<compile_context>
chip_gen: v7x
topology: tpu7x:2x2x1
jax: 0.10.0
libtpu: 0.0.40
codegen_flags: <defaults>
</compile_context>

<pallas_src>
import functools

import jax
import jax.numpy as jnp
from jax.experimental import pallas as pl
from jax.experimental.pallas import tpu as pltpu


_HEAD_N = 128      # lane-dense fused/padded head output width (>= n_cls + emb)
_VOX_CHUNK = 16    # points per masked-max chunk in the fused voxel kernel


def _round_up(x, m):
    return ((x + m - 1) // m) * m


def _multi_tensorcore():
    """True on chips with >1 TensorCore per chip (v7x-class)."""
    try:
        kind = jax.devices()[0].device_kind.lower()
    except Exception:
        return False
    return ("v7" in kind) or ("7x" in kind)


# ---------------------------------------------------------------------------
# Kernel 1: fully fused FIDNet-lite range stem.
#   conv3x3(ReLU) -> conv3x3(ReLU) -> fused (logits || embeds) 1x1 head.
#   Each conv = im2col staging into VMEM scratch + ONE MXU dot.
# ---------------------------------------------------------------------------
def _range_stem_kernel(x_ref, w1_ref, b1_ref, w2_ref, b2_ref, wh_ref, bh_ref,
                       o_ref, pad1_ref, pad2_ref, col1_ref, col2_ref,
                       *, H, W, pad, n_imgs):
    R = H * W
    c_in = x_ref.shape[-1]
    c_mid = w1_ref.shape[-1]

    # dw=+-1 column masks, shared by both convs (zero halo covers dh=+-1).
    r = jax.lax.broadcasted_iota(jnp.int32, (R, 1), 0)
    w_idx = r % W
    mask_l = w_idx >= 1          # valid source taps for dw = -1
    mask_r = w_idx < (W - 1)     # valid source taps for dw = +1

    # Zero only the aligned halo bands once per grid step; the middle R rows
    # are fully overwritten by the per-image staging stores below.
    zeros1 = jnp.zeros((pad, c_in), jnp.float32)
    zeros2 = jnp.zeros((pad, c_mid), jnp.float32)
    pad1_ref[0:pad, :] = zeros1
    pad1_ref[pad + R:pad + R + pad, :] = zeros1
    pad2_ref[0:pad, :] = zeros2
    pad2_ref[pad + R:pad + R + pad, :] = zeros2

    def conv3x3(src_ref, col_ref, w_ref, b_ref, c):
        # Stage the 9 shifted (+dw-masked) taps into the im2col scratch, then
        # contract with the pre-reshaped (9*c, cout) weight in ONE MXU dot.
        k = 0
        for dh in (-1, 0, 1):
            for dw in (-1, 0, 1):
                off = pad + dh * W + dw
                xs = src_ref[off:off + R, :]
                if dw == -1:
                    xs = jnp.where(mask_l, xs, 0.0)
                elif dw == 1:
                    xs = jnp.where(mask_r, xs, 0.0)
                col_ref[:, k * c:(k + 1) * c] = xs
                k += 1
        y = jnp.dot(col_ref[...].astype(jnp.bfloat16),
                    w_ref[...].astype(jnp.bfloat16),
                    preferred_element_type=jnp.float32)
        return jnp.maximum(y + b_ref[...], 0.0)

    for img in range(n_imgs):
        # conv1
        pad1_ref[pad:pad + R, :] = x_ref[img]
        h1 = conv3x3(pad1_ref, col1_ref, w1_ref, b1_ref, c_in)      # (R, c_mid)
        # conv2
        pad2_ref[pad:pad + R, :] = h1
        h2 = conv3x3(pad2_ref, col2_ref, w2_ref, b2_ref, c_mid)     # (R, c_mid)
        # fused 1x1 heads: [logits || embeds || 0-pad] -> 128-lane dense store
        o_ref[img] = (jnp.dot(h2.astype(jnp.bfloat16),
                              wh_ref[...].astype(jnp.bfloat16),
                              preferred_element_type=jnp.float32) + bh_ref[...])


def range_stem(x_flat, w1, b1, w2, b2, wh, bh, *, H, W):
    B, R, cin_p = x_flat.shape
    c1 = w1.shape[-1]
    pad = _round_up(W + 1, 8)
    # v7x (2 TensorCores): one image per grid step, grid marked "parallel".
    # v5e / v6e (single TC): collapse the batch into a single grid step.
    n_imgs = 1 if _multi_tensorcore() else B
    kernel = functools.partial(_range_stem_kernel, H=H, W=W, pad=pad,
                               n_imgs=n_imgs)
    return pl.pallas_call(
        kernel,
        out_shape=jax.ShapeDtypeStruct((B, R, _HEAD_N), jnp.float32),
        grid=(B // n_imgs,),
        in_specs=[
            pl.BlockSpec((n_imgs, R, cin_p), lambda b: (b, 0, 0)),
            pl.BlockSpec(w1.shape, lambda b: (0, 0)),
            pl.BlockSpec(b1.shape, lambda b: (0, 0)),
            pl.BlockSpec(w2.shape, lambda b: (0, 0)),
            pl.BlockSpec(b2.shape, lambda b: (0, 0)),
            pl.BlockSpec(wh.shape, lambda b: (0, 0)),
            pl.BlockSpec(bh.shape, lambda b: (0, 0)),
        ],
        out_specs=pl.BlockSpec((n_imgs, R, _HEAD_N), lambda b: (b, 0, 0)),
        scratch_shapes=[
            pltpu.VMEM((R + 2 * pad, cin_p), jnp.float32),   # conv1 halo buf
            pltpu.VMEM((R + 2 * pad, c1), jnp.float32),      # conv2 halo buf
            pltpu.VMEM((R, 9 * cin_p), jnp.float32),         # conv1 im2col
            pltpu.VMEM((R, 9 * c1), jnp.float32),            # conv2 im2col
        ],
        compiler_params=pltpu.CompilerParams(
            dimension_semantics=("parallel",)),
    )(x_flat, w1, b1, w2, b2, wh, bh)


# ---------------------------------------------------------------------------
# Kernel 2: fully fused Cylinder3D-lite voxel branch.
#   mlp1 -> mlp2 -> embeds head, dense scatter-max voxelization (in VMEM),
#   voxel logits head.  One pallas_call, no intermediate HBM round trips.
# ---------------------------------------------------------------------------
def _voxel_kernel(feats_ref, coord_ref, w1_ref, b1_ref, w2_ref, b2_ref,
                  we_ref, be_ref, wl_ref, bl_ref, e_ref, l_ref,
                  *, grid_size, n_vox, chunk):
    gx, gy, gz = grid_size

    def mm(x, w_ref):
        return jnp.dot(x.astype(jnp.bfloat16), w_ref[...].astype(jnp.bfloat16),
                       preferred_element_type=jnp.float32)

    # ---- per-point MLP chain (stays in VMEM / vregs) ----
    h1 = jnp.maximum(mm(feats_ref[...], w1_ref) + b1_ref[...], 0.0)
    h2 = jnp.maximum(mm(h1, w2_ref) + b2_ref[...], 0.0)          # (N, C), >= 0

    # per-point embeds head: lane-dense (N, 128) slab, sliced in the wrapper
    e_ref[...] = mm(h2, we_ref) + be_ref[...]

    # ---- dense scatter-max voxelization ----
    c = coord_ref[...]                                            # (N, 4) int32
    flat = (((c[:, 0:1] * gx + c[:, 1:2]) * gy + c[:, 2:3]) * gz
            + c[:, 3:4])                                          # (N, 1)
    vox_iota = jax.lax.broadcasted_iota(jnp.int32, (1, n_vox), 1)  # (1, V)

    n_pts, n_ch = h2.shape
    vox = jnp.zeros((n_vox, n_ch), jnp.float32)
    for i in range(0, n_pts, chunk):
        idx_c = flat[i:i + chunk, :]                              # (chunk, 1)
        hc = h2[i:i + chunk, :]                                   # (chunk, C)
        # {0,1} match mask; multiply == where(match, h, 0) because h2 >= 0.
        match_f = (idx_c == vox_iota).astype(jnp.float32)         # (chunk, V)
        cand = match_f[:, :, None] * hc[:, None, :]               # (chunk,V,C)
        vox = jnp.maximum(vox, jnp.max(cand, axis=0))
    # Empty voxels stay 0 == the torch scatter-max -inf -> 0 cleanup.

    # voxel logits head: lane-dense (V, 128) slab, sliced in the wrapper
    l_ref[...] = mm(vox, wl_ref) + bl_ref[...]


def voxel_fused(feats, coords, w1, b1, w2, b2, we, be, wl, bl, *,
                grid_size, n_vox):
    N, F = feats.shape
    kernel = functools.partial(_voxel_kernel, grid_size=grid_size,
                               n_vox=n_vox, chunk=_VOX_CHUNK)
    return pl.pallas_call(
        kernel,
        out_shape=(jax.ShapeDtypeStruct((N, _HEAD_N), jnp.float32),
                   jax.ShapeDtypeStruct((n_vox, _HEAD_N), jnp.float32)),
        grid=(1,),
        in_specs=[
            pl.BlockSpec((N, F), lambda i: (0, 0)),
            pl.BlockSpec(coords.shape, lambda i: (0, 0)),
            pl.BlockSpec(w1.shape, lambda i: (0, 0)),
            pl.BlockSpec(b1.shape, lambda i: (0, 0)),
            pl.BlockSpec(w2.shape, lambda i: (0, 0)),
            pl.BlockSpec(b2.shape, lambda i: (0, 0)),
            pl.BlockSpec(we.shape, lambda i: (0, 0)),
            pl.BlockSpec(be.shape, lambda i: (0, 0)),
            pl.BlockSpec(wl.shape, lambda i: (0, 0)),
            pl.BlockSpec(bl.shape, lambda i: (0, 0)),
        ],
        out_specs=(pl.BlockSpec((N, _HEAD_N), lambda i: (0, 0)),
                   pl.BlockSpec((n_vox, _HEAD_N), lambda i: (0, 0))),
        compiler_params=pltpu.CompilerParams(
            vmem_limit_bytes=32 * 1024 * 1024),
    )(feats, coords, w1, b1, w2, b2, we, be, wl, bl)


# ---------------------------------------------------------------------------
# Parameters (all static layout plumbing done here, once)
# ---------------------------------------------------------------------------
class Param:
    def __init__(self):
        self.grid_size = (8, 8, 4)         # cylinder voxel grid (small)
        self.n_classes = 8
        self.feat_dimension = 9            # per-point input features
        self.feat_compression = 16
        self.output_feature = 64           # point feature net output dim
        self.init_size = 16                # base channel count
        self.embeds_dim = 32
        self.rings = 16                    # range image height
        self.horizontal_resolution = 16    # range image width
        self.range_in_channels = 5
        self.batch_size = 2
        self.ignore_index = 255


def _dense_init(key, fan_in, fan_out, pad_out=None):
    kw, kb = jax.random.split(key)
    w = jax.random.normal(kw, (fan_in, fan_out), jnp.float32) / jnp.sqrt(
        jnp.float32(fan_in))
    b = 0.01 * jax.random.normal(kb, (1, fan_out), jnp.float32)
    if pad_out is not None:
        w = jnp.pad(w, ((0, 0), (0, pad_out - fan_out)))
        b = jnp.pad(b, ((0, 0), (0, pad_out - fan_out)))
    return w, b


def _conv3x3_init(key, cin, cin_pad, cout):
    kw, kb = jax.random.split(key)
    w = jax.random.normal(kw, (9, cin, cout), jnp.float32) / jnp.sqrt(
        jnp.float32(9 * cin))
    w = jnp.pad(w, ((0, 0), (0, cin_pad - cin), (0, 0)))   # zero pad channels
    w = w.reshape(9 * cin_pad, cout)                       # im2col layout
    b = 0.01 * jax.random.normal(kb, (1, cout), jnp.float32)
    return w, b


def init_params(key, p: Param):
    keys = jax.random.split(key, 8)
    c = p.init_size
    cin_p = _round_up(p.range_in_channels, 8)
    feat_p = _round_up(p.feat_dimension, 8)
    params = {}
    # ---- range branch (FIDNet-lite) ----
    params["r_conv1"] = _conv3x3_init(keys[0], p.range_in_channels, cin_p, c)
    params["r_conv2"] = _conv3x3_init(keys[1], c, c, c)
    wl, bl = _dense_init(keys[2], c, p.n_classes)
    wem, bem = _dense_init(keys[3], c, p.embeds_dim)
    nh = p.n_classes + p.embeds_dim
    assert nh <= _HEAD_N
    wh = jnp.zeros((c, _HEAD_N), jnp.float32).at[:, :nh].set(
        jnp.concatenate([wl, wem], axis=1))
    bh = jnp.zeros((1, _HEAD_N), jnp.float32).at[:, :nh].set(
        jnp.concatenate([bl, bem], axis=1))
    params["r_heads"] = (wh, bh)
    # ---- voxel branch (Cylinder3D-lite) ----
    w1, b1 = _dense_init(keys[4], p.feat_dimension, 64)
    params["v_mlp1"] = (jnp.pad(w1, ((0, feat_p - p.feat_dimension), (0, 0))), b1)
    params["v_mlp2"] = _dense_init(keys[5], 64, p.output_feature)
    params["v_logit"] = _dense_init(keys[6], p.output_feature, p.n_classes,
                                    pad_out=_HEAD_N)
    params["v_embed"] = _dense_init(keys[7], p.output_feature, p.embeds_dim,
                                    pad_out=_HEAD_N)
    return params


# ---------------------------------------------------------------------------
# Branches
# ---------------------------------------------------------------------------
@functools.partial(jax.jit, static_argnums=(2,))
def range_branch(params, range_image, p: Param):
    """FIDNet-lite.  Input NCHW (B,5,H,W); outputs NCHW logits + embeds."""
    B, Cin, H, W = range_image.shape
    w1, b1 = params["r_conv1"]
    w2, b2 = params["r_conv2"]
    wh, bh = params["r_heads"]
    cin_p = w1.shape[0] // 9
    # layout plumbing to channel-last, flattened, channel-padded input
    x = jnp.transpose(range_image, (0, 2, 3, 1)).reshape(B, H * W, Cin)
    x = jnp.pad(x, ((0, 0), (0, 0), (0, cin_p - Cin)))
    out = range_stem(x, w1, b1, w2, b2, wh, bh, H=H, W=W)   # (B, H*W, 128)
    nc, ne = p.n_classes, p.embeds_dim
    logits = out[:, :, :nc].reshape(B, H, W, nc).transpose(0, 3, 1, 2)
    embeds = out[:, :, nc:nc + ne].reshape(B, H, W, ne).transpose(0, 3, 1, 2)
    return logits, embeds


@functools.partial(jax.jit, static_argnums=(3,))
def voxel_branch(params, point_feature, point_coord, p: Param):
    """Cylinder3D-lite.  Returns voxel logits (B,n_classes,gx,gy,gz) and
    per-point embeds (N, E) — one fused pallas_call for the whole chain."""
    gx, gy, gz = p.grid_size
    B = p.batch_size
    w1, b1 = params["v_mlp1"]
    w2, b2 = params["v_mlp2"]
    we, be = params["v_embed"]
    wl, bl = params["v_logit"]
    fp = w1.shape[0]
    feats = jnp.pad(point_feature, ((0, 0), (0, fp - point_feature.shape[1])))
    n_vox = B * gx * gy * gz

    e_pad, l_pad = voxel_fused(feats, point_coord, w1, b1, w2, b2, we, be,
                               wl, bl, grid_size=p.grid_size, n_vox=n_vox)

    embeds = e_pad[:, :p.embeds_dim]
    vox_logits = l_pad[:, :p.n_classes].reshape(B, gx, gy, gz, p.n_classes)
    vox_logits = vox_logits.transpose(0, 4, 1, 2, 3)
    return vox_logits, embeds


def models_forward(params, batch_info, branch_name, p: Param):
    assert branch_name in ("voxel", "range")
    if branch_name == "range":
        return range_branch(params, batch_info["range_image"], p)
    return voxel_branch(params, batch_info["point_feature"],
                        batch_info["point_coord"], p)


# ---------------------------------------------------------------------------
# Main
# ---------------------------------------------------------------------------
if __name__ == "__main__":
    p = Param()
    key = jax.random.PRNGKey(0)
    k_param, k_img, k_feat, k_coord = jax.random.split(key, 4)

    params = init_params(k_param, p)

    n_points = 256
    kc = jax.random.split(k_coord, 4)
    batch = {
        "range_image": jax.random.normal(
            k_img,
            (p.batch_size, p.range_in_channels, p.rings, p.horizontal_resolution),
            jnp.float32,
        ),
        "point_feature": jax.random.normal(
            k_feat, (n_points, p.feat_dimension), jnp.float32
        ),
        "point_coord": jnp.concatenate(
            [
                jax.random.randint(kc[0], (n_points, 1), 0, p.batch_size),
                jax.random.randint(kc[1], (n_points, 1), 0, p.grid_size[0]),
                jax.random.randint(kc[2], (n_points, 1), 0, p.grid_size[1]),
                jax.random.randint(kc[3], (n_points, 1), 0, p.grid_size[2]),
            ],
            axis=1,
        ).astype(jnp.int32),
    }

    r_logits, r_embeds = models_forward(params, batch, "range", p)
    v_logits, v_embeds = models_forward(params, batch, "voxel", p)

    jax.block_until_ready((r_logits, r_embeds, v_logits, v_embeds))

    assert r_logits.shape == (p.batch_size, p.n_classes, p.rings, p.horizontal_resolution)
    assert r_embeds.shape == (p.batch_size, p.embeds_dim, p.rings, p.horizontal_resolution)
    assert v_logits.shape == (p.batch_size, p.n_classes, *p.grid_size)
    assert v_embeds.shape == (n_points, p.embeds_dim)

    print("KERNEL_OK")
</pallas_src>

<mosaic_0001>
module attributes {stable_mosaic.version = 11 : i64} {
  func.func @_range_stem_kernel(%arg0: i32, %arg1: memref<2x256x8xf32, #tpu.memory_space<vmem>>, %arg2: memref<72x16xf32, #tpu.memory_space<vmem>>, %arg3: memref<1x16xf32, #tpu.memory_space<vmem>>, %arg4: memref<144x16xf32, #tpu.memory_space<vmem>>, %arg5: memref<1x16xf32, #tpu.memory_space<vmem>>, %arg6: memref<16x128xf32, #tpu.memory_space<vmem>>, %arg7: memref<1x128xf32, #tpu.memory_space<vmem>>, %arg8: memref<2x256x128xf32, #tpu.memory_space<vmem>>, %arg9: memref<304x8xf32, #tpu.memory_space<vmem>>, %arg10: memref<304x16xf32, #tpu.memory_space<vmem>>, %arg11: memref<256x72xf32, #tpu.memory_space<vmem>>, %arg12: memref<256x144xf32, #tpu.memory_space<vmem>>) attributes {dimension_semantics = [#tpu.dimension_semantics<parallel>], iteration_bounds = array<i64: 1>, scalar_prefetch = 0 : i64, scratch_operands = 4 : i64, tpu.core_type = #tpu.core_type<tc>, window_params = [{transform_indices = @transform_0, window_bounds = array<i64: 2, 256, 8>}, {pipeline_mode = #tpu.pipeline_mode<synchronous>, transform_indices = @transform_1, window_bounds = array<i64: 72, 16>}, {pipeline_mode = #tpu.pipeline_mode<synchronous>, transform_indices = @transform_2, window_bounds = array<i64: 1, 16>}, {pipeline_mode = #tpu.pipeline_mode<synchronous>, transform_indices = @transform_3, window_bounds = array<i64: 144, 16>}, {pipeline_mode = #tpu.pipeline_mode<synchronous>, transform_indices = @transform_4, window_bounds = array<i64: 1, 16>}, {pipeline_mode = #tpu.pipeline_mode<synchronous>, transform_indices = @transform_5, window_bounds = array<i64: 16, 128>}, {pipeline_mode = #tpu.pipeline_mode<synchronous>, transform_indices = @transform_6, window_bounds = array<i64: 1, 128>}, {transform_indices = @transform_7, window_bounds = array<i64: 2, 256, 128>}]} {
    %0 = tpu.iota {dimensions = array<i32: 0>} : vector<256x1xi32>
    %c16_i32 = arith.constant 16 : i32
    %c0_i32 = arith.constant 0 : i32
    %1 = arith.cmpi eq, %c16_i32, %c0_i32 : i32
    %c1_i32 = arith.constant 1 : i32
    %2 = arith.select %1, %c1_i32, %c16_i32 : i32
    %3 = vector.broadcast %2 : i32 to vector<256x1xi32>
    %4 = arith.remsi %0, %3 : vector<256x1xi32>
    %c0_i32_0 = arith.constant 0 : i32
    %5 = vector.broadcast %c0_i32_0 : i32 to vector<256x1xi32>
    %6 = arith.cmpi ne, %4, %5 : vector<256x1xi32>
    %c0_i32_1 = arith.constant 0 : i32
    %7 = vector.broadcast %c0_i32_1 : i32 to vector<256x1xi32>
    %8 = arith.cmpi slt, %4, %7 : vector<256x1xi32>
    %c0_i32_2 = arith.constant 0 : i32
    %9 = arith.cmpi slt, %2, %c0_i32_2 : i32
    %10 = vector.broadcast %9 : i1 to vector<256x1xi1>
    %11 = vector.broadcast %10 : vector<256x1xi1> to vector<256x1xi1>
    %12 = arith.xori %8, %11 : vector<256x1xi1>
    %13 = arith.andi %12, %6 : vector<256x1xi1>
    %14 = vector.broadcast %2 : i32 to vector<256x1xi32>
    %15 = arith.addi %4, %14 : vector<256x1xi32>
    %16 = arith.select %13, %15, %4 : vector<256x1xi1>, vector<256x1xi32>
    %c1_i32_3 = arith.constant 1 : i32
    %17 = vector.broadcast %c1_i32_3 : i32 to vector<256x1xi32>
    %18 = arith.cmpi sge, %16, %17 : vector<256x1xi32>
    %c15_i32 = arith.constant 15 : i32
    %19 = vector.broadcast %c15_i32 : i32 to vector<256x1xi32>
    %20 = arith.cmpi slt, %16, %19 : vector<256x1xi32>
    %cst = arith.constant 0.000000e+00 : f32
    %21 = vector.broadcast %cst : f32 to vector<24x8xf32>
    %cst_4 = arith.constant 0.000000e+00 : f32
    %22 = vector.broadcast %cst_4 : f32 to vector<24x16xf32>
    %c0 = arith.constant 0 : index
    %c0_5 = arith.constant 0 : index
    %23 = vector.load %arg9[%c0, %c0_5] : memref<304x8xf32, #tpu.memory_space<vmem>>, vector<24x8xf32>
    tpu.vector_store %arg9[%c0, %c0_5], %21 {strides = array<i32>} : memref<304x8xf32, #tpu.memory_space<vmem>>, vector<24x8xf32>,
    %c280 = arith.constant 280 : index
    %c0_6 = arith.constant 0 : index
    %24 = vector.load %arg9[%c280, %c0_6] : memref<304x8xf32, #tpu.memory_space<vmem>>, vector<24x8xf32>
    tpu.vector_store %arg9[%c280, %c0_6], %21 {strides = array<i32>} : memref<304x8xf32, #tpu.memory_space<vmem>>, vector<24x8xf32>,
    %c0_7 = arith.constant 0 : index
    %c0_8 = arith.constant 0 : index
    %25 = vector.load %arg10[%c0_7, %c0_8] : memref<304x16xf32, #tpu.memory_space<vmem>>, vector<24x16xf32>
    tpu.vector_store %arg10[%c0_7, %c0_8], %22 {strides = array<i32>} : memref<304x16xf32, #tpu.memory_space<vmem>>, vector<24x16xf32>,
    %c280_9 = arith.constant 280 : index
    %c0_10 = arith.constant 0 : index
    %26 = vector.load %arg10[%c280_9, %c0_10] : memref<304x16xf32, #tpu.memory_space<vmem>>, vector<24x16xf32>
    tpu.vector_store %arg10[%c280_9, %c0_10], %22 {strides = array<i32>} : memref<304x16xf32, #tpu.memory_space<vmem>>, vector<24x16xf32>,
    %c0_11 = arith.constant 0 : index
    %c0_12 = arith.constant 0 : index
    %c0_13 = arith.constant 0 : index
    %27 = vector.load %arg1[%c0_11, %c0_12, %c0_13] : memref<2x256x8xf32, #tpu.memory_space<vmem>>, vector<1x256x8xf32>
    %28 = vector.shape_cast %27 : vector<1x256x8xf32> to vector<256x8xf32>
    %c24 = arith.constant 24 : index
    %c0_14 = arith.constant 0 : index
    %29 = vector.load %arg9[%c24, %c0_14] : memref<304x8xf32, #tpu.memory_space<vmem>>, vector<256x8xf32>
    tpu.vector_store %arg9[%c24, %c0_14], %28 {strides = array<i32>} : memref<304x8xf32, #tpu.memory_space<vmem>>, vector<256x8xf32>,
    %c7 = arith.constant 7 : index
    %c0_15 = arith.constant 0 : index
    %30 = vector.load %arg9[%c7, %c0_15] : memref<304x8xf32, #tpu.memory_space<vmem>>, vector<256x8xf32>
    %cst_16 = arith.constant 0.000000e+00 : f32
    %31 = vector.shape_cast %18 : vector<256x1xi1> to vector<256x1xi1>
    %32 = vector.broadcast %31 : vector<256x1xi1> to vector<256x8xi1>
    %33 = vector.broadcast %cst_16 : f32 to vector<256x8xf32>
    %34 = arith.select %32, %30, %33 : vector<256x8xi1>, vector<256x8xf32>
    %c0_17 = arith.constant 0 : index
    %c0_18 = arith.constant 0 : index
    %35 = vector.load %arg11[%c0_17, %c0_18] : memref<256x72xf32, #tpu.memory_space<vmem>>, vector<256x8xf32>
    tpu.vector_store %arg11[%c0_17, %c0_18], %34 {strides = array<i32>} : memref<256x72xf32, #tpu.memory_space<vmem>>, vector<256x8xf32>,
    %c8 = arith.constant 8 : index
    %c0_19 = arith.constant 0 : index
    %36 = vector.load %arg9[%c8, %c0_19] : memref<304x8xf32, #tpu.memory_space<vmem>>, vector<256x8xf32>
    %c0_20 = arith.constant 0 : index
    %c8_21 = arith.constant 8 : index
    %37 = vector.load %arg11[%c0_20, %c8_21] : memref<256x72xf32, #tpu.memory_space<vmem>>, vector<256x8xf32>
    tpu.vector_store %arg11[%c0_20, %c8_21], %36 {strides = array<i32>} : memref<256x72xf32, #tpu.memory_space<vmem>>, vector<256x8xf32>,
    %c9 = arith.constant 9 : index
    %c0_22 = arith.constant 0 : index
    %38 = vector.load %arg9[%c9, %c0_22] : memref<304x8xf32, #tpu.memory_space<vmem>>, vector<256x8xf32>
    %cst_23 = arith.constant 0.000000e+00 : f32
    %39 = vector.shape_cast %20 : vector<256x1xi1> to vector<256x1xi1>
    %40 = vector.broadcast %39 : vector<256x1xi1> to vector<256x8xi1>
    %41 = vector.broadcast %cst_23 : f32 to vector<256x8xf32>
    %42 = arith.select %40, %38, %41 : vector<256x8xi1>, vector<256x8xf32>
    %c0_24 = arith.constant 0 : index
    %c16 = arith.constant 16 : index
    %43 = vector.load %arg11[%c0_24, %c16] : memref<256x72xf32, #tpu.memory_space<vmem>>, vector<256x8xf32>
    tpu.vector_store %arg11[%c0_24, %c16], %42 {strides = array<i32>} : memref<256x72xf32, #tpu.memory_space<vmem>>, vector<256x8xf32>,
    %c23 = arith.constant 23 : index
    %c0_25 = arith.constant 0 : index
    %44 = vector.load %arg9[%c23, %c0_25] : memref<304x8xf32, #tpu.memory_space<vmem>>, vector<256x8xf32>
    %cst_26 = arith.constant 0.000000e+00 : f32
    %45 = vector.shape_cast %18 : vector<256x1xi1> to vector<256x1xi1>
    %46 = vector.broadcast %45 : vector<256x1xi1> to vector<256x8xi1>
    %47 = vector.broadcast %cst_26 : f32 to vector<256x8xf32>
    %48 = arith.select %46, %44, %47 : vector<256x8xi1>, vector<256x8xf32>
    %c0_27 = arith.constant 0 : index
    %c24_28 = arith.constant 24 : index
    %49 = vector.load %arg11[%c0_27, %c24_28] : memref<256x72xf32, #tpu.memory_space<vmem>>, vector<256x8xf32>
    tpu.vector_store %arg11[%c0_27, %c24_28], %48 {strides = array<i32>} : memref<256x72xf32, #tpu.memory_space<vmem>>, vector<256x8xf32>,
    %c24_29 = arith.constant 24 : index
    %c0_30 = arith.constant 0 : index
    %50 = vector.load %arg9[%c24_29, %c0_30] : memref<304x8xf32, #tpu.memory_space<vmem>>, vector<256x8xf32>
    %c0_31 = arith.constant 0 : index
    %c32 = arith.constant 32 : index
    %51 = vector.load %arg11[%c0_31, %c32] : memref<256x72xf32, #tpu.memory_space<vmem>>, vector<256x8xf32>
    tpu.vector_store %arg11[%c0_31, %c32], %50 {strides = array<i32>} : memref<256x72xf32, #tpu.memory_space<vmem>>, vector<256x8xf32>,
    %c25 = arith.constant 25 : index
    %c0_32 = arith.constant 0 : index
    %52 = vector.load %arg9[%c25, %c0_32] : memref<304x8xf32, #tpu.memory_space<vmem>>, vector<256x8xf32>
    %cst_33 = arith.constant 0.000000e+00 : f32
    %53 = vector.shape_cast %20 : vector<256x1xi1> to vector<256x1xi1>
    %54 = vector.broadcast %53 : vector<256x1xi1> to vector<256x8xi1>
    %55 = vector.broadcast %cst_33 : f32 to vector<256x8xf32>
    %56 = arith.select %54, %52, %55 : vector<256x8xi1>, vector<256x8xf32>
    %c0_34 = arith.constant 0 : index
    %c40 = arith.constant 40 : index
    %57 = vector.load %arg11[%c0_34, %c40] : memref<256x72xf32, #tpu.memory_space<vmem>>, vector<256x8xf32>
    tpu.vector_store %arg11[%c0_34, %c40], %56 {strides = array<i32>} : memref<256x72xf32, #tpu.memory_space<vmem>>, vector<256x8xf32>,
    %c39 = arith.constant 39 : index
    %c0_35 = arith.constant 0 : index
    %58 = vector.load %arg9[%c39, %c0_35] : memref<304x8xf32, #tpu.memory_space<vmem>>, vector<256x8xf32>
    %cst_36 = arith.constant 0.000000e+00 : f32
    %59 = vector.shape_cast %18 : vector<256x1xi1> to vector<256x1xi1>
    %60 = vector.broadcast %59 : vector<256x1xi1> to vector<256x8xi1>
    %61 = vector.broadcast %cst_36 : f32 to vector<256x8xf32>
    %62 = arith.select %60, %58, %61 : vector<256x8xi1>, vector<256x8xf32>
    %c0_37 = arith.constant 0 : index
    %c48 = arith.constant 48 : index
    %63 = vector.load %arg11[%c0_37, %c48] : memref<256x72xf32, #tpu.memory_space<vmem>>, vector<256x8xf32>
    tpu.vector_store %arg11[%c0_37, %c48], %62 {strides = array<i32>} : memref<256x72xf32, #tpu.memory_space<vmem>>, vector<256x8xf32>,
    %c40_38 = arith.constant 40 : index
    %c0_39 = arith.constant 0 : index
    %64 = vector.load %arg9[%c40_38, %c0_39] : memref<304x8xf32, #tpu.memory_space<vmem>>, vector<256x8xf32>
    %c0_40 = arith.constant 0 : index
    %c56 = arith.constant 56 : index
    %65 = vector.load %arg11[%c0_40, %c56] : memref<256x72xf32, #tpu.memory_space<vmem>>, vector<256x8xf32>
    tpu.vector_store %arg11[%c0_40, %c56], %64 {strides = array<i32>} : memref<256x72xf32, #tpu.memory_space<vmem>>, vector<256x8xf32>,
    %c41 = arith.constant 41 : index
    %c0_41 = arith.constant 0 : index
    %66 = vector.load %arg9[%c41, %c0_41] : memref<304x8xf32, #tpu.memory_space<vmem>>, vector<256x8xf32>
    %cst_42 = arith.constant 0.000000e+00 : f32
    %67 = vector.shape_cast %20 : vector<256x1xi1> to vector<256x1xi1>
    %68 = vector.broadcast %67 : vector<256x1xi1> to vector<256x8xi1>
    %69 = vector.broadcast %cst_42 : f32 to vector<256x8xf32>
    %70 = arith.select %68, %66, %69 : vector<256x8xi1>, vector<256x8xf32>
    %c0_43 = arith.constant 0 : index
    %c64 = arith.constant 64 : index
    %71 = vector.load %arg11[%c0_43, %c64] : memref<256x72xf32, #tpu.memory_space<vmem>>, vector<256x8xf32>
    tpu.vector_store %arg11[%c0_43, %c64], %70 {strides = array<i32>} : memref<256x72xf32, #tpu.memory_space<vmem>>, vector<256x8xf32>,
    %c0_44 = arith.constant 0 : index
    %c0_45 = arith.constant 0 : index
    %72 = vector.load %arg11[%c0_44, %c0_45] : memref<256x72xf32, #tpu.memory_space<vmem>>, vector<256x72xf32>
    %73 = arith.truncf %72 : vector<256x72xf32> to vector<256x72xbf16>
    %c0_46 = arith.constant 0 : index
    %c0_47 = arith.constant 0 : index
    %74 = vector.load %arg2[%c0_46, %c0_47] : memref<72x16xf32, #tpu.memory_space<vmem>>, vector<72x16xf32>
    %75 = arith.truncf %74 : vector<72x16xf32> to vector<72x16xbf16>
    %cst_48 = arith.constant dense<0.000000e+00> : vector<256x16xf32>
    %76 = tpu.matmul %73, %75, %cst_48 {dimension_numbers = #tpu.dot_dimension_numbers<[1], [0], [0], [1], [0, 0, 1, 1], [], []>} : vector<256x72xbf16>, vector<72x16xbf16>, vector<256x16xf32> -> vector<256x16xf32>
    %c0_49 = arith.constant 0 : index
    %c0_50 = arith.constant 0 : index
    %77 = vector.load %arg3[%c0_49, %c0_50] : memref<1x16xf32, #tpu.memory_space<vmem>>, vector<1x16xf32>
    %78 = vector.broadcast %77 : vector<1x16xf32> to vector<256x16xf32>
    %79 = arith.addf %76, %78 : vector<256x16xf32>
    %cst_51 = arith.constant 0.000000e+00 : f32
    %80 = vector.broadcast %cst_51 : f32 to vector<256x16xf32>
    %81 = arith.maximumf %79, %80 : vector<256x16xf32>
    %c24_52 = arith.constant 24 : index
    %c0_53 = arith.constant 0 : index
    %82 = vector.load %arg10[%c24_52, %c0_53] : memref<304x16xf32, #tpu.memory_space<vmem>>, vector<256x16xf32>
    tpu.vector_store %arg10[%c24_52, %c0_53], %81 {strides = array<i32>} : memref<304x16xf32, #tpu.memory_space<vmem>>, vector<256x16xf32>,
    %c7_54 = arith.constant 7 : index
    %c0_55 = arith.constant 0 : index
    %83 = vector.load %arg10[%c7_54, %c0_55] : memref<304x16xf32, #tpu.memory_space<vmem>>, vector<256x16xf32>
    %cst_56 = arith.constant 0.000000e+00 : f32
    %84 = vector.shape_cast %18 : vector<256x1xi1> to vector<256x1xi1>
    %85 = vector.broadcast %84 : vector<256x1xi1> to vector<256x16xi1>
    %86 = vector.broadcast %cst_56 : f32 to vector<256x16xf32>
    %87 = arith.select %85, %83, %86 : vector<256x16xi1>, vector<256x16xf32>
    %c0_57 = arith.constant 0 : index
    %c0_58 = arith.constant 0 : index
    %88 = vector.load %arg12[%c0_57, %c0_58] : memref<256x144xf32, #tpu.memory_space<vmem>>, vector<256x16xf32>
    tpu.vector_store %arg12[%c0_57, %c0_58], %87 {strides = array<i32>} : memref<256x144xf32, #tpu.memory_space<vmem>>, vector<256x16xf32>,
    %c8_59 = arith.constant 8 : index
    %c0_60 = arith.constant 0 : index
    %89 = vector.load %arg10[%c8_59, %c0_60] : memref<304x16xf32, #tpu.memory_space<vmem>>, vector<256x16xf32>
    %c0_61 = arith.constant 0 : index
    %c16_62 = arith.constant 16 : index
    %90 = vector.load %arg12[%c0_61, %c16_62] : memref<256x144xf32, #tpu.memory_space<vmem>>, vector<256x16xf32>
    tpu.vector_store %arg12[%c0_61, %c16_62], %89 {strides = array<i32>} : memref<256x144xf32, #tpu.memory_space<vmem>>, vector<256x16xf32>,
    %c9_63 = arith.constant 9 : index
    %c0_64 = arith.constant 0 : index
    %91 = vector.load %arg10[%c9_63, %c0_64] : memref<304x16xf32, #tpu.memory_space<vmem>>, vector<256x16xf32>
    %cst_65 = arith.constant 0.000000e+00 : f32
    %92 = vector.shape_cast %20 : vector<256x1xi1> to vector<256x1xi1>
    %93 = vector.broadcast %92 : vector<256x1xi1> to vector<256x16xi1>
    %94 = vector.broadcast %cst_65 : f32 to vector<256x16xf32>
    %95 = arith.select %93, %91, %94 : vector<256x16xi1>, vector<256x16xf32>
    %c0_66 = arith.constant 0 : index
    %c32_67 = arith.constant 32 : index
    %96 = vector.load %arg12[%c0_66, %c32_67] : memref<256x144xf32, #tpu.memory_space<vmem>>, vector<256x16xf32>
    tpu.vector_store %arg12[%c0_66, %c32_67], %95 {strides = array<i32>} : memref<256x144xf32, #tpu.memory_space<vmem>>, vector<256x16xf32>,
    %c23_68 = arith.constant 23 : index
    %c0_69 = arith.constant 0 : index
    %97 = vector.load %arg10[%c23_68, %c0_69] : memref<304x16xf32, #tpu.memory_space<vmem>>, vector<256x16xf32>
    %cst_70 = arith.constant 0.000000e+00 : f32
    %98 = vector.shape_cast %18 : vector<256x1xi1> to vector<256x1xi1>
    %99 = vector.broadcast %98 : vector<256x1xi1> to vector<256x16xi1>
    %100 = vector.broadcast %cst_70 : f32 to vector<256x16xf32>
    %101 = arith.select %99, %97, %100 : vector<256x16xi1>, vector<256x16xf32>
    %c0_71 = arith.constant 0 : index
    %c48_72 = arith.constant 48 : index
    %102 = vector.load %arg12[%c0_71, %c48_72] : memref<256x144xf32, #tpu.memory_space<vmem>>, vector<256x16xf32>
    tpu.vector_store %arg12[%c0_71, %c48_72], %101 {strides = array<i32>} : memref<256x144xf32, #tpu.memory_space<vmem>>, vector<256x16xf32>,
    %c24_73 = arith.constant 24 : index
    %c0_74 = arith.constant 0 : index
    %103 = vector.load %arg10[%c24_73, %c0_74] : memref<304x16xf32, #tpu.memory_space<vmem>>, vector<256x16xf32>
    %c0_75 = arith.constant 0 : index
    %c64_76 = arith.constant 64 : index
    %104 = vector.load %arg12[%c0_75, %c64_76] : memref<256x144xf32, #tpu.memory_space<vmem>>, vector<256x16xf32>
    tpu.vector_store %arg12[%c0_75, %c64_76], %103 {strides = array<i32>} : memref<256x144xf32, #tpu.memory_space<vmem>>, vector<256x16xf32>,
    %c25_77 = arith.constant 25 : index
    %c0_78 = arith.constant 0 : index
    %105 = vector.load %arg10[%c25_77, %c0_78] : memref<304x16xf32, #tpu.memory_space<vmem>>, vector<256x16xf32>
    %cst_79 = arith.constant 0.000000e+00 : f32
    %106 = vector.shape_cast %20 : vector<256x1xi1> to vector<256x1xi1>
    %107 = vector.broadcast %106 : vector<256x1xi1> to vector<256x16xi1>
    %108 = vector.broadcast %cst_79 : f32 to vector<256x16xf32>
    %109 = arith.select %107, %105, %108 : vector<256x16xi1>, vector<256x16xf32>
    %c0_80 = arith.constant 0 : index
    %c80 = arith.constant 80 : index
    %110 = vector.load %arg12[%c0_80, %c80] : memref<256x144xf32, #tpu.memory_space<vmem>>, vector<256x16xf32>
    tpu.vector_store %arg12[%c0_80, %c80], %109 {strides = array<i32>} : memref<256x144xf32, #tpu.memory_space<vmem>>, vector<256x16xf32>,
    %c39_81 = arith.constant 39 : index
    %c0_82 = arith.constant 0 : index
    %111 = vector.load %arg10[%c39_81, %c0_82] : memref<304x16xf32, #tpu.memory_space<vmem>>, vector<256x16xf32>
    %cst_83 = arith.constant 0.000000e+00 : f32
    %112 = vector.shape_cast %18 : vector<256x1xi1> to vector<256x1xi1>
    %113 = vector.broadcast %112 : vector<256x1xi1> to vector<256x16xi1>
    %114 = vector.broadcast %cst_83 : f32 to vector<256x16xf32>
    %115 = arith.select %113, %111, %114 : vector<256x16xi1>, vector<256x16xf32>
    %c0_84 = arith.constant 0 : index
    %c96 = arith.constant 96 : index
    %116 = vector.load %arg12[%c0_84, %c96] : memref<256x144xf32, #tpu.memory_space<vmem>>, vector<256x16xf32>
    tpu.vector_store %arg12[%c0_84, %c96], %115 {strides = array<i32>} : memref<256x144xf32, #tpu.memory_space<vmem>>, vector<256x16xf32>,
    %c40_85 = arith.constant 40 : index
    %c0_86 = arith.constant 0 : index
    %117 = vector.load %arg10[%c40_85, %c0_86] : memref<304x16xf32, #tpu.memory_space<vmem>>, vector<256x16xf32>
    %c0_87 = arith.constant 0 : index
    %c112 = arith.constant 112 : index
    %118 = vector.load %arg12[%c0_87, %c112] : memref<256x144xf32, #tpu.memory_space<vmem>>, vector<256x16xf32>
    tpu.vector_store %arg12[%c0_87, %c112], %117 {strides = array<i32>} : memref<256x144xf32, #tpu.memory_space<vmem>>, vector<256x16xf32>,
    %c41_88 = arith.constant 41 : index
    %c0_89 = arith.constant 0 : index
    %119 = vector.load %arg10[%c41_88, %c0_89] : memref<304x16xf32, #tpu.memory_space<vmem>>, vector<256x16xf32>
    %cst_90 = arith.constant 0.000000e+00 : f32
    %120 = vector.shape_cast %20 : vector<256x1xi1> to vector<256x1xi1>
    %121 = vector.broadcast %120 : vector<256x1xi1> to vector<256x16xi1>
    %122 = vector.broadcast %cst_90 : f32 to vector<256x16xf32>
    %123 = arith.select %121, %119, %122 : vector<256x16xi1>, vector<256x16xf32>
    %c0_91 = arith.constant 0 : index
    %c128 = arith.constant 128 : index
    %124 = vector.load %arg12[%c0_91, %c128] : memref<256x144xf32, #tpu.memory_space<vmem>>, vector<256x16xf32>
    tpu.vector_store %arg12[%c0_91, %c128], %123 {strides = array<i32>} : memref<256x144xf32, #tpu.memory_space<vmem>>, vector<256x16xf32>,
    %c0_92 = arith.constant 0 : index
    %c0_93 = arith.constant 0 : index
    %125 = vector.load %arg12[%c0_92, %c0_93] : memref<256x144xf32, #tpu.memory_space<vmem>>, vector<256x144xf32>
    %126 = arith.truncf %125 : vector<256x144xf32> to vector<256x144xbf16>
    %c0_94 = arith.constant 0 : index
    %c0_95 = arith.constant 0 : index
    %127 = vector.load %arg4[%c0_94, %c0_95] : memref<144x16xf32, #tpu.memory_space<vmem>>, vector<144x16xf32>
    %128 = arith.truncf %127 : vector<144x16xf32> to vector<144x16xbf16>
    %cst_96 = arith.constant dense<0.000000e+00> : vector<256x16xf32>
    %129 = tpu.matmul %126, %128, %cst_96 {dimension_numbers = #tpu.dot_dimension_numbers<[1], [0], [0], [1], [0, 0, 1, 1], [], []>} : vector<256x144xbf16>, vector<144x16xbf16>, vector<256x16xf32> -> vector<256x16xf32>
    %c0_97 = arith.constant 0 : index
    %c0_98 = arith.constant 0 : index
    %130 = vector.load %arg5[%c0_97, %c0_98] : memref<1x16xf32, #tpu.memory_space<vmem>>, vector<1x16xf32>
    %131 = vector.broadcast %130 : vector<1x16xf32> to vector<256x16xf32>
    %132 = arith.addf %129, %131 : vector<256x16xf32>
    %cst_99 = arith.constant 0.000000e+00 : f32
    %133 = vector.broadcast %cst_99 : f32 to vector<256x16xf32>
    %134 = arith.maximumf %132, %133 : vector<256x16xf32>
    %135 = arith.truncf %134 : vector<256x16xf32> to vector<256x16xbf16>
    %c0_100 = arith.constant 0 : index
    %c0_101 = arith.constant 0 : index
    %136 = vector.load %arg6[%c0_100, %c0_101] : memref<16x128xf32, #tpu.memory_space<vmem>>, vector<16x128xf32>
    %137 = arith.truncf %136 : vector<16x128xf32> to vector<16x128xbf16>
    %cst_102 = arith.constant dense<0.000000e+00> : vector<256x128xf32>
    %138 = tpu.matmul %135, %137, %cst_102 {dimension_numbers = #tpu.dot_dimension_numbers<[1], [0], [0], [1], [0, 0, 1, 1], [], []>} : vector<256x16xbf16>, vector<16x128xbf16>, vector<256x128xf32> -> vector<256x128xf32>
    %c0_103 = arith.constant 0 : index
    %c0_104 = arith.constant 0 : index
    %139 = vector.load %arg7[%c0_103, %c0_104] : memref<1x128xf32, #tpu.memory_space<vmem>>, vector<1x128xf32>
    %140 = vector.broadcast %139 : vector<1x128xf32> to vector<256x128xf32>
    %141 = arith.addf %138, %140 : vector<256x128xf32>
    %c0_105 = arith.constant 0 : index
    %c0_106 = arith.constant 0 : index
    %c0_107 = arith.constant 0 : index
    %142 = vector.load %arg8[%c0_105, %c0_106, %c0_107] : memref<2x256x128xf32, #tpu.memory_space<vmem>>, vector<1x256x128xf32>
    %143 = vector.shape_cast %142 : vector<1x256x128xf32> to vector<256x128xf32>
    %144 = vector.shape_cast %141 : vector<256x128xf32> to vector<1x256x128xf32>
    tpu.vector_store %arg8[%c0_105, %c0_106, %c0_107], %144 {strides = array<i32>} : memref<2x256x128xf32, #tpu.memory_space<vmem>>, vector<1x256x128xf32>,
    %c1 = arith.constant 1 : index
    %c0_108 = arith.constant 0 : index
    %c0_109 = arith.constant 0 : index
    %145 = vector.load %arg1[%c1, %c0_108, %c0_109] : memref<2x256x8xf32, #tpu.memory_space<vmem>>, vector<1x256x8xf32>
    %146 = vector.shape_cast %145 : vector<1x256x8xf32> to vector<256x8xf32>
    %c24_110 = arith.constant 24 : index
    %c0_111 = arith.constant 0 : index
    %147 = vector.load %arg9[%c24_110, %c0_111] : memref<304x8xf32, #tpu.memory_space<vmem>>, vector<256x8xf32>
    tpu.vector_store %arg9[%c24_110, %c0_111], %146 {strides = array<i32>} : memref<304x8xf32, #tpu.memory_space<vmem>>, vector<256x8xf32>,
    %c7_112 = arith.constant 7 : index
    %c0_113 = arith.constant 0 : index
    %148 = vector.load %arg9[%c7_112, %c0_113] : memref<304x8xf32, #tpu.memory_space<vmem>>, vector<256x8xf32>
    %cst_114 = arith.constant 0.000000e+00 : f32
    %149 = vector.shape_cast %18 : vector<256x1xi1> to vector<256x1xi1>
    %150 = vector.broadcast %149 : vector<256x1xi1> to vector<256x8xi1>
    %151 = vector.broadcast %cst_114 : f32 to vector<256x8xf32>
    %152 = arith.select %150, %148, %151 : vector<256x8xi1>, vector<256x8xf32>
    %c0_115 = arith.constant 0 : index
    %c0_116 = arith.constant 0 : index
    %153 = vector.load %arg11[%c0_115, %c0_116] : memref<256x72xf32, #tpu.memory_space<vmem>>, vector<256x8xf32>
    tpu.vector_store %arg11[%c0_115, %c0_116], %152 {strides = array<i32>} : memref<256x72xf32, #tpu.memory_space<vmem>>, vector<256x8xf32>,
    %c8_117 = arith.constant 8 : index
    %c0_118 = arith.constant 0 : index
    %154 = vector.load %arg9[%c8_117, %c0_118] : memref<304x8xf32, #tpu.memory_space<vmem>>, vector<256x8xf32>
    %c0_119 = arith.constant 0 : index
    %c8_120 = arith.constant 8 : index
    %155 = vector.load %arg11[%c0_119, %c8_120] : memref<256x72xf32, #tpu.memory_space<vmem>>, vector<256x8xf32>
    tpu.vector_store %arg11[%c0_119, %c8_120], %154 {strides = array<i32>} : memref<256x72xf32, #tpu.memory_space<vmem>>, vector<256x8xf32>,
    %c9_121 = arith.constant 9 : index
    %c0_122 = arith.constant 0 : index
    %156 = vector.load %arg9[%c9_121, %c0_122] : memref<304x8xf32, #tpu.memory_space<vmem>>, vector<256x8xf32>
    %cst_123 = arith.constant 0.000000e+00 : f32
    %157 = vector.shape_cast %20 : vector<256x1xi1> to vector<256x1xi1>
    %158 = vector.broadcast %157 : vector<256x1xi1> to vector<256x8xi1>
    %159 = vector.broadcast %cst_123 : f32 to vector<256x8xf32>
    %160 = arith.select %158, %156, %159 : vector<256x8xi1>, vector<256x8xf32>
    %c0_124 = arith.constant 0 : index
    %c16_125 = arith.constant 16 : index
    %161 = vector.load %arg11[%c0_124, %c16_125] : memref<256x72xf32, #tpu.memory_space<vmem>>, vector<256x8xf32>
    tpu.vector_store %arg11[%c0_124, %c16_125], %160 {strides = array<i32>} : memref<256x72xf32, #tpu.memory_space<vmem>>, vector<256x8xf32>,
    %c23_126 = arith.constant 23 : index
    %c0_127 = arith.constant 0 : index
    %162 = vector.load %arg9[%c23_126, %c0_127] : memref<304x8xf32, #tpu.memory_space<vmem>>, vector<256x8xf32>
    %cst_128 = arith.constant 0.000000e+00 : f32
    %163 = vector.shape_cast %18 : vector<256x1xi1> to vector<256x1xi1>
    %164 = vector.broadcast %163 : vector<256x1xi1> to vector<256x8xi1>
    %165 = vector.broadcast %cst_128 : f32 to vector<256x8xf32>
    %166 = arith.select %164, %162, %165 : vector<256x8xi1>, vector<256x8xf32>
    %c0_129 = arith.constant 0 : index
    %c24_130 = arith.constant 24 : index
    %167 = vector.load %arg11[%c0_129, %c24_130] : memref<256x72xf32, #tpu.memory_space<vmem>>, vector<256x8xf32>
    tpu.vector_store %arg11[%c0_129, %c24_130], %166 {strides = array<i32>} : memref<256x72xf32, #tpu.memory_space<vmem>>, vector<256x8xf32>,
    %c24_131 = arith.constant 24 : index
    %c0_132 = arith.constant 0 : index
    %168 = vector.load %arg9[%c24_131, %c0_132] : memref<304x8xf32, #tpu.memory_space<vmem>>, vector<256x8xf32>
    %c0_133 = arith.constant 0 : index
    %c32_134 = arith.constant 32 : index
    %169 = vector.load %arg11[%c0_133, %c32_134] : memref<256x72xf32, #tpu.memory_space<vmem>>, vector<256x8xf32>
    tpu.vector_store %arg11[%c0_133, %c32_134], %168 {strides = array<i32>} : memref<256x72xf32, #tpu.memory_space<vmem>>, vector<256x8xf32>,
    %c25_135 = arith.constant 25 : index
    %c0_136 = arith.constant 0 : index
    %170 = vector.load %arg9[%c25_135, %c0_136] : memref<304x8xf32, #tpu.memory_space<vmem>>, vector<256x8xf32>
    %cst_137 = arith.constant 0.000000e+00 : f32
    %171 = vector.shape_cast %20 : vector<256x1xi1> to vector<256x1xi1>
    %172 = vector.broadcast %171 : vector<256x1xi1> to vector<256x8xi1>
    %173 = vector.broadcast %cst_137 : f32 to vector<256x8xf32>
    %174 = arith.select %172, %170, %173 : vector<256x8xi1>, vector<256x8xf32>
    %c0_138 = arith.constant 0 : index
    %c40_139 = arith.constant 40 : index
    %175 = vector.load %arg11[%c0_138, %c40_139] : memref<256x72xf32, #tpu.memory_space<vmem>>, vector<256x8xf32>
    tpu.vector_store %arg11[%c0_138, %c40_139], %174 {strides = array<i32>} : memref<256x72xf32, #tpu.memory_space<vmem>>, vector<256x8xf32>,
    %c39_140 = arith.constant 39 : index
    %c0_141 = arith.constant 0 : index
    %176 = vector.load %arg9[%c39_140, %c0_141] : memref<304x8xf32, #tpu.memory_space<vmem>>, vector<256x8xf32>
    %cst_142 = arith.constant 0.000000e+00 : f32
    %177 = vector.shape_cast %18 : vector<256x1xi1> to vector<256x1xi1>
    %178 = vector.broadcast %177 : vector<256x1xi1> to vector<256x8xi1>
    %179 = vector.broadcast %cst_142 : f32 to vector<256x8xf32>
    %180 = arith.select %178, %176, %179 : vector<256x8xi1>, vector<256x8xf32>
    %c0_143 = arith.constant 0 : index
    %c48_144 = arith.constant 48 : index
    %181 = vector.load %arg11[%c0_143, %c48_144] : memref<256x72xf32, #tpu.memory_space<vmem>>, vector<256x8xf32>
    tpu.vector_store %arg11[%c0_143, %c48_144], %180 {strides = array<i32>} : memref<256x72xf32, #tpu.memory_space<vmem>>, vector<256x8xf32>,
    %c40_145 = arith.constant 40 : index
    %c0_146 = arith.constant 0 : index
    %182 = vector.load %arg9[%c40_145, %c0_146] : memref<304x8xf32, #tpu.memory_space<vmem>>, vector<256x8xf32>
    %c0_147 = arith.constant 0 : index
    %c56_148 = arith.constant 56 : index
    %183 = vector.load %arg11[%c0_147, %c56_148] : memref<256x72xf32, #tpu.memory_space<vmem>>, vector<256x8xf32>
    tpu.vector_store %arg11[%c0_147, %c56_148], %182 {strides = array<i32>} : memref<256x72xf32, #tpu.memory_space<vmem>>, vector<256x8xf32>,
    %c41_149 = arith.constant 41 : index
    %c0_150 = arith.constant 0 : index
    %184 = vector.load %arg9[%c41_149, %c0_150] : memref<304x8xf32, #tpu.memory_space<vmem>>, vector<256x8xf32>
    %cst_151 = arith.constant 0.000000e+00 : f32
    %185 = vector.shape_cast %20 : vector<256x1xi1> to vector<256x1xi1>
    %186 = vector.broadcast %185 : vector<256x1xi1> to vector<256x8xi1>
    %187 = vector.broadcast %cst_151 : f32 to vector<256x8xf32>
    %188 = arith.select %186, %184, %187 : vector<256x8xi1>, vector<256x8xf32>
    %c0_152 = arith.constant 0 : index
    %c64_153 = arith.constant 64 : index
    %189 = vector.load %arg11[%c0_152, %c64_153] : memref<256x72xf32, #tpu.memory_space<vmem>>, vector<256x8xf32>
    tpu.vector_store %arg11[%c0_152, %c64_153], %188 {strides = array<i32>} : memref<256x72xf32, #tpu.memory_space<vmem>>, vector<256x8xf32>,
    %c0_154 = arith.constant 0 : index
    %c0_155 = arith.constant 0 : index
    %190 = vector.load %arg11[%c0_154, %c0_155] : memref<256x72xf32, #tpu.memory_space<vmem>>, vector<256x72xf32>
    %191 = arith.truncf %190 : vector<256x72xf32> to vector<256x72xbf16>
    %c0_156 = arith.constant 0 : index
    %c0_157 = arith.constant 0 : index
    %192 = vector.load %arg2[%c0_156, %c0_157] : memref<72x16xf32, #tpu.memory_space<vmem>>, vector<72x16xf32>
    %193 = arith.truncf %192 : vector<72x16xf32> to vector<72x16xbf16>
    %cst_158 = arith.constant dense<0.000000e+00> : vector<256x16xf32>
    %194 = tpu.matmul %191, %193, %cst_158 {dimension_numbers = #tpu.dot_dimension_numbers<[1], [0], [0], [1], [0, 0, 1, 1], [], []>} : vector<256x72xbf16>, vector<72x16xbf16>, vector<256x16xf32> -> vector<256x16xf32>
    %c0_159 = arith.constant 0 : index
    %c0_160 = arith.constant 0 : index
    %195 = vector.load %arg3[%c0_159, %c0_160] : memref<1x16xf32, #tpu.memory_space<vmem>>, vector<1x16xf32>
    %196 = vector.broadcast %195 : vector<1x16xf32> to vector<256x16xf32>
    %197 = arith.addf %194, %196 : vector<256x16xf32>
    %cst_161 = arith.constant 0.000000e+00 : f32
    %198 = vector.broadcast %cst_161 : f32 to vector<256x16xf32>
    %199 = arith.maximumf %197, %198 : vector<256x16xf32>
    %c24_162 = arith.constant 24 : index
    %c0_163 = arith.constant 0 : index
    %200 = vector.load %arg10[%c24_162, %c0_163] : memref<304x16xf32, #tpu.memory_space<vmem>>, vector<256x16xf32>
    tpu.vector_store %arg10[%c24_162, %c0_163], %199 {strides = array<i32>} : memref<304x16xf32, #tpu.memory_space<vmem>>, vector<256x16xf32>,
    %c7_164 = arith.constant 7 : index
    %c0_165 = arith.constant 0 : index
    %201 = vector.load %arg10[%c7_164, %c0_165] : memref<304x16xf32, #tpu.memory_space<vmem>>, vector<256x16xf32>
    %cst_166 = arith.constant 0.000000e+00 : f32
    %202 = vector.shape_cast %18 : vector<256x1xi1> to vector<256x1xi1>
    %203 = vector.broadcast %202 : vector<256x1xi1> to vector<256x16xi1>
    %204 = vector.broadcast %cst_166 : f32 to vector<256x16xf32>
    %205 = arith.select %203, %201, %204 : vector<256x16xi1>, vector<256x16xf32>
    %c0_167 = arith.constant 0 : index
    %c0_168 = arith.constant 0 : index
    %206 = vector.load %arg12[%c0_167, %c0_168] : memref<256x144xf32, #tpu.memory_space<vmem>>, vector<256x16xf32>
    tpu.vector_store %arg12[%c0_167, %c0_168], %205 {strides = array<i32>} : memref<256x144xf32, #tpu.memory_space<vmem>>, vector<256x16xf32>,
    %c8_169 = arith.constant 8 : index
    %c0_170 = arith.constant 0 : index
    %207 = vector.load %arg10[%c8_169, %c0_170] : memref<304x16xf32, #tpu.memory_space<vmem>>, vector<256x16xf32>
    %c0_171 = arith.constant 0 : index
    %c16_172 = arith.constant 16 : index
    %208 = vector.load %arg12[%c0_171, %c16_172] : memref<256x144xf32, #tpu.memory_space<vmem>>, vector<256x16xf32>
    tpu.vector_store %arg12[%c0_171, %c16_172], %207 {strides = array<i32>} : memref<256x144xf32, #tpu.memory_space<vmem>>, vector<256x16xf32>,
    %c9_173 = arith.constant 9 : index
    %c0_174 = arith.constant 0 : index
    %209 = vector.load %arg10[%c9_173, %c0_174] : memref<304x16xf32, #tpu.memory_space<vmem>>, vector<256x16xf32>
    %cst_175 = arith.constant 0.000000e+00 : f32
    %210 = vector.shape_cast %20 : vector<256x1xi1> to vector<256x1xi1>
    %211 = vector.broadcast %210 : vector<256x1xi1> to vector<256x16xi1>
    %212 = vector.broadcast %cst_175 : f32 to vector<256x16xf32>
    %213 = arith.select %211, %209, %212 : vector<256x16xi1>, vector<256x16xf32>
    %c0_176 = arith.constant 0 : index
    %c32_177 = arith.constant 32 : index
    %214 = vector.load %arg12[%c0_176, %c32_177] : memref<256x144xf32, #tpu.memory_space<vmem>>, vector<256x16xf32>
    tpu.vector_store %arg12[%c0_176, %c32_177], %213 {strides = array<i32>} : memref<256x144xf32, #tpu.memory_space<vmem>>, vector<256x16xf32>,
    %c23_178 = arith.constant 23 : index
    %c0_179 = arith.constant 0 : index
    %215 = vector.load %arg10[%c23_178, %c0_179] : memref<304x16xf32, #tpu.memory_space<vmem>>, vector<256x16xf32>
    %cst_180 = arith.constant 0.000000e+00 : f32
    %216 = vector.shape_cast %18 : vector<256x1xi1> to vector<256x1xi1>
    %217 = vector.broadcast %216 : vector<256x1xi1> to vector<256x16xi1>
    %218 = vector.broadcast %cst_180 : f32 to vector<256x16xf32>
    %219 = arith.select %217, %215, %218 : vector<256x16xi1>, vector<256x16xf32>
    %c0_181 = arith.constant 0 : index
    %c48_182 = arith.constant 48 : index
    %220 = vector.load %arg12[%c0_181, %c48_182] : memref<256x144xf32, #tpu.memory_space<vmem>>, vector<256x16xf32>
    tpu.vector_store %arg12[%c0_181, %c48_182], %219 {strides = array<i32>} : memref<256x144xf32, #tpu.memory_space<vmem>>, vector<256x16xf32>,
    %c24_183 = arith.constant 24 : index
    %c0_184 = arith.constant 0 : index
    %221 = vector.load %arg10[%c24_183, %c0_184] : memref<304x16xf32, #tpu.memory_space<vmem>>, vector<256x16xf32>
    %c0_185 = arith.constant 0 : index
    %c64_186 = arith.constant 64 : index
    %222 = vector.load %arg12[%c0_185, %c64_186] : memref<256x144xf32, #tpu.memory_space<vmem>>, vector<256x16xf32>
    tpu.vector_store %arg12[%c0_185, %c64_186], %221 {strides = array<i32>} : memref<256x144xf32, #tpu.memory_space<vmem>>, vector<256x16xf32>,
    %c25_187 = arith.constant 25 : index
    %c0_188 = arith.constant 0 : index
    %223 = vector.load %arg10[%c25_187, %c0_188] : memref<304x16xf32, #tpu.memory_space<vmem>>, vector<256x16xf32>
    %cst_189 = arith.constant 0.000000e+00 : f32
    %224 = vector.shape_cast %20 : vector<256x1xi1> to vector<256x1xi1>
    %225 = vector.broadcast %224 : vector<256x1xi1> to vector<256x16xi1>
    %226 = vector.broadcast %cst_189 : f32 to vector<256x16xf32>
    %227 = arith.select %225, %223, %226 : vector<256x16xi1>, vector<256x16xf32>
    %c0_190 = arith.constant 0 : index
    %c80_191 = arith.constant 80 : index
    %228 = vector.load %arg12[%c0_190, %c80_191] : memref<256x144xf32, #tpu.memory_space<vmem>>, vector<256x16xf32>
    tpu.vector_store %arg12[%c0_190, %c80_191], %227 {strides = array<i32>} : memref<256x144xf32, #tpu.memory_space<vmem>>, vector<256x16xf32>,
    %c39_192 = arith.constant 39 : index
    %c0_193 = arith.constant 0 : index
    %229 = vector.load %arg10[%c39_192, %c0_193] : memref<304x16xf32, #tpu.memory_space<vmem>>, vector<256x16xf32>
    %cst_194 = arith.constant 0.000000e+00 : f32
    %230 = vector.shape_cast %18 : vector<256x1xi1> to vector<256x1xi1>
    %231 = vector.broadcast %230 : vector<256x1xi1> to vector<256x16xi1>
    %232 = vector.broadcast %cst_194 : f32 to vector<256x16xf32>
    %233 = arith.select %231, %229, %232 : vector<256x16xi1>, vector<256x16xf32>
    %c0_195 = arith.constant 0 : index
    %c96_196 = arith.constant 96 : index
    %234 = vector.load %arg12[%c0_195, %c96_196] : memref<256x144xf32, #tpu.memory_space<vmem>>, vector<256x16xf32>
    tpu.vector_store %arg12[%c0_195, %c96_196], %233 {strides = array<i32>} : memref<256x144xf32, #tpu.memory_space<vmem>>, vector<256x16xf32>,
    %c40_197 = arith.constant 40 : index
    %c0_198 = arith.constant 0 : index
    %235 = vector.load %arg10[%c40_197, %c0_198] : memref<304x16xf32, #tpu.memory_space<vmem>>, vector<256x16xf32>
    %c0_199 = arith.constant 0 : index
    %c112_200 = arith.constant 112 : index
    %236 = vector.load %arg12[%c0_199, %c112_200] : memref<256x144xf32, #tpu.memory_space<vmem>>, vector<256x16xf32>
    tpu.vector_store %arg12[%c0_199, %c112_200], %235 {strides = array<i32>} : memref<256x144xf32, #tpu.memory_space<vmem>>, vector<256x16xf32>,
    %c41_201 = arith.constant 41 : index
    %c0_202 = arith.constant 0 : index
    %237 = vector.load %arg10[%c41_201, %c0_202] : memref<304x16xf32, #tpu.memory_space<vmem>>, vector<256x16xf32>
    %cst_203 = arith.constant 0.000000e+00 : f32
    %238 = vector.shape_cast %20 : vector<256x1xi1> to vector<256x1xi1>
    %239 = vector.broadcast %238 : vector<256x1xi1> to vector<256x16xi1>
    %240 = vector.broadcast %cst_203 : f32 to vector<256x16xf32>
    %241 = arith.select %239, %237, %240 : vector<256x16xi1>, vector<256x16xf32>
    %c0_204 = arith.constant 0 : index
    %c128_205 = arith.constant 128 : index
    %242 = vector.load %arg12[%c0_204, %c128_205] : memref<256x144xf32, #tpu.memory_space<vmem>>, vector<256x16xf32>
    tpu.vector_store %arg12[%c0_204, %c128_205], %241 {strides = array<i32>} : memref<256x144xf32, #tpu.memory_space<vmem>>, vector<256x16xf32>,
    %c0_206 = arith.constant 0 : index
    %c0_207 = arith.constant 0 : index
    %243 = vector.load %arg12[%c0_206, %c0_207] : memref<256x144xf32, #tpu.memory_space<vmem>>, vector<256x144xf32>
    %244 = arith.truncf %243 : vector<256x144xf32> to vector<256x144xbf16>
    %c0_208 = arith.constant 0 : index
    %c0_209 = arith.constant 0 : index
    %245 = vector.load %arg4[%c0_208, %c0_209] : memref<144x16xf32, #tpu.memory_space<vmem>>, vector<144x16xf32>
    %246 = arith.truncf %245 : vector<144x16xf32> to vector<144x16xbf16>
    %cst_210 = arith.constant dense<0.000000e+00> : vector<256x16xf32>
    %247 = tpu.matmul %244, %246, %cst_210 {dimension_numbers = #tpu.dot_dimension_numbers<[1], [0], [0], [1], [0, 0, 1, 1], [], []>} : vector<256x144xbf16>, vector<144x16xbf16>, vector<256x16xf32> -> vector<256x16xf32>
    %c0_211 = arith.constant 0 : index
    %c0_212 = arith.constant 0 : index
    %248 = vector.load %arg5[%c0_211, %c0_212] : memref<1x16xf32, #tpu.memory_space<vmem>>, vector<1x16xf32>
    %249 = vector.broadcast %248 : vector<1x16xf32> to vector<256x16xf32>
    %250 = arith.addf %247, %249 : vector<256x16xf32>
    %cst_213 = arith.constant 0.000000e+00 : f32
    %251 = vector.broadcast %cst_213 : f32 to vector<256x16xf32>
    %252 = arith.maximumf %250, %251 : vector<256x16xf32>
    %253 = arith.truncf %252 : vector<256x16xf32> to vector<256x16xbf16>
    %c0_214 = arith.constant 0 : index
    %c0_215 = arith.constant 0 : index
    %254 = vector.load %arg6[%c0_214, %c0_215] : memref<16x128xf32, #tpu.memory_space<vmem>>, vector<16x128xf32>
    %255 = arith.truncf %254 : vector<16x128xf32> to vector<16x128xbf16>
    %cst_216 = arith.constant dense<0.000000e+00> : vector<256x128xf32>
    %256 = tpu.matmul %253, %255, %cst_216 {dimension_numbers = #tpu.dot_dimension_numbers<[1], [0], [0], [1], [0, 0, 1, 1], [], []>} : vector<256x16xbf16>, vector<16x128xbf16>, vector<256x128xf32> -> vector<256x128xf32>
    %c0_217 = arith.constant 0 : index
    %c0_218 = arith.constant 0 : index
    %257 = vector.load %arg7[%c0_217, %c0_218] : memref<1x128xf32, #tpu.memory_space<vmem>>, vector<1x128xf32>
    %258 = vector.broadcast %257 : vector<1x128xf32> to vector<256x128xf32>
    %259 = arith.addf %256, %258 : vector<256x128xf32>
    %c1_219 = arith.constant 1 : index
    %c0_220 = arith.constant 0 : index
    %c0_221 = arith.constant 0 : index
    %260 = vector.load %arg8[%c1_219, %c0_220, %c0_221] : memref<2x256x128xf32, #tpu.memory_space<vmem>>, vector<1x256x128xf32>
    %261 = vector.shape_cast %260 : vector<1x256x128xf32> to vector<256x128xf32>
    %262 = vector.shape_cast %259 : vector<256x128xf32> to vector<1x256x128xf32>
    tpu.vector_store %arg8[%c1_219, %c0_220, %c0_221], %262 {strides = array<i32>} : memref<2x256x128xf32, #tpu.memory_space<vmem>>, vector<1x256x128xf32>,
    return
  }
  func.func @transform_0(%arg0: i32) -> (i32, i32, i32) {
    %c0_i32 = arith.constant 0 : i32
    %c0_i32_0 = arith.constant 0 : i32
    %c0_i32_1 = arith.constant 0 : i32
    return %arg0, %c0_i32, %c0_i32_0 : i32, i32, i32
  }
  func.func @transform_1(%arg0: i32) -> (i32, i32) {
    %c0_i32 = arith.constant 0 : i32
    %c0_i32_0 = arith.constant 0 : i32
    %c0_i32_1 = arith.constant 0 : i32
    return %c0_i32, %c0_i32_0 : i32, i32
  }
  func.func @transform_2(%arg0: i32) -> (i32, i32) {
    %c0_i32 = arith.constant 0 : i32
    %c0_i32_0 = arith.constant 0 : i32
    %c0_i32_1 = arith.constant 0 : i32
    return %c0_i32, %c0_i32_0 : i32, i32
  }
  func.func @transform_3(%arg0: i32) -> (i32, i32) {
    %c0_i32 = arith.constant 0 : i32
    %c0_i32_0 = arith.constant 0 : i32
    %c0_i32_1 = arith.constant 0 : i32
    return %c0_i32, %c0_i32_0 : i32, i32
  }
  func.func @transform_4(%arg0: i32) -> (i32, i32) {
    %c0_i32 = arith.constant 0 : i32
    %c0_i32_0 = arith.constant 0 : i32
    %c0_i32_1 = arith.constant 0 : i32
    return %c0_i32, %c0_i32_0 : i32, i32
  }
  func.func @transform_5(%arg0: i32) -> (i32, i32) {
    %c0_i32 = arith.constant 0 : i32
    %c0_i32_0 = arith.constant 0 : i32
    %c0_i32_1 = arith.constant 0 : i32
    return %c0_i32, %c0_i32_0 : i32, i32
  }
  func.func @transform_6(%arg0: i32) -> (i32, i32) {
    %c0_i32 = arith.constant 0 : i32
    %c0_i32_0 = arith.constant 0 : i32
    %c0_i32_1 = arith.constant 0 : i32
    return %c0_i32, %c0_i32_0 : i32, i32
  }
  func.func @transform_7(%arg0: i32) -> (i32, i32, i32) {
    %c0_i32 = arith.constant 0 : i32
    %c0_i32_0 = arith.constant 0 : i32
    %c0_i32_1 = arith.constant 0 : i32
    return %arg0, %c0_i32, %c0_i32_0 : i32, i32, i32
  }
}

</mosaic_0001>

<llo_original>
// kernel: range_branch.1
$region0: #{range_branch.1}
  #allocation0 [shape = 'u32[]', space=smem, size = 0x4, offset = 0x4, fixed_abs, tag = 'smem constant byte address 0x4 - core index']
  #allocation1 [shape = 'u32[144,128]{1,0:T(1,128)}', space=vmem, size = 0x12000, scoped, tag = 'internal scratch']
  #allocation2 [shape = 'f32[304,8]{1,0:T(8,128)}', space=vmem, size = 0x26000, scoped, tag = 'scratch operand']
  #allocation3 [shape = 'f32[304,16]{1,0:T(8,128)}', space=vmem, size = 0x26000, scoped, tag = 'scratch operand']
  #allocation4 [shape = 'f32[256,72]{1,0:T(8,128)}', space=vmem, size = 0x20000, scoped, tag = 'scratch operand']
  #allocation5 [shape = 'f32[256,144]{1,0:T(8,128)}', space=vmem, size = 0x40000, scoped, tag = 'scratch operand']
  %s0 = inlined_call_operand.vmem [shape: f32[2,256,8], index: 0, kind: input, shape index: {}]
  %s1 = inlined_call_operand.vmem [shape: f32[72,16], index: 1, kind: input, shape index: {}]
  %s2 = inlined_call_operand.vmem [shape: f32[1,16], index: 2, kind: input, shape index: {}]
  %s3 = inlined_call_operand.vmem [shape: f32[144,16], index: 3, kind: input, shape index: {}]
  %s4 = inlined_call_operand.vmem [shape: f32[1,16], index: 4, kind: input, shape index: {}]
  %s5 = inlined_call_operand.vmem [shape: f32[16,128], index: 5, kind: input, shape index: {}]
  %s6 = inlined_call_operand.vmem [shape: f32[1,128], index: 6, kind: input, shape index: {}]
  %s7 = inlined_call_operand.vmem [shape: f32[2,256,128], index: 7, kind: output, shape index: {}]
  %s8 = sld [smem:[#allocation0]]
  $region38: #{range_branch.1} parent=0
    _
  %s10 = ssub.s32 1, %s8
  %s11 = scalar_select 0, %s10, %s8
  // Predicated region
  $region2: #{range_branch.1} parent=0 // pred_check
    _
  $region3: #{range_branch.1} parent=0 // pred_check_branch
    %13 = sbr.rel (0) target = $region5
  $region4: #{range_branch.1} parent=0 // pred_region
    _
  $region5: #{range_branch.1} parent=0 // pred_fallthru
    _
  // Predicated region
  $region6: #{range_branch.1} parent=0 // pred_check
    _
  $region7: #{range_branch.1} parent=0 // pred_check_branch
    %15 = sbr.rel (0) target = $region9
  $region8: #{range_branch.1} parent=0 // pred_region
    _
  $region9: #{range_branch.1} parent=0 // pred_fallthru
    _
  // Predicated region
  $region10: #{range_branch.1} parent=0 // pred_check
    _
  $region11: #{range_branch.1} parent=0 // pred_check_branch
    %17 = sbr.rel (0) target = $region13
  $region12: #{range_branch.1} parent=0 // pred_region
    _
  $region13: #{range_branch.1} parent=0 // pred_fallthru
    _
  // Predicated region
  $region14: #{range_branch.1} parent=0 // pred_check
    _
  $region15: #{range_branch.1} parent=0 // pred_check_branch
    %19 = sbr.rel (0) target = $region17
  $region16: #{range_branch.1} parent=0 // pred_region
    _
  $region17: #{range_branch.1} parent=0 // pred_fallthru
    _
  // Predicated region
  $region18: #{range_branch.1} parent=0 // pred_check
    _
  $region19: #{range_branch.1} parent=0 // pred_check_branch
    %21 = sbr.rel (0) target = $region21
  $region20: #{range_branch.1} parent=0 // pred_region
    _
  $region21: #{range_branch.1} parent=0 // pred_fallthru
    _
  // Predicated region
  $region22: #{range_branch.1} parent=0 // pred_check
    _
  $region23: #{range_branch.1} parent=0 // pred_check_branch
    %23 = sbr.rel (0) target = $region25
  $region24: #{range_branch.1} parent=0 // pred_region
    _
  $region25: #{range_branch.1} parent=0 // pred_fallthru
    _
  // Predicated region
  $region26: #{range_branch.1} parent=0 // pred_check
    _
  $region27: #{range_branch.1} parent=0 // pred_check_branch
    %25 = sbr.rel (0) target = $region29
  $region28: #{range_branch.1} parent=0 // pred_region
    _
  $region29: #{range_branch.1} parent=0 // pred_fallthru
    _
  %v27 = vlaneseq
  %v28 = vshrl.u32 %v27, 7
  %v29 = vadd.s32 %v28, 8
  %v30 = vadd.s32 %v28, 16
  %v31 = vadd.s32 %v28, 24
  %v32 = vadd.s32 %v28, 32
  %v33 = vadd.s32 %v28, 40
  %v34 = vadd.s32 %v28, 48
  %v35 = vadd.s32 %v28, 56
  %v36 = vadd.s32 %v28, 64
  %v37 = vadd.s32 %v28, 72
  %v38 = vadd.s32 %v28, 80
  %v39 = vadd.s32 %v28, 88
  %v40 = vadd.s32 %v28, 96
  %v41 = vadd.s32 %v28, 104
  %v42 = vadd.s32 %v28, 112
  %v43 = vadd.s32 %v28, 120
  %v44 = vadd.s32 %v28, 128
  %v45 = vadd.s32 %v28, 136
  %v46 = vadd.s32 %v28, 144
  %v47 = vadd.s32 %v28, 152
  %v48 = vadd.s32 %v28, 160
  %v49 = vadd.s32 %v28, 168
  %v50 = vadd.s32 %v28, 176
  %v51 = vadd.s32 %v28, 184
  %v52 = vadd.s32 %v28, 192
  %v53 = vadd.s32 %v28, 200
  %v54 = vadd.s32 %v28, 208
  %v55 = vadd.s32 %v28, 216
  %v56 = vadd.s32 %v28, 224
  %v57 = vadd.s32 %v28, 232
  %v58 = vadd.s32 %v28, 240
  %v59 = vadd.s32 %v28, 248
  %vm60 = vcmp.lt.s32.totalorder %v28, 0
  %v61 = vsub.s32 0, %v28
  %v62 = vsel %vm60, %v61, %v28
  %v63 = vshrl.u32 %v62, 4
  %v64 = vand.u32 %v62, 15
  %v65 = vsub.s32 0, %v64
  %v66 = vsel %vm60, %v65, %v64
  %vm67 = vcmp.lt.s32.totalorder %v29, 0
  %v68 = vsub.s32 0, %v29
  %v69 = vsel %vm67, %v68, %v29
  %v70 = vshrl.u32 %v69, 4
  %v71 = vand.u32 %v69, 15
  %v72 = vsub.s32 0, %v71
  %v73 = vsel %vm67, %v72, %v71
  %vm74 = vcmp.lt.s32.totalorder %v30, 0
  %v75 = vsub.s32 0, %v30
  %v76 = vsel %vm74, %v75, %v30
  %v77 = vshrl.u32 %v76, 4
  %v78 = vand.u32 %v76, 15
  %v79 = vsub.s32 0, %v78
  %v80 = vsel %vm74, %v79, %v78
  %vm81 = vcmp.lt.s32.totalorder %v31, 0
  %v82 = vsub.s32 0, %v31
  %v83 = vsel %vm81, %v82, %v31
  %v84 = vshrl.u32 %v83, 4
  %v85 = vand.u32 %v83, 15
  %v86 = vsub.s32 0, %v85
  %v87 = vsel %vm81, %v86, %v85
  %vm88 = vcmp.lt.s32.totalorder %v32, 0
  %v89 = vsub.s32 0, %v32
  %v90 = vsel %vm88, %v89, %v32
  %v91 = vshrl.u32 %v90, 4
  %v92 = vand.u32 %v90, 15
  %v93 = vsub.s32 0, %v92
  %v94 = vsel %vm88, %v93, %v92
  %vm95 = vcmp.lt.s32.totalorder %v33, 0
  %v96 = vsub.s32 0, %v33
  %v97 = vsel %vm95, %v96, %v33
  %v98 = vshrl.u32 %v97, 4
  %v99 = vand.u32 %v97, 15
  %v100 = vsub.s32 0, %v99
  %v101 = vsel %vm95, %v100, %v99
  %vm102 = vcmp.lt.s32.totalorder %v34, 0
  %v103 = vsub.s32 0, %v34
  %v104 = vsel %vm102, %v103, %v34
  %v105 = vshrl.u32 %v104, 4
  %v106 = vand.u32 %v104, 15
  %v107 = vsub.s32 0, %v106
  %v108 = vsel %vm102, %v107, %v106
  %vm109 = vcmp.lt.s32.totalorder %v35, 0
  %v110 = vsub.s32 0, %v35
  %v111 = vsel %vm109, %v110, %v35
  %v112 = vshrl.u32 %v111, 4
  %v113 = vand.u32 %v111, 15
  %v114 = vsub.s32 0, %v113
  %v115 = vsel %vm109, %v114, %v113
  %vm116 = vcmp.lt.s32.totalorder %v36, 0
  %v117 = vsub.s32 0, %v36
  %v118 = vsel %vm116, %v117, %v36
  %v119 = vshrl.u32 %v118, 4
  %v120 = vand.u32 %v118, 15
  %v121 = vsub.s32 0, %v120
  %v122 = vsel %vm116, %v121, %v120
  %vm123 = vcmp.lt.s32.totalorder %v37, 0
  %v124 = vsub.s32 0, %v37
  %v125 = vsel %vm123, %v124, %v37
  %v126 = vshrl.u32 %v125, 4
  %v127 = vand.u32 %v125, 15
  %v128 = vsub.s32 0, %v127
  %v129 = vsel %vm123, %v128, %v127
  %vm130 = vcmp.lt.s32.totalorder %v38, 0
  %v131 = vsub.s32 0, %v38
  %v132 = vsel %vm130, %v131, %v38
  %v133 = vshrl.u32 %v132, 4
  %v134 = vand.u32 %v132, 15
  %v135 = vsub.s32 0, %v134
  %v136 = vsel %vm130, %v135, %v134
  %vm137 = vcmp.lt.s32.totalorder %v39, 0
  %v138 = vsub.s32 0, %v39
  %v139 = vsel %vm137, %v138, %v39
  %v140 = vshrl.u32 %v139, 4
  %v141 = vand.u32 %v139, 15
  %v142 = vsub.s32 0, %v141
  %v143 = vsel %vm137, %v142, %v141
  %vm144 = vcmp.lt.s32.totalorder %v40, 0
  %v145 = vsub.s32 0, %v40
  %v146 = vsel %vm144, %v145, %v40
  %v147 = vshrl.u32 %v146, 4
  %v148 = vand.u32 %v146, 15
  %v149 = vsub.s32 0, %v148
  %v150 = vsel %vm144, %v149, %v148
  %vm151 = vcmp.lt.s32.totalorder %v41, 0
  %v152 = vsub.s32 0, %v41
  %v153 = vsel %vm151, %v152, %v41
  %v154 = vshrl.u32 %v153, 4
  %v155 = vand.u32 %v153, 15
  %v156 = vsub.s32 0, %v155
  %v157 = vsel %vm151, %v156, %v155
  %vm158 = vcmp.lt.s32.totalorder %v42, 0
  %v159 = vsub.s32 0, %v42
  %v160 = vsel %vm158, %v159, %v42
  %v161 = vshrl.u32 %v160, 4
  %v162 = vand.u32 %v160, 15
  %v163 = vsub.s32 0, %v162
  %v164 = vsel %vm158, %v163, %v162
  %vm165 = vcmp.lt.s32.totalorder %v43, 0
  %v166 = vsub.s32 0, %v43
  %v167 = vsel %vm165, %v166, %v43
  %v168 = vshrl.u32 %v167, 4
  %v169 = vand.u32 %v167, 15
  %v170 = vsub.s32 0, %v169
  %v171 = vsel %vm165, %v170, %v169
  %vm172 = vcmp.lt.s32.totalorder %v44, 0
  %v173 = vsub.s32 0, %v44
  %v174 = vsel %vm172, %v173, %v44
  %v175 = vshrl.u32 %v174, 4
  %v176 = vand.u32 %v174, 15
  %v177 = vsub.s32 0, %v176
  %v178 = vsel %vm172, %v177, %v176
  %vm179 = vcmp.lt.s32.totalorder %v45, 0
  %v180 = vsub.s32 0, %v45
  %v181 = vsel %vm179, %v180, %v45
  %v182 = vshrl.u32 %v181, 4
  %v183 = vand.u32 %v181, 15
  %v184 = vsub.s32 0, %v183
  %v185 = vsel %vm179, %v184, %v183
  %vm186 = vcmp.lt.s32.totalorder %v46, 0
  %v187 = vsub.s32 0, %v46
  %v188 = vsel %vm186, %v187, %v46
  %v189 = vshrl.u32 %v188, 4
  %v190 = vand.u32 %v188, 15
  %v191 = vsub.s32 0, %v190
  %v192 = vsel %vm186, %v191, %v190
  %vm193 = vcmp.lt.s32.totalorder %v47, 0
  %v194 = vsub.s32 0, %v47
  %v195 = vsel %vm193, %v194, %v47
  %v196 = vshrl.u32 %v195, 4
  %v197 = vand.u32 %v195, 15
  %v198 = vsub.s32 0, %v197
  %v199 = vsel %vm193, %v198, %v197
  %vm200 = vcmp.lt.s32.totalorder %v48, 0
  %v201 = vsub.s32 0, %v48
  %v202 = vsel %vm200, %v201, %v48
  %v203 = vshrl.u32 %v202, 4
  %v204 = vand.u32 %v202, 15
  %v205 = vsub.s32 0, %v204
  %v206 = vsel %vm200, %v205, %v204
  %vm207 = vcmp.lt.s32.totalorder %v49, 0
  %v208 = vsub.s32 0, %v49
  %v209 = vsel %vm207, %v208, %v49
  %v210 = vshrl.u32 %v209, 4
  %v211 = vand.u32 %v209, 15
  %v212 = vsub.s32 0, %v211
  %v213 = vsel %vm207, %v212, %v211
  %vm214 = vcmp.lt.s32.totalorder %v50, 0
  %v215 = vsub.s32 0, %v50
  %v216 = vsel %vm214, %v215, %v50
  %v217 = vshrl.u32 %v216, 4
  %v218 = vand.u32 %v216, 15
  %v219 = vsub.s32 0, %v218
  %v220 = vsel %vm214, %v219, %v218
  %vm221 = vcmp.lt.s32.totalorder %v51, 0
  %v222 = vsub.s32 0, %v51
  %v223 = vsel %vm221, %v222, %v51
  %v224 = vshrl.u32 %v223, 4
  %v225 = vand.u32 %v223, 15
  %v226 = vsub.s32 0, %v225
  %v227 = vsel %vm221, %v226, %v225
  %vm228 = vcmp.lt.s32.totalorder %v52, 0
  %v229 = vsub.s32 0, %v52
  %v230 = vsel %vm228, %v229, %v52
  %v231 = vshrl.u32 %v230, 4
  %v232 = vand.u32 %v230, 15
  %v233 = vsub.s32 0, %v232
  %v234 = vsel %vm228, %v233, %v232
  %vm235 = vcmp.lt.s32.totalorder %v53, 0
  %v236 = vsub.s32 0, %v53
  %v237 = vsel %vm235, %v236, %v53
  %v238 = vshrl.u32 %v237, 4
  %v239 = vand.u32 %v237, 15
  %v240 = vsub.s32 0, %v239
  %v241 = vsel %vm235, %v240, %v239
  %vm242 = vcmp.lt.s32.totalorder %v54, 0
  %v243 = vsub.s32 0, %v54
  %v244 = vsel %vm242, %v243, %v54
  %v245 = vshrl.u32 %v244, 4
  %v246 = vand.u32 %v244, 15
  %v247 = vsub.s32 0, %v246
  %v248 = vsel %vm242, %v247, %v246
  %vm249 = vcmp.lt.s32.totalorder %v55, 0
  %v250 = vsub.s32 0, %v55
  %v251 = vsel %vm249, %v250, %v55
  %v252 = vshrl.u32 %v251, 4
  %v253 = vand.u32 %v251, 15
  %v254 = vsub.s32 0, %v253
  %v255 = vsel %vm249, %v254, %v253
  %vm256 = vcmp.lt.s32.totalorder %v56, 0
  %v257 = vsub.s32 0, %v56
  %v258 = vsel %vm256, %v257, %v56
  %v259 = vshrl.u32 %v258, 4
  %v260 = vand.u32 %v258, 15
  %v261 = vsub.s32 0, %v260
  %v262 = vsel %vm256, %v261, %v260
  %vm263 = vcmp.lt.s32.totalorder %v57, 0
  %v264 = vsub.s32 0, %v57
  %v265 = vsel %vm263, %v264, %v57
  %v266 = vshrl.u32 %v265, 4
  %v267 = vand.u32 %v265, 15
  %v268 = vsub.s32 0, %v267
  %v269 = vsel %vm263, %v268, %v267
  %vm270 = vcmp.lt.s32.totalorder %v58, 0
  %v271 = vsub.s32 0, %v58
  %v272 = vsel %vm270, %v271, %v58
  %v273 = vshrl.u32 %v272, 4
  %v274 = vand.u32 %v272, 15
  %v275 = vsub.s32 0, %v274
  %v276 = vsel %vm270, %v275, %v274
  %vm277 = vcmp.lt.s32.totalorder %v59, 0
  %v278 = vsub.s32 0, %v59
  %v279 = vsel %vm277, %v278, %v59
  %v280 = vshrl.u32 %v279, 4
  %v281 = vand.u32 %v279, 15
  %v282 = vsub.s32 0, %v281
  %v283 = vsel %vm277, %v282, %v281
  %vm284 = vcmp.ne.s32.totalorder %v66, 0
  %vm285 = vcmp.ne.s32.totalorder %v73, 0
  %vm286 = vcmp.ne.s32.totalorder %v80, 0
  %vm287 = vcmp.ne.s32.totalorder %v87, 0
  %vm288 = vcmp.ne.s32.totalorder %v94, 0
  %vm289 = vcmp.ne.s32.totalorder %v101, 0
  %vm290 = vcmp.ne.s32.totalorder %v108, 0
  %vm291 = vcmp.ne.s32.totalorder %v115, 0
  %vm292 = vcmp.ne.s32.totalorder %v122, 0
  %vm293 = vcmp.ne.s32.totalorder %v129, 0
  %vm294 = vcmp.ne.s32.totalorder %v136, 0
  %vm295 = vcmp.ne.s32.totalorder %v143, 0
  %vm296 = vcmp.ne.s32.totalorder %v150, 0
  %vm297 = vcmp.ne.s32.totalorder %v157, 0
  %vm298 = vcmp.ne.s32.totalorder %v164, 0
  %vm299 = vcmp.ne.s32.totalorder %v171, 0
  %vm300 = vcmp.ne.s32.totalorder %v178, 0
  %vm301 = vcmp.ne.s32.totalorder %v185, 0
  %vm302 = vcmp.ne.s32.totalorder %v192, 0
  %vm303 = vcmp.ne.s32.totalorder %v199, 0
  %vm304 = vcmp.ne.s32.totalorder %v206, 0
  %vm305 = vcmp.ne.s32.totalorder %v213, 0
  %vm306 = vcmp.ne.s32.totalorder %v220, 0
  %vm307 = vcmp.ne.s32.totalorder %v227, 0
  %vm308 = vcmp.ne.s32.totalorder %v234, 0
  %vm309 = vcmp.ne.s32.totalorder %v241, 0
  %vm310 = vcmp.ne.s32.totalorder %v248, 0
  %vm311 = vcmp.ne.s32.totalorder %v255, 0
  %vm312 = vcmp.ne.s32.totalorder %v262, 0
  %vm313 = vcmp.ne.s32.totalorder %v269, 0
  %vm314 = vcmp.ne.s32.totalorder %v276, 0
  %vm315 = vcmp.ne.s32.totalorder %v283, 0
  %vm316 = vcmp.lt.s32.totalorder %v66, 0
  %vm317 = vcmp.lt.s32.totalorder %v73, 0
  %vm318 = vcmp.lt.s32.totalorder %v80, 0
  %vm319 = vcmp.lt.s32.totalorder %v87, 0
  %vm320 = vcmp.lt.s32.totalorder %v94, 0
  %vm321 = vcmp.lt.s32.totalorder %v101, 0
  %vm322 = vcmp.lt.s32.totalorder %v108, 0
  %vm323 = vcmp.lt.s32.totalorder %v115, 0
  %vm324 = vcmp.lt.s32.totalorder %v122, 0
  %vm325 = vcmp.lt.s32.totalorder %v129, 0
  %vm326 = vcmp.lt.s32.totalorder %v136, 0
  %vm327 = vcmp.lt.s32.totalorder %v143, 0
  %vm328 = vcmp.lt.s32.totalorder %v150, 0
  %vm329 = vcmp.lt.s32.totalorder %v157, 0
  %vm330 = vcmp.lt.s32.totalorder %v164, 0
  %vm331 = vcmp.lt.s32.totalorder %v171, 0
  %vm332 = vcmp.lt.s32.totalorder %v178, 0
  %vm333 = vcmp.lt.s32.totalorder %v185, 0
  %vm334 = vcmp.lt.s32.totalorder %v192, 0
  %vm335 = vcmp.lt.s32.totalorder %v199, 0
  %vm336 = vcmp.lt.s32.totalorder %v206, 0
  %vm337 = vcmp.lt.s32.totalorder %v213, 0
  %vm338 = vcmp.lt.s32.totalorder %v220, 0
  %vm339 = vcmp.lt.s32.totalorder %v227, 0
  %vm340 = vcmp.lt.s32.totalorder %v234, 0
  %vm341 = vcmp.lt.s32.totalorder %v241, 0
  %vm342 = vcmp.lt.s32.totalorder %v248, 0
  %vm343 = vcmp.lt.s32.totalorder %v255, 0
  %vm344 = vcmp.lt.s32.totalorder %v262, 0
  %vm345 = vcmp.lt.s32.totalorder %v269, 0
  %vm346 = vcmp.lt.s32.totalorder %v276, 0
  %vm347 = vcmp.lt.s32.totalorder %v283, 0
  %vm348 = vmand %vm316, %vm284
  %vm349 = vmand %vm317, %vm285
  %vm350 = vmand %vm318, %vm286
  %vm351 = vmand %vm319, %vm287
  %vm352 = vmand %vm320, %vm288
  %vm353 = vmand %vm321, %vm289
  %vm354 = vmand %vm322, %vm290
  %vm355 = vmand %vm323, %vm291
  %vm356 = vmand %vm324, %vm292
  %vm357 = vmand %vm325, %vm293
  %vm358 = vmand %vm326, %vm294
  %vm359 = vmand %vm327, %vm295
  %vm360 = vmand %vm328, %vm296
  %vm361 = vmand %vm329, %vm297
  %vm362 = vmand %vm330, %vm298
  %vm363 = vmand %vm331, %vm299
  %vm364 = vmand %vm332, %vm300
  %vm365 = vmand %vm333, %vm301
  %vm366 = vmand %vm334, %vm302
  %vm367 = vmand %vm335, %vm303
  %vm368 = vmand %vm336, %vm304
  %vm369 = vmand %vm337, %vm305
  %vm370 = vmand %vm338, %vm306
  %vm371 = vmand %vm339, %vm307
  %vm372 = vmand %vm340, %vm308
  %vm373 = vmand %vm341, %vm309
  %vm374 = vmand %vm342, %vm310
  %vm375 = vmand %vm343, %vm311
  %vm376 = vmand %vm344, %vm312
  %vm377 = vmand %vm345, %vm313
  %vm378 = vmand %vm346, %vm314
  %vm379 = vmand %vm347, %vm315
  %v380 = vadd.s32 %v66, 16
  %v381 = vadd.s32 %v73, 16
  %v382 = vadd.s32 %v80, 16
  %v383 = vadd.s32 %v87, 16
  %v384 = vadd.s32 %v94, 16
  %v385 = vadd.s32 %v101, 16
  %v386 = vadd.s32 %v108, 16
  %v387 = vadd.s32 %v115, 16
  %v388 = vadd.s32 %v122, 16
  %v389 = vadd.s32 %v129, 16
  %v390 = vadd.s32 %v136, 16
  %v391 = vadd.s32 %v143, 16
  %v392 = vadd.s32 %v150, 16
  %v393 = vadd.s32 %v157, 16
  %v394 = vadd.s32 %v164, 16
  %v395 = vadd.s32 %v171, 16
  %v396 = vadd.s32 %v178, 16
  %v397 = vadd.s32 %v185, 16
  %v398 = vadd.s32 %v192, 16
  %v399 = vadd.s32 %v199, 16
  %v400 = vadd.s32 %v206, 16
  %v401 = vadd.s32 %v213, 16
  %v402 = vadd.s32 %v220, 16
  %v403 = vadd.s32 %v227, 16
  %v404 = vadd.s32 %v234, 16
  %v405 = vadd.s32 %v241, 16
  %v406 = vadd.s32 %v248, 16
  %v407 = vadd.s32 %v255, 16
  %v408 = vadd.s32 %v262, 16
  %v409 = vadd.s32 %v269, 16
  %v410 = vadd.s32 %v276, 16
  %v411 = vadd.s32 %v283, 16
  %v412 = vsel %vm348, %v380, %v66
  %v413 = vsel %vm349, %v381, %v73
  %v414 = vsel %vm350, %v382, %v80
  %v415 = vsel %vm351, %v383, %v87
  %v416 = vsel %vm352, %v384, %v94
  %v417 = vsel %vm353, %v385, %v101
  %v418 = vsel %vm354, %v386, %v108
  %v419 = vsel %vm355, %v387, %v115
  %v420 = vsel %vm356, %v388, %v122
  %v421 = vsel %vm357, %v389, %v129
  %v422 = vsel %vm358, %v390, %v136
  %v423 = vsel %vm359, %v391, %v143
  %v424 = vsel %vm360, %v392, %v150
  %v425 = vsel %vm361, %v393, %v157
  %v426 = vsel %vm362, %v394, %v164
  %v427 = vsel %vm363, %v395, %v171
  %v428 = vsel %vm364, %v396, %v178
  %v429 = vsel %vm365, %v397, %v185
  %v430 = vsel %vm366, %v398, %v192
  %v431 = vsel %vm367, %v399, %v199
  %v432 = vsel %vm368, %v400, %v206
  %v433 = vsel %vm369, %v401, %v213
  %v434 = vsel %vm370, %v402, %v220
  %v435 = vsel %vm371, %v403, %v227
  %v436 = vsel %vm372, %v404, %v234
  %v437 = vsel %vm373, %v405, %v241
  %v438 = vsel %vm374, %v406, %v248
  %v439 = vsel %vm375, %v407, %v255
  %v440 = vsel %vm376, %v408, %v262
  %v441 = vsel %vm377, %v409, %v269
  %v442 = vsel %vm378, %v410, %v276
  %v443 = vsel %vm379, %v411, %v283
  %vm444 = vcmp.ge.s32.totalorder %v412, 1
  %vm445 = vcmp.ge.s32.totalorder %v413, 1
  %vm446 = vcmp.ge.s32.totalorder %v414, 1
  %vm447 = vcmp.ge.s32.totalorder %v415, 1
  %vm448 = vcmp.ge.s32.totalorder %v416, 1
  %vm449 = vcmp.ge.s32.totalorder %v417, 1
  %vm450 = vcmp.ge.s32.totalorder %v418, 1
  %vm451 = vcmp.ge.s32.totalorder %v419, 1
  %vm452 = vcmp.ge.s32.totalorder %v420, 1
  %vm453 = vcmp.ge.s32.totalorder %v421, 1
  %vm454 = vcmp.ge.s32.totalorder %v422, 1
  %vm455 = vcmp.ge.s32.totalorder %v423, 1
  %vm456 = vcmp.ge.s32.totalorder %v424, 1
  %vm457 = vcmp.ge.s32.totalorder %v425, 1
  %vm458 = vcmp.ge.s32.totalorder %v426, 1
  %vm459 = vcmp.ge.s32.totalorder %v427, 1
  %vm460 = vcmp.ge.s32.totalorder %v428, 1
  %vm461 = vcmp.ge.s32.totalorder %v429, 1
  %vm462 = vcmp.ge.s32.totalorder %v430, 1
  %vm463 = vcmp.ge.s32.totalorder %v431, 1
  %vm464 = vcmp.ge.s32.totalorder %v432, 1
  %vm465 = vcmp.ge.s32.totalorder %v433, 1
  %vm466 = vcmp.ge.s32.totalorder %v434, 1
  %vm467 = vcmp.ge.s32.totalorder %v435, 1
  %vm468 = vcmp.ge.s32.totalorder %v436, 1
  %vm469 = vcmp.ge.s32.totalorder %v437, 1
  %vm470 = vcmp.ge.s32.totalorder %v438, 1
  %vm471 = vcmp.ge.s32.totalorder %v439, 1
  %vm472 = vcmp.ge.s32.totalorder %v440, 1
  %vm473 = vcmp.ge.s32.totalorder %v441, 1
  %vm474 = vcmp.ge.s32.totalorder %v442, 1
  %vm475 = vcmp.ge.s32.totalorder %v443, 1
  %vm476 = vcmp.lt.s32.totalorder %v412, 15
  %vm477 = vcmp.lt.s32.totalorder %v413, 15
  %vm478 = vcmp.lt.s32.totalorder %v414, 15
  %vm479 = vcmp.lt.s32.totalorder %v415, 15
  %vm480 = vcmp.lt.s32.totalorder %v416, 15
  %vm481 = vcmp.lt.s32.totalorder %v417, 15
  %vm482 = vcmp.lt.s32.totalorder %v418, 15
  %vm483 = vcmp.lt.s32.totalorder %v419, 15
  %vm484 = vcmp.lt.s32.totalorder %v420, 15
  %vm485 = vcmp.lt.s32.totalorder %v421, 15
  %vm486 = vcmp.lt.s32.totalorder %v422, 15
  %vm487 = vcmp.lt.s32.totalorder %v423, 15
  %vm488 = vcmp.lt.s32.totalorder %v424, 15
  %vm489 = vcmp.lt.s32.totalorder %v425, 15
  %vm490 = vcmp.lt.s32.totalorder %v426, 15
  %vm491 = vcmp.lt.s32.totalorder %v427, 15
  %vm492 = vcmp.lt.s32.totalorder %v428, 15
  %vm493 = vcmp.lt.s32.totalorder %v429, 15
  %vm494 = vcmp.lt.s32.totalorder %v430, 15
  %vm495 = vcmp.lt.s32.totalorder %v431, 15
  %vm496 = vcmp.lt.s32.totalorder %v432, 15
  %vm497 = vcmp.lt.s32.totalorder %v433, 15
  %vm498 = vcmp.lt.s32.totalorder %v434, 15
  %vm499 = vcmp.lt.s32.totalorder %v435, 15
  %vm500 = vcmp.lt.s32.totalorder %v436, 15
  %vm501 = vcmp.lt.s32.totalorder %v437, 15
  %vm502 = vcmp.lt.s32.totalorder %v438, 15
  %vm503 = vcmp.lt.s32.totalorder %v439, 15
  %vm504 = vcmp.lt.s32.totalorder %v440, 15
  %vm505 = vcmp.lt.s32.totalorder %v441, 15
  %vm506 = vcmp.lt.s32.totalorder %v442, 15
  %vm507 = vcmp.lt.s32.totalorder %v443, 15
  %vm508 = vcmask 64512
  %509 = vst.msk [vmem:[#allocation2] sm:$0xff] %vm508, 0.0
  %510 = vst.msk [vmem:[#allocation2 + $0x8] sm:$0xff] %vm508, 0.0
  %511 = vst.msk [vmem:[#allocation2 + $0x10] sm:$0xff] %vm508, 0.0
  %512 = vst.msk [vmem:[#allocation2 + $0x118] sm:$0xff] %vm508, 0.0
  %513 = vst.msk [vmem:[#allocation2 + $0x120] sm:$0xff] %vm508, 0.0
  %514 = vst.msk [vmem:[#allocation2 + $0x128] sm:$0xff] %vm508, 0.0
  %vm515 = vcmask 130048
  %516 = vst.msk [vmem:[#allocation3] sm:$0xff] %vm515, 0.0
  %517 = vst.msk [vmem:[#allocation3 + $0x8] sm:$0xff] %vm515, 0.0
  %518 = vst.msk [vmem:[#allocation3 + $0x10] sm:$0xff] %vm515, 0.0
  %519 = vst.msk [vmem:[#allocation3 + $0x118] sm:$0xff] %vm515, 0.0
  %520 = vst.msk [vmem:[#allocation3 + $0x120] sm:$0xff] %vm515, 0.0
  %521 = vst.msk [vmem:[#allocation3 + $0x128] sm:$0xff] %vm515, 0.0
  %v522 = vld [vmem:[%s0] sm:$0xff]
  %v523 = vld [vmem:[%s0 + $0x8] sm:$0xff]
  %v524 = vld [vmem:[%s0 + $0x10] sm:$0xff]
  %v525 = vld [vmem:[%s0 + $0x18] sm:$0xff]
  %v526 = vld [vmem:[%s0 + $0x20] sm:$0xff]
  %v527 = vld [vmem:[%s0 + $0x28] sm:$0xff]
  %v528 = vld [vmem:[%s0 + $0x30] sm:$0xff]
  %v529 = vld [vmem:[%s0 + $0x38] sm:$0xff]
  %v530 = vld [vmem:[%s0 + $0x40] sm:$0xff]
  %v531 = vld [vmem:[%s0 + $0x48] sm:$0xff]
  %v532 = vld [vmem:[%s0 + $0x50] sm:$0xff]
  %v533 = vld [vmem:[%s0 + $0x58] sm:$0xff]
  %v534 = vld [vmem:[%s0 + $0x60] sm:$0xff]
  %v535 = vld [vmem:[%s0 + $0x68] sm:$0xff]
  %v536 = vld [vmem:[%s0 + $0x70] sm:$0xff]
  %v537 = vld [vmem:[%s0 + $0x78] sm:$0xff]
  %v538 = vld [vmem:[%s0 + $0x80] sm:$0xff]
  %v539 = vld [vmem:[%s0 + $0x88] sm:$0xff]
  %v540 = vld [vmem:[%s0 + $0x90] sm:$0xff]
  %v541 = vld [vmem:[%s0 + $0x98] sm:$0xff]
  %v542 = vld [vmem:[%s0 + $0xa0] sm:$0xff]
  %v543 = vld [vmem:[%s0 + $0xa8] sm:$0xff]
  %v544 = vld [vmem:[%s0 + $0xb0] sm:$0xff]
  %v545 = vld [vmem:[%s0 + $0xb8] sm:$0xff]
  %v546 = vld [vmem:[%s0 + $0xc0] sm:$0xff]
  %v547 = vld [vmem:[%s0 + $0xc8] sm:$0xff]
  %v548 = vld [vmem:[%s0 + $0xd0] sm:$0xff]
  %v549 = vld [vmem:[%s0 + $0xd8] sm:$0xff]
  %v550 = vld [vmem:[%s0 + $0xe0] sm:$0xff]
  %v551 = vld [vmem:[%s0 + $0xe8] sm:$0xff]
  %v552 = vld [vmem:[%s0 + $0xf0] sm:$0xff]
  %v553 = vld [vmem:[%s0 + $0xf8] sm:$0xff]
  %554 = vst.msk [vmem:[#allocation2 + $0x18] sm:$0xff] %vm508, %v522
  %555 = vst.msk [vmem:[#allocation2 + $0x20] sm:$0xff] %vm508, %v523
  %556 = vst.msk [vmem:[#allocation2 + $0x28] sm:$0xff] %vm508, %v524
  %557 = vst.msk [vmem:[#allocation2 + $0x30] sm:$0xff] %vm508, %v525
  %558 = vst.msk [vmem:[#allocation2 + $0x38] sm:$0xff] %vm508, %v526
  %559 = vst.msk [vmem:[#allocation2 + $0x40] sm:$0xff] %vm508, %v527
  %560 = vst.msk [vmem:[#allocation2 + $0x48] sm:$0xff] %vm508, %v528
  %561 = vst.msk [vmem:[#allocation2 + $0x50] sm:$0xff] %vm508, %v529
  %562 = vst.msk [vmem:[#allocation2 + $0x58] sm:$0xff] %vm508, %v530
  %563 = vst.msk [vmem:[#allocation2 + $0x60] sm:$0xff] %vm508, %v531
  %564 = vst.msk [vmem:[#allocation2 + $0x68] sm:$0xff] %vm508, %v532
  %565 = vst.msk [vmem:[#allocation2 + $0x70] sm:$0xff] %vm508, %v533
  %566 = vst.msk [vmem:[#allocation2 + $0x78] sm:$0xff] %vm508, %v534
  %567 = vst.msk [vmem:[#allocation2 + $0x80] sm:$0xff] %vm508, %v535
  %568 = vst.msk [vmem:[#allocation2 + $0x88] sm:$0xff] %vm508, %v536
  %569 = vst.msk [vmem:[#allocation2 + $0x90] sm:$0xff] %vm508, %v537
  %570 = vst.msk [vmem:[#allocation2 + $0x98] sm:$0xff] %vm508, %v538
  %571 = vst.msk [vmem:[#allocation2 + $0xa0] sm:$0xff] %vm508, %v539
  %572 = vst.msk [vmem:[#allocation2 + $0xa8] sm:$0xff] %vm508, %v540
  %573 = vst.msk [vmem:[#allocation2 + $0xb0] sm:$0xff] %vm508, %v541
  %574 = vst.msk [vmem:[#allocation2 + $0xb8] sm:$0xff] %vm508, %v542
  %575 = vst.msk [vmem:[#allocation2 + $0xc0] sm:$0xff] %vm508, %v543
  %576 = vst.msk [vmem:[#allocation2 + $0xc8] sm:$0xff] %vm508, %v544
  %577 = vst.msk [vmem:[#allocation2 + $0xd0] sm:$0xff] %vm508, %v545
  %578 = vst.msk [vmem:[#allocation2 + $0xd8] sm:$0xff] %vm508, %v546
  %579 = vst.msk [vmem:[#allocation2 + $0xe0] sm:$0xff] %vm508, %v547
  %580 = vst.msk [vmem:[#allocation2 + $0xe8] sm:$0xff] %vm508, %v548
  %581 = vst.msk [vmem:[#allocation2 + $0xf0] sm:$0xff] %vm508, %v549
  %582 = vst.msk [vmem:[#allocation2 + $0xf8] sm:$0xff] %vm508, %v550
  %583 = vst.msk [vmem:[#allocation2 + $0x100] sm:$0xff] %vm508, %v551
  %584 = vst.msk [vmem:[#allocation2 + $0x108] sm:$0xff] %vm508, %v552
  %585 = vst.msk [vmem:[#allocation2 + $0x110] sm:$0xff] %vm508, %v553
  %v586 = vld [vmem:[#allocation2 + $0x7] sm:$0xff]
  %v587 = vld [vmem:[#allocation2 + $0xf] sm:$0xff]
  %v588 = vld [vmem:[#allocation2 + $0x17] sm:$0xff]
  %v589 = vld [vmem:[#allocation2 + $0x1f] sm:$0xff]
  %v590 = vld [vmem:[#allocation2 + $0x27] sm:$0xff]
  %v591 = vld [vmem:[#allocation2 + $0x2f] sm:$0xff]
  %v592 = vld [vmem:[#allocation2 + $0x37] sm:$0xff]
  %v593 = vld [vmem:[#allocation2 + $0x3f] sm:$0xff]
  %v594 = vld [vmem:[#allocation2 + $0x47] sm:$0xff]
  %v595 = vld [vmem:[#allocation2 + $0x4f] sm:$0xff]
  %v596 = vld [vmem:[#allocation2 + $0x57] sm:$0xff]
  %v597 = vld [vmem:[#allocation2 + $0x5f] sm:$0xff]
  %v598 = vld [vmem:[#allocation2 + $0x67] sm:$0xff]
  %v599 = vld [vmem:[#allocation2 + $0x6f] sm:$0xff]
  %v600 = vld [vmem:[#allocation2 + $0x77] sm:$0xff]
  %v601 = vld [vmem:[#allocation2 + $0x7f] sm:$0xff]
  %v602 = vld [vmem:[#allocation2 + $0x87] sm:$0xff]
  %v603 = vld [vmem:[#allocation2 + $0x8f] sm:$0xff]
  %v604 = vld [vmem:[#allocation2 + $0x97] sm:$0xff]
  %v605 = vld [vmem:[#allocation2 + $0x9f] sm:$0xff]
  %v606 = vld [vmem:[#allocation2 + $0xa7] sm:$0xff]
  %v607 = vld [vmem:[#allocation2 + $0xaf] sm:$0xff]
  %v608 = vld [vmem:[#allocation2 + $0xb7] sm:$0xff]
  %v609 = vld [vmem:[#allocation2 + $0xbf] sm:$0xff]
  %v610 = vld [vmem:[#allocation2 + $0xc7] sm:$0xff]
  %v611 = vld [vmem:[#allocation2 + $0xcf] sm:$0xff]
  %v612 = vld [vmem:[#allocation2 + $0xd7] sm:$0xff]
  %v613 = vld [vmem:[#allocation2 + $0xdf] sm:$0xff]
  %v614 = vld [vmem:[#allocation2 + $0xe7] sm:$0xff]
  %v615 = vld [vmem:[#allocation2 + $0xef] sm:$0xff]
  %v616 = vld [vmem:[#allocation2 + $0xf7] sm:$0xff]
  %v617 = vld [vmem:[#allocation2 + $0xff] sm:$0xff]
  %v618 = vsel %vm444, 1, 0
  %v619 = vsel %vm445, 1, 0
  %v620 = vsel %vm446, 1, 0
  %v621 = vsel %vm447, 1, 0
  %v622 = vsel %vm448, 1, 0
  %v623 = vsel %vm449, 1, 0
  %v624 = vsel %vm450, 1, 0
  %v625 = vsel %vm451, 1, 0
  %v626 = vsel %vm452, 1, 0
  %v627 = vsel %vm453, 1, 0
  %v628 = vsel %vm454, 1, 0
  %v629 = vsel %vm455, 1, 0
  %v630 = vsel %vm456, 1, 0
  %v631 = vsel %vm457, 1, 0
  %v632 = vsel %vm458, 1, 0
  %v633 = vsel %vm459, 1, 0
  %v634 = vsel %vm460, 1, 0
  %v635 = vsel %vm461, 1, 0
  %v636 = vsel %vm462, 1, 0
  %v637 = vsel %vm463, 1, 0
  %v638 = vsel %vm464, 1, 0
  %v639 = vsel %vm465, 1, 0
  %v640 = vsel %vm466, 1, 0
  %v641 = vsel %vm467, 1, 0
  %v642 = vsel %vm468, 1, 0
  %v643 = vsel %vm469, 1, 0
  %v644 = vsel %vm470, 1, 0
  %v645 = vsel %vm471, 1, 0
  %v646 = vsel %vm472, 1, 0
  %v647 = vsel %vm473, 1, 0
  %v648 = vsel %vm474, 1, 0
  %v649 = vsel %vm475, 1, 0
  %vm650 = vcmp.eq.s32.totalorder %v618, 1
  %vm651 = vcmp.eq.s32.totalorder %v619, 1
  %vm652 = vcmp.eq.s32.totalorder %v620, 1
  %vm653 = vcmp.eq.s32.totalorder %v621, 1
  %vm654 = vcmp.eq.s32.totalorder %v622, 1
  %vm655 = vcmp.eq.s32.totalorder %v623, 1
  %vm656 = vcmp.eq.s32.totalorder %v624, 1
  %vm657 = vcmp.eq.s32.totalorder %v625, 1
  %vm658 = vcmp.eq.s32.totalorder %v626, 1
  %vm659 = vcmp.eq.s32.totalorder %v627, 1
  %vm660 = vcmp.eq.s32.totalorder %v628, 1
  %vm661 = vcmp.eq.s32.totalorder %v629, 1
  %vm662 = vcmp.eq.s32.totalorder %v630, 1
  %vm663 = vcmp.eq.s32.totalorder %v631, 1
  %vm664 = vcmp.eq.s32.totalorder %v632, 1
  %vm665 = vcmp.eq.s32.totalorder %v633, 1
  %vm666 = vcmp.eq.s32.totalorder %v634, 1
  %vm667 = vcmp.eq.s32.totalorder %v635, 1
  %vm668 = vcmp.eq.s32.totalorder %v636, 1
  %vm669 = vcmp.eq.s32.totalorder %v637, 1
  %vm670 = vcmp.eq.s32.totalorder %v638, 1
  %vm671 = vcmp.eq.s32.totalorder %v639, 1
  %vm672 = vcmp.eq.s32.totalorder %v640, 1
  %vm673 = vcmp.eq.s32.totalorder %v641, 1
  %vm674 = vcmp.eq.s32.totalorder %v642, 1
  %vm675 = vcmp.eq.s32.totalorder %v643, 1
  %vm676 = vcmp.eq.s32.totalorder %v644, 1
  %vm677 = vcmp.eq.s32.totalorder %v645, 1
  %vm678 = vcmp.eq.s32.totalorder %v646, 1
  %vm679 = vcmp.eq.s32.totalorder %v647, 1
  %vm680 = vcmp.eq.s32.totalorder %v648, 1
  %vm681 = vcmp.eq.s32.totalorder %v649, 1
  %v682 = vsel %vm650, %v586, 0.0
  %v683 = vsel %vm651, %v587, 0.0
  %v684 = vsel %vm652, %v588, 0.0
  %v685 = vsel %vm653, %v589, 0.0
  %v686 = vsel %vm654, %v590, 0.0
  %v687 = vsel %vm655, %v591, 0.0
  %v688 = vsel %vm656, %v592, 0.0
  %v689 = vsel %vm657, %v593, 0.0
  %v690 = vsel %vm658, %v594, 0.0
  %v691 = vsel %vm659, %v595, 0.0
  %v692 = vsel %vm660, %v596, 0.0
  %v693 = vsel %vm661, %v597, 0.0
  %v694 = vsel %vm662, %v598, 0.0
  %v695 = vsel %vm663, %v599, 0.0
  %v696 = vsel %vm664, %v600, 0.0
  %v697 = vsel %vm665, %v601, 0.0
  %v698 = vsel %vm666, %v602, 0.0
  %v699 = vsel %vm667, %v603, 0.0
  %v700 = vsel %vm668, %v604, 0.0
  %v701 = vsel %vm669, %v605, 0.0
  %v702 = vsel %vm670, %v606, 0.0
  %v703 = vsel %vm671, %v607, 0.0
  %v704 = vsel %vm672, %v608, 0.0
  %v705 = vsel %vm673, %v609, 0.0
  %v706 = vsel %vm674, %v610, 0.0
  %v707 = vsel %vm675, %v611, 0.0
  %v708 = vsel %vm676, %v612, 0.0
  %v709 = vsel %vm677, %v613, 0.0
  %v710 = vsel %vm678, %v614, 0.0
  %v711 = vsel %vm679, %v615, 0.0
  %v712 = vsel %vm680, %v616, 0.0
  %v713 = vsel %vm681, %v617, 0.0
  %714 = vst.msk [vmem:[#allocation4] sm:$0xff] %vm508, %v682
  %715 = vst.msk [vmem:[#allocation4 + $0x8] sm:$0xff] %vm508, %v683
  %716 = vst.msk [vmem:[#allocation4 + $0x10] sm:$0xff] %vm508, %v684
  %717 = vst.msk [vmem:[#allocation4 + $0x18] sm:$0xff] %vm508, %v685
  %718 = vst.msk [vmem:[#allocation4 + $0x20] sm:$0xff] %vm508, %v686
  %719 = vst.msk [vmem:[#allocation4 + $0x28] sm:$0xff] %vm508, %v687
  %720 = vst.msk [vmem:[#allocation4 + $0x30] sm:$0xff] %vm508, %v688
  %721 = vst.msk [vmem:[#allocation4 + $0x38] sm:$0xff] %vm508, %v689
  %722 = vst.msk [vmem:[#allocation4 + $0x40] sm:$0xff] %vm508, %v690
  %723 = vst.msk [vmem:[#allocation4 + $0x48] sm:$0xff] %vm508, %v691
  %724 = vst.msk [vmem:[#allocation4 + $0x50] sm:$0xff] %vm508, %v692
  %725 = vst.msk [vmem:[#allocation4 + $0x58] sm:$0xff] %vm508, %v693
  %726 = vst.msk [vmem:[#allocation4 + $0x60] sm:$0xff] %vm508, %v694
  %727 = vst.msk [vmem:[#allocation4 + $0x68] sm:$0xff] %vm508, %v695
  %728 = vst.msk [vmem:[#allocation4 + $0x70] sm:$0xff] %vm508, %v696
  %729 = vst.msk [vmem:[#allocation4 + $0x78] sm:$0xff] %vm508, %v697
  %730 = vst.msk [vmem:[#allocation4 + $0x80] sm:$0xff] %vm508, %v698
  %731 = vst.msk [vmem:[#allocation4 + $0x88] sm:$0xff] %vm508, %v699
  %732 = vst.msk [vmem:[#allocation4 + $0x90] sm:$0xff] %vm508, %v700
  %733 = vst.msk [vmem:[#allocation4 + $0x98] sm:$0xff] %vm508, %v701
  %734 = vst.msk [vmem:[#allocation4 + $0xa0] sm:$0xff] %vm508, %v702
  %735 = vst.msk [vmem:[#allocation4 + $0xa8] sm:$0xff] %vm508, %v703
  %736 = vst.msk [vmem:[#allocation4 + $0xb0] sm:$0xff] %vm508, %v704
  %737 = vst.msk [vmem:[#allocation4 + $0xb8] sm:$0xff] %vm508, %v705
  %738 = vst.msk [vmem:[#allocation4 + $0xc0] sm:$0xff] %vm508, %v706
  %739 = vst.msk [vmem:[#allocation4 + $0xc8] sm:$0xff] %vm508, %v707
  %740 = vst.msk [vmem:[#allocation4 + $0xd0] sm:$0xff] %vm508, %v708
  %741 = vst.msk [vmem:[#allocation4 + $0xd8] sm:$0xff] %vm508, %v709
  %742 = vst.msk [vmem:[#allocation4 + $0xe0] sm:$0xff] %vm508, %v710
  %743 = vst.msk [vmem:[#allocation4 + $0xe8] sm:$0xff] %vm508, %v711
  %744 = vst.msk [vmem:[#allocation4 + $0xf0] sm:$0xff] %vm508, %v712
  %745 = vst.msk [vmem:[#allocation4 + $0xf8] sm:$0xff] %vm508, %v713
  %v746 = vld [vmem:[#allocation2 + $0x8] sm:$0xff]
  %v747 = vld [vmem:[#allocation2 + $0x10] sm:$0xff]
  %v748 = vld [vmem:[#allocation2 + $0x18] sm:$0xff]
  %v749 = vld [vmem:[#allocation2 + $0x20] sm:$0xff]
  %v750 = vld [vmem:[#allocation2 + $0x28] sm:$0xff]
  %v751 = vld [vmem:[#allocation2 + $0x30] sm:$0xff]
  %v752 = vld [vmem:[#allocation2 + $0x38] sm:$0xff]
  %v753 = vld [vmem:[#allocation2 + $0x40] sm:$0xff]
  %v754 = vld [vmem:[#allocation2 + $0x48] sm:$0xff]
  %v755 = vld [vmem:[#allocation2 + $0x50] sm:$0xff]
  %v756 = vld [vmem:[#allocation2 + $0x58] sm:$0xff]
  %v757 = vld [vmem:[#allocation2 + $0x60] sm:$0xff]
  %v758 = vld [vmem:[#allocation2 + $0x68] sm:$0xff]
  %v759 = vld [vmem:[#allocation2 + $0x70] sm:$0xff]
  %v760 = vld [vmem:[#allocation2 + $0x78] sm:$0xff]
  %v761 = vld [vmem:[#allocation2 + $0x80] sm:$0xff]
  %v762 = vld [vmem:[#allocation2 + $0x88] sm:$0xff]
  %v763 = vld [vmem:[#allocation2 + $0x90] sm:$0xff]
  %v764 = vld [vmem:[#allocation2 + $0x98] sm:$0xff]
  %v765 = vld [vmem:[#allocation2 + $0xa0] sm:$0xff]
  %v766 = vld [vmem:[#allocation2 + $0xa8] sm:$0xff]
  %v767 = vld [vmem:[#allocation2 + $0xb0] sm:$0xff]
  %v768 = vld [vmem:[#allocation2 + $0xb8] sm:$0xff]
  %v769 = vld [vmem:[#allocation2 + $0xc0] sm:$0xff]
  %v770 = vld [vmem:[#allocation2 + $0xc8] sm:$0xff]
  %v771 = vld [vmem:[#allocation2 + $0xd0] sm:$0xff]
  %v772 = vld [vmem:[#allocation2 + $0xd8] sm:$0xff]
  %v773 = vld [vmem:[#allocation2 + $0xe0] sm:$0xff]
  %v774 = vld [vmem:[#allocation2 + $0xe8] sm:$0xff]
  %v775 = vld [vmem:[#allocation2 + $0xf0] sm:$0xff]
  %v776 = vld [vmem:[#allocation2 + $0xf8] sm:$0xff]
  %v777 = vld [vmem:[#allocation2 + $0x100] sm:$0xff]
  %810 = vrot.lane.b32.xlu0 %v746, 8
  %v811 = vpop.permute.xlu0 %810
  %812 = vrot.lane.b32.xlu0 %v747, 8
  %v813 = vpop.permute.xlu0 %812
  %814 = vrot.lane.b32.xlu0 %v748, 8
  %v815 = vpop.permute.xlu0 %814
  %816 = vrot.lane.b32.xlu0 %v749, 8
  %v817 = vpop.permute.xlu0 %816
  %818 = vrot.lane.b32.xlu0 %v750, 8
  %v819 = vpop.permute.xlu0 %818
  %820 = vrot.lane.b32.xlu0 %v751, 8
  %v821 = vpop.permute.xlu0 %820
  %822 = vrot.lane.b32.xlu0 %v752, 8
  %v823 = vpop.permute.xlu0 %822
  %824 = vrot.lane.b32.xlu0 %v753, 8
  %v825 = vpop.permute.xlu0 %824
  %826 = vrot.lane.b32.xlu0 %v754, 8
  %v827 = vpop.permute.xlu0 %826
  %828 = vrot.lane.b32.xlu0 %v755, 8
  %v829 = vpop.permute.xlu0 %828
  %830 = vrot.lane.b32.xlu0 %v756, 8
  %v831 = vpop.permute.xlu0 %830
  %832 = vrot.lane.b32.xlu0 %v757, 8
  %v833 = vpop.permute.xlu0 %832
  %834 = vrot.lane.b32.xlu0 %v758, 8
  %v835 = vpop.permute.xlu0 %834
  %836 = vrot.lane.b32.xlu0 %v759, 8
  %v837 = vpop.permute.xlu0 %836
  %838 = vrot.lane.b32.xlu0 %v760, 8
  %v839 = vpop.permute.xlu0 %838
  %840 = vrot.lane.b32.xlu0 %v761, 8
  %v841 = vpop.permute.xlu0 %840
  %842 = vrot.lane.b32.xlu0 %v762, 8
  %v843 = vpop.permute.xlu0 %842
  %844 = vrot.lane.b32.xlu0 %v763, 8
  %v845 = vpop.permute.xlu0 %844
  %846 = vrot.lane.b32.xlu0 %v764, 8
  %v847 = vpop.permute.xlu0 %846
  %848 = vrot.lane.b32.xlu0 %v765, 8
  %v849 = vpop.permute.xlu0 %848
  %850 = vrot.lane.b32.xlu0 %v766, 8
  %v851 = vpop.permute.xlu0 %850
  %852 = vrot.lane.b32.xlu0 %v767, 8
  %v853 = vpop.permute.xlu0 %852
  %854 = vrot.lane.b32.xlu0 %v768, 8
  %v855 = vpop.permute.xlu0 %854
  %856 = vrot.lane.b32.xlu0 %v769, 8
  %v857 = vpop.permute.xlu0 %856
  %858 = vrot.lane.b32.xlu0 %v770, 8
  %v859 = vpop.permute.xlu0 %858
  %860 = vrot.lane.b32.xlu0 %v771, 8
  %v861 = vpop.permute.xlu0 %860
  %862 = vrot.lane.b32.xlu0 %v772, 8
  %v863 = vpop.permute.xlu0 %862
  %864 = vrot.lane.b32.xlu0 %v773, 8
  %v865 = vpop.permute.xlu0 %864
  %866 = vrot.lane.b32.xlu0 %v774, 8
  %v867 = vpop.permute.xlu0 %866
  %868 = vrot.lane.b32.xlu0 %v775, 8
  %v869 = vpop.permute.xlu0 %868
  %870 = vrot.lane.b32.xlu0 %v776, 8
  %v871 = vpop.permute.xlu0 %870
  %872 = vrot.lane.b32.xlu0 %v777, 8
  %v873 = vpop.permute.xlu0 %872
  %vm906 = vcmask 130112
  %907 = vst.msk [vmem:[#allocation4] sm:$0xff] %vm906, %v811
  %908 = vst.msk [vmem:[#allocation4 + $0x8] sm:$0xff] %vm906, %v813
  %909 = vst.msk [vmem:[#allocation4 + $0x10] sm:$0xff] %vm906, %v815
  %910 = vst.msk [vmem:[#allocation4 + $0x18] sm:$0xff] %vm906, %v817
  %911 = vst.msk [vmem:[#allocation4 + $0x20] sm:$0xff] %vm906, %v819
  %912 = vst.msk [vmem:[#allocation4 + $0x28] sm:$0xff] %vm906, %v821
  %913 = vst.msk [vmem:[#allocation4 + $0x30] sm:$0xff] %vm906, %v823
  %914 = vst.msk [vmem:[#allocation4 + $0x38] sm:$0xff] %vm906, %v825
  %915 = vst.msk [vmem:[#allocation4 + $0x40] sm:$0xff] %vm906, %v827
  %916 = vst.msk [vmem:[#allocation4 + $0x48] sm:$0xff] %vm906, %v829
  %917 = vst.msk [vmem:[#allocation4 + $0x50] sm:$0xff] %vm906, %v831
  %918 = vst.msk [vmem:[#allocation4 + $0x58] sm:$0xff] %vm906, %v833
  %919 = vst.msk [vmem:[#allocation4 + $0x60] sm:$0xff] %vm906, %v835
  %920 = vst.msk [vmem:[#allocation4 + $0x68] sm:$0xff] %vm906, %v837
  %921 = vst.msk [vmem:[#allocation4 + $0x70] sm:$0xff] %vm906, %v839
  %922 = vst.msk [vmem:[#allocation4 + $0x78] sm:$0xff] %vm906, %v841
  %923 = vst.msk [vmem:[#allocation4 + $0x80] sm:$0xff] %vm906, %v843
  %924 = vst.msk [vmem:[#allocation4 + $0x88] sm:$0xff] %vm906, %v845
  %925 = vst.msk [vmem:[#allocation4 + $0x90] sm:$0xff] %vm906, %v847
  %926 = vst.msk [vmem:[#allocation4 + $0x98] sm:$0xff] %vm906, %v849
  %927 = vst.msk [vmem:[#allocation4 + $0xa0] sm:$0xff] %vm906, %v851
  %928 = vst.msk [vmem:[#allocation4 + $0xa8] sm:$0xff] %vm906, %v853
  %929 = vst.msk [vmem:[#allocation4 + $0xb0] sm:$0xff] %vm906, %v855
  %930 = vst.msk [vmem:[#allocation4 + $0xb8] sm:$0xff] %vm906, %v857
  %931 = vst.msk [vmem:[#allocation4 + $0xc0] sm:$0xff] %vm906, %v859
  %932 = vst.msk [vmem:[#allocation4 + $0xc8] sm:$0xff] %vm906, %v861
  %933 = vst.msk [vmem:[#allocation4 + $0xd0] sm:$0xff] %vm906, %v863
  %934 = vst.msk [vmem:[#allocation4 + $0xd8] sm:$0xff] %vm906, %v865
  %935 = vst.msk [vmem:[#allocation4 + $0xe0] sm:$0xff] %vm906, %v867
  %936 = vst.msk [vmem:[#allocation4 + $0xe8] sm:$0xff] %vm906, %v869
  %937 = vst.msk [vmem:[#allocation4 + $0xf0] sm:$0xff] %vm906, %v871
  %938 = vst.msk [vmem:[#allocation4 + $0xf8] sm:$0xff] %vm906, %v873
  %v939 = vld [vmem:[#allocation2 + $0x9] sm:$0xff]
  %v940 = vld [vmem:[#allocation2 + $0x11] sm:$0xff]
  %v941 = vld [vmem:[#allocation2 + $0x19] sm:$0xff]
  %v942 = vld [vmem:[#allocation2 + $0x21] sm:$0xff]
  %v943 = vld [vmem:[#allocation2 + $0x29] sm:$0xff]
  %v944 = vld [vmem:[#allocation2 + $0x31] sm:$0xff]
  %v945 = vld [vmem:[#allocation2 + $0x39] sm:$0xff]
  %v946 = vld [vmem:[#allocation2 + $0x41] sm:$0xff]
  %v947 = vld [vmem:[#allocation2 + $0x49] sm:$0xff]
  %v948 = vld [vmem:[#allocation2 + $0x51] sm:$0xff]
  %v949 = vld [vmem:[#allocation2 + $0x59] sm:$0xff]
  %v950 = vld [vmem:[#allocation2 + $0x61] sm:$0xff]
  %v951 = vld [vmem:[#allocation2 + $0x69] sm:$0xff]
  %v952 = vld [vmem:[#allocation2 + $0x71] sm:$0xff]
  %v953 = vld [vmem:[#allocation2 + $0x79] sm:$0xff]
  %v954 = vld [vmem:[#allocation2 + $0x81] sm:$0xff]
  %v955 = vld [vmem:[#allocation2 + $0x89] sm:$0xff]
  %v956 = vld [vmem:[#allocation2 + $0x91] sm:$0xff]
  %v957 = vld [vmem:[#allocation2 + $0x99] sm:$0xff]
  %v958 = vld [vmem:[#allocation2 + $0xa1] sm:$0xff]
  %v959 = vld [vmem:[#allocation2 + $0xa9] sm:$0xff]
  %v960 = vld [vmem:[#allocation2 + $0xb1] sm:$0xff]
  %v961 = vld [vmem:[#allocation2 + $0xb9] sm:$0xff]
  %v962 = vld [vmem:[#allocation2 + $0xc1] sm:$0xff]
  %v963 = vld [vmem:[#allocation2 + $0xc9] sm:$0xff]
  %v964 = vld [vmem:[#allocation2 + $0xd1] sm:$0xff]
  %v965 = vld [vmem:[#allocation2 + $0xd9] sm:$0xff]
  %v966 = vld [vmem:[#allocation2 + $0xe1] sm:$0xff]
  %v967 = vld [vmem:[#allocation2 + $0xe9] sm:$0xff]
  %v968 = vld [vmem:[#allocation2 + $0xf1] sm:$0xff]
  %v969 = vld [vmem:[#allocation2 + $0xf9] sm:$0xff]
  %v970 = vld [vmem:[#allocation2 + $0x101] sm:$0xff]
  %v971 = vsel %vm476, 1, 0
  %v972 = vsel %vm477, 1, 0
  %v973 = vsel %vm478, 1, 0
  %v974 = vsel %vm479, 1, 0
  %v975 = vsel %vm480, 1, 0
  %v976 = vsel %vm481, 1, 0
  %v977 = vsel %vm482, 1, 0
  %v978 = vsel %vm483, 1, 0
  %v979 = vsel %vm484, 1, 0
  %v980 = vsel %vm485, 1, 0
  %v981 = vsel %vm486, 1, 0
  %v982 = vsel %vm487, 1, 0
  %v983 = vsel %vm488, 1, 0
  %v984 = vsel %vm489, 1, 0
  %v985 = vsel %vm490, 1, 0
  %v986 = vsel %vm491, 1, 0
  %v987 = vsel %vm492, 1, 0
  %v988 = vsel %vm493, 1, 0
  %v989 = vsel %vm494, 1, 0
  %v990 = vsel %vm495, 1, 0
  %v991 = vsel %vm496, 1, 0
  %v992 = vsel %vm497, 1, 0
  %v993 = vsel %vm498, 1, 0
  %v994 = vsel %vm499, 1, 0
  %v995 = vsel %vm500, 1, 0
  %v996 = vsel %vm501, 1, 0
  %v997 = vsel %vm502, 1, 0
  %v998 = vsel %vm503, 1, 0
  %v999 = vsel %vm504, 1, 0
  %v1000 = vsel %vm505, 1, 0
  %v1001 = vsel %vm506, 1, 0
  %v1002 = vsel %vm507, 1, 0
  %vm1003 = vcmp.eq.s32.totalorder %v971, 1
  %vm1004 = vcmp.eq.s32.totalorder %v972, 1
  %vm1005 = vcmp.eq.s32.totalorder %v973, 1
  %vm1006 = vcmp.eq.s32.totalorder %v974, 1
  %vm1007 = vcmp.eq.s32.totalorder %v975, 1
  %vm1008 = vcmp.eq.s32.totalorder %v976, 1
  %vm1009 = vcmp.eq.s32.totalorder %v977, 1
  %vm1010 = vcmp.eq.s32.totalorder %v978, 1
  %vm1011 = vcmp.eq.s32.totalorder %v979, 1
  %vm1012 = vcmp.eq.s32.totalorder %v980, 1
  %vm1013 = vcmp.eq.s32.totalorder %v981, 1
  %vm1014 = vcmp.eq.s32.totalorder %v982, 1
  %vm1015 = vcmp.eq.s32.totalorder %v983, 1
  %vm1016 = vcmp.eq.s32.totalorder %v984, 1
  %vm1017 = vcmp.eq.s32.totalorder %v985, 1
  %vm1018 = vcmp.eq.s32.totalorder %v986, 1
  %vm1019 = vcmp.eq.s32.totalorder %v987, 1
  %vm1020 = vcmp.eq.s32.totalorder %v988, 1
  %vm1021 = vcmp.eq.s32.totalorder %v989, 1
  %vm1022 = vcmp.eq.s32.totalorder %v990, 1
  %vm1023 = vcmp.eq.s32.totalorder %v991, 1
  %vm1024 = vcmp.eq.s32.totalorder %v992, 1
  %vm1025 = vcmp.eq.s32.totalorder %v993, 1
  %vm1026 = vcmp.eq.s32.totalorder %v994, 1
  %vm1027 = vcmp.eq.s32.totalorder %v995, 1
  %vm1028 = vcmp.eq.s32.totalorder %v996, 1
  %vm1029 = vcmp.eq.s32.totalorder %v997, 1
  %vm1030 = vcmp.eq.s32.totalorder %v998, 1
  %vm1031 = vcmp.eq.s32.totalorder %v999, 1
  %vm1032 = vcmp.eq.s32.totalorder %v1000, 1
  %vm1033 = vcmp.eq.s32.totalorder %v1001, 1
  %vm1034 = vcmp.eq.s32.totalorder %v1002, 1
  %v1035 = vsel %vm1003, %v939, 0.0
  %v1036 = vsel %vm1004, %v940, 0.0
  %v1037 = vsel %vm1005, %v941, 0.0
  %v1038 = vsel %vm1006, %v942, 0.0
  %v1039 = vsel %vm1007, %v943, 0.0
  %v1040 = vsel %vm1008, %v944, 0.0
  %v1041 = vsel %vm1009, %v945, 0.0
  %v1042 = vsel %vm1010, %v946, 0.0
  %v1043 = vsel %vm1011, %v947, 0.0
  %v1044 = vsel %vm1012, %v948, 0.0
  %v1045 = vsel %vm1013, %v949, 0.0
  %v1046 = vsel %vm1014, %v950, 0.0
  %v1047 = vsel %vm1015, %v951, 0.0
  %v1048 = vsel %vm1016, %v952, 0.0
  %v1049 = vsel %vm1017, %v953, 0.0
  %v1050 = vsel %vm1018, %v954, 0.0
  %v1051 = vsel %vm1019, %v955, 0.0
  %v1052 = vsel %vm1020, %v956, 0.0
  %v1053 = vsel %vm1021, %v957, 0.0
  %v1054 = vsel %vm1022, %v958, 0.0
  %v1055 = vsel %vm1023, %v959, 0.0
  %v1056 = vsel %vm1024, %v960, 0.0
  %v1057 = vsel %vm1025, %v961, 0.0
  %v1058 = vsel %vm1026, %v962, 0.0
  %v1059 = vsel %vm1027, %v963, 0.0
  %v1060 = vsel %vm1028, %v964, 0.0
  %v1061 = vsel %vm1029, %v965, 0.0
  %v1062 = vsel %vm1030, %v966, 0.0
  %v1063 = vsel %vm1031, %v967, 0.0
  %v1064 = vsel %vm1032, %v968, 0.0
  %v1065 = vsel %vm1033, %v969, 0.0
  %v1066 = vsel %vm1034, %v970, 0.0
  %1099 = vrot.lane.b32.xlu0 %v1035, 16
  %v1100 = vpop.permute.xlu0 %1099
  %1101 = vrot.lane.b32.xlu0 %v1036, 16
  %v1102 = vpop.permute.xlu0 %1101
  %1103 = vrot.lane.b32.xlu0 %v1037, 16
  %v1104 = vpop.permute.xlu0 %1103
  %1105 = vrot.lane.b32.xlu0 %v1038, 16
  %v1106 = vpop.permute.xlu0 %1105
  %1107 = vrot.lane.b32.xlu0 %v1039, 16
  %v1108 = vpop.permute.xlu0 %1107
  %1109 = vrot.lane.b32.xlu0 %v1040, 16
  %v1110 = vpop.permute.xlu0 %1109
  %1111 = vrot.lane.b32.xlu0 %v1041, 16
  %v1112 = vpop.permute.xlu0 %1111
  %1113 = vrot.lane.b32.xlu0 %v1042, 16
  %v1114 = vpop.permute.xlu0 %1113
  %1115 = vrot.lane.b32.xlu0 %v1043, 16
  %v1116 = vpop.permute.xlu0 %1115
  %1117 = vrot.lane.b32.xlu0 %v1044, 16
  %v1118 = vpop.permute.xlu0 %1117
  %1119 = vrot.lane.b32.xlu0 %v1045, 16
  %v1120 = vpop.permute.xlu0 %1119
  %1121 = vrot.lane.b32.xlu0 %v1046, 16
  %v1122 = vpop.permute.xlu0 %1121
  %1123 = vrot.lane.b32.xlu0 %v1047, 16
  %v1124 = vpop.permute.xlu0 %1123
  %1125 = vrot.lane.b32.xlu0 %v1048, 16
  %v1126 = vpop.permute.xlu0 %1125
  %1127 = vrot.lane.b32.xlu0 %v1049, 16
  %v1128 = vpop.permute.xlu0 %1127
  %1129 = vrot.lane.b32.xlu0 %v1050, 16
  %v1130 = vpop.permute.xlu0 %1129
  %1131 = vrot.lane.b32.xlu0 %v1051, 16
  %v1132 = vpop.permute.xlu0 %1131
  %1133 = vrot.lane.b32.xlu0 %v1052, 16
  %v1134 = vpop.permute.xlu0 %1133
  %1135 = vrot.lane.b32.xlu0 %v1053, 16
  %v1136 = vpop.permute.xlu0 %1135
  %1137 = vrot.lane.b32.xlu0 %v1054, 16
  %v1138 = vpop.permute.xlu0 %1137
  %1139 = vrot.lane.b32.xlu0 %v1055, 16
  %v1140 = vpop.permute.xlu0 %1139
  %1141 = vrot.lane.b32.xlu0 %v1056, 16
  %v1142 = vpop.permute.xlu0 %1141
  %1143 = vrot.lane.b32.xlu0 %v1057, 16
  %v1144 = vpop.permute.xlu0 %1143
  %1145 = vrot.lane.b32.xlu0 %v1058, 16
  %v1146 = vpop.permute.xlu0 %1145
  %1147 = vrot.lane.b32.xlu0 %v1059, 16
  %v1148 = vpop.permute.xlu0 %1147
  %1149 = vrot.lane.b32.xlu0 %v1060, 16
  %v1150 = vpop.permute.xlu0 %1149
  %1151 = vrot.lane.b32.xlu0 %v1061, 16
  %v1152 = vpop.permute.xlu0 %1151
  %1153 = vrot.lane.b32.xlu0 %v1062, 16
  %v1154 = vpop.permute.xlu0 %1153
  %1155 = vrot.lane.b32.xlu0 %v1063, 16
  %v1156 = vpop.permute.xlu0 %1155
  %1157 = vrot.lane.b32.xlu0 %v1064, 16
  %v1158 = vpop.permute.xlu0 %1157
  %1159 = vrot.lane.b32.xlu0 %v1065, 16
  %v1160 = vpop.permute.xlu0 %1159
  %1161 = vrot.lane.b32.xlu0 %v1066, 16
  %v1162 = vpop.permute.xlu0 %1161
  %vm1195 = vcmask 195712
  %1196 = vst.msk [vmem:[#allocation4] sm:$0xff] %vm1195, %v1100
  %1197 = vst.msk [vmem:[#allocation4 + $0x8] sm:$0xff] %vm1195, %v1102
  %1198 = vst.msk [vmem:[#allocation4 + $0x10] sm:$0xff] %vm1195, %v1104
  %1199 = vst.msk [vmem:[#allocation4 + $0x18] sm:$0xff] %vm1195, %v1106
  %1200 = vst.msk [vmem:[#allocation4 + $0x20] sm:$0xff] %vm1195, %v1108
  %1201 = vst.msk [vmem:[#allocation4 + $0x28] sm:$0xff] %vm1195, %v1110
  %1202 = vst.msk [vmem:[#allocation4 + $0x30] sm:$0xff] %vm1195, %v1112
  %1203 = vst.msk [vmem:[#allocation4 + $0x38] sm:$0xff] %vm1195, %v1114
  %1204 = vst.msk [vmem:[#allocation4 + $0x40] sm:$0xff] %vm1195, %v1116
  %1205 = vst.msk [vmem:[#allocation4 + $0x48] sm:$0xff] %vm1195, %v1118
  %1206 = vst.msk [vmem:[#allocation4 + $0x50] sm:$0xff] %vm1195, %v1120
  %1207 = vst.msk [vmem:[#allocation4 + $0x58] sm:$0xff] %vm1195, %v1122
  %1208 = vst.msk [vmem:[#allocation4 + $0x60] sm:$0xff] %vm1195, %v1124
  %1209 = vst.msk [vmem:[#allocation4 + $0x68] sm:$0xff] %vm1195, %v1126
  %1210 = vst.msk [vmem:[#allocation4 + $0x70] sm:$0xff] %vm1195, %v1128
  %1211 = vst.msk [vmem:[#allocation4 + $0x78] sm:$0xff] %vm1195, %v1130
  %1212 = vst.msk [vmem:[#allocation4 + $0x80] sm:$0xff] %vm1195, %v1132
  %1213 = vst.msk [vmem:[#allocation4 + $0x88] sm:$0xff] %vm1195, %v1134
  %1214 = vst.msk [vmem:[#allocation4 + $0x90] sm:$0xff] %vm1195, %v1136
  %1215 = vst.msk [vmem:[#allocation4 + $0x98] sm:$0xff] %vm1195, %v1138
  %1216 = vst.msk [vmem:[#allocation4 + $0xa0] sm:$0xff] %vm1195, %v1140
  %1217 = vst.msk [vmem:[#allocation4 + $0xa8] sm:$0xff] %vm1195, %v1142
  %1218 = vst.msk [vmem:[#allocation4 + $0xb0] sm:$0xff] %vm1195, %v1144
  %1219 = vst.msk [vmem:[#allocation4 + $0xb8] sm:$0xff] %vm1195, %v1146
  %1220 = vst.msk [vmem:[#allocation4 + $0xc0] sm:$0xff] %vm1195, %v1148
  %1221 = vst.msk [vmem:[#allocation4 + $0xc8] sm:$0xff] %vm1195, %v1150
  %1222 = vst.msk [vmem:[#allocation4 + $0xd0] sm:$0xff] %vm1195, %v1152
  %1223 = vst.msk [vmem:[#allocation4 + $0xd8] sm:$0xff] %vm1195, %v1154
  %1224 = vst.msk [vmem:[#allocation4 + $0xe0] sm:$0xff] %vm1195, %v1156
  %1225 = vst.msk [vmem:[#allocation4 + $0xe8] sm:$0xff] %vm1195, %v1158
  %1226 = vst.msk [vmem:[#allocation4 + $0xf0] sm:$0xff] %vm1195, %v1160
  %1227 = vst.msk [vmem:[#allocation4 + $0xf8] sm:$0xff] %vm1195, %v1162
  %v1228 = vld [vmem:[#allocation2 + $0x17] sm:$0xff]
  %v1229 = vld [vmem:[#allocation2 + $0x1f] sm:$0xff]
  %v1230 = vld [vmem:[#allocation2 + $0x27] sm:$0xff]
  %v1231 = vld [vmem:[#allocation2 + $0x2f] sm:$0xff]
  %v1232 = vld [vmem:[#allocation2 + $0x37] sm:$0xff]
  %v1233 = vld [vmem:[#allocation2 + $0x3f] sm:$0xff]
  %v1234 = vld [vmem:[#allocation2 + $0x47] sm:$0xff]
  %v1235 = vld [vmem:[#allocation2 + $0x4f] sm:$0xff]
  %v1236 = vld [vmem:[#allocation2 + $0x57] sm:$0xff]
  %v1237 = vld [vmem:[#allocation2 + $0x5f] sm:$0xff]
  %v1238 = vld [vmem:[#allocation2 + $0x67] sm:$0xff]
  %v1239 = vld [vmem:[#allocation2 + $0x6f] sm:$0xff]
  %v1240 = vld [vmem:[#allocation2 + $0x77] sm:$0xff]
  %v1241 = vld [vmem:[#allocation2 + $0x7f] sm:$0xff]
  %v1242 = vld [vmem:[#allocation2 + $0x87] sm:$0xff]
  %v1243 = vld [vmem:[#allocation2 + $0x8f] sm:$0xff]
  %v1244 = vld [vmem:[#allocation2 + $0x97] sm:$0xff]
  %v1245 = vld [vmem:[#allocation2 + $0x9f] sm:$0xff]
  %v1246 = vld [vmem:[#allocation2 + $0xa7] sm:$0xff]
  %v1247 = vld [vmem:[#allocation2 + $0xaf] sm:$0xff]
  %v1248 = vld [vmem:[#allocation2 + $0xb7] sm:$0xff]
  %v1249 = vld [vmem:[#allocation2 + $0xbf] sm:$0xff]
  %v1250 = vld [vmem:[#allocation2 + $0xc7] sm:$0xff]
  %v1251 = vld [vmem:[#allocation2 + $0xcf] sm:$0xff]
  %v1252 = vld [vmem:[#allocation2 + $0xd7] sm:$0xff]
  %v1253 = vld [vmem:[#allocation2 + $0xdf] sm:$0xff]
  %v1254 = vld [vmem:[#allocation2 + $0xe7] sm:$0xff]
  %v1255 = vld [vmem:[#allocation2 + $0xef] sm:$0xff]
  %v1256 = vld [vmem:[#allocation2 + $0xf7] sm:$0xff]
  %v1257 = vld [vmem:[#allocation2 + $0xff] sm:$0xff]
  %v1258 = vld [vmem:[#allocation2 + $0x107] sm:$0xff]
  %v1259 = vld [vmem:[#allocation2 + $0x10f] sm:$0xff]
  %v1260 = vsel %vm650, %v1228, 0.0
  %v1261 = vsel %vm651, %v1229, 0.0
  %v1262 = vsel %vm652, %v1230, 0.0
  %v1263 = vsel %vm653, %v1231, 0.0
  %v1264 = vsel %vm654, %v1232, 0.0
  %v1265 = vsel %vm655, %v1233, 0.0
  %v1266 = vsel %vm656, %v1234, 0.0
  %v1267 = vsel %vm657, %v1235, 0.0
  %v1268 = vsel %vm658, %v1236, 0.0
  %v1269 = vsel %vm659, %v1237, 0.0
  %v1270 = vsel %vm660, %v1238, 0.0
  %v1271 = vsel %vm661, %v1239, 0.0
  %v1272 = vsel %vm662, %v1240, 0.0
  %v1273 = vsel %vm663, %v1241, 0.0
  %v1274 = vsel %vm664, %v1242, 0.0
  %v1275 = vsel %vm665, %v1243, 0.0
  %v1276 = vsel %vm666, %v1244, 0.0
  %v1277 = vsel %vm667, %v1245, 0.0
  %v1278 = vsel %vm668, %v1246, 0.0
  %v1279 = vsel %vm669, %v1247, 0.0
  %v1280 = vsel %vm670, %v1248, 0.0
  %v1281 = vsel %vm671, %v1249, 0.0
  %v1282 = vsel %vm672, %v1250, 0.0
  %v1283 = vsel %vm673, %v1251, 0.0
  %v1284 = vsel %vm674, %v1252, 0.0
  %v1285 = vsel %vm675, %v1253, 0.0
  %v1286 = vsel %vm676, %v1254, 0.0
  %v1287 = vsel %vm677, %v1255, 0.0
  %v1288 = vsel %vm678, %v1256, 0.0
  %v1289 = vsel %vm679, %v1257, 0.0
  %v1290 = vsel %vm680, %v1258, 0.0
  %v1291 = vsel %vm681, %v1259, 0.0
  %1324 = vrot.lane.b32.xlu0 %v1260, 24
  %v1325 = vpop.permute.xlu0 %1324
  %1326 = vrot.lane.b32.xlu0 %v1261, 24
  %v1327 = vpop.permute.xlu0 %1326
  %1328 = vrot.lane.b32.xlu0 %v1262, 24
  %v1329 = vpop.permute.xlu0 %1328
  %1330 = vrot.lane.b32.xlu0 %v1263, 24
  %v1331 = vpop.permute.xlu0 %1330
  %1332 = vrot.lane.b32.xlu0 %v1264, 24
  %v1333 = vpop.permute.xlu0 %1332
  %1334 = vrot.lane.b32.xlu0 %v1265, 24
  %v1335 = vpop.permute.xlu0 %1334
  %1336 = vrot.lane.b32.xlu0 %v1266, 24
  %v1337 = vpop.permute.xlu0 %1336
  %1338 = vrot.lane.b32.xlu0 %v1267, 24
  %v1339 = vpop.permute.xlu0 %1338
  %1340 = vrot.lane.b32.xlu0 %v1268, 24
  %v1341 = vpop.permute.xlu0 %1340
  %1342 = vrot.lane.b32.xlu0 %v1269, 24
  %v1343 = vpop.permute.xlu0 %1342
  %1344 = vrot.lane.b32.xlu0 %v1270, 24
  %v1345 = vpop.permute.xlu0 %1344
  %1346 = vrot.lane.b32.xlu0 %v1271, 24
  %v1347 = vpop.permute.xlu0 %1346
  %1348 = vrot.lane.b32.xlu0 %v1272, 24
  %v1349 = vpop.permute.xlu0 %1348
  %1350 = vrot.lane.b32.xlu0 %v1273, 24
  %v1351 = vpop.permute.xlu0 %1350
  %1352 = vrot.lane.b32.xlu0 %v1274, 24
  %v1353 = vpop.permute.xlu0 %1352
  %1354 = vrot.lane.b32.xlu0 %v1275, 24
  %v1355 = vpop.permute.xlu0 %1354
  %1356 = vrot.lane.b32.xlu0 %v1276, 24
  %v1357 = vpop.permute.xlu0 %1356
  %1358 = vrot.lane.b32.xlu0 %v1277, 24
  %v1359 = vpop.permute.xlu0 %1358
  %1360 = vrot.lane.b32.xlu0 %v1278, 24
  %v1361 = vpop.permute.xlu0 %1360
  %1362 = vrot.lane.b32.xlu0 %v1279, 24
  %v1363 = vpop.permute.xlu0 %1362
  %1364 = vrot.lane.b32.xlu0 %v1280, 24
  %v1365 = vpop.permute.xlu0 %1364
  %1366 = vrot.lane.b32.xlu0 %v1281, 24
  %v1367 = vpop.permute.xlu0 %1366
  %1368 = vrot.lane.b32.xlu0 %v1282, 24
  %v1369 = vpop.permute.xlu0 %1368
  %1370 = vrot.lane.b32.xlu0 %v1283, 24
  %v1371 = vpop.permute.xlu0 %1370
  %1372 = vrot.lane.b32.xlu0 %v1284, 24
  %v1373 = vpop.permute.xlu0 %1372
  %1374 = vrot.lane.b32.xlu0 %v1285, 24
  %v1375 = vpop.permute.xlu0 %1374
  %1376 = vrot.lane.b32.xlu0 %v1286, 24
  %v1377 = vpop.permute.xlu0 %1376
  %1378 = vrot.lane.b32.xlu0 %v1287, 24
  %v1379 = vpop.permute.xlu0 %1378
  %1380 = vrot.lane.b32.xlu0 %v1288, 24
  %v1381 = vpop.permute.xlu0 %1380
  %1382 = vrot.lane.b32.xlu0 %v1289, 24
  %v1383 = vpop.permute.xlu0 %1382
  %1384 = vrot.lane.b32.xlu0 %v1290, 24
  %v1385 = vpop.permute.xlu0 %1384
  %1386 = vrot.lane.b32.xlu0 %v1291, 24
  %v1387 = vpop.permute.xlu0 %1386
  %vm1420 = vcmask 261312
  %1421 = vst.msk [vmem:[#allocation4] sm:$0xff] %vm1420, %v1325
  %1422 = vst.msk [vmem:[#allocation4 + $0x8] sm:$0xff] %vm1420, %v1327
  %1423 = vst.msk [vmem:[#allocation4 + $0x10] sm:$0xff] %vm1420, %v1329
  %1424 = vst.msk [vmem:[#allocation4 + $0x18] sm:$0xff] %vm1420, %v1331
  %1425 = vst.msk [vmem:[#allocation4 + $0x20] sm:$0xff] %vm1420, %v1333
  %1426 = vst.msk [vmem:[#allocation4 + $0x28] sm:$0xff] %vm1420, %v1335
  %1427 = vst.msk [vmem:[#allocation4 + $0x30] sm:$0xff] %vm1420, %v1337
  %1428 = vst.msk [vmem:[#allocation4 + $0x38] sm:$0xff] %vm1420, %v1339
  %1429 = vst.msk [vmem:[#allocation4 + $0x40] sm:$0xff] %vm1420, %v1341
  %1430 = vst.msk [vmem:[#allocation4 + $0x48] sm:$0xff] %vm1420, %v1343
  %1431 = vst.msk [vmem:[#allocation4 + $0x50] sm:$0xff] %vm1420, %v1345
  %1432 = vst.msk [vmem:[#allocation4 + $0x58] sm:$0xff] %vm1420, %v1347
  %1433 = vst.msk [vmem:[#allocation4 + $0x60] sm:$0xff] %vm1420, %v1349
  %1434 = vst.msk [vmem:[#allocation4 + $0x68] sm:$0xff] %vm1420, %v1351
  %1435 = vst.msk [vmem:[#allocation4 + $0x70] sm:$0xff] %vm1420, %v1353
  %1436 = vst.msk [vmem:[#allocation4 + $0x78] sm:$0xff] %vm1420, %v1355
  %1437 = vst.msk [vmem:[#allocation4 + $0x80] sm:$0xff] %vm1420, %v1357
  %1438 = vst.msk [vmem:[#allocation4 + $0x88] sm:$0xff] %vm1420, %v1359
  %1439 = vst.msk [vmem:[#allocation4 + $0x90] sm:$0xff] %vm1420, %v1361
  %1440 = vst.msk [vmem:[#allocation4 + $0x98] sm:$0xff] %vm1420, %v1363
  %1441 = vst.msk [vmem:[#allocation4 + $0xa0] sm:$0xff] %vm1420, %v1365
  %1442 = vst.msk [vmem:[#allocation4 + $0xa8] sm:$0xff] %vm1420, %v1367
  %1443 = vst.msk [vmem:[#allocation4 + $0xb0] sm:$0xff] %vm1420, %v1369
  %1444 = vst.msk [vmem:[#allocation4 + $0xb8] sm:$0xff] %vm1420, %v1371
  %1445 = vst.msk [vmem:[#allocation4 + $0xc0] sm:$0xff] %vm1420, %v1373
  %1446 = vst.msk [vmem:[#allocation4 + $0xc8] sm:$0xff] %vm1420, %v1375
  %1447 = vst.msk [vmem:[#allocation4 + $0xd0] sm:$0xff] %vm1420, %v1377
  %1448 = vst.msk [vmem:[#allocation4 + $0xd8] sm:$0xff] %vm1420, %v1379
  %1449 = vst.msk [vmem:[#allocation4 + $0xe0] sm:$0xff] %vm1420, %v1381
  %1450 = vst.msk [vmem:[#allocation4 + $0xe8] sm:$0xff] %vm1420, %v1383
  %1451 = vst.msk [vmem:[#allocation4 + $0xf0] sm:$0xff] %vm1420, %v1385
  %1452 = vst.msk [vmem:[#allocation4 + $0xf8] sm:$0xff] %vm1420, %v1387
  %v1453 = vld [vmem:[#allocation2 + $0x18] sm:$0xff]
  %v1454 = vld [vmem:[#allocation2 + $0x20] sm:$0xff]
  %v1455 = vld [vmem:[#allocation2 + $0x28] sm:$0xff]
  %v1456 = vld [vmem:[#allocation2 + $0x30] sm:$0xff]
  %v1457 = vld [vmem:[#allocation2 + $0x38] sm:$0xff]
  %v1458 = vld [vmem:[#allocation2 + $0x40] sm:$0xff]
  %v1459 = vld [vmem:[#allocation2 + $0x48] sm:$0xff]
  %v1460 = vld [vmem:[#allocation2 + $0x50] sm:$0xff]
  %v1461 = vld [vmem:[#allocation2 + $0x58] sm:$0xff]
  %v1462 = vld [vmem:[#allocation2 + $0x60] sm:$0xff]
  %v1463 = vld [vmem:[#allocation2 + $0x68] sm:$0xff]
  %v1464 = vld [vmem:[#allocation2 + $0x70] sm:$0xff]
  %v1465 = vld [vmem:[#allocation2 + $0x78] sm:$0xff]
  %v1466 = vld [vmem:[#allocation2 + $0x80] sm:$0xff]
  %v1467 = vld [vmem:[#allocation2 + $0x88] sm:$0xff]
  %v1468 = vld [vmem:[#allocation2 + $0x90] sm:$0xff]
  %v1469 = vld [vmem:[#allocation2 + $0x98] sm:$0xff]
  %v1470 = vld [vmem:[#allocation2 + $0xa0] sm:$0xff]
  %v1471 = vld [vmem:[#allocation2 + $0xa8] sm:$0xff]
  %v1472 = vld [vmem:[#allocation2 + $0xb0] sm:$0xff]
  %v1473 = vld [vmem:[#allocation2 + $0xb8] sm:$0xff]
  %v1474 = vld [vmem:[#allocation2 + $0xc0] sm:$0xff]
  %v1475 = vld [vmem:[#allocation2 + $0xc8] sm:$0xff]
  %v1476 = vld [vmem:[#allocation2 + $0xd0] sm:$0xff]
  %v1477 = vld [vmem:[#allocation2 + $0xd8] sm:$0xff]
  %v1478 = vld [vmem:[#allocation2 + $0xe0] sm:$0xff]
  %v1479 = vld [vmem:[#allocation2 + $0xe8] sm:$0xff]
  %v1480 = vld [vmem:[#allocation2 + $0xf0] sm:$0xff]
  %v1481 = vld [vmem:[#allocation2 + $0xf8] sm:$0xff]
  %v1482 = vld [vmem:[#allocation2 + $0x100] sm:$0xff]
  %v1483 = vld [vmem:[#allocation2 + $0x108] sm:$0xff]
  %v1484 = vld [vmem:[#allocation2 + $0x110] sm:$0xff]
  %1517 = vrot.lane.b32.xlu0 %v1453, 32
  %v1518 = vpop.permute.xlu0 %1517
  %1519 = vrot.lane.b32.xlu0 %v1454, 32
  %v1520 = vpop.permute.xlu0 %1519
  %1521 = vrot.lane.b32.xlu0 %v1455, 32
  %v1522 = vpop.permute.xlu0 %1521
  %1523 = vrot.lane.b32.xlu0 %v1456, 32
  %v1524 = vpop.permute.xlu0 %1523
  %1525 = vrot.lane.b32.xlu0 %v1457, 32
  %v1526 = vpop.permute.xlu0 %1525
  %1527 = vrot.lane.b32.xlu0 %v1458, 32
  %v1528 = vpop.permute.xlu0 %1527
  %1529 = vrot.lane.b32.xlu0 %v1459, 32
  %v1530 = vpop.permute.xlu0 %1529
  %1531 = vrot.lane.b32.xlu0 %v1460, 32
  %v1532 = vpop.permute.xlu0 %1531
  %1533 = vrot.lane.b32.xlu0 %v1461, 32
  %v1534 = vpop.permute.xlu0 %1533
  %1535 = vrot.lane.b32.xlu0 %v1462, 32
  %v1536 = vpop.permute.xlu0 %1535
  %1537 = vrot.lane.b32.xlu0 %v1463, 32
  %v1538 = vpop.permute.xlu0 %1537
  %1539 = vrot.lane.b32.xlu0 %v1464, 32
  %v1540 = vpop.permute.xlu0 %1539
  %1541 = vrot.lane.b32.xlu0 %v1465, 32
  %v1542 = vpop.permute.xlu0 %1541
  %1543 = vrot.lane.b32.xlu0 %v1466, 32
  %v1544 = vpop.permute.xlu0 %1543
  %1545 = vrot.lane.b32.xlu0 %v1467, 32
  %v1546 = vpop.permute.xlu0 %1545
  %1547 = vrot.lane.b32.xlu0 %v1468, 32
  %v1548 = vpop.permute.xlu0 %1547
  %1549 = vrot.lane.b32.xlu0 %v1469, 32
  %v1550 = vpop.permute.xlu0 %1549
  %1551 = vrot.lane.b32.xlu0 %v1470, 32
  %v1552 = vpop.permute.xlu0 %1551
  %1553 = vrot.lane.b32.xlu0 %v1471, 32
  %v1554 = vpop.permute.xlu0 %1553
  %1555 = vrot.lane.b32.xlu0 %v1472, 32
  %v1556 = vpop.permute.xlu0 %1555
  %1557 = vrot.lane.b32.xlu0 %v1473, 32
  %v1558 = vpop.permute.xlu0 %1557
  %1559 = vrot.lane.b32.xlu0 %v1474, 32
  %v1560 = vpop.permute.xlu0 %1559
  %1561 = vrot.lane.b32.xlu0 %v1475, 32
  %v1562 = vpop.permute.xlu0 %1561
  %1563 = vrot.lane.b32.xlu0 %v1476, 32
  %v1564 = vpop.permute.xlu0 %1563
  %1565 = vrot.lane.b32.xlu0 %v1477, 32
  %v1566 = vpop.permute.xlu0 %1565
  %1567 = vrot.lane.b32.xlu0 %v1478, 32
  %v1568 = vpop.permute.xlu0 %1567
  %1569 = vrot.lane.b32.xlu0 %v1479, 32
  %v1570 = vpop.permute.xlu0 %1569
  %1571 = vrot.lane.b32.xlu0 %v1480, 32
  %v1572 = vpop.permute.xlu0 %1571
  %1573 = vrot.lane.b32.xlu0 %v1481, 32
  %v1574 = vpop.permute.xlu0 %1573
  %1575 = vrot.lane.b32.xlu0 %v1482, 32
  %v1576 = vpop.permute.xlu0 %1575
  %1577 = vrot.lane.b32.xlu0 %v1483, 32
  %v1578 = vpop.permute.xlu0 %1577
  %1579 = vrot.lane.b32.xlu0 %v1484, 32
  %v1580 = vpop.permute.xlu0 %1579
  %vm1613 = vcmask 326912
  %1614 = vst.msk [vmem:[#allocation4] sm:$0xff] %vm1613, %v1518
  %1615 = vst.msk [vmem:[#allocation4 + $0x8] sm:$0xff] %vm1613, %v1520
  %1616 = vst.msk [vmem:[#allocation4 + $0x10] sm:$0xff] %vm1613, %v1522
  %1617 = vst.msk [vmem:[#allocation4 + $0x18] sm:$0xff] %vm1613, %v1524
  %1618 = vst.msk [vmem:[#allocation4 + $0x20] sm:$0xff] %vm1613, %v1526
  %1619 = vst.msk [vmem:[#allocation4 + $0x28] sm:$0xff] %vm1613, %v1528
  %1620 = vst.msk [vmem:[#allocation4 + $0x30] sm:$0xff] %vm1613, %v1530
  %1621 = vst.msk [vmem:[#allocation4 + $0x38] sm:$0xff] %vm1613, %v1532
  %1622 = vst.msk [vmem:[#allocation4 + $0x40] sm:$0xff] %vm1613, %v1534
  %1623 = vst.msk [vmem:[#allocation4 + $0x48] sm:$0xff] %vm1613, %v1536
  %1624 = vst.msk [vmem:[#allocation4 + $0x50] sm:$0xff] %vm1613, %v1538
  %1625 = vst.msk [vmem:[#allocation4 + $0x58] sm:$0xff] %vm1613, %v1540
  %1626 = vst.msk [vmem:[#allocation4 + $0x60] sm:$0xff] %vm1613, %v1542
  %1627 = vst.msk [vmem:[#allocation4 + $0x68] sm:$0xff] %vm1613, %v1544
  %1628 = vst.msk [vmem:[#allocation4 + $0x70] sm:$0xff] %vm1613, %v1546
  %1629 = vst.msk [vmem:[#allocation4 + $0x78] sm:$0xff] %vm1613, %v1548
  %1630 = vst.msk [vmem:[#allocation4 + $0x80] sm:$0xff] %vm1613, %v1550
  %1631 = vst.msk [vmem:[#allocation4 + $0x88] sm:$0xff] %vm1613, %v1552
  %1632 = vst.msk [vmem:[#allocation4 + $0x90] sm:$0xff] %vm1613, %v1554
  %1633 = vst.msk [vmem:[#allocation4 + $0x98] sm:$0xff] %vm1613, %v1556
  %1634 = vst.msk [vmem:[#allocation4 + $0xa0] sm:$0xff] %vm1613, %v1558
  %1635 = vst.msk [vmem:[#allocation4 + $0xa8] sm:$0xff] %vm1613, %v1560
  %1636 = vst.msk [vmem:[#allocation4 + $0xb0] sm:$0xff] %vm1613, %v1562
  %1637 = vst.msk [vmem:[#allocation4 + $0xb8] sm:$0xff] %vm1613, %v1564
  %1638 = vst.msk [vmem:[#allocation4 + $0xc0] sm:$0xff] %vm1613, %v1566
  %1639 = vst.msk [vmem:[#allocation4 + $0xc8] sm:$0xff] %vm1613, %v1568
  %1640 = vst.msk [vmem:[#allocation4 + $0xd0] sm:$0xff] %vm1613, %v1570
  %1641 = vst.msk [vmem:[#allocation4 + $0xd8] sm:$0xff] %vm1613, %v1572
  %1642 = vst.msk [vmem:[#allocation4 + $0xe0] sm:$0xff] %vm1613, %v1574
  %1643 = vst.msk [vmem:[#allocation4 + $0xe8] sm:$0xff] %vm1613, %v1576
  %1644 = vst.msk [vmem:[#allocation4 + $0xf0] sm:$0xff] %vm1613, %v1578
  %1645 = vst.msk [vmem:[#allocation4 + $0xf8] sm:$0xff] %vm1613, %v1580
  %v1646 = vld [vmem:[#allocation2 + $0x19] sm:$0xff]
  %v1647 = vld [vmem:[#allocation2 + $0x21] sm:$0xff]
  %v1648 = vld [vmem:[#allocation2 + $0x29] sm:$0xff]
  %v1649 = vld [vmem:[#allocation2 + $0x31] sm:$0xff]
  %v1650 = vld [vmem:[#allocation2 + $0x39] sm:$0xff]
  %v1651 = vld [vmem:[#allocation2 + $0x41] sm:$0xff]
  %v1652 = vld [vmem:[#allocation2 + $0x49] sm:$0xff]
  %v1653 = vld [vmem:[#allocation2 + $0x51] sm:$0xff]
  %v1654 = vld [vmem:[#allocation2 + $0x59] sm:$0xff]
  %v1655 = vld [vmem:[#allocation2 + $0x61] sm:$0xff]
  %v1656 = vld [vmem:[#allocation2 + $0x69] sm:$0xff]
  %v1657 = vld [vmem:[#allocation2 + $0x71] sm:$0xff]
  %v1658 = vld [vmem:[#allocation2 + $0x79] sm:$0xff]
  %v1659 = vld [vmem:[#allocation2 + $0x81] sm:$0xff]
  %v1660 = vld [vmem:[#allocation2 + $0x89] sm:$0xff]
  %v1661 = vld [vmem:[#allocation2 + $0x91] sm:$0xff]
  %v1662 = vld [vmem:[#allocation2 + $0x99] sm:$0xff]
  %v1663 = vld [vmem:[#allocation2 + $0xa1] sm:$0xff]
  %v1664 = vld [vmem:[#allocation2 + $0xa9] sm:$0xff]
  %v1665 = vld [vmem:[#allocation2 + $0xb1] sm:$0xff]
  %v1666 = vld [vmem:[#allocation2 + $0xb9] sm:$0xff]
  %v1667 = vld [vmem:[#allocation2 + $0xc1] sm:$0xff]
  %v1668 = vld [vmem:[#allocation2 + $0xc9] sm:$0xff]
  %v1669 = vld [vmem:[#allocation2 + $0xd1] sm:$0xff]
  %v1670 = vld [vmem:[#allocation2 + $0xd9] sm:$0xff]
  %v1671 = vld [vmem:[#allocation2 + $0xe1] sm:$0xff]
  %v1672 = vld [vmem:[#allocation2 + $0xe9] sm:$0xff]
  %v1673 = vld [vmem:[#allocation2 + $0xf1] sm:$0xff]
  %v1674 = vld [vmem:[#allocation2 + $0xf9] sm:$0xff]
  %v1675 = vld [vmem:[#allocation2 + $0x101] sm:$0xff]
  %v1676 = vld [vmem:[#allocation2 + $0x109] sm:$0xff]
  %v1677 = vld [vmem:[#allocation2 + $0x111] sm:$0xff]
  %v1678 = vsel %vm1003, %v1646, 0.0
  %v1679 = vsel %vm1004, %v1647, 0.0
  %v1680 = vsel %vm1005, %v1648, 0.0
  %v1681 = vsel %vm1006, %v1649, 0.0
  %v1682 = vsel %vm1007, %v1650, 0.0
  %v1683 = vsel %vm1008, %v1651, 0.0
  %v1684 = vsel %vm1009, %v1652, 0.0
  %v1685 = vsel %vm1010, %v1653, 0.0
  %v1686 = vsel %vm1011, %v1654, 0.0
  %v1687 = vsel %vm1012, %v1655, 0.0
  %v1688 = vsel %vm1013, %v1656, 0.0
  %v1689 = vsel %vm1014, %v1657, 0.0
  %v1690 = vsel %vm1015, %v1658, 0.0
  %v1691 = vsel %vm1016, %v1659, 0.0
  %v1692 = vsel %vm1017, %v1660, 0.0
  %v1693 = vsel %vm1018, %v1661, 0.0
  %v1694 = vsel %vm1019, %v1662, 0.0
  %v1695 = vsel %vm1020, %v1663, 0.0
  %v1696 = vsel %vm1021, %v1664, 0.0
  %v1697 = vsel %vm1022, %v1665, 0.0
  %v1698 = vsel %vm1023, %v1666, 0.0
  %v1699 = vsel %vm1024, %v1667, 0.0
  %v1700 = vsel %vm1025, %v1668, 0.0
  %v1701 = vsel %vm1026, %v1669, 0.0
  %v1702 = vsel %vm1027, %v1670, 0.0
  %v1703 = vsel %vm1028, %v1671, 0.0
  %v1704 = vsel %vm1029, %v1672, 0.0
  %v1705 = vsel %vm1030, %v1673, 0.0
  %v1706 = vsel %vm1031, %v1674, 0.0
  %v1707 = vsel %vm1032, %v1675, 0.0
  %v1708 = vsel %vm1033, %v1676, 0.0
  %v1709 = vsel %vm1034, %v1677, 0.0
  %1742 = vrot.lane.b32.xlu0 %v1678, 40
  %v1743 = vpop.permute.xlu0 %1742
  %1744 = vrot.lane.b32.xlu0 %v1679, 40
  %v1745 = vpop.permute.xlu0 %1744
  %1746 = vrot.lane.b32.xlu0 %v1680, 40
  %v1747 = vpop.permute.xlu0 %1746
  %1748 = vrot.lane.b32.xlu0 %v1681, 40
  %v1749 = vpop.permute.xlu0 %1748
  %1750 = vrot.lane.b32.xlu0 %v1682, 40
  %v1751 = vpop.permute.xlu0 %1750
  %1752 = vrot.lane.b32.xlu0 %v1683, 40
  %v1753 = vpop.permute.xlu0 %1752
  %1754 = vrot.lane.b32.xlu0 %v1684, 40
  %v1755 = vpop.permute.xlu0 %1754
  %1756 = vrot.lane.b32.xlu0 %v1685, 40
  %v1757 = vpop.permute.xlu0 %1756
  %1758 = vrot.lane.b32.xlu0 %v1686, 40
  %v1759 = vpop.permute.xlu0 %1758
  %1760 = vrot.lane.b32.xlu0 %v1687, 40
  %v1761 = vpop.permute.xlu0 %1760
  %1762 = vrot.lane.b32.xlu0 %v1688, 40
  %v1763 = vpop.permute.xlu0 %1762
  %1764 = vrot.lane.b32.xlu0 %v1689, 40
  %v1765 = vpop.permute.xlu0 %1764
  %1766 = vrot.lane.b32.xlu0 %v1690, 40
  %v1767 = vpop.permute.xlu0 %1766
  %1768 = vrot.lane.b32.xlu0 %v1691, 40
  %v1769 = vpop.permute.xlu0 %1768
  %1770 = vrot.lane.b32.xlu0 %v1692, 40
  %v1771 = vpop.permute.xlu0 %1770
  %1772 = vrot.lane.b32.xlu0 %v1693, 40
  %v1773 = vpop.permute.xlu0 %1772
  %1774 = vrot.lane.b32.xlu0 %v1694, 40
  %v1775 = vpop.permute.xlu0 %1774
  %1776 = vrot.lane.b32.xlu0 %v1695, 40
  %v1777 = vpop.permute.xlu0 %1776
  %1778 = vrot.lane.b32.xlu0 %v1696, 40
  %v1779 = vpop.permute.xlu0 %1778
  %1780 = vrot.lane.b32.xlu0 %v1697, 40
  %v1781 = vpop.permute.xlu0 %1780
  %1782 = vrot.lane.b32.xlu0 %v1698, 40
  %v1783 = vpop.permute.xlu0 %1782
  %1784 = vrot.lane.b32.xlu0 %v1699, 40
  %v1785 = vpop.permute.xlu0 %1784
  %1786 = vrot.lane.b32.xlu0 %v1700, 40
  %v1787 = vpop.permute.xlu0 %1786
  %1788 = vrot.lane.b32.xlu0 %v1701, 40
  %v1789 = vpop.permute.xlu0 %1788
  %1790 = vrot.lane.b32.xlu0 %v1702, 40
  %v1791 = vpop.permute.xlu0 %1790
  %1792 = vrot.lane.b32.xlu0 %v1703, 40
  %v1793 = vpop.permute.xlu0 %1792
  %1794 = vrot.lane.b32.xlu0 %v1704, 40
  %v1795 = vpop.permute.xlu0 %1794
  %1796 = vrot.lane.b32.xlu0 %v1705, 40
  %v1797 = vpop.permute.xlu0 %1796
  %1798 = vrot.lane.b32.xlu0 %v1706, 40
  %v1799 = vpop.permute.xlu0 %1798
  %1800 = vrot.lane.b32.xlu0 %v1707, 40
  %v1801 = vpop.permute.xlu0 %1800
  %1802 = vrot.lane.b32.xlu0 %v1708, 40
  %v1803 = vpop.permute.xlu0 %1802
  %1804 = vrot.lane.b32.xlu0 %v1709, 40
  %v1805 = vpop.permute.xlu0 %1804
  %vm1838 = vcmask 392512
  %1839 = vst.msk [vmem:[#allocation4] sm:$0xff] %vm1838, %v1743
  %1840 = vst.msk [vmem:[#allocation4 + $0x8] sm:$0xff] %vm1838, %v1745
  %1841 = vst.msk [vmem:[#allocation4 + $0x10] sm:$0xff] %vm1838, %v1747
  %1842 = vst.msk [vmem:[#allocation4 + $0x18] sm:$0xff] %vm1838, %v1749
  %1843 = vst.msk [vmem:[#allocation4 + $0x20] sm:$0xff] %vm1838, %v1751
  %1844 = vst.msk [vmem:[#allocation4 + $0x28] sm:$0xff] %vm1838, %v1753
  %1845 = vst.msk [vmem:[#allocation4 + $0x30] sm:$0xff] %vm1838, %v1755
  %1846 = vst.msk [vmem:[#allocation4 + $0x38] sm:$0xff] %vm1838, %v1757
  %1847 = vst.msk [vmem:[#allocation4 + $0x40] sm:$0xff] %vm1838, %v1759
  %1848 = vst.msk [vmem:[#allocation4 + $0x48] sm:$0xff] %vm1838, %v1761
  %1849 = vst.msk [vmem:[#allocation4 + $0x50] sm:$0xff] %vm1838, %v1763
  %1850 = vst.msk [vmem:[#allocation4 + $0x58] sm:$0xff] %vm1838, %v1765
  %1851 = vst.msk [vmem:[#allocation4 + $0x60] sm:$0xff] %vm1838, %v1767
  %1852 = vst.msk [vmem:[#allocation4 + $0x68] sm:$0xff] %vm1838, %v1769
  %1853 = vst.msk [vmem:[#allocation4 + $0x70] sm:$0xff] %vm1838, %v1771
  %1854 = vst.msk [vmem:[#allocation4 + $0x78] sm:$0xff] %vm1838, %v1773
  %1855 = vst.msk [vmem:[#allocation4 + $0x80] sm:$0xff] %vm1838, %v1775
  %1856 = vst.msk [vmem:[#allocation4 + $0x88] sm:$0xff] %vm1838, %v1777
  %1857 = vst.msk [vmem:[#allocation4 + $0x90] sm:$0xff] %vm1838, %v1779
  %1858 = vst.msk [vmem:[#allocation4 + $0x98] sm:$0xff] %vm1838, %v1781
  %1859 = vst.msk [vmem:[#allocation4 + $0xa0] sm:$0xff] %vm1838, %v1783
  %1860 = vst.msk [vmem:[#allocation4 + $0xa8] sm:$0xff] %vm1838, %v1785
  %1861 = vst.msk [vmem:[#allocation4 + $0xb0] sm:$0xff] %vm1838, %v1787
  %1862 = vst.msk [vmem:[#allocation4 + $0xb8] sm:$0xff] %vm1838, %v1789
  %1863 = vst.msk [vmem:[#allocation4 + $0xc0] sm:$0xff] %vm1838, %v1791
  %1864 = vst.msk [vmem:[#allocation4 + $0xc8] sm:$0xff] %vm1838, %v1793
  %1865 = vst.msk [vmem:[#allocation4 + $0xd0] sm:$0xff] %vm1838, %v1795
  %1866 = vst.msk [vmem:[#allocation4 + $0xd8] sm:$0xff] %vm1838, %v1797
  %1867 = vst.msk [vmem:[#allocation4 + $0xe0] sm:$0xff] %vm1838, %v1799
  %1868 = vst.msk [vmem:[#allocation4 + $0xe8] sm:$0xff] %vm1838, %v1801
  %1869 = vst.msk [vmem:[#allocation4 + $0xf0] sm:$0xff] %vm1838, %v1803
  %1870 = vst.msk [vmem:[#allocation4 + $0xf8] sm:$0xff] %vm1838, %v1805
  %v1871 = vld [vmem:[#allocation2 + $0x27] sm:$0xff]
  %v1872 = vld [vmem:[#allocation2 + $0x2f] sm:$0xff]
  %v1873 = vld [vmem:[#allocation2 + $0x37] sm:$0xff]
  %v1874 = vld [vmem:[#allocation2 + $0x3f] sm:$0xff]
  %v1875 = vld [vmem:[#allocation2 + $0x47] sm:$0xff]
  %v1876 = vld [vmem:[#allocation2 + $0x4f] sm:$0xff]
  %v1877 = vld [vmem:[#allocation2 + $0x57] sm:$0xff]
  %v1878 = vld [vmem:[#allocation2 + $0x5f] sm:$0xff]
  %v1879 = vld [vmem:[#allocation2 + $0x67] sm:$0xff]
  %v1880 = vld [vmem:[#allocation2 + $0x6f] sm:$0xff]
  %v1881 = vld [vmem:[#allocation2 + $0x77] sm:$0xff]
  %v1882 = vld [vmem:[#allocation2 + $0x7f] sm:$0xff]
  %v1883 = vld [vmem:[#allocation2 + $0x87] sm:$0xff]
  %v1884 = vld [vmem:[#allocation2 + $0x8f] sm:$0xff]
  %v1885 = vld [vmem:[#allocation2 + $0x97] sm:$0xff]
  %v1886 = vld [vmem:[#allocation2 + $0x9f] sm:$0xff]
  %v1887 = vld [vmem:[#allocation2 + $0xa7] sm:$0xff]
  %v1888 = vld [vmem:[#allocation2 + $0xaf] sm:$0xff]
  %v1889 = vld [vmem:[#allocation2 + $0xb7] sm:$0xff]
  %v1890 = vld [vmem:[#allocation2 + $0xbf] sm:$0xff]
  %v1891 = vld [vmem:[#allocation2 + $0xc7] sm:$0xff]
  %v1892 = vld [vmem:[#allocation2 + $0xcf] sm:$0xff]
  %v1893 = vld [vmem:[#allocation2 + $0xd7] sm:$0xff]
  %v1894 = vld [vmem:[#allocation2 + $0xdf] sm:$0xff]
  %v1895 = vld [vmem:[#allocation2 + $0xe7] sm:$0xff]
  %v1896 = vld [vmem:[#allocation2 + $0xef] sm:$0xff]
  %v1897 = vld [vmem:[#allocation2 + $0xf7] sm:$0xff]
  %v1898 = vld [vmem:[#allocation2 + $0xff] sm:$0xff]
  %v1899 = vld [vmem:[#allocation2 + $0x107] sm:$0xff]
  %v1900 = vld [vmem:[#allocation2 + $0x10f] sm:$0xff]
  %v1901 = vld [vmem:[#allocation2 + $0x117] sm:$0xff]
  %v1902 = vld [vmem:[#allocation2 + $0x11f] sm:$0xff]
  %v1903 = vsel %vm650, %v1871, 0.0
  %v1904 = vsel %vm651, %v1872, 0.0
  %v1905 = vsel %vm652, %v1873, 0.0
  %v1906 = vsel %vm653, %v1874, 0.0
  %v1907 = vsel %vm654, %v1875, 0.0
  %v1908 = vsel %vm655, %v1876, 0.0
  %v1909 = vsel %vm656, %v1877, 0.0
  %v1910 = vsel %vm657, %v1878, 0.0
  %v1911 = vsel %vm658, %v1879, 0.0
  %v1912 = vsel %vm659, %v1880, 0.0
  %v1913 = vsel %vm660, %v1881, 0.0
  %v1914 = vsel %vm661, %v1882, 0.0
  %v1915 = vsel %vm662, %v1883, 0.0
  %v1916 = vsel %vm663, %v1884, 0.0
  %v1917 = vsel %vm664, %v1885, 0.0
  %v1918 = vsel %vm665, %v1886, 0.0
  %v1919 = vsel %vm666, %v1887, 0.0
  %v1920 = vsel %vm667, %v1888, 0.0
  %v1921 = vsel %vm668, %v1889, 0.0
  %v1922 = vsel %vm669, %v1890, 0.0
  %v1923 = vsel %vm670, %v1891, 0.0
  %v1924 = vsel %vm671, %v1892, 0.0
  %v1925 = vsel %vm672, %v1893, 0.0
  %v1926 = vsel %vm673, %v1894, 0.0
  %v1927 = vsel %vm674, %v1895, 0.0
  %v1928 = vsel %vm675, %v1896, 0.0
  %v1929 = vsel %vm676, %v1897, 0.0
  %v1930 = vsel %vm677, %v1898, 0.0
  %v1931 = vsel %vm678, %v1899, 0.0
  %v1932 = vsel %vm679, %v1900, 0.0
  %v1933 = vsel %vm680, %v1901, 0.0
  %v1934 = vsel %vm681, %v1902, 0.0
  %1967 = vrot.lane.b32.xlu0 %v1903, 48
  %v1968 = vpop.permute.xlu0 %1967
  %1969 = vrot.lane.b32.xlu0 %v1904, 48
  %v1970 = vpop.permute.xlu0 %1969
  %1971 = vrot.lane.b32.xlu0 %v1905, 48
  %v1972 = vpop.permute.xlu0 %1971
  %1973 = vrot.lane.b32.xlu0 %v1906, 48
  %v1974 = vpop.permute.xlu0 %1973
  %1975 = vrot.lane.b32.xlu0 %v1907, 48
  %v1976 = vpop.permute.xlu0 %1975
  %1977 = vrot.lane.b32.xlu0 %v1908, 48
  %v1978 = vpop.permute.xlu0 %1977
  %1979 = vrot.lane.b32.xlu0 %v1909, 48
  %v1980 = vpop.permute.xlu0 %1979
  %1981 = vrot.lane.b32.xlu0 %v1910, 48
  %v1982 = vpop.permute.xlu0 %1981
  %1983 = vrot.lane.b32.xlu0 %v1911, 48
  %v1984 = vpop.permute.xlu0 %1983
  %1985 = vrot.lane.b32.xlu0 %v1912, 48
  %v1986 = vpop.permute.xlu0 %1985
  %1987 = vrot.lane.b32.xlu0 %v1913, 48
  %v1988 = vpop.permute.xlu0 %1987
  %1989 = vrot.lane.b32.xlu0 %v1914, 48
  %v1990 = vpop.permute.xlu0 %1989
  %1991 = vrot.lane.b32.xlu0 %v1915, 48
  %v1992 = vpop.permute.xlu0 %1991
  %1993 = vrot.lane.b32.xlu0 %v1916, 48
  %v1994 = vpop.permute.xlu0 %1993
  %1995 = vrot.lane.b32.xlu0 %v1917, 48
  %v1996 = vpop.permute.xlu0 %1995
  %1997 = vrot.lane.b32.xlu0 %v1918, 48
  %v1998 = vpop.permute.xlu0 %1997
  %1999 = vrot.lane.b32.xlu0 %v1919, 48
  %v2000 = vpop.permute.xlu0 %1999
  %2001 = vrot.lane.b32.xlu0 %v1920, 48
  %v2002 = vpop.permute.xlu0 %2001
  %2003 = vrot.lane.b32.xlu0 %v1921, 48
  %v2004 = vpop.permute.xlu0 %2003
  %2005 = vrot.lane.b32.xlu0 %v1922, 48
  %v2006 = vpop.permute.xlu0 %2005
  %2007 = vrot.lane.b32.xlu0 %v1923, 48
  %v2008 = vpop.permute.xlu0 %2007
  %2009 = vrot.lane.b32.xlu0 %v1924, 48
  %v2010 = vpop.permute.xlu0 %2009
  %2011 = vrot.lane.b32.xlu0 %v1925, 48
  %v2012 = vpop.permute.xlu0 %2011
  %2013 = vrot.lane.b32.xlu0 %v1926, 48
  %v2014 = vpop.permute.xlu0 %2013
  %2015 = vrot.lane.b32.xlu0 %v1927, 48
  %v2016 = vpop.permute.xlu0 %2015
  %2017 = vrot.lane.b32.xlu0 %v1928, 48
  %v2018 = vpop.permute.xlu0 %2017
  %2019 = vrot.lane.b32.xlu0 %v1929, 48
  %v2020 = vpop.permute.xlu0 %2019
  %2021 = vrot.lane.b32.xlu0 %v1930, 48
  %v2022 = vpop.permute.xlu0 %2021
  %2023 = vrot.lane.b32.xlu0 %v1931, 48
  %v2024 = vpop.permute.xlu0 %2023
  %2025 = vrot.lane.b32.xlu0 %v1932, 48
  %v2026 = vpop.permute.xlu0 %2025
  %2027 = vrot.lane.b32.xlu0 %v1933, 48
  %v2028 = vpop.permute.xlu0 %2027
  %2029 = vrot.lane.b32.xlu0 %v1934, 48
  %v2030 = vpop.permute.xlu0 %2029
  %vm2063 = vcmask 458112
  %2064 = vst.msk [vmem:[#allocation4] sm:$0xff] %vm2063, %v1968
  %2065 = vst.msk [vmem:[#allocation4 + $0x8] sm:$0xff] %vm2063, %v1970
  %2066 = vst.msk [vmem:[#allocation4 + $0x10] sm:$0xff] %vm2063, %v1972
  %2067 = vst.msk [vmem:[#allocation4 + $0x18] sm:$0xff] %vm2063, %v1974
  %2068 = vst.msk [vmem:[#allocation4 + $0x20] sm:$0xff] %vm2063, %v1976
  %2069 = vst.msk [vmem:[#allocation4 + $0x28] sm:$0xff] %vm2063, %v1978
  %2070 = vst.msk [vmem:[#allocation4 + $0x30] sm:$0xff] %vm2063, %v1980
  %2071 = vst.msk [vmem:[#allocation4 + $0x38] sm:$0xff] %vm2063, %v1982
  %2072 = vst.msk [vmem:[#allocation4 + $0x40] sm:$0xff] %vm2063, %v1984
  %2073 = vst.msk [vmem:[#allocation4 + $0x48] sm:$0xff] %vm2063, %v1986
  %2074 = vst.msk [vmem:[#allocation4 + $0x50] sm:$0xff] %vm2063, %v1988
  %2075 = vst.msk [vmem:[#allocation4 + $0x58] sm:$0xff] %vm2063, %v1990
  %2076 = vst.msk [vmem:[#allocation4 + $0x60] sm:$0xff] %vm2063, %v1992
  %2077 = vst.msk [vmem:[#allocation4 + $0x68] sm:$0xff] %vm2063, %v1994
  %2078 = vst.msk [vmem:[#allocation4 + $0x70] sm:$0xff] %vm2063, %v1996
  %2079 = vst.msk [vmem:[#allocation4 + $0x78] sm:$0xff] %vm2063, %v1998
  %2080 = vst.msk [vmem:[#allocation4 + $0x80] sm:$0xff] %vm2063, %v2000
  %2081 = vst.msk [vmem:[#allocation4 + $0x88] sm:$0xff] %vm2063, %v2002
  %2082 = vst.msk [vmem:[#allocation4 + $0x90] sm:$0xff] %vm2063, %v2004
  %2083 = vst.msk [vmem:[#allocation4 + $0x98] sm:$0xff] %vm2063, %v2006
  %2084 = vst.msk [vmem:[#allocation4 + $0xa0] sm:$0xff] %vm2063, %v2008
  %2085 = vst.msk [vmem:[#allocation4 + $0xa8] sm:$0xff] %vm2063, %v2010
  %2086 = vst.msk [vmem:[#allocation4 + $0xb0] sm:$0xff] %vm2063, %v2012
  %2087 = vst.msk [vmem:[#allocation4 + $0xb8] sm:$0xff] %vm2063, %v2014
  %2088 = vst.msk [vmem:[#allocation4 + $0xc0] sm:$0xff] %vm2063, %v2016
  %2089 = vst.msk [vmem:[#allocation4 + $0xc8] sm:$0xff] %vm2063, %v2018
  %2090 = vst.msk [vmem:[#allocation4 + $0xd0] sm:$0xff] %vm2063, %v2020
  %2091 = vst.msk [vmem:[#allocation4 + $0xd8] sm:$0xff] %vm2063, %v2022
  %2092 = vst.msk [vmem:[#allocation4 + $0xe0] sm:$0xff] %vm2063, %v2024
  %2093 = vst.msk [vmem:[#allocation4 + $0xe8] sm:$0xff] %vm2063, %v2026
  %2094 = vst.msk [vmem:[#allocation4 + $0xf0] sm:$0xff] %vm2063, %v2028
  %2095 = vst.msk [vmem:[#allocation4 + $0xf8] sm:$0xff] %vm2063, %v2030
  %v2096 = vld [vmem:[#allocation2 + $0x28] sm:$0xff]
  %v2097 = vld [vmem:[#allocation2 + $0x30] sm:$0xff]
  %v2098 = vld [vmem:[#allocation2 + $0x38] sm:$0xff]
  %v2099 = vld [vmem:[#allocation2 + $0x40] sm:$0xff]
  %v2100 = vld [vmem:[#allocation2 + $0x48] sm:$0xff]
  %v2101 = vld [vmem:[#allocation2 + $0x50] sm:$0xff]
  %v2102 = vld [vmem:[#allocation2 + $0x58] sm:$0xff]
  %v2103 = vld [vmem:[#allocation2 + $0x60] sm:$0xff]
  %v2104 = vld [vmem:[#allocation2 + $0x68] sm:$0xff]
  %v2105 = vld [vmem:[#allocation2 + $0x70] sm:$0xff]
  %v2106 = vld [vmem:[#allocation2 + $0x78] sm:$0xff]
  %v2107 = vld [vmem:[#allocation2 + $0x80] sm:$0xff]
  %v2108 = vld [vmem:[#allocation2 + $0x88] sm:$0xff]
  %v2109 = vld [vmem:[#allocation2 + $0x90] sm:$0xff]
  %v2110 = vld [vmem:[#allocation2 + $0x98] sm:$0xff]
  %v2111 = vld [vmem:[#allocation2 + $0xa0] sm:$0xff]
  %v2112 = vld [vmem:[#allocation2 + $0xa8] sm:$0xff]
  %v2113 = vld [vmem:[#allocation2 + $0xb0] sm:$0xff]
  %v2114 = vld [vmem:[#allocation2 + $0xb8] sm:$0xff]
  %v2115 = vld [vmem:[#allocation2 + $0xc0] sm:$0xff]
  %v2116 = vld [vmem:[#allocation2 + $0xc8] sm:$0xff]
  %v2117 = vld [vmem:[#allocation2 + $0xd0] sm:$0xff]
  %v2118 = vld [vmem:[#allocation2 + $0xd8] sm:$0xff]
  %v2119 = vld [vmem:[#allocation2 + $0xe0] sm:$0xff]
  %v2120 = vld [vmem:[#allocation2 + $0xe8] sm:$0xff]
  %v2121 = vld [vmem:[#allocation2 + $0xf0] sm:$0xff]
  %v2122 = vld [vmem:[#allocation2 + $0xf8] sm:$0xff]
  %v2123 = vld [vmem:[#allocation2 + $0x100] sm:$0xff]
  %v2124 = vld [vmem:[#allocation2 + $0x108] sm:$0xff]
  %v2125 = vld [vmem:[#allocation2 + $0x110] sm:$0xff]
  %v2126 = vld [vmem:[#allocation2 + $0x118] sm:$0xff]
  %v2127 = vld [vmem:[#allocation2 + $0x120] sm:$0xff]
  %2160 = vrot.lane.b32.xlu0 %v2096, 56
  %v2161 = vpop.permute.xlu0 %2160
  %2162 = vrot.lane.b32.xlu0 %v2097, 56
  %v2163 = vpop.permute.xlu0 %2162
  %2164 = vrot.lane.b32.xlu0 %v2098, 56
  %v2165 = vpop.permute.xlu0 %2164
  %2166 = vrot.lane.b32.xlu0 %v2099, 56
  %v2167 = vpop.permute.xlu0 %2166
  %2168 = vrot.lane.b32.xlu0 %v2100, 56
  %v2169 = vpop.permute.xlu0 %2168
  %2170 = vrot.lane.b32.xlu0 %v2101, 56
  %v2171 = vpop.permute.xlu0 %2170
  %2172 = vrot.lane.b32.xlu0 %v2102, 56
  %v2173 = vpop.permute.xlu0 %2172
  %2174 = vrot.lane.b32.xlu0 %v2103, 56
  %v2175 = vpop.permute.xlu0 %2174
  %2176 = vrot.lane.b32.xlu0 %v2104, 56
  %v2177 = vpop.permute.xlu0 %2176
  %2178 = vrot.lane.b32.xlu0 %v2105, 56
  %v2179 = vpop.permute.xlu0 %2178
  %2180 = vrot.lane.b32.xlu0 %v2106, 56
  %v2181 = vpop.permute.xlu0 %2180
  %2182 = vrot.lane.b32.xlu0 %v2107, 56
  %v2183 = vpop.permute.xlu0 %2182
  %2184 = vrot.lane.b32.xlu0 %v2108, 56
  %v2185 = vpop.permute.xlu0 %2184
  %2186 = vrot.lane.b32.xlu0 %v2109, 56
  %v2187 = vpop.permute.xlu0 %2186
  %2188 = vrot.lane.b32.xlu0 %v2110, 56
  %v2189 = vpop.permute.xlu0 %2188
  %2190 = vrot.lane.b32.xlu0 %v2111, 56
  %v2191 = vpop.permute.xlu0 %2190
  %2192 = vrot.lane.b32.xlu0 %v2112, 56
  %v2193 = vpop.permute.xlu0 %2192
  %2194 = vrot.lane.b32.xlu0 %v2113, 56
  %v2195 = vpop.permute.xlu0 %2194
  %2196 = vrot.lane.b32.xlu0 %v2114, 56
  %v2197 = vpop.permute.xlu0 %2196
  %2198 = vrot.lane.b32.xlu0 %v2115, 56
  %v2199 = vpop.permute.xlu0 %2198
  %2200 = vrot.lane.b32.xlu0 %v2116, 56
  %v2201 = vpop.permute.xlu0 %2200
  %2202 = vrot.lane.b32.xlu0 %v2117, 56
  %v2203 = vpop.permute.xlu0 %2202
  %2204 = vrot.lane.b32.xlu0 %v2118, 56
  %v2205 = vpop.permute.xlu0 %2204
  %2206 = vrot.lane.b32.xlu0 %v2119, 56
  %v2207 = vpop.permute.xlu0 %2206
  %2208 = vrot.lane.b32.xlu0 %v2120, 56
  %v2209 = vpop.permute.xlu0 %2208
  %2210 = vrot.lane.b32.xlu0 %v2121, 56
  %v2211 = vpop.permute.xlu0 %2210
  %2212 = vrot.lane.b32.xlu0 %v2122, 56
  %v2213 = vpop.permute.xlu0 %2212
  %2214 = vrot.lane.b32.xlu0 %v2123, 56
  %v2215 = vpop.permute.xlu0 %2214
  %2216 = vrot.lane.b32.xlu0 %v2124, 56
  %v2217 = vpop.permute.xlu0 %2216
  %2218 = vrot.lane.b32.xlu0 %v2125, 56
  %v2219 = vpop.permute.xlu0 %2218
  %2220 = vrot.lane.b32.xlu0 %v2126, 56
  %v2221 = vpop.permute.xlu0 %2220
  %2222 = vrot.lane.b32.xlu0 %v2127, 56
  %v2223 = vpop.permute.xlu0 %2222
  %vm2256 = vcmask 523712
  %2257 = vst.msk [vmem:[#allocation4] sm:$0xff] %vm2256, %v2161
  %2258 = vst.msk [vmem:[#allocation4 + $0x8] sm:$0xff] %vm2256, %v2163
  %2259 = vst.msk [vmem:[#allocation4 + $0x10] sm:$0xff] %vm2256, %v2165
  %2260 = vst.msk [vmem:[#allocation4 + $0x18] sm:$0xff] %vm2256, %v2167
  %2261 = vst.msk [vmem:[#allocation4 + $0x20] sm:$0xff] %vm2256, %v2169
  %2262 = vst.msk [vmem:[#allocation4 + $0x28] sm:$0xff] %vm2256, %v2171
  %2263 = vst.msk [vmem:[#allocation4 + $0x30] sm:$0xff] %vm2256, %v2173
  %2264 = vst.msk [vmem:[#allocation4 + $0x38] sm:$0xff] %vm2256, %v2175
  %2265 = vst.msk [vmem:[#allocation4 + $0x40] sm:$0xff] %vm2256, %v2177
  %2266 = vst.msk [vmem:[#allocation4 + $0x48] sm:$0xff] %vm2256, %v2179
  %2267 = vst.msk [vmem:[#allocation4 + $0x50] sm:$0xff] %vm2256, %v2181
  %2268 = vst.msk [vmem:[#allocation4 + $0x58] sm:$0xff] %vm2256, %v2183
  %2269 = vst.msk [vmem:[#allocation4 + $0x60] sm:$0xff] %vm2256, %v2185
  %2270 = vst.msk [vmem:[#allocation4 + $0x68] sm:$0xff] %vm2256, %v2187
  %2271 = vst.msk [vmem:[#allocation4 + $0x70] sm:$0xff] %vm2256, %v2189
  %2272 = vst.msk [vmem:[#allocation4 + $0x78] sm:$0xff] %vm2256, %v2191
  %2273 = vst.msk [vmem:[#allocation4 + $0x80] sm:$0xff] %vm2256, %v2193
  %2274 = vst.msk [vmem:[#allocation4 + $0x88] sm:$0xff] %vm2256, %v2195
  %2275 = vst.msk [vmem:[#allocation4 + $0x90] sm:$0xff] %vm2256, %v2197
  %2276 = vst.msk [vmem:[#allocation4 + $0x98] sm:$0xff] %vm2256, %v2199
  %2277 = vst.msk [vmem:[#allocation4 + $0xa0] sm:$0xff] %vm2256, %v2201
  %2278 = vst.msk [vmem:[#allocation4 + $0xa8] sm:$0xff] %vm2256, %v2203
  %2279 = vst.msk [vmem:[#allocation4 + $0xb0] sm:$0xff] %vm2256, %v2205
  %2280 = vst.msk [vmem:[#allocation4 + $0xb8] sm:$0xff] %vm2256, %v2207
  %2281 = vst.msk [vmem:[#allocation4 + $0xc0] sm:$0xff] %vm2256, %v2209
  %2282 = vst.msk [vmem:[#allocation4 + $0xc8] sm:$0xff] %vm2256, %v2211
  %2283 = vst.msk [vmem:[#allocation4 + $0xd0] sm:$0xff] %vm2256, %v2213
  %2284 = vst.msk [vmem:[#allocation4 + $0xd8] sm:$0xff] %vm2256, %v2215
  %2285 = vst.msk [vmem:[#allocation4 + $0xe0] sm:$0xff] %vm2256, %v2217
  %2286 = vst.msk [vmem:[#allocation4 + $0xe8] sm:$0xff] %vm2256, %v2219
  %2287 = vst.msk [vmem:[#allocation4 + $0xf0] sm:$0xff] %vm2256, %v2221
  %2288 = vst.msk [vmem:[#allocation4 + $0xf8] sm:$0xff] %vm2256, %v2223
  %v2289 = vld [vmem:[#allocation2 + $0x29] sm:$0xff]
  %v2290 = vld [vmem:[#allocation2 + $0x31] sm:$0xff]
  %v2291 = vld [vmem:[#allocation2 + $0x39] sm:$0xff]
  %v2292 = vld [vmem:[#allocation2 + $0x41] sm:$0xff]
  %v2293 = vld [vmem:[#allocation2 + $0x49] sm:$0xff]
  %v2294 = vld [vmem:[#allocation2 + $0x51] sm:$0xff]
  %v2295 = vld [vmem:[#allocation2 + $0x59] sm:$0xff]
  %v2296 = vld [vmem:[#allocation2 + $0x61] sm:$0xff]
  %v2297 = vld [vmem:[#allocation2 + $0x69] sm:$0xff]
  %v2298 = vld [vmem:[#allocation2 + $0x71] sm:$0xff]
  %v2299 = vld [vmem:[#allocation2 + $0x79] sm:$0xff]
  %v2300 = vld [vmem:[#allocation2 + $0x81] sm:$0xff]
  %v2301 = vld [vmem:[#allocation2 + $0x89] sm:$0xff]
  %v2302 = vld [vmem:[#allocation2 + $0x91] sm:$0xff]
  %v2303 = vld [vmem:[#allocation2 + $0x99] sm:$0xff]
  %v2304 = vld [vmem:[#allocation2 + $0xa1] sm:$0xff]
  %v2305 = vld [vmem:[#allocation2 + $0xa9] sm:$0xff]
  %v2306 = vld [vmem:[#allocation2 + $0xb1] sm:$0xff]
  %v2307 = vld [vmem:[#allocation2 + $0xb9] sm:$0xff]
  %v2308 = vld [vmem:[#allocation2 + $0xc1] sm:$0xff]
  %v2309 = vld [vmem:[#allocation2 + $0xc9] sm:$0xff]
  %v2310 = vld [vmem:[#allocation2 + $0xd1] sm:$0xff]
  %v2311 = vld [vmem:[#allocation2 + $0xd9] sm:$0xff]
  %v2312 = vld [vmem:[#allocation2 + $0xe1] sm:$0xff]
  %v2313 = vld [vmem:[#allocation2 + $0xe9] sm:$0xff]
  %v2314 = vld [vmem:[#allocation2 + $0xf1] sm:$0xff]
  %v2315 = vld [vmem:[#allocation2 + $0xf9] sm:$0xff]
  %v2316 = vld [vmem:[#allocation2 + $0x101] sm:$0xff]
  %v2317 = vld [vmem:[#allocation2 + $0x109] sm:$0xff]
  %v2318 = vld [vmem:[#allocation2 + $0x111] sm:$0xff]
  %v2319 = vld [vmem:[#allocation2 + $0x119] sm:$0xff]
  %v2320 = vld [vmem:[#allocation2 + $0x121] sm:$0xff]
  %v2321 = vsel %vm1003, %v2289, 0.0
  %v2322 = vsel %vm1004, %v2290, 0.0
  %v2323 = vsel %vm1005, %v2291, 0.0
  %v2324 = vsel %vm1006, %v2292, 0.0
  %v2325 = vsel %vm1007, %v2293, 0.0
  %v2326 = vsel %vm1008, %v2294, 0.0
  %v2327 = vsel %vm1009, %v2295, 0.0
  %v2328 = vsel %vm1010, %v2296, 0.0
  %v2329 = vsel %vm1011, %v2297, 0.0
  %v2330 = vsel %vm1012, %v2298, 0.0
  %v2331 = vsel %vm1013, %v2299, 0.0
  %v2332 = vsel %vm1014, %v2300, 0.0
  %v2333 = vsel %vm1015, %v2301, 0.0
  %v2334 = vsel %vm1016, %v2302, 0.0
  %v2335 = vsel %vm1017, %v2303, 0.0
  %v2336 = vsel %vm1018, %v2304, 0.0
  %v2337 = vsel %vm1019, %v2305, 0.0
  %v2338 = vsel %vm1020, %v2306, 0.0
  %v2339 = vsel %vm1021, %v2307, 0.0
  %v2340 = vsel %vm1022, %v2308, 0.0
  %v2341 = vsel %vm1023, %v2309, 0.0
  %v2342 = vsel %vm1024, %v2310, 0.0
  %v2343 = vsel %vm1025, %v2311, 0.0
  %v2344 = vsel %vm1026, %v2312, 0.0
  %v2345 = vsel %vm1027, %v2313, 0.0
  %v2346 = vsel %vm1028, %v2314, 0.0
  %v2347 = vsel %vm1029, %v2315, 0.0
  %v2348 = vsel %vm1030, %v2316, 0.0
  %v2349 = vsel %vm1031, %v2317, 0.0
  %v2350 = vsel %vm1032, %v2318, 0.0
  %v2351 = vsel %vm1033, %v2319, 0.0
  %v2352 = vsel %vm1034, %v2320, 0.0
  %2385 = vrot.lane.b32.xlu0 %v2321, 64
  %v2386 = vpop.permute.xlu0 %2385
  %2387 = vrot.lane.b32.xlu0 %v2322, 64
  %v2388 = vpop.permute.xlu0 %2387
  %2389 = vrot.lane.b32.xlu0 %v2323, 64
  %v2390 = vpop.permute.xlu0 %2389
  %2391 = vrot.lane.b32.xlu0 %v2324, 64
  %v2392 = vpop.permute.xlu0 %2391
  %2393 = vrot.lane.b32.xlu0 %v2325, 64
  %v2394 = vpop.permute.xlu0 %2393
  %2395 = vrot.lane.b32.xlu0 %v2326, 64
  %v2396 = vpop.permute.xlu0 %2395
  %2397 = vrot.lane.b32.xlu0 %v2327, 64
  %v2398 = vpop.permute.xlu0 %2397
  %2399 = vrot.lane.b32.xlu0 %v2328, 64
  %v2400 = vpop.permute.xlu0 %2399
  %2401 = vrot.lane.b32.xlu0 %v2329, 64
  %v2402 = vpop.permute.xlu0 %2401
  %2403 = vrot.lane.b32.xlu0 %v2330, 64
  %v2404 = vpop.permute.xlu0 %2403
  %2405 = vrot.lane.b32.xlu0 %v2331, 64
  %v2406 = vpop.permute.xlu0 %2405
  %2407 = vrot.lane.b32.xlu0 %v2332, 64
  %v2408 = vpop.permute.xlu0 %2407
  %2409 = vrot.lane.b32.xlu0 %v2333, 64
  %v2410 = vpop.permute.xlu0 %2409
  %2411 = vrot.lane.b32.xlu0 %v2334, 64
  %v2412 = vpop.permute.xlu0 %2411
  %2413 = vrot.lane.b32.xlu0 %v2335, 64
  %v2414 = vpop.permute.xlu0 %2413
  %2415 = vrot.lane.b32.xlu0 %v2336, 64
  %v2416 = vpop.permute.xlu0 %2415
  %2417 = vrot.lane.b32.xlu0 %v2337, 64
  %v2418 = vpop.permute.xlu0 %2417
  %2419 = vrot.lane.b32.xlu0 %v2338, 64
  %v2420 = vpop.permute.xlu0 %2419
  %2421 = vrot.lane.b32.xlu0 %v2339, 64
  %v2422 = vpop.permute.xlu0 %2421
  %2423 = vrot.lane.b32.xlu0 %v2340, 64
  %v2424 = vpop.permute.xlu0 %2423
  %2425 = vrot.lane.b32.xlu0 %v2341, 64
  %v2426 = vpop.permute.xlu0 %2425
  %2427 = vrot.lane.b32.xlu0 %v2342, 64
  %v2428 = vpop.permute.xlu0 %2427
  %2429 = vrot.lane.b32.xlu0 %v2343, 64
  %v2430 = vpop.permute.xlu0 %2429
  %2431 = vrot.lane.b32.xlu0 %v2344, 64
  %v2432 = vpop.permute.xlu0 %2431
  %2433 = vrot.lane.b32.xlu0 %v2345, 64
  %v2434 = vpop.permute.xlu0 %2433
  %2435 = vrot.lane.b32.xlu0 %v2346, 64
  %v2436 = vpop.permute.xlu0 %2435
  %2437 = vrot.lane.b32.xlu0 %v2347, 64
  %v2438 = vpop.permute.xlu0 %2437
  %2439 = vrot.lane.b32.xlu0 %v2348, 64
  %v2440 = vpop.permute.xlu0 %2439
  %2441 = vrot.lane.b32.xlu0 %v2349, 64
  %v2442 = vpop.permute.xlu0 %2441
  %2443 = vrot.lane.b32.xlu0 %v2350, 64
  %v2444 = vpop.permute.xlu0 %2443
  %2445 = vrot.lane.b32.xlu0 %v2351, 64
  %v2446 = vpop.permute.xlu0 %2445
  %2447 = vrot.lane.b32.xlu0 %v2352, 64
  %v2448 = vpop.permute.xlu0 %2447
  %vm2481 = vcmask 589312
  %2482 = vst.msk [vmem:[#allocation4] sm:$0xff] %vm2481, %v2386
  %2483 = vst.msk [vmem:[#allocation4 + $0x8] sm:$0xff] %vm2481, %v2388
  %2484 = vst.msk [vmem:[#allocation4 + $0x10] sm:$0xff] %vm2481, %v2390
  %2485 = vst.msk [vmem:[#allocation4 + $0x18] sm:$0xff] %vm2481, %v2392
  %2486 = vst.msk [vmem:[#allocation4 + $0x20] sm:$0xff] %vm2481, %v2394
  %2487 = vst.msk [vmem:[#allocation4 + $0x28] sm:$0xff] %vm2481, %v2396
  %2488 = vst.msk [vmem:[#allocation4 + $0x30] sm:$0xff] %vm2481, %v2398
  %2489 = vst.msk [vmem:[#allocation4 + $0x38] sm:$0xff] %vm2481, %v2400
  %2490 = vst.msk [vmem:[#allocation4 + $0x40] sm:$0xff] %vm2481, %v2402
  %2491 = vst.msk [vmem:[#allocation4 + $0x48] sm:$0xff] %vm2481, %v2404
  %2492 = vst.msk [vmem:[#allocation4 + $0x50] sm:$0xff] %vm2481, %v2406
  %2493 = vst.msk [vmem:[#allocation4 + $0x58] sm:$0xff] %vm2481, %v2408
  %2494 = vst.msk [vmem:[#allocation4 + $0x60] sm:$0xff] %vm2481, %v2410
  %2495 = vst.msk [vmem:[#allocation4 + $0x68] sm:$0xff] %vm2481, %v2412
  %2496 = vst.msk [vmem:[#allocation4 + $0x70] sm:$0xff] %vm2481, %v2414
  %2497 = vst.msk [vmem:[#allocation4 + $0x78] sm:$0xff] %vm2481, %v2416
  %2498 = vst.msk [vmem:[#allocation4 + $0x80] sm:$0xff] %vm2481, %v2418
  %2499 = vst.msk [vmem:[#allocation4 + $0x88] sm:$0xff] %vm2481, %v2420
  %2500 = vst.msk [vmem:[#allocation4 + $0x90] sm:$0xff] %vm2481, %v2422
  %2501 = vst.msk [vmem:[#allocation4 + $0x98] sm:$0xff] %vm2481, %v2424
  %2502 = vst.msk [vmem:[#allocation4 + $0xa0] sm:$0xff] %vm2481, %v2426
  %2503 = vst.msk [vmem:[#allocation4 + $0xa8] sm:$0xff] %vm2481, %v2428
  %2504 = vst.msk [vmem:[#allocation4 + $0xb0] sm:$0xff] %vm2481, %v2430
  %2505 = vst.msk [vmem:[#allocation4 + $0xb8] sm:$0xff] %vm2481, %v2432
  %2506 = vst.msk [vmem:[#allocation4 + $0xc0] sm:$0xff] %vm2481, %v2434
  %2507 = vst.msk [vmem:[#allocation4 + $0xc8] sm:$0xff] %vm2481, %v2436
  %2508 = vst.msk [vmem:[#allocation4 + $0xd0] sm:$0xff] %vm2481, %v2438
  %2509 = vst.msk [vmem:[#allocation4 + $0xd8] sm:$0xff] %vm2481, %v2440
  %2510 = vst.msk [vmem:[#allocation4 + $0xe0] sm:$0xff] %vm2481, %v2442
  %2511 = vst.msk [vmem:[#allocation4 + $0xe8] sm:$0xff] %vm2481, %v2444
  %2512 = vst.msk [vmem:[#allocation4 + $0xf0] sm:$0xff] %vm2481, %v2446
  %2513 = vst.msk [vmem:[#allocation4 + $0xf8] sm:$0xff] %vm2481, %v2448
  %v2514 = vld [vmem:[#allocation4] sm:$0xff]
  %v2515 = vld [vmem:[#allocation4 + $0x8] sm:$0xff]
  %v2516 = vld [vmem:[#allocation4 + $0x10] sm:$0xff]
  %v2517 = vld [vmem:[#allocation4 + $0x18] sm:$0xff]
  %v2518 = vld [vmem:[#allocation4 + $0x20] sm:$0xff]
  %v2519 = vld [vmem:[#allocation4 + $0x28] sm:$0xff]
  %v2520 = vld [vmem:[#allocation4 + $0x30] sm:$0xff]
  %v2521 = vld [vmem:[#allocation4 + $0x38] sm:$0xff]
  %v2522 = vld [vmem:[#allocation4 + $0x40] sm:$0xff]
  %v2523 = vld [vmem:[#allocation4 + $0x48] sm:$0xff]
  %v2524 = vld [vmem:[#allocation4 + $0x50] sm:$0xff]
  %v2525 = vld [vmem:[#allocation4 + $0x58] sm:$0xff]
  %v2526 = vld [vmem:[#allocation4 + $0x60] sm:$0xff]
  %v2527 = vld [vmem:[#allocation4 + $0x68] sm:$0xff]
  %v2528 = vld [vmem:[#allocation4 + $0x70] sm:$0xff]
  %v2529 = vld [vmem:[#allocation4 + $0x78] sm:$0xff]
  %v2530 = vld [vmem:[#allocation4 + $0x80] sm:$0xff]
  %v2531 = vld [vmem:[#allocation4 + $0x88] sm:$0xff]
  %v2532 = vld [vmem:[#allocation4 + $0x90] sm:$0xff]
  %v2533 = vld [vmem:[#allocation4 + $0x98] sm:$0xff]
  %v2534 = vld [vmem:[#allocation4 + $0xa0] sm:$0xff]
  %v2535 = vld [vmem:[#allocation4 + $0xa8] sm:$0xff]
  %v2536 = vld [vmem:[#allocation4 + $0xb0] sm:$0xff]
  %v2537 = vld [vmem:[#allocation4 + $0xb8] sm:$0xff]
  %v2538 = vld [vmem:[#allocation4 + $0xc0] sm:$0xff]
  %v2539 = vld [vmem:[#allocation4 + $0xc8] sm:$0xff]
  %v2540 = vld [vmem:[#allocation4 + $0xd0] sm:$0xff]
  %v2541 = vld [vmem:[#allocation4 + $0xd8] sm:$0xff]
  %v2542 = vld [vmem:[#allocation4 + $0xe0] sm:$0xff]
  %v2543 = vld [vmem:[#allocation4 + $0xe8] sm:$0xff]
  %v2544 = vld [vmem:[#allocation4 + $0xf0] sm:$0xff]
  %v2545 = vld [vmem:[#allocation4 + $0xf8] sm:$0xff]
  %v2546 = vpack.c.bf16 %v2515, %v2514
  %v2547 = vpack.c.bf16 %v2517, %v2516
  %v2548 = vpack.c.bf16 %v2519, %v2518
  %v2549 = vpack.c.bf16 %v2521, %v2520
  %v2550 = vpack.c.bf16 %v2523, %v2522
  %v2551 = vpack.c.bf16 %v2525, %v2524
  %v2552 = vpack.c.bf16 %v2527, %v2526
  %v2553 = vpack.c.bf16 %v2529, %v2528
  %v2554 = vpack.c.bf16 %v2531, %v2530
  %v2555 = vpack.c.bf16 %v2533, %v2532
  %v2556 = vpack.c.bf16 %v2535, %v2534
  %v2557 = vpack.c.bf16 %v2537, %v2536
  %v2558 = vpack.c.bf16 %v2539, %v2538
  %v2559 = vpack.c.bf16 %v2541, %v2540
  %v2560 = vpack.c.bf16 %v2543, %v2542
  %v2561 = vpack.c.bf16 %v2545, %v2544
  %v2562 = vld [vmem:[%s1] sm:$0xff]
  %v2563 = vld [vmem:[%s1 + $0x8] sm:$0xff]
  %v2564 = vld [vmem:[%s1 + $0x10] sm:$0xff]
  %v2565 = vld [vmem:[%s1 + $0x18] sm:$0xff]
  %v2566 = vld [vmem:[%s1 + $0x20] sm:$0xff]
  %v2567 = vld [vmem:[%s1 + $0x28] sm:$0xff]
  %v2568 = vld [vmem:[%s1 + $0x30] sm:$0xff]
  %v2569 = vld [vmem:[%s1 + $0x38] sm:$0xff]
  %v2570 = vld [vmem:[%s1 + $0x40] sm:$0xff]
  %v2571 = vpack.c.bf16 %v2563, %v2562
  %v2572 = vpack.c.bf16 %v2565, %v2564
  %v2573 = vpack.c.bf16 %v2567, %v2566
  %v2574 = vpack.c.bf16 %v2569, %v2568
  %v2575 = vpack.c.bf16 %v2570, %v2570
  %v2576 = vld [vmem:[%s2] sm:$0x1]
  %v2578 = vlaneseq
  %v2579 = vshrl.u32 %v2578, 7
  %v2580 = vsub.s32 0, %v2579
  %v2581 = vrot.slane %v2576, %v2580
  %vm2583 = vcmask 588800
  %v2585 = vsel %vm2583, %v2546, 0
  %v2588 = vsel %vm2583, %v2547, 0
  %v2591 = vsel %vm2583, %v2548, 0
  %v2594 = vsel %vm2583, %v2549, 0
  %v2597 = vsel %vm2583, %v2550, 0
  %v2600 = vsel %vm2583, %v2551, 0
  %v2603 = vsel %vm2583, %v2552, 0
  %v2606 = vsel %vm2583, %v2553, 0
  %v2609 = vsel %vm2583, %v2554, 0
  %v2612 = vsel %vm2583, %v2555, 0
  %v2615 = vsel %vm2583, %v2556, 0
  %v2618 = vsel %vm2583, %v2557, 0
  %v2621 = vsel %vm2583, %v2558, 0
  %v2624 = vsel %vm2583, %v2559, 0
  %v2627 = vsel %vm2583, %v2560, 0
  %v2630 = vsel %vm2583, %v2561, 0
  %vm2632 = vcmask 1043456
  %v2634 = vsel %vm2632, %v2575, 0
  %2636 = vmatprep.subr.bf16.mxu0 0
  %2637 = vmatpush1.bf16.msra.mxu0 %v2571
  %2638 = vmatprep.subr.bf16.mxu0 0
  %2639 = vmatpush1.bf16.msra.mxu0 %v2572
  %2640 = vmatprep.subr.bf16.mxu0 0
  %2641 = vmatpush1.bf16.msra.mxu0 %v2573
  %2642 = vmatprep.subr.bf16.mxu0 0
  %2643 = vmatpush1.bf16.msra.mxu0 %v2574
  %2644 = vmatprep.subr.bf16.mxu0 0
  %2645 = vmatpush1.bf16.msra.mxu0 %v2634
  %2646 = vmatprep.subr.bf16.mxu0 0
  %2647 = vmatpush1.bf16.msra.mxu0 0
  %2648 = vmatprep.subr.bf16.mxu0 0
  %2649 = vmatpush1.bf16.msra.mxu0 0
  %2650 = vmatprep.subr.bf16.mxu0 0
  %2651 = vmatpush1.bf16.msra.mxu0 0
  %2652 = vmatprep.subr.bf16.mxu0 0
  %2653 = vmatpush1.bf16.msra.mxu0 0
  %2654 = vmatprep.subr.bf16.mxu0 0
  %2655 = vmatpush1.bf16.msra.mxu0 0
  %2656 = vmatprep.subr.bf16.mxu0 0
  %2657 = vmatpush1.bf16.msra.mxu0 0
  %2658 = vmatprep.subr.bf16.mxu0 0
  %2659 = vmatpush1.bf16.msra.mxu0 0
  %2660 = vmatprep.subr.bf16.mxu0 0
  %2661 = vmatpush1.bf16.msra.mxu0 0
  %2662 = vmatprep.subr.bf16.mxu0 0
  %2663 = vmatpush1.bf16.msra.mxu0 0
  %2664 = vmatprep.subr.bf16.mxu0 0
  %2665 = vmatpush1.bf16.msra.mxu0 0
  %2666 = vmatprep.subr.bf16.mxu0 0
  %2667 = vmatpush1.bf16.msra.mxu0 0
  %2668 = vmatprep.mubr.bf16.mxu0 0
  %2669 = vmatmul.mubr.bf16.gmra.mrb[0].mxu0 %v2585
  %v2670 = vpop.f32.mrb[0].mxu0
  %v2671 = vadd.f32 %v2581, %v2670
  %v2672 = vpop.f32.mrb[0].mxu0
  %v2673 = vpop.f32.mrb[0].mxu0
  %v2674 = vadd.f32 %v2581, %v2673
  %v2675 = vpop.f32.mrb[0].mxu0
  %2676 = vmatprep.mubr.bf16.mxu0 0
  %2677 = vmatmul.mubr.bf16.gmra.mrb[0].mxu0 %v2588
  %v2678 = vpop.f32.mrb[0].mxu0
  %v2679 = vadd.f32 %v2581, %v2678
  %v2680 = vpop.f32.mrb[0].mxu0
  %v2681 = vpop.f32.mrb[0].mxu0
  %v2682 = vadd.f32 %v2581, %v2681
  %v2683 = vpop.f32.mrb[0].mxu0
  %2684 = vmatprep.mubr.bf16.mxu0 0
  %2685 = vmatmul.mubr.bf16.gmra.mrb[0].mxu0 %v2591
  %v2686 = vpop.f32.mrb[0].mxu0
  %v2687 = vadd.f32 %v2581, %v2686
  %v2688 = vpop.f32.mrb[0].mxu0
  %v2689 = vpop.f32.mrb[0].mxu0
  %v2690 = vadd.f32 %v2581, %v2689
  %v2691 = vpop.f32.mrb[0].mxu0
  %2692 = vmatprep.mubr.bf16.mxu0 0
  %2693 = vmatmul.mubr.bf16.gmra.mrb[0].mxu0 %v2594
  %v2694 = vpop.f32.mrb[0].mxu0
  %v2695 = vadd.f32 %v2581, %v2694
  %v2696 = vpop.f32.mrb[0].mxu0
  %v2697 = vpop.f32.mrb[0].mxu0
  %v2698 = vadd.f32 %v2581, %v2697
  %v2699 = vpop.f32.mrb[0].mxu0
  %2700 = vmatprep.mubr.bf16.mxu0 0
  %2701 = vmatmul.mubr.bf16.gmra.mrb[0].mxu0 %v2597
  %v2702 = vpop.f32.mrb[0].mxu0
  %v2703 = vadd.f32 %v2581, %v2702
  %v2704 = vpop.f32.mrb[0].mxu0
  %v2705 = vpop.f32.mrb[0].mxu0
  %v2706 = vadd.f32 %v2581, %v2705
  %v2707 = vpop.f32.mrb[0].mxu0
  %2708 = vmatprep.mubr.bf16.mxu0 0
  %2709 = vmatmul.mubr.bf16.gmra.mrb[0].mxu0 %v2600
  %v2710 = vpop.f32.mrb[0].mxu0
  %v2711 = vadd.f32 %v2581, %v2710
  %v2712 = vpop.f32.mrb[0].mxu0
  %v2713 = vpop.f32.mrb[0].mxu0
  %v2714 = vadd.f32 %v2581, %v2713
  %v2715 = vpop.f32.mrb[0].mxu0
  %2716 = vmatprep.mubr.bf16.mxu0 0
  %2717 = vmatmul.mubr.bf16.gmra.mrb[0].mxu0 %v2603
  %v2718 = vpop.f32.mrb[0].mxu0
  %v2719 = vadd.f32 %v2581, %v2718
  %v2720 = vpop.f32.mrb[0].mxu0
  %v2721 = vpop.f32.mrb[0].mxu0
  %v2722 = vadd.f32 %v2581, %v2721
  %v2723 = vpop.f32.mrb[0].mxu0
  %2724 = vmatprep.mubr.bf16.mxu0 0
  %2725 = vmatmul.mubr.bf16.gmra.mrb[0].mxu0 %v2606
  %v2726 = vpop.f32.mrb[0].mxu0
  %v2727 = vadd.f32 %v2581, %v2726
  %v2728 = vpop.f32.mrb[0].mxu0
  %v2729 = vpop.f32.mrb[0].mxu0
  %v2730 = vadd.f32 %v2581, %v2729
  %v2731 = vpop.f32.mrb[0].mxu0
  %2732 = vmatprep.mubr.bf16.mxu0 0
  %2733 = vmatmul.mubr.bf16.gmra.mrb[0].mxu0 %v2609
  %v2734 = vpop.f32.mrb[0].mxu0
  %v2735 = vadd.f32 %v2581, %v2734
  %v2736 = vpop.f32.mrb[0].mxu0
  %v2737 = vpop.f32.mrb[0].mxu0
  %v2738 = vadd.f32 %v2581, %v2737
  %v2739 = vpop.f32.mrb[0].mxu0
  %2740 = vmatprep.mubr.bf16.mxu0 0
  %2741 = vmatmul.mubr.bf16.gmra.mrb[0].mxu0 %v2612
  %v2742 = vpop.f32.mrb[0].mxu0
  %v2743 = vadd.f32 %v2581, %v2742
  %v2744 = vpop.f32.mrb[0].mxu0
  %v2745 = vpop.f32.mrb[0].mxu0
  %v2746 = vadd.f32 %v2581, %v2745
  %v2747 = vpop.f32.mrb[0].mxu0
  %2748 = vmatprep.mubr.bf16.mxu0 0
  %2749 = vmatmul.mubr.bf16.gmra.mrb[0].mxu0 %v2615
  %v2750 = vpop.f32.mrb[0].mxu0
  %v2751 = vadd.f32 %v2581, %v2750
  %v2752 = vpop.f32.mrb[0].mxu0
  %v2753 = vpop.f32.mrb[0].mxu0
  %v2754 = vadd.f32 %v2581, %v2753
  %v2755 = vpop.f32.mrb[0].mxu0
  %2756 = vmatprep.mubr.bf16.mxu0 0
  %2757 = vmatmul.mubr.bf16.gmra.mrb[0].mxu0 %v2618
  %v2758 = vpop.f32.mrb[0].mxu0
  %v2759 = vadd.f32 %v2581, %v2758
  %v2760 = vpop.f32.mrb[0].mxu0
  %v2761 = vpop.f32.mrb[0].mxu0
  %v2762 = vadd.f32 %v2581, %v2761
  %v2763 = vpop.f32.mrb[0].mxu0
  %2764 = vmatprep.mubr.bf16.mxu0 0
  %2765 = vmatmul.mubr.bf16.gmra.mrb[0].mxu0 %v2621
  %v2766 = vpop.f32.mrb[0].mxu0
  %v2767 = vadd.f32 %v2581, %v2766
  %v2768 = vpop.f32.mrb[0].mxu0
  %v2769 = vpop.f32.mrb[0].mxu0
  %v2770 = vadd.f32 %v2581, %v2769
  %v2771 = vpop.f32.mrb[0].mxu0
  %2772 = vmatprep.mubr.bf16.mxu0 0
  %2773 = vmatmul.mubr.bf16.gmra.mrb[0].mxu0 %v2624
  %v2774 = vpop.f32.mrb[0].mxu0
  %v2775 = vadd.f32 %v2581, %v2774
  %v2776 = vpop.f32.mrb[0].mxu0
  %v2777 = vpop.f32.mrb[0].mxu0
  %v2778 = vadd.f32 %v2581, %v2777
  %v2779 = vpop.f32.mrb[0].mxu0
  %2780 = vmatprep.mubr.bf16.mxu0 0
  %2781 = vmatmul.mubr.bf16.gmra.mrb[0].mxu0 %v2627
  %v2782 = vpop.f32.mrb[0].mxu0
  %v2783 = vadd.f32 %v2581, %v2782
  %v2784 = vpop.f32.mrb[0].mxu0
  %v2785 = vpop.f32.mrb[0].mxu0
  %v2786 = vadd.f32 %v2581, %v2785
  %v2787 = vpop.f32.mrb[0].mxu0
  %2788 = vmatprep.mubr.bf16.mxu0 0
  %2789 = vmatmul.mubr.bf16.gmra.mrb[0].mxu0 %v2630
  %v2790 = vpop.f32.mrb[0].mxu0
  %v2791 = vadd.f32 %v2581, %v2790
  %v2792 = vpop.f32.mrb[0].mxu0
  %v2793 = vpop.f32.mrb[0].mxu0
  %v2794 = vadd.f32 %v2581, %v2793
  %v2795 = vpop.f32.mrb[0].mxu0
  %2796 = vdwg.mxu0
  %v2797 = vmax.f32 %v2671, 0.0
  %v2798 = vmax.f32 %v2674, 0.0
  %v2799 = vmax.f32 %v2679, 0.0
  %v2800 = vmax.f32 %v2682, 0.0
  %v2801 = vmax.f32 %v2687, 0.0
  %v2802 = vmax.f32 %v2690, 0.0
  %v2803 = vmax.f32 %v2695, 0.0
  %v2804 = vmax.f32 %v2698, 0.0
  %v2805 = vmax.f32 %v2703, 0.0
  %v2806 = vmax.f32 %v2706, 0.0
  %v2807 = vmax.f32 %v2711, 0.0
  %v2808 = vmax.f32 %v2714, 0.0
  %v2809 = vmax.f32 %v2719, 0.0
  %v2810 = vmax.f32 %v2722, 0.0
  %v2811 = vmax.f32 %v2727, 0.0
  %v2812 = vmax.f32 %v2730, 0.0
  %v2813 = vmax.f32 %v2735, 0.0
  %v2814 = vmax.f32 %v2738, 0.0
  %v2815 = vmax.f32 %v2743, 0.0
  %v2816 = vmax.f32 %v2746, 0.0
  %v2817 = vmax.f32 %v2751, 0.0
  %v2818 = vmax.f32 %v2754, 0.0
  %v2819 = vmax.f32 %v2759, 0.0
  %v2820 = vmax.f32 %v2762, 0.0
  %v2821 = vmax.f32 %v2767, 0.0
  %v2822 = vmax.f32 %v2770, 0.0
  %v2823 = vmax.f32 %v2775, 0.0
  %v2824 = vmax.f32 %v2778, 0.0
  %v2825 = vmax.f32 %v2783, 0.0
  %v2826 = vmax.f32 %v2786, 0.0
  %v2827 = vmax.f32 %v2791, 0.0
  %v2828 = vmax.f32 %v2794, 0.0
  %2829 = vst.msk [vmem:[#allocation3 + $0x18] sm:$0xff] %vm515, %v2797
  %2830 = vst.msk [vmem:[#allocation3 + $0x20] sm:$0xff] %vm515, %v2798
  %2831 = vst.msk [vmem:[#allocation3 + $0x28] sm:$0xff] %vm515, %v2799
  %2832 = vst.msk [vmem:[#allocation3 + $0x30] sm:$0xff] %vm515, %v2800
  %2833 = vst.msk [vmem:[#allocation3 + $0x38] sm:$0xff] %vm515, %v2801
  %2834 = vst.msk [vmem:[#allocation3 + $0x40] sm:$0xff] %vm515, %v2802
  %2835 = vst.msk [vmem:[#allocation3 + $0x48] sm:$0xff] %vm515, %v2803
  %2836 = vst.msk [vmem:[#allocation3 + $0x50] sm:$0xff] %vm515, %v2804
  %2837 = vst.msk [vmem:[#allocation3 + $0x58] sm:$0xff] %vm515, %v2805
  %2838 = vst.msk [vmem:[#allocation3 + $0x60] sm:$0xff] %vm515, %v2806
  %2839 = vst.msk [vmem:[#allocation3 + $0x68] sm:$0xff] %vm515, %v2807
  %2840 = vst.msk [vmem:[#allocation3 + $0x70] sm:$0xff] %vm515, %v2808
  %2841 = vst.msk [vmem:[#allocation3 + $0x78] sm:$0xff] %vm515, %v2809
  %2842 = vst.msk [vmem:[#allocation3 + $0x80] sm:$0xff] %vm515, %v2810
  %2843 = vst.msk [vmem:[#allocation3 + $0x88] sm:$0xff] %vm515, %v2811
  %2844 = vst.msk [vmem:[#allocation3 + $0x90] sm:$0xff] %vm515, %v2812
  %2845 = vst.msk [vmem:[#allocation3 + $0x98] sm:$0xff] %vm515, %v2813
  %2846 = vst.msk [vmem:[#allocation3 + $0xa0] sm:$0xff] %vm515, %v2814
  %2847 = vst.msk [vmem:[#allocation3 + $0xa8] sm:$0xff] %vm515, %v2815
  %2848 = vst.msk [vmem:[#allocation3 + $0xb0] sm:$0xff] %vm515, %v2816
  %2849 = vst.msk [vmem:[#allocation3 + $0xb8] sm:$0xff] %vm515, %v2817
  %2850 = vst.msk [vmem:[#allocation3 + $0xc0] sm:$0xff] %vm515, %v2818
  %2851 = vst.msk [vmem:[#allocation3 + $0xc8] sm:$0xff] %vm515, %v2819
  %2852 = vst.msk [vmem:[#allocation3 + $0xd0] sm:$0xff] %vm515, %v2820
  %2853 = vst.msk [vmem:[#allocation3 + $0xd8] sm:$0xff] %vm515, %v2821
  %2854 = vst.msk [vmem:[#allocation3 + $0xe0] sm:$0xff] %vm515, %v2822
  %2855 = vst.msk [vmem:[#allocation3 + $0xe8] sm:$0xff] %vm515, %v2823
  %2856 = vst.msk [vmem:[#allocation3 + $0xf0] sm:$0xff] %vm515, %v2824
  %2857 = vst.msk [vmem:[#allocation3 + $0xf8] sm:$0xff] %vm515, %v2825
  %2858 = vst.msk [vmem:[#allocation3 + $0x100] sm:$0xff] %vm515, %v2826
  %2859 = vst.msk [vmem:[#allocation3 + $0x108] sm:$0xff] %vm515, %v2827
  %2860 = vst.msk [vmem:[#allocation3 + $0x110] sm:$0xff] %vm515, %v2828
  %v2861 = vld [vmem:[#allocation3 + $0x7] sm:$0xff]
  %v2862 = vld [vmem:[#allocation3 + $0xf] sm:$0xff]
  %v2863 = vld [vmem:[#allocation3 + $0x17] sm:$0xff]
  %v2864 = vld [vmem:[#allocation3 + $0x1f] sm:$0xff]
  %v2865 = vld [vmem:[#allocation3 + $0x27] sm:$0xff]
  %v2866 = vld [vmem:[#allocation3 + $0x2f] sm:$0xff]
  %v2867 = vld [vmem:[#allocation3 + $0x37] sm:$0xff]
  %v2868 = vld [vmem:[#allocation3 + $0x3f] sm:$0xff]
  %v2869 = vld [vmem:[#allocation3 + $0x47] sm:$0xff]
  %v2870 = vld [vmem:[#allocation3 + $0x4f] sm:$0xff]
  %v2871 = vld [vmem:[#allocation3 + $0x57] sm:$0xff]
  %v2872 = vld [vmem:[#allocation3 + $0x5f] sm:$0xff]
  %v2873 = vld [vmem:[#allocation3 + $0x67] sm:$0xff]
  %v2874 = vld [vmem:[#allocation3 + $0x6f] sm:$0xff]
  %v2875 = vld [vmem:[#allocation3 + $0x77] sm:$0xff]
  %v2876 = vld [vmem:[#allocation3 + $0x7f] sm:$0xff]
  %v2877 = vld [vmem:[#allocation3 + $0x87] sm:$0xff]
  %v2878 = vld [vmem:[#allocation3 + $0x8f] sm:$0xff]
  %v2879 = vld [vmem:[#allocation3 + $0x97] sm:$0xff]
  %v2880 = vld [vmem:[#allocation3 + $0x9f] sm:$0xff]
  %v2881 = vld [vmem:[#allocation3 + $0xa7] sm:$0xff]
  %v2882 = vld [vmem:[#allocation3 + $0xaf] sm:$0xff]
  %v2883 = vld [vmem:[#allocation3 + $0xb7] sm:$0xff]
  %v2884 = vld [vmem:[#allocation3 + $0xbf] sm:$0xff]
  %v2885 = vld [vmem:[#allocation3 + $0xc7] sm:$0xff]
  %v2886 = vld [vmem:[#allocation3 + $0xcf] sm:$0xff]
  %v2887 = vld [vmem:[#allocation3 + $0xd7] sm:$0xff]
  %v2888 = vld [vmem:[#allocation3 + $0xdf] sm:$0xff]
  %v2889 = vld [vmem:[#allocation3 + $0xe7] sm:$0xff]
  %v2890 = vld [vmem:[#allocation3 + $0xef] sm:$0xff]
  %v2891 = vld [vmem:[#allocation3 + $0xf7] sm:$0xff]
  %v2892 = vld [vmem:[#allocation3 + $0xff] sm:$0xff]
  %v2893 = vsel %vm650, %v2861, 0.0
  %v2894 = vsel %vm651, %v2862, 0.0
  %v2895 = vsel %vm652, %v2863, 0.0
  %v2896 = vsel %vm653, %v2864, 0.0
  %v2897 = vsel %vm654, %v2865, 0.0
  %v2898 = vsel %vm655, %v2866, 0.0
  %v2899 = vsel %vm656, %v2867, 0.0
  %v2900 = vsel %vm657, %v2868, 0.0
  %v2901 = vsel %vm658, %v2869, 0.0
  %v2902 = vsel %vm659, %v2870, 0.0
  %v2903 = vsel %vm660, %v2871, 0.0
  %v2904 = vsel %vm661, %v2872, 0.0
  %v2905 = vsel %vm662, %v2873, 0.0
  %v2906 = vsel %vm663, %v2874, 0.0
  %v2907 = vsel %vm664, %v2875, 0.0
  %v2908 = vsel %vm665, %v2876, 0.0
  %v2909 = vsel %vm666, %v2877, 0.0
  %v2910 = vsel %vm667, %v2878, 0.0
  %v2911 = vsel %vm668, %v2879, 0.0
  %v2912 = vsel %vm669, %v2880, 0.0
  %v2913 = vsel %vm670, %v2881, 0.0
  %v2914 = vsel %vm671, %v2882, 0.0
  %v2915 = vsel %vm672, %v2883, 0.0
  %v2916 = vsel %vm673, %v2884, 0.0
  %v2917 = vsel %vm674, %v2885, 0.0
  %v2918 = vsel %vm675, %v2886, 0.0
  %v2919 = vsel %vm676, %v2887, 0.0
  %v2920 = vsel %vm677, %v2888, 0.0
  %v2921 = vsel %vm678, %v2889, 0.0
  %v2922 = vsel %vm679, %v2890, 0.0
  %v2923 = vsel %vm680, %v2891, 0.0
  %v2924 = vsel %vm681, %v2892, 0.0
  %2925 = vst.msk [vmem:[#allocation5] sm:$0xff] %vm515, %v2893
  %2926 = vst.msk [vmem:[#allocation5 + $0x10] sm:$0xff] %vm515, %v2894
  %2927 = vst.msk [vmem:[#allocation5 + $0x20] sm:$0xff] %vm515, %v2895
  %2928 = vst.msk [vmem:[#allocation5 + $0x30] sm:$0xff] %vm515, %v2896
  %2929 = vst.msk [vmem:[#allocation5 + $0x40] sm:$0xff] %vm515, %v2897
  %2930 = vst.msk [vmem:[#allocation5 + $0x50] sm:$0xff] %vm515, %v2898
  %2931 = vst.msk [vmem:[#allocation5 + $0x60] sm:$0xff] %vm515, %v2899
  %2932 = vst.msk [vmem:[#allocation5 + $0x70] sm:$0xff] %vm515, %v2900
  %2933 = vst.msk [vmem:[#allocation5 + $0x80] sm:$0xff] %vm515, %v2901
  %2934 = vst.msk [vmem:[#allocation5 + $0x90] sm:$0xff] %vm515, %v2902
  %2935 = vst.msk [vmem:[#allocation5 + $0xa0] sm:$0xff] %vm515, %v2903
  %2936 = vst.msk [vmem:[#allocation5 + $0xb0] sm:$0xff] %vm515, %v2904
  %2937 = vst.msk [vmem:[#allocation5 + $0xc0] sm:$0xff] %vm515, %v2905
  %2938 = vst.msk [vmem:[#allocation5 + $0xd0] sm:$0xff] %vm515, %v2906
  %2939 = vst.msk [vmem:[#allocation5 + $0xe0] sm:$0xff] %vm515, %v2907
  %2940 = vst.msk [vmem:[#allocation5 + $0xf0] sm:$0xff] %vm515, %v2908
  %2941 = vst.msk [vmem:[#allocation5 + $0x100] sm:$0xff] %vm515, %v2909
  %2942 = vst.msk [vmem:[#allocation5 + $0x110] sm:$0xff] %vm515, %v2910
  %2943 = vst.msk [vmem:[#allocation5 + $0x120] sm:$0xff] %vm515, %v2911
  %2944 = vst.msk [vmem:[#allocation5 + $0x130] sm:$0xff] %vm515, %v2912
  %2945 = vst.msk [vmem:[#allocation5 + $0x140] sm:$0xff] %vm515, %v2913
  %2946 = vst.msk [vmem:[#allocation5 + $0x150] sm:$0xff] %vm515, %v2914
  %2947 = vst.msk [vmem:[#allocation5 + $0x160] sm:$0xff] %vm515, %v2915
  %2948 = vst.msk [vmem:[#allocation5 + $0x170] sm:$0xff] %vm515, %v2916
  %2949 = vst.msk [vmem:[#allocation5 + $0x180] sm:$0xff] %vm515, %v2917
  %2950 = vst.msk [vmem:[#allocation5 + $0x190] sm:$0xff] %vm515, %v2918
  %2951 = vst.msk [vmem:[#allocation5 + $0x1a0] sm:$0xff] %vm515, %v2919
  %2952 = vst.msk [vmem:[#allocation5 + $0x1b0] sm:$0xff] %vm515, %v2920
  %2953 = vst.msk [vmem:[#allocation5 + $0x1c0] sm:$0xff] %vm515, %v2921
  %2954 = vst.msk [vmem:[#allocation5 + $0x1d0] sm:$0xff] %vm515, %v2922
  %2955 = vst.msk [vmem:[#allocation5 + $0x1e0] sm:$0xff] %vm515, %v2923
  %2956 = vst.msk [vmem:[#allocation5 + $0x1f0] sm:$0xff] %vm515, %v2924
  %v2957 = vld [vmem:[#allocation3 + $0x8] sm:$0xff]
  %v2958 = vld [vmem:[#allocation3 + $0x10] sm:$0xff]
  %v2959 = vld [vmem:[#allocation3 + $0x18] sm:$0xff]
  %v2960 = vld [vmem:[#allocation3 + $0x20] sm:$0xff]
  %v2961 = vld [vmem:[#allocation3 + $0x28] sm:$0xff]
  %v2962 = vld [vmem:[#allocation3 + $0x30] sm:$0xff]
  %v2963 = vld [vmem:[#allocation3 + $0x38] sm:$0xff]
  %v2964 = vld [vmem:[#allocation3 + $0x40] sm:$0xff]
  %v2965 = vld [vmem:[#allocation3 + $0x48] sm:$0xff]
  %v2966 = vld [vmem:[#allocation3 + $0x50] sm:$0xff]
  %v2967 = vld [vmem:[#allocation3 + $0x58] sm:$0xff]
  %v2968 = vld [vmem:[#allocation3 + $0x60] sm:$0xff]
  %v2969 = vld [vmem:[#allocation3 + $0x68] sm:$0xff]
  %v2970 = vld [vmem:[#allocation3 + $0x70] sm:$0xff]
  %v2971 = vld [vmem:[#allocation3 + $0x78] sm:$0xff]
  %v2972 = vld [vmem:[#allocation3 + $0x80] sm:$0xff]
  %v2973 = vld [vmem:[#allocation3 + $0x88] sm:$0xff]
  %v2974 = vld [vmem:[#allocation3 + $0x90] sm:$0xff]
  %v2975 = vld [vmem:[#allocation3 + $0x98] sm:$0xff]
  %v2976 = vld [vmem:[#allocation3 + $0xa0] sm:$0xff]
  %v2977 = vld [vmem:[#allocation3 + $0xa8] sm:$0xff]
  %v2978 = vld [vmem:[#allocation3 + $0xb0] sm:$0xff]
  %v2979 = vld [vmem:[#allocation3 + $0xb8] sm:$0xff]
  %v2980 = vld [vmem:[#allocation3 + $0xc0] sm:$0xff]
  %v2981 = vld [vmem:[#allocation3 + $0xc8] sm:$0xff]
  %v2982 = vld [vmem:[#allocation3 + $0xd0] sm:$0xff]
  %v2983 = vld [vmem:[#allocation3 + $0xd8] sm:$0xff]
  %v2984 = vld [vmem:[#allocation3 + $0xe0] sm:$0xff]
  %v2985 = vld [vmem:[#allocation3 + $0xe8] sm:$0xff]
  %v2986 = vld [vmem:[#allocation3 + $0xf0] sm:$0xff]
  %v2987 = vld [vmem:[#allocation3 + $0xf8] sm:$0xff]
  %v2988 = vld [vmem:[#allocation3 + $0x100] sm:$0xff]
  %3021 = vrot.lane.b32.xlu0 %v2957, 16
  %v3022 = vpop.permute.xlu0 %3021
  %3023 = vrot.lane.b32.xlu0 %v2958, 16
  %v3024 = vpop.permute.xlu0 %3023
  %3025 = vrot.lane.b32.xlu0 %v2959, 16
  %v3026 = vpop.permute.xlu0 %3025
  %3027 = vrot.lane.b32.xlu0 %v2960, 16
  %v3028 = vpop.permute.xlu0 %3027
  %3029 = vrot.lane.b32.xlu0 %v2961, 16
  %v3030 = vpop.permute.xlu0 %3029
  %3031 = vrot.lane.b32.xlu0 %v2962, 16
  %v3032 = vpop.permute.xlu0 %3031
  %3033 = vrot.lane.b32.xlu0 %v2963, 16
  %v3034 = vpop.permute.xlu0 %3033
  %3035 = vrot.lane.b32.xlu0 %v2964, 16
  %v3036 = vpop.permute.xlu0 %3035
  %3037 = vrot.lane.b32.xlu0 %v2965, 16
  %v3038 = vpop.permute.xlu0 %3037
  %3039 = vrot.lane.b32.xlu0 %v2966, 16
  %v3040 = vpop.permute.xlu0 %3039
  %3041 = vrot.lane.b32.xlu0 %v2967, 16
  %v3042 = vpop.permute.xlu0 %3041
  %3043 = vrot.lane.b32.xlu0 %v2968, 16
  %v3044 = vpop.permute.xlu0 %3043
  %3045 = vrot.lane.b32.xlu0 %v2969, 16
  %v3046 = vpop.permute.xlu0 %3045
  %3047 = vrot.lane.b32.xlu0 %v2970, 16
  %v3048 = vpop.permute.xlu0 %3047
  %3049 = vrot.lane.b32.xlu0 %v2971, 16
  %v3050 = vpop.permute.xlu0 %3049
  %3051 = vrot.lane.b32.xlu0 %v2972, 16
  %v3052 = vpop.permute.xlu0 %3051
  %3053 = vrot.lane.b32.xlu0 %v2973, 16
  %v3054 = vpop.permute.xlu0 %3053
  %3055 = vrot.lane.b32.xlu0 %v2974, 16
  %v3056 = vpop.permute.xlu0 %3055
  %3057 = vrot.lane.b32.xlu0 %v2975, 16
  %v3058 = vpop.permute.xlu0 %3057
  %3059 = vrot.lane.b32.xlu0 %v2976, 16
  %v3060 = vpop.permute.xlu0 %3059
  %3061 = vrot.lane.b32.xlu0 %v2977, 16
  %v3062 = vpop.permute.xlu0 %3061
  %3063 = vrot.lane.b32.xlu0 %v2978, 16
  %v3064 = vpop.permute.xlu0 %3063
  %3065 = vrot.lane.b32.xlu0 %v2979, 16
  %v3066 = vpop.permute.xlu0 %3065
  %3067 = vrot.lane.b32.xlu0 %v2980, 16
  %v3068 = vpop.permute.xlu0 %3067
  %3069 = vrot.lane.b32.xlu0 %v2981, 16
  %v3070 = vpop.permute.xlu0 %3069
  %3071 = vrot.lane.b32.xlu0 %v2982, 16
  %v3072 = vpop.permute.xlu0 %3071
  %3073 = vrot.lane.b32.xlu0 %v2983, 16
  %v3074 = vpop.permute.xlu0 %3073
  %3075 = vrot.lane.b32.xlu0 %v2984, 16
  %v3076 = vpop.permute.xlu0 %3075
  %3077 = vrot.lane.b32.xlu0 %v2985, 16
  %v3078 = vpop.permute.xlu0 %3077
  %3079 = vrot.lane.b32.xlu0 %v2986, 16
  %v3080 = vpop.permute.xlu0 %3079
  %3081 = vrot.lane.b32.xlu0 %v2987, 16
  %v3082 = vpop.permute.xlu0 %3081
  %3083 = vrot.lane.b32.xlu0 %v2988, 16
  %v3084 = vpop.permute.xlu0 %3083
  %vm3117 = vcmask 261248
  %3118 = vst.msk [vmem:[#allocation5] sm:$0xff] %vm3117, %v3022
  %3119 = vst.msk [vmem:[#allocation5 + $0x10] sm:$0xff] %vm3117, %v3024
  %3120 = vst.msk [vmem:[#allocation5 + $0x20] sm:$0xff] %vm3117, %v3026
  %3121 = vst.msk [vmem:[#allocation5 + $0x30] sm:$0xff] %vm3117, %v3028
  %3122 = vst.msk [vmem:[#allocation5 + $0x40] sm:$0xff] %vm3117, %v3030
  %3123 = vst.msk [vmem:[#allocation5 + $0x50] sm:$0xff] %vm3117, %v3032
  %3124 = vst.msk [vmem:[#allocation5 + $0x60] sm:$0xff] %vm3117, %v3034
  %3125 = vst.msk [vmem:[#allocation5 + $0x70] sm:$0xff] %vm3117, %v3036
  %3126 = vst.msk [vmem:[#allocation5 + $0x80] sm:$0xff] %vm3117, %v3038
  %3127 = vst.msk [vmem:[#allocation5 + $0x90] sm:$0xff] %vm3117, %v3040
  %3128 = vst.msk [vmem:[#allocation5 + $0xa0] sm:$0xff] %vm3117, %v3042
  %3129 = vst.msk [vmem:[#allocation5 + $0xb0] sm:$0xff] %vm3117, %v3044
  %3130 = vst.msk [vmem:[#allocation5 + $0xc0] sm:$0xff] %vm3117, %v3046
  %3131 = vst.msk [vmem:[#allocation5 + $0xd0] sm:$0xff] %vm3117, %v3048
  %3132 = vst.msk [vmem:[#allocation5 + $0xe0] sm:$0xff] %vm3117, %v3050
  %3133 = vst.msk [vmem:[#allocation5 + $0xf0] sm:$0xff] %vm3117, %v3052
  %3134 = vst.msk [vmem:[#allocation5 + $0x100] sm:$0xff] %vm3117, %v3054
  %3135 = vst.msk [vmem:[#allocation5 + $0x110] sm:$0xff] %vm3117, %v3056
  %3136 = vst.msk [vmem:[#allocation5 + $0x120] sm:$0xff] %vm3117, %v3058
  %3137 = vst.msk [vmem:[#allocation5 + $0x130] sm:$0xff] %vm3117, %v3060
  %3138 = vst.msk [vmem:[#allocation5 + $0x140] sm:$0xff] %vm3117, %v3062
  %3139 = vst.msk [vmem:[#allocation5 + $0x150] sm:$0xff] %vm3117, %v3064
  %3140 = vst.msk [vmem:[#allocation5 + $0x160] sm:$0xff] %vm3117, %v3066
  %3141 = vst.msk [vmem:[#allocation5 + $0x170] sm:$0xff] %vm3117, %v3068
  %3142 = vst.msk [vmem:[#allocation5 + $0x180] sm:$0xff] %vm3117, %v3070
  %3143 = vst.msk [vmem:[#allocation5 + $0x190] sm:$0xff] %vm3117, %v3072
  %3144 = vst.msk [vmem:[#allocation5 + $0x1a0] sm:$0xff] %vm3117, %v3074
  %3145 = vst.msk [vmem:[#allocation5 + $0x1b0] sm:$0xff] %vm3117, %v3076
  %3146 = vst.msk [vmem:[#allocation5 + $0x1c0] sm:$0xff] %vm3117, %v3078
  %3147 = vst.msk [vmem:[#allocation5 + $0x1d0] sm:$0xff] %vm3117, %v3080
  %3148 = vst.msk [vmem:[#allocation5 + $0x1e0] sm:$0xff] %vm3117, %v3082
  %3149 = vst.msk [vmem:[#allocation5 + $0x1f0] sm:$0xff] %vm3117, %v3084
  %v3150 = vld [vmem:[#allocation3 + $0x9] sm:$0xff]
  %v3151 = vld [vmem:[#allocation3 + $0x11] sm:$0xff]
  %v3152 = vld [vmem:[#allocation3 + $0x19] sm:$0xff]
  %v3153 = vld [vmem:[#allocation3 + $0x21] sm:$0xff]
  %v3154 = vld [vmem:[#allocation3 + $0x29] sm:$0xff]
  %v3155 = vld [vmem:[#allocation3 + $0x31] sm:$0xff]
  %v3156 = vld [vmem:[#allocation3 + $0x39] sm:$0xff]
  %v3157 = vld [vmem:[#allocation3 + $0x41] sm:$0xff]
  %v3158 = vld [vmem:[#allocation3 + $0x49] sm:$0xff]
  %v3159 = vld [vmem:[#allocation3 + $0x51] sm:$0xff]
  %v3160 = vld [vmem:[#allocation3 + $0x59] sm:$0xff]
  %v3161 = vld [vmem:[#allocation3 + $0x61] sm:$0xff]
  %v3162 = vld [vmem:[#allocation3 + $0x69] sm:$0xff]
  %v3163 = vld [vmem:[#allocation3 + $0x71] sm:$0xff]
  %v3164 = vld [vmem:[#allocation3 + $0x79] sm:$0xff]
  %v3165 = vld [vmem:[#allocation3 + $0x81] sm:$0xff]
  %v3166 = vld [vmem:[#allocation3 + $0x89] sm:$0xff]
  %v3167 = vld [vmem:[#allocation3 + $0x91] sm:$0xff]
  %v3168 = vld [vmem:[#allocation3 + $0x99] sm:$0xff]
  %v3169 = vld [vmem:[#allocation3 + $0xa1] sm:$0xff]
  %v3170 = vld [vmem:[#allocation3 + $0xa9] sm:$0xff]
  %v3171 = vld [vmem:[#allocation3 + $0xb1] sm:$0xff]
  %v3172 = vld [vmem:[#allocation3 + $0xb9] sm:$0xff]
  %v3173 = vld [vmem:[#allocation3 + $0xc1] sm:$0xff]
  %v3174 = vld [vmem:[#allocation3 + $0xc9] sm:$0xff]
  %v3175 = vld [vmem:[#allocation3 + $0xd1] sm:$0xff]
  %v3176 = vld [vmem:[#allocation3 + $0xd9] sm:$0xff]
  %v3177 = vld [vmem:[#allocation3 + $0xe1] sm:$0xff]
  %v3178 = vld [vmem:[#allocation3 + $0xe9] sm:$0xff]
  %v3179 = vld [vmem:[#allocation3 + $0xf1] sm:$0xff]
  %v3180 = vld [vmem:[#allocation3 + $0xf9] sm:$0xff]
  %v3181 = vld [vmem:[#allocation3 + $0x101] sm:$0xff]
  %v3182 = vsel %vm1003, %v3150, 0.0
  %v3183 = vsel %vm1004, %v3151, 0.0
  %v3184 = vsel %vm1005, %v3152, 0.0
  %v3185 = vsel %vm1006, %v3153, 0.0
  %v3186 = vsel %vm1007, %v3154, 0.0
  %v3187 = vsel %vm1008, %v3155, 0.0
  %v3188 = vsel %vm1009, %v3156, 0.0
  %v3189 = vsel %vm1010, %v3157, 0.0
  %v3190 = vsel %vm1011, %v3158, 0.0
  %v3191 = vsel %vm1012, %v3159, 0.0
  %v3192 = vsel %vm1013, %v3160, 0.0
  %v3193 = vsel %vm1014, %v3161, 0.0
  %v3194 = vsel %vm1015, %v3162, 0.0
  %v3195 = vsel %vm1016, %v3163, 0.0
  %v3196 = vsel %vm1017, %v3164, 0.0
  %v3197 = vsel %vm1018, %v3165, 0.0
  %v3198 = vsel %vm1019, %v3166, 0.0
  %v3199 = vsel %vm1020, %v3167, 0.0
  %v3200 = vsel %vm1021, %v3168, 0.0
  %v3201 = vsel %vm1022, %v3169, 0.0
  %v3202 = vsel %vm1023, %v3170, 0.0
  %v3203 = vsel %vm1024, %v3171, 0.0
  %v3204 = vsel %vm1025, %v3172, 0.0
  %v3205 = vsel %vm1026, %v3173, 0.0
  %v3206 = vsel %vm1027, %v3174, 0.0
  %v3207 = vsel %vm1028, %v3175, 0.0
  %v3208 = vsel %vm1029, %v3176, 0.0
  %v3209 = vsel %vm1030, %v3177, 0.0
  %v3210 = vsel %vm1031, %v3178, 0.0
  %v3211 = vsel %vm1032, %v3179, 0.0
  %v3212 = vsel %vm1033, %v3180, 0.0
  %v3213 = vsel %vm1034, %v3181, 0.0
  %3246 = vrot.lane.b32.xlu0 %v3182, 32
  %v3247 = vpop.permute.xlu0 %3246
  %3248 = vrot.lane.b32.xlu0 %v3183, 32
  %v3249 = vpop.permute.xlu0 %3248
  %3250 = vrot.lane.b32.xlu0 %v3184, 32
  %v3251 = vpop.permute.xlu0 %3250
  %3252 = vrot.lane.b32.xlu0 %v3185, 32
  %v3253 = vpop.permute.xlu0 %3252
  %3254 = vrot.lane.b32.xlu0 %v3186, 32
  %v3255 = vpop.permute.xlu0 %3254
  %3256 = vrot.lane.b32.xlu0 %v3187, 32
  %v3257 = vpop.permute.xlu0 %3256
  %3258 = vrot.lane.b32.xlu0 %v3188, 32
  %v3259 = vpop.permute.xlu0 %3258
  %3260 = vrot.lane.b32.xlu0 %v3189, 32
  %v3261 = vpop.permute.xlu0 %3260
  %3262 = vrot.lane.b32.xlu0 %v3190, 32
  %v3263 = vpop.permute.xlu0 %3262
  %3264 = vrot.lane.b32.xlu0 %v3191, 32
  %v3265 = vpop.permute.xlu0 %3264
  %3266 = vrot.lane.b32.xlu0 %v3192, 32
  %v3267 = vpop.permute.xlu0 %3266
  %3268 = vrot.lane.b32.xlu0 %v3193, 32
  %v3269 = vpop.permute.xlu0 %3268
  %3270 = vrot.lane.b32.xlu0 %v3194, 32
  %v3271 = vpop.permute.xlu0 %3270
  %3272 = vrot.lane.b32.xlu0 %v3195, 32
  %v3273 = vpop.permute.xlu0 %3272
  %3274 = vrot.lane.b32.xlu0 %v3196, 32
  %v3275 = vpop.permute.xlu0 %3274
  %3276 = vrot.lane.b32.xlu0 %v3197, 32
  %v3277 = vpop.permute.xlu0 %3276
  %3278 = vrot.lane.b32.xlu0 %v3198, 32
  %v3279 = vpop.permute.xlu0 %3278
  %3280 = vrot.lane.b32.xlu0 %v3199, 32
  %v3281 = vpop.permute.xlu0 %3280
  %3282 = vrot.lane.b32.xlu0 %v3200, 32
  %v3283 = vpop.permute.xlu0 %3282
  %3284 = vrot.lane.b32.xlu0 %v3201, 32
  %v3285 = vpop.permute.xlu0 %3284
  %3286 = vrot.lane.b32.xlu0 %v3202, 32
  %v3287 = vpop.permute.xlu0 %3286
  %3288 = vrot.lane.b32.xlu0 %v3203, 32
  %v3289 = vpop.permute.xlu0 %3288
  %3290 = vrot.lane.b32.xlu0 %v3204, 32
  %v3291 = vpop.permute.xlu0 %3290
  %3292 = vrot.lane.b32.xlu0 %v3205, 32
  %v3293 = vpop.permute.xlu0 %3292
  %3294 = vrot.lane.b32.xlu0 %v3206, 32
  %v3295 = vpop.permute.xlu0 %3294
  %3296 = vrot.lane.b32.xlu0 %v3207, 32
  %v3297 = vpop.permute.xlu0 %3296
  %3298 = vrot.lane.b32.xlu0 %v3208, 32
  %v3299 = vpop.permute.xlu0 %3298
  %3300 = vrot.lane.b32.xlu0 %v3209, 32
  %v3301 = vpop.permute.xlu0 %3300
  %3302 = vrot.lane.b32.xlu0 %v3210, 32
  %v3303 = vpop.permute.xlu0 %3302
  %3304 = vrot.lane.b32.xlu0 %v3211, 32
  %v3305 = vpop.permute.xlu0 %3304
  %3306 = vrot.lane.b32.xlu0 %v3212, 32
  %v3307 = vpop.permute.xlu0 %3306
  %3308 = vrot.lane.b32.xlu0 %v3213, 32
  %v3309 = vpop.permute.xlu0 %3308
  %vm3342 = vcmask 392448
  %3343 = vst.msk [vmem:[#allocation5] sm:$0xff] %vm3342, %v3247
  %3344 = vst.msk [vmem:[#allocation5 + $0x10] sm:$0xff] %vm3342, %v3249
  %3345 = vst.msk [vmem:[#allocation5 + $0x20] sm:$0xff] %vm3342, %v3251
  %3346 = vst.msk [vmem:[#allocation5 + $0x30] sm:$0xff] %vm3342, %v3253
  %3347 = vst.msk [vmem:[#allocation5 + $0x40] sm:$0xff] %vm3342, %v3255
  %3348 = vst.msk [vmem:[#allocation5 + $0x50] sm:$0xff] %vm3342, %v3257
  %3349 = vst.msk [vmem:[#allocation5 + $0x60] sm:$0xff] %vm3342, %v3259
  %3350 = vst.msk [vmem:[#allocation5 + $0x70] sm:$0xff] %vm3342, %v3261
  %3351 = vst.msk [vmem:[#allocation5 + $0x80] sm:$0xff] %vm3342, %v3263
  %3352 = vst.msk [vmem:[#allocation5 + $0x90] sm:$0xff] %vm3342, %v3265
  %3353 = vst.msk [vmem:[#allocation5 + $0xa0] sm:$0xff] %vm3342, %v3267
  %3354 = vst.msk [vmem:[#allocation5 + $0xb0] sm:$0xff] %vm3342, %v3269
  %3355 = vst.msk [vmem:[#allocation5 + $0xc0] sm:$0xff] %vm3342, %v3271
  %3356 = vst.msk [vmem:[#allocation5 + $0xd0] sm:$0xff] %vm3342, %v3273
  %3357 = vst.msk [vmem:[#allocation5 + $0xe0] sm:$0xff] %vm3342, %v3275
  %3358 = vst.msk [vmem:[#allocation5 + $0xf0] sm:$0xff] %vm3342, %v3277
  %3359 = vst.msk [vmem:[#allocation5 + $0x100] sm:$0xff] %vm3342, %v3279
  %3360 = vst.msk [vmem:[#allocation5 + $0x110] sm:$0xff] %vm3342, %v3281
  %3361 = vst.msk [vmem:[#allocation5 + $0x120] sm:$0xff] %vm3342, %v3283
  %3362 = vst.msk [vmem:[#allocation5 + $0x130] sm:$0xff] %vm3342, %v3285
  %3363 = vst.msk [vmem:[#allocation5 + $0x140] sm:$0xff] %vm3342, %v3287
  %3364 = vst.msk [vmem:[#allocation5 + $0x150] sm:$0xff] %vm3342, %v3289
  %3365 = vst.msk [vmem:[#allocation5 + $0x160] sm:$0xff] %vm3342, %v3291
  %3366 = vst.msk [vmem:[#allocation5 + $0x170] sm:$0xff] %vm3342, %v3293
  %3367 = vst.msk [vmem:[#allocation5 + $0x180] sm:$0xff] %vm3342, %v3295
  %3368 = vst.msk [vmem:[#allocation5 + $0x190] sm:$0xff] %vm3342, %v3297
  %3369 = vst.msk [vmem:[#allocation5 + $0x1a0] sm:$0xff] %vm3342, %v3299
  %3370 = vst.msk [vmem:[#allocation5 + $0x1b0] sm:$0xff] %vm3342, %v3301
  %3371 = vst.msk [vmem:[#allocation5 + $0x1c0] sm:$0xff] %vm3342, %v3303
  %3372 = vst.msk [vmem:[#allocation5 + $0x1d0] sm:$0xff] %vm3342, %v3305
  %3373 = vst.msk [vmem:[#allocation5 + $0x1e0] sm:$0xff] %vm3342, %v3307
  %3374 = vst.msk [vmem:[#allocation5 + $0x1f0] sm:$0xff] %vm3342, %v3309
  %v3375 = vld [vmem:[#allocation3 + $0x17] sm:$0xff]
  %v3376 = vld [vmem:[#allocation3 + $0x1f] sm:$0xff]
  %v3377 = vld [vmem:[#allocation3 + $0x27] sm:$0xff]
  %v3378 = vld [vmem:[#allocation3 + $0x2f] sm:$0xff]
  %v3379 = vld [vmem:[#allocation3 + $0x37] sm:$0xff]
  %v3380 = vld [vmem:[#allocation3 + $0x3f] sm:$0xff]
  %v3381 = vld [vmem:[#allocation3 + $0x47] sm:$0xff]
  %v3382 = vld [vmem:[#allocation3 + $0x4f] sm:$0xff]
  %v3383 = vld [vmem:[#allocation3 + $0x57] sm:$0xff]
  %v3384 = vld [vmem:[#allocation3 + $0x5f] sm:$0xff]
  %v3385 = vld [vmem:[#allocation3 + $0x67] sm:$0xff]
  %v3386 = vld [vmem:[#allocation3 + $0x6f] sm:$0xff]
  %v3387 = vld [vmem:[#allocation3 + $0x77] sm:$0xff]
  %v3388 = vld [vmem:[#allocation3 + $0x7f] sm:$0xff]
  %v3389 = vld [vmem:[#allocation3 + $0x87] sm:$0xff]
  %v3390 = vld [vmem:[#allocation3 + $0x8f] sm:$0xff]
  %v3391 = vld [vmem:[#allocation3 + $0x97] sm:$0xff]
  %v3392 = vld [vmem:[#allocation3 + $0x9f] sm:$0xff]
  %v3393 = vld [vmem:[#allocation3 + $0xa7] sm:$0xff]
  %v3394 = vld [vmem:[#allocation3 + $0xaf] sm:$0xff]
  %v3395 = vld [vmem:[#allocation3 + $0xb7] sm:$0xff]
  %v3396 = vld [vmem:[#allocation3 + $0xbf] sm:$0xff]
  %v3397 = vld [vmem:[#allocation3 + $0xc7] sm:$0xff]
  %v3398 = vld [vmem:[#allocation3 + $0xcf] sm:$0xff]
  %v3399 = vld [vmem:[#allocation3 + $0xd7] sm:$0xff]
  %v3400 = vld [vmem:[#allocation3 + $0xdf] sm:$0xff]
  %v3401 = vld [vmem:[#allocation3 + $0xe7] sm:$0xff]
  %v3402 = vld [vmem:[#allocation3 + $0xef] sm:$0xff]
  %v3403 = vld [vmem:[#allocation3 + $0xf7] sm:$0xff]
  %v3404 = vld [vmem:[#allocation3 + $0xff] sm:$0xff]
  %v3405 = vld [vmem:[#allocation3 + $0x107] sm:$0xff]
  %v3406 = vld [vmem:[#allocation3 + $0x10f] sm:$0xff]
  %v3407 = vsel %vm650, %v3375, 0.0
  %v3408 = vsel %vm651, %v3376, 0.0
  %v3409 = vsel %vm652, %v3377, 0.0
  %v3410 = vsel %vm653, %v3378, 0.0
  %v3411 = vsel %vm654, %v3379, 0.0
  %v3412 = vsel %vm655, %v3380, 0.0
  %v3413 = vsel %vm656, %v3381, 0.0
  %v3414 = vsel %vm657, %v3382, 0.0
  %v3415 = vsel %vm658, %v3383, 0.0
  %v3416 = vsel %vm659, %v3384, 0.0
  %v3417 = vsel %vm660, %v3385, 0.0
  %v3418 = vsel %vm661, %v3386, 0.0
  %v3419 = vsel %vm662, %v3387, 0.0
  %v3420 = vsel %vm663, %v3388, 0.0
  %v3421 = vsel %vm664, %v3389, 0.0
  %v3422 = vsel %vm665, %v3390, 0.0
  %v3423 = vsel %vm666, %v3391, 0.0
  %v3424 = vsel %vm667, %v3392, 0.0
  %v3425 = vsel %vm668, %v3393, 0.0
  %v3426 = vsel %vm669, %v3394, 0.0
  %v3427 = vsel %vm670, %v3395, 0.0
  %v3428 = vsel %vm671, %v3396, 0.0
  %v3429 = vsel %vm672, %v3397, 0.0
  %v3430 = vsel %vm673, %v3398, 0.0
  %v3431 = vsel %vm674, %v3399, 0.0
  %v3432 = vsel %vm675, %v3400, 0.0
  %v3433 = vsel %vm676, %v3401, 0.0
  %v3434 = vsel %vm677, %v3402, 0.0
  %v3435 = vsel %vm678, %v3403, 0.0
  %v3436 = vsel %vm679, %v3404, 0.0
  %v3437 = vsel %vm680, %v3405, 0.0
  %v3438 = vsel %vm681, %v3406, 0.0
  %3471 = vrot.lane.b32.xlu0 %v3407, 48
  %v3472 = vpop.permute.xlu0 %3471
  %3473 = vrot.lane.b32.xlu0 %v3408, 48
  %v3474 = vpop.permute.xlu0 %3473
  %3475 = vrot.lane.b32.xlu0 %v3409, 48
  %v3476 = vpop.permute.xlu0 %3475
  %3477 = vrot.lane.b32.xlu0 %v3410, 48
  %v3478 = vpop.permute.xlu0 %3477
  %3479 = vrot.lane.b32.xlu0 %v3411, 48
  %v3480 = vpop.permute.xlu0 %3479
  %3481 = vrot.lane.b32.xlu0 %v3412, 48
  %v3482 = vpop.permute.xlu0 %3481
  %3483 = vrot.lane.b32.xlu0 %v3413, 48
  %v3484 = vpop.permute.xlu0 %3483
  %3485 = vrot.lane.b32.xlu0 %v3414, 48
  %v3486 = vpop.permute.xlu0 %3485
  %3487 = vrot.lane.b32.xlu0 %v3415, 48
  %v3488 = vpop.permute.xlu0 %3487
  %3489 = vrot.lane.b32.xlu0 %v3416, 48
  %v3490 = vpop.permute.xlu0 %3489
  %3491 = vrot.lane.b32.xlu0 %v3417, 48
  %v3492 = vpop.permute.xlu0 %3491
  %3493 = vrot.lane.b32.xlu0 %v3418, 48
  %v3494 = vpop.permute.xlu0 %3493
  %3495 = vrot.lane.b32.xlu0 %v3419, 48
  %v3496 = vpop.permute.xlu0 %3495
  %3497 = vrot.lane.b32.xlu0 %v3420, 48
  %v3498 = vpop.permute.xlu0 %3497
  %3499 = vrot.lane.b32.xlu0 %v3421, 48
  %v3500 = vpop.permute.xlu0 %3499
  %3501 = vrot.lane.b32.xlu0 %v3422, 48
  %v3502 = vpop.permute.xlu0 %3501
  %3503 = vrot.lane.b32.xlu0 %v3423, 48
  %v3504 = vpop.permute.xlu0 %3503
  %3505 = vrot.lane.b32.xlu0 %v3424, 48
  %v3506 = vpop.permute.xlu0 %3505
  %3507 = vrot.lane.b32.xlu0 %v3425, 48
  %v3508 = vpop.permute.xlu0 %3507
  %3509 = vrot.lane.b32.xlu0 %v3426, 48
  %v3510 = vpop.permute.xlu0 %3509
  %3511 = vrot.lane.b32.xlu0 %v3427, 48
  %v3512 = vpop.permute.xlu0 %3511
  %3513 = vrot.lane.b32.xlu0 %v3428, 48
  %v3514 = vpop.permute.xlu0 %3513
  %3515 = vrot.lane.b32.xlu0 %v3429, 48
  %v3516 = vpop.permute.xlu0 %3515
  %3517 = vrot.lane.b32.xlu0 %v3430, 48
  %v3518 = vpop.permute.xlu0 %3517
  %3519 = vrot.lane.b32.xlu0 %v3431, 48
  %v3520 = vpop.permute.xlu0 %3519
  %3521 = vrot.lane.b32.xlu0 %v3432, 48
  %v3522 = vpop.permute.xlu0 %3521
  %3523 = vrot.lane.b32.xlu0 %v3433, 48
  %v3524 = vpop.permute.xlu0 %3523
  %3525 = vrot.lane.b32.xlu0 %v3434, 48
  %v3526 = vpop.permute.xlu0 %3525
  %3527 = vrot.lane.b32.xlu0 %v3435, 48
  %v3528 = vpop.permute.xlu0 %3527
  %3529 = vrot.lane.b32.xlu0 %v3436, 48
  %v3530 = vpop.permute.xlu0 %3529
  %3531 = vrot.lane.b32.xlu0 %v3437, 48
  %v3532 = vpop.permute.xlu0 %3531
  %3533 = vrot.lane.b32.xlu0 %v3438, 48
  %v3534 = vpop.permute.xlu0 %3533
  %vm3567 = vcmask 523648
  %3568 = vst.msk [vmem:[#allocation5] sm:$0xff] %vm3567, %v3472
  %3569 = vst.msk [vmem:[#allocation5 + $0x10] sm:$0xff] %vm3567, %v3474
  %3570 = vst.msk [vmem:[#allocation5 + $0x20] sm:$0xff] %vm3567, %v3476
  %3571 = vst.msk [vmem:[#allocation5 + $0x30] sm:$0xff] %vm3567, %v3478
  %3572 = vst.msk [vmem:[#allocation5 + $0x40] sm:$0xff] %vm3567, %v3480
  %3573 = vst.msk [vmem:[#allocation5 + $0x50] sm:$0xff] %vm3567, %v3482
  %3574 = vst.msk [vmem:[#allocation5 + $0x60] sm:$0xff] %vm3567, %v3484
  %3575 = vst.msk [vmem:[#allocation5 + $0x70] sm:$0xff] %vm3567, %v3486
  %3576 = vst.msk [vmem:[#allocation5 + $0x80] sm:$0xff] %vm3567, %v3488
  %3577 = vst.msk [vmem:[#allocation5 + $0x90] sm:$0xff] %vm3567, %v3490
  %3578 = vst.msk [vmem:[#allocation5 + $0xa0] sm:$0xff] %vm3567, %v3492
  %3579 = vst.msk [vmem:[#allocation5 + $0xb0] sm:$0xff] %vm3567, %v3494
  %3580 = vst.msk [vmem:[#allocation5 + $0xc0] sm:$0xff] %vm3567, %v3496
  %3581 = vst.msk [vmem:[#allocation5 + $0xd0] sm:$0xff] %vm3567, %v3498
  %3582 = vst.msk [vmem:[#allocation5 + $0xe0] sm:$0xff] %vm3567, %v3500
  %3583 = vst.msk [vmem:[#allocation5 + $0xf0] sm:$0xff] %vm3567, %v3502
  %3584 = vst.msk [vmem:[#allocation5 + $0x100] sm:$0xff] %vm3567, %v3504
  %3585 = vst.msk [vmem:[#allocation5 + $0x110] sm:$0xff] %vm3567, %v3506
  %3586 = vst.msk [vmem:[#allocation5 + $0x120] sm:$0xff] %vm3567, %v3508
  %3587 = vst.msk [vmem:[#allocation5 + $0x130] sm:$0xff] %vm3567, %v3510
  %3588 = vst.msk [vmem:[#allocation5 + $0x140] sm:$0xff] %vm3567, %v3512
  %3589 = vst.msk [vmem:[#allocation5 + $0x150] sm:$0xff] %vm3567, %v3514
  %3590 = vst.msk [vmem:[#allocation5 + $0x160] sm:$0xff] %vm3567, %v3516
  %3591 = vst.msk [vmem:[#allocation5 + $0x170] sm:$0xff] %vm3567, %v3518
  %3592 = vst.msk [vmem:[#allocation5 + $0x180] sm:$0xff] %vm3567, %v3520
  %3593 = vst.msk [vmem:[#allocation5 + $0x190] sm:$0xff] %vm3567, %v3522
  %3594 = vst.msk [vmem:[#allocation5 + $0x1a0] sm:$0xff] %vm3567, %v3524
  %3595 = vst.msk [vmem:[#allocation5 + $0x1b0] sm:$0xff] %vm3567, %v3526
  %3596 = vst.msk [vmem:[#allocation5 + $0x1c0] sm:$0xff] %vm3567, %v3528
  %3597 = vst.msk [vmem:[#allocation5 + $0x1d0] sm:$0xff] %vm3567, %v3530
  %3598 = vst.msk [vmem:[#allocation5 + $0x1e0] sm:$0xff] %vm3567, %v3532
  %3599 = vst.msk [vmem:[#allocation5 + $0x1f0] sm:$0xff] %vm3567, %v3534
  %v3600 = vld [vmem:[#allocation3 + $0x18] sm:$0xff]
  %v3601 = vld [vmem:[#allocation3 + $0x20] sm:$0xff]
  %v3602 = vld [vmem:[#allocation3 + $0x28] sm:$0xff]
  %v3603 = vld [vmem:[#allocation3 + $0x30] sm:$0xff]
  %v3604 = vld [vmem:[#allocation3 + $0x38] sm:$0xff]
  %v3605 = vld [vmem:[#allocation3 + $0x40] sm:$0xff]
  %v3606 = vld [vmem:[#allocation3 + $0x48] sm:$0xff]
  %v3607 = vld [vmem:[#allocation3 + $0x50] sm:$0xff]
  %v3608 = vld [vmem:[#allocation3 + $0x58] sm:$0xff]
  %v3609 = vld [vmem:[#allocation3 + $0x60] sm:$0xff]
  %v3610 = vld [vmem:[#allocation3 + $0x68] sm:$0xff]
  %v3611 = vld [vmem:[#allocation3 + $0x70] sm:$0xff]
  %v3612 = vld [vmem:[#allocation3 + $0x78] sm:$0xff]
  %v3613 = vld [vmem:[#allocation3 + $0x80] sm:$0xff]
  %v3614 = vld [vmem:[#allocation3 + $0x88] sm:$0xff]
  %v3615 = vld [vmem:[#allocation3 + $0x90] sm:$0xff]
  %v3616 = vld [vmem:[#allocation3 + $0x98] sm:$0xff]
  %v3617 = vld [vmem:[#allocation3 + $0xa0] sm:$0xff]
  %v3618 = vld [vmem:[#allocation3 + $0xa8] sm:$0xff]
  %v3619 = vld [vmem:[#allocation3 + $0xb0] sm:$0xff]
  %v3620 = vld [vmem:[#allocation3 + $0xb8] sm:$0xff]
  %v3621 = vld [vmem:[#allocation3 + $0xc0] sm:$0xff]
  %v3622 = vld [vmem:[#allocation3 + $0xc8] sm:$0xff]
  %v3623 = vld [vmem:[#allocation3 + $0xd0] sm:$0xff]
  %v3624 = vld [vmem:[#allocation3 + $0xd8] sm:$0xff]
  %v3625 = vld [vmem:[#allocation3 + $0xe0] sm:$0xff]
  %v3626 = vld [vmem:[#allocation3 + $0xe8] sm:$0xff]
  %v3627 = vld [vmem:[#allocation3 + $0xf0] sm:$0xff]
  %v3628 = vld [vmem:[#allocation3 + $0xf8] sm:$0xff]
  %v3629 = vld [vmem:[#allocation3 + $0x100] sm:$0xff]
  %v3630 = vld [vmem:[#allocation3 + $0x108] sm:$0xff]
  %v3631 = vld [vmem:[#allocation3 + $0x110] sm:$0xff]
  %3664 = vrot.lane.b32.xlu0 %v3600, 64
  %v3665 = vpop.permute.xlu0 %3664
  %3666 = vrot.lane.b32.xlu0 %v3601, 64
  %v3667 = vpop.permute.xlu0 %3666
  %3668 = vrot.lane.b32.xlu0 %v3602, 64
  %v3669 = vpop.permute.xlu0 %3668
  %3670 = vrot.lane.b32.xlu0 %v3603, 64
  %v3671 = vpop.permute.xlu0 %3670
  %3672 = vrot.lane.b32.xlu0 %v3604, 64
  %v3673 = vpop.permute.xlu0 %3672
  %3674 = vrot.lane.b32.xlu0 %v3605, 64
  %v3675 = vpop.permute.xlu0 %3674
  %3676 = vrot.lane.b32.xlu0 %v3606, 64
  %v3677 = vpop.permute.xlu0 %3676
  %3678 = vrot.lane.b32.xlu0 %v3607, 64
  %v3679 = vpop.permute.xlu0 %3678
  %3680 = vrot.lane.b32.xlu0 %v3608, 64
  %v3681 = vpop.permute.xlu0 %3680
  %3682 = vrot.lane.b32.xlu0 %v3609, 64
  %v3683 = vpop.permute.xlu0 %3682
  %3684 = vrot.lane.b32.xlu0 %v3610, 64
  %v3685 = vpop.permute.xlu0 %3684
  %3686 = vrot.lane.b32.xlu0 %v3611, 64
  %v3687 = vpop.permute.xlu0 %3686
  %3688 = vrot.lane.b32.xlu0 %v3612, 64
  %v3689 = vpop.permute.xlu0 %3688
  %3690 = vrot.lane.b32.xlu0 %v3613, 64
  %v3691 = vpop.permute.xlu0 %3690
  %3692 = vrot.lane.b32.xlu0 %v3614, 64
  %v3693 = vpop.permute.xlu0 %3692
  %3694 = vrot.lane.b32.xlu0 %v3615, 64
  %v3695 = vpop.permute.xlu0 %3694
  %3696 = vrot.lane.b32.xlu0 %v3616, 64
  %v3697 = vpop.permute.xlu0 %3696
  %3698 = vrot.lane.b32.xlu0 %v3617, 64
  %v3699 = vpop.permute.xlu0 %3698
  %3700 = vrot.lane.b32.xlu0 %v3618, 64
  %v3701 = vpop.permute.xlu0 %3700
  %3702 = vrot.lane.b32.xlu0 %v3619, 64
  %v3703 = vpop.permute.xlu0 %3702
  %3704 = vrot.lane.b32.xlu0 %v3620, 64
  %v3705 = vpop.permute.xlu0 %3704
  %3706 = vrot.lane.b32.xlu0 %v3621, 64
  %v3707 = vpop.permute.xlu0 %3706
  %3708 = vrot.lane.b32.xlu0 %v3622, 64
  %v3709 = vpop.permute.xlu0 %3708
  %3710 = vrot.lane.b32.xlu0 %v3623, 64
  %v3711 = vpop.permute.xlu0 %3710
  %3712 = vrot.lane.b32.xlu0 %v3624, 64
  %v3713 = vpop.permute.xlu0 %3712
  %3714 = vrot.lane.b32.xlu0 %v3625, 64
  %v3715 = vpop.permute.xlu0 %3714
  %3716 = vrot.lane.b32.xlu0 %v3626, 64
  %v3717 = vpop.permute.xlu0 %3716
  %3718 = vrot.lane.b32.xlu0 %v3627, 64
  %v3719 = vpop.permute.xlu0 %3718
  %3720 = vrot.lane.b32.xlu0 %v3628, 64
  %v3721 = vpop.permute.xlu0 %3720
  %3722 = vrot.lane.b32.xlu0 %v3629, 64
  %v3723 = vpop.permute.xlu0 %3722
  %3724 = vrot.lane.b32.xlu0 %v3630, 64
  %v3725 = vpop.permute.xlu0 %3724
  %3726 = vrot.lane.b32.xlu0 %v3631, 64
  %v3727 = vpop.permute.xlu0 %3726
  %vm3760 = vcmask 654848
  %3761 = vst.msk [vmem:[#allocation5] sm:$0xff] %vm3760, %v3665
  %3762 = vst.msk [vmem:[#allocation5 + $0x10] sm:$0xff] %vm3760, %v3667
  %3763 = vst.msk [vmem:[#allocation5 + $0x20] sm:$0xff] %vm3760, %v3669
  %3764 = vst.msk [vmem:[#allocation5 + $0x30] sm:$0xff] %vm3760, %v3671
  %3765 = vst.msk [vmem:[#allocation5 + $0x40] sm:$0xff] %vm3760, %v3673
  %3766 = vst.msk [vmem:[#allocation5 + $0x50] sm:$0xff] %vm3760, %v3675
  %3767 = vst.msk [vmem:[#allocation5 + $0x60] sm:$0xff] %vm3760, %v3677
  %3768 = vst.msk [vmem:[#allocation5 + $0x70] sm:$0xff] %vm3760, %v3679
  %3769 = vst.msk [vmem:[#allocation5 + $0x80] sm:$0xff] %vm3760, %v3681
  %3770 = vst.msk [vmem:[#allocation5 + $0x90] sm:$0xff] %vm3760, %v3683
  %3771 = vst.msk [vmem:[#allocation5 + $0xa0] sm:$0xff] %vm3760, %v3685
  %3772 = vst.msk [vmem:[#allocation5 + $0xb0] sm:$0xff] %vm3760, %v3687
  %3773 = vst.msk [vmem:[#allocation5 + $0xc0] sm:$0xff] %vm3760, %v3689
  %3774 = vst.msk [vmem:[#allocation5 + $0xd0] sm:$0xff] %vm3760, %v3691
  %3775 = vst.msk [vmem:[#allocation5 + $0xe0] sm:$0xff] %vm3760, %v3693
  %3776 = vst.msk [vmem:[#allocation5 + $0xf0] sm:$0xff] %vm3760, %v3695
  %3777 = vst.msk [vmem:[#allocation5 + $0x100] sm:$0xff] %vm3760, %v3697
  %3778 = vst.msk [vmem:[#allocation5 + $0x110] sm:$0xff] %vm3760, %v3699
  %3779 = vst.msk [vmem:[#allocation5 + $0x120] sm:$0xff] %vm3760, %v3701
  %3780 = vst.msk [vmem:[#allocation5 + $0x130] sm:$0xff] %vm3760, %v3703
  %3781 = vst.msk [vmem:[#allocation5 + $0x140] sm:$0xff] %vm3760, %v3705
  %3782 = vst.msk [vmem:[#allocation5 + $0x150] sm:$0xff] %vm3760, %v3707
  %3783 = vst.msk [vmem:[#allocation5 + $0x160] sm:$0xff] %vm3760, %v3709
  %3784 = vst.msk [vmem:[#allocation5 + $0x170] sm:$0xff] %vm3760, %v3711
  %3785 = vst.msk [vmem:[#allocation5 + $0x180] sm:$0xff] %vm3760, %v3713
  %3786 = vst.msk [vmem:[#allocation5 + $0x190] sm:$0xff] %vm3760, %v3715
  %3787 = vst.msk [vmem:[#allocation5 + $0x1a0] sm:$0xff] %vm3760, %v3717
  %3788 = vst.msk [vmem:[#allocation5 + $0x1b0] sm:$0xff] %vm3760, %v3719
  %3789 = vst.msk [vmem:[#allocation5 + $0x1c0] sm:$0xff] %vm3760, %v3721
  %3790 = vst.msk [vmem:[#allocation5 + $0x1d0] sm:$0xff] %vm3760, %v3723
  %3791 = vst.msk [vmem:[#allocation5 + $0x1e0] sm:$0xff] %vm3760, %v3725
  %3792 = vst.msk [vmem:[#allocation5 + $0x1f0] sm:$0xff] %vm3760, %v3727
  %v3793 = vld [vmem:[#allocation3 + $0x19] sm:$0xff]
  %v3794 = vld [vmem:[#allocation3 + $0x21] sm:$0xff]
  %v3795 = vld [vmem:[#allocation3 + $0x29] sm:$0xff]
  %v3796 = vld [vmem:[#allocation3 + $0x31] sm:$0xff]
  %v3797 = vld [vmem:[#allocation3 + $0x39] sm:$0xff]
  %v3798 = vld [vmem:[#allocation3 + $0x41] sm:$0xff]
  %v3799 = vld [vmem:[#allocation3 + $0x49] sm:$0xff]
  %v3800 = vld [vmem:[#allocation3 + $0x51] sm:$0xff]
  %v3801 = vld [vmem:[#allocation3 + $0x59] sm:$0xff]
  %v3802 = vld [vmem:[#allocation3 + $0x61] sm:$0xff]
  %v3803 = vld [vmem:[#allocation3 + $0x69] sm:$0xff]
  %v3804 = vld [vmem:[#allocation3 + $0x71] sm:$0xff]
  %v3805 = vld [vmem:[#allocation3 + $0x79] sm:$0xff]
  %v3806 = vld [vmem:[#allocation3 + $0x81] sm:$0xff]
  %v3807 = vld [vmem:[#allocation3 + $0x89] sm:$0xff]
  %v3808 = vld [vmem:[#allocation3 + $0x91] sm:$0xff]
  %v3809 = vld [vmem:[#allocation3 + $0x99] sm:$0xff]
  %v3810 = vld [vmem:[#allocation3 + $0xa1] sm:$0xff]
  %v3811 = vld [vmem:[#allocation3 + $0xa9] sm:$0xff]
  %v3812 = vld [vmem:[#allocation3 + $0xb1] sm:$0xff]
  %v3813 = vld [vmem:[#allocation3 + $0xb9] sm:$0xff]
  %v3814 = vld [vmem:[#allocation3 + $0xc1] sm:$0xff]
  %v3815 = vld [vmem:[#allocation3 + $0xc9] sm:$0xff]
  %v3816 = vld [vmem:[#allocation3 + $0xd1] sm:$0xff]
  %v3817 = vld [vmem:[#allocation3 + $0xd9] sm:$0xff]
  %v3818 = vld [vmem:[#allocation3 + $0xe1] sm:$0xff]
  %v3819 = vld [vmem:[#allocation3 + $0xe9] sm:$0xff]
  %v3820 = vld [vmem:[#allocation3 + $0xf1] sm:$0xff]
  %v3821 = vld [vmem:[#allocation3 + $0xf9] sm:$0xff]
  %v3822 = vld [vmem:[#allocation3 + $0x101] sm:$0xff]
  %v3823 = vld [vmem:[#allocation3 + $0x109] sm:$0xff]
  %v3824 = vld [vmem:[#allocation3 + $0x111] sm:$0xff]
  %v3825 = vsel %vm1003, %v3793, 0.0
  %v3826 = vsel %vm1004, %v3794, 0.0
  %v3827 = vsel %vm1005, %v3795, 0.0
  %v3828 = vsel %vm1006, %v3796, 0.0
  %v3829 = vsel %vm1007, %v3797, 0.0
  %v3830 = vsel %vm1008, %v3798, 0.0
  %v3831 = vsel %vm1009, %v3799, 0.0
  %v3832 = vsel %vm1010, %v3800, 0.0
  %v3833 = vsel %vm1011, %v3801, 0.0
  %v3834 = vsel %vm1012, %v3802, 0.0
  %v3835 = vsel %vm1013, %v3803, 0.0
  %v3836 = vsel %vm1014, %v3804, 0.0
  %v3837 = vsel %vm1015, %v3805, 0.0
  %v3838 = vsel %vm1016, %v3806, 0.0
  %v3839 = vsel %vm1017, %v3807, 0.0
  %v3840 = vsel %vm1018, %v3808, 0.0
  %v3841 = vsel %vm1019, %v3809, 0.0
  %v3842 = vsel %vm1020, %v3810, 0.0
  %v3843 = vsel %vm1021, %v3811, 0.0
  %v3844 = vsel %vm1022, %v3812, 0.0
  %v3845 = vsel %vm1023, %v3813, 0.0
  %v3846 = vsel %vm1024, %v3814, 0.0
  %v3847 = vsel %vm1025, %v3815, 0.0
  %v3848 = vsel %vm1026, %v3816, 0.0
  %v3849 = vsel %vm1027, %v3817, 0.0
  %v3850 = vsel %vm1028, %v3818, 0.0
  %v3851 = vsel %vm1029, %v3819, 0.0
  %v3852 = vsel %vm1030, %v3820, 0.0
  %v3853 = vsel %vm1031, %v3821, 0.0
  %v3854 = vsel %vm1032, %v3822, 0.0
  %v3855 = vsel %vm1033, %v3823, 0.0
  %v3856 = vsel %vm1034, %v3824, 0.0
  %3889 = vrot.lane.b32.xlu0 %v3825, 80
  %v3890 = vpop.permute.xlu0 %3889
  %3891 = vrot.lane.b32.xlu0 %v3826, 80
  %v3892 = vpop.permute.xlu0 %3891
  %3893 = vrot.lane.b32.xlu0 %v3827, 80
  %v3894 = vpop.permute.xlu0 %3893
  %3895 = vrot.lane.b32.xlu0 %v3828, 80
  %v3896 = vpop.permute.xlu0 %3895
  %3897 = vrot.lane.b32.xlu0 %v3829, 80
  %v3898 = vpop.permute.xlu0 %3897
  %3899 = vrot.lane.b32.xlu0 %v3830, 80
  %v3900 = vpop.permute.xlu0 %3899
  %3901 = vrot.lane.b32.xlu0 %v3831, 80
  %v3902 = vpop.permute.xlu0 %3901
  %3903 = vrot.lane.b32.xlu0 %v3832, 80
  %v3904 = vpop.permute.xlu0 %3903
  %3905 = vrot.lane.b32.xlu0 %v3833, 80
  %v3906 = vpop.permute.xlu0 %3905
  %3907 = vrot.lane.b32.xlu0 %v3834, 80
  %v3908 = vpop.permute.xlu0 %3907
  %3909 = vrot.lane.b32.xlu0 %v3835, 80
  %v3910 = vpop.permute.xlu0 %3909
  %3911 = vrot.lane.b32.xlu0 %v3836, 80
  %v3912 = vpop.permute.xlu0 %3911
  %3913 = vrot.lane.b32.xlu0 %v3837, 80
  %v3914 = vpop.permute.xlu0 %3913
  %3915 = vrot.lane.b32.xlu0 %v3838, 80
  %v3916 = vpop.permute.xlu0 %3915
  %3917 = vrot.lane.b32.xlu0 %v3839, 80
  %v3918 = vpop.permute.xlu0 %3917
  %3919 = vrot.lane.b32.xlu0 %v3840, 80
  %v3920 = vpop.permute.xlu0 %3919
  %3921 = vrot.lane.b32.xlu0 %v3841, 80
  %v3922 = vpop.permute.xlu0 %3921
  %3923 = vrot.lane.b32.xlu0 %v3842, 80
  %v3924 = vpop.permute.xlu0 %3923
  %3925 = vrot.lane.b32.xlu0 %v3843, 80
  %v3926 = vpop.permute.xlu0 %3925
  %3927 = vrot.lane.b32.xlu0 %v3844, 80
  %v3928 = vpop.permute.xlu0 %3927
  %3929 = vrot.lane.b32.xlu0 %v3845, 80
  %v3930 = vpop.permute.xlu0 %3929
  %3931 = vrot.lane.b32.xlu0 %v3846, 80
  %v3932 = vpop.permute.xlu0 %3931
  %3933 = vrot.lane.b32.xlu0 %v3847, 80
  %v3934 = vpop.permute.xlu0 %3933
  %3935 = vrot.lane.b32.xlu0 %v3848, 80
  %v3936 = vpop.permute.xlu0 %3935
  %3937 = vrot.lane.b32.xlu0 %v3849, 80
  %v3938 = vpop.permute.xlu0 %3937
  %3939 = vrot.lane.b32.xlu0 %v3850, 80
  %v3940 = vpop.permute.xlu0 %3939
  %3941 = vrot.lane.b32.xlu0 %v3851, 80
  %v3942 = vpop.permute.xlu0 %3941
  %3943 = vrot.lane.b32.xlu0 %v3852, 80
  %v3944 = vpop.permute.xlu0 %3943
  %3945 = vrot.lane.b32.xlu0 %v3853, 80
  %v3946 = vpop.permute.xlu0 %3945
  %3947 = vrot.lane.b32.xlu0 %v3854, 80
  %v3948 = vpop.permute.xlu0 %3947
  %3949 = vrot.lane.b32.xlu0 %v3855, 80
  %v3950 = vpop.permute.xlu0 %3949
  %3951 = vrot.lane.b32.xlu0 %v3856, 80
  %v3952 = vpop.permute.xlu0 %3951
  %vm3985 = vcmask 786048
  %3986 = vst.msk [vmem:[#allocation5] sm:$0xff] %vm3985, %v3890
  %3987 = vst.msk [vmem:[#allocation5 + $0x10] sm:$0xff] %vm3985, %v3892
  %3988 = vst.msk [vmem:[#allocation5 + $0x20] sm:$0xff] %vm3985, %v3894
  %3989 = vst.msk [vmem:[#allocation5 + $0x30] sm:$0xff] %vm3985, %v3896
  %3990 = vst.msk [vmem:[#allocation5 + $0x40] sm:$0xff] %vm3985, %v3898
  %3991 = vst.msk [vmem:[#allocation5 + $0x50] sm:$0xff] %vm3985, %v3900
  %3992 = vst.msk [vmem:[#allocation5 + $0x60] sm:$0xff] %vm3985, %v3902
  %3993 = vst.msk [vmem:[#allocation5 + $0x70] sm:$0xff] %vm3985, %v3904
  %3994 = vst.msk [vmem:[#allocation5 + $0x80] sm:$0xff] %vm3985, %v3906
  %3995 = vst.msk [vmem:[#allocation5 + $0x90] sm:$0xff] %vm3985, %v3908
  %3996 = vst.msk [vmem:[#allocation5 + $0xa0] sm:$0xff] %vm3985, %v3910
  %3997 = vst.msk [vmem:[#allocation5 + $0xb0] sm:$0xff] %vm3985, %v3912
  %3998 = vst.msk [vmem:[#allocation5 + $0xc0] sm:$0xff] %vm3985, %v3914
  %3999 = vst.msk [vmem:[#allocation5 + $0xd0] sm:$0xff] %vm3985, %v3916
  %4000 = vst.msk [vmem:[#allocation5 + $0xe0] sm:$0xff] %vm3985, %v3918
  %4001 = vst.msk [vmem:[#allocation5 + $0xf0] sm:$0xff] %vm3985, %v3920
  %4002 = vst.msk [vmem:[#allocation5 + $0x100] sm:$0xff] %vm3985, %v3922
  %4003 = vst.msk [vmem:[#allocation5 + $0x110] sm:$0xff] %vm3985, %v3924
  %4004 = vst.msk [vmem:[#allocation5 + $0x120] sm:$0xff] %vm3985, %v3926
  %4005 = vst.msk [vmem:[#allocation5 + $0x130] sm:$0xff] %vm3985, %v3928
  %4006 = vst.msk [vmem:[#allocation5 + $0x140] sm:$0xff] %vm3985, %v3930
  %4007 = vst.msk [vmem:[#allocation5 + $0x150] sm:$0xff] %vm3985, %v3932
  %4008 = vst.msk [vmem:[#allocation5 + $0x160] sm:$0xff] %vm3985, %v3934
  %4009 = vst.msk [vmem:[#allocation5 + $0x170] sm:$0xff] %vm3985, %v3936
  %4010 = vst.msk [vmem:[#allocation5 + $0x180] sm:$0xff] %vm3985, %v3938
  %4011 = vst.msk [vmem:[#allocation5 + $0x190] sm:$0xff] %vm3985, %v3940
  %4012 = vst.msk [vmem:[#allocation5 + $0x1a0] sm:$0xff] %vm3985, %v3942
  %4013 = vst.msk [vmem:[#allocation5 + $0x1b0] sm:$0xff] %vm3985, %v3944
  %4014 = vst.msk [vmem:[#allocation5 + $0x1c0] sm:$0xff] %vm3985, %v3946
  %4015 = vst.msk [vmem:[#allocation5 + $0x1d0] sm:$0xff] %vm3985, %v3948
  %4016 = vst.msk [vmem:[#allocation5 + $0x1e0] sm:$0xff] %vm3985, %v3950
  %4017 = vst.msk [vmem:[#allocation5 + $0x1f0] sm:$0xff] %vm3985, %v3952
  %v4018 = vld [vmem:[#allocation3 + $0x27] sm:$0xff]
  %v4019 = vld [vmem:[#allocation3 + $0x2f] sm:$0xff]
  %v4020 = vld [vmem:[#allocation3 + $0x37] sm:$0xff]
  %v4021 = vld [vmem:[#allocation3 + $0x3f] sm:$0xff]
  %v4022 = vld [vmem:[#allocation3 + $0x47] sm:$0xff]
  %v4023 = vld [vmem:[#allocation3 + $0x4f] sm:$0xff]
  %v4024 = vld [vmem:[#allocation3 + $0x57] sm:$0xff]
  %v4025 = vld [vmem:[#allocation3 + $0x5f] sm:$0xff]
  %v4026 = vld [vmem:[#allocation3 + $0x67] sm:$0xff]
  %v4027 = vld [vmem:[#allocation3 + $0x6f] sm:$0xff]
  %v4028 = vld [vmem:[#allocation3 + $0x77] sm:$0xff]
  %v4029 = vld [vmem:[#allocation3 + $0x7f] sm:$0xff]
  %v4030 = vld [vmem:[#allocation3 + $0x87] sm:$0xff]
  %v4031 = vld [vmem:[#allocation3 + $0x8f] sm:$0xff]
  %v4032 = vld [vmem:[#allocation3 + $0x97] sm:$0xff]
  %v4033 = vld [vmem:[#allocation3 + $0x9f] sm:$0xff]
  %v4034 = vld [vmem:[#allocation3 + $0xa7] sm:$0xff]
  %v4035 = vld [vmem:[#allocation3 + $0xaf] sm:$0xff]
  %v4036 = vld [vmem:[#allocation3 + $0xb7] sm:$0xff]
  %v4037 = vld [vmem:[#allocation3 + $0xbf] sm:$0xff]
  %v4038 = vld [vmem:[#allocation3 + $0xc7] sm:$0xff]
  %v4039 = vld [vmem:[#allocation3 + $0xcf] sm:$0xff]
  %v4040 = vld [vmem:[#allocation3 + $0xd7] sm:$0xff]
  %v4041 = vld [vmem:[#allocation3 + $0xdf] sm:$0xff]
  %v4042 = vld [vmem:[#allocation3 + $0xe7] sm:$0xff]
  %v4043 = vld [vmem:[#allocation3 + $0xef] sm:$0xff]
  %v4044 = vld [vmem:[#allocation3 + $0xf7] sm:$0xff]
  %v4045 = vld [vmem:[#allocation3 + $0xff] sm:$0xff]
  %v4046 = vld [vmem:[#allocation3 + $0x107] sm:$0xff]
  %v4047 = vld [vmem:[#allocation3 + $0x10f] sm:$0xff]
  %v4048 = vld [vmem:[#allocation3 + $0x117] sm:$0xff]
  %v4049 = vld [vmem:[#allocation3 + $0x11f] sm:$0xff]
  %v4050 = vsel %vm650, %v4018, 0.0
  %v4051 = vsel %vm651, %v4019, 0.0
  %v4052 = vsel %vm652, %v4020, 0.0
  %v4053 = vsel %vm653, %v4021, 0.0
  %v4054 = vsel %vm654, %v4022, 0.0
  %v4055 = vsel %vm655, %v4023, 0.0
  %v4056 = vsel %vm656, %v4024, 0.0
  %v4057 = vsel %vm657, %v4025, 0.0
  %v4058 = vsel %vm658, %v4026, 0.0
  %v4059 = vsel %vm659, %v4027, 0.0
  %v4060 = vsel %vm660, %v4028, 0.0
  %v4061 = vsel %vm661, %v4029, 0.0
  %v4062 = vsel %vm662, %v4030, 0.0
  %v4063 = vsel %vm663, %v4031, 0.0
  %v4064 = vsel %vm664, %v4032, 0.0
  %v4065 = vsel %vm665, %v4033, 0.0
  %v4066 = vsel %vm666, %v4034, 0.0
  %v4067 = vsel %vm667, %v4035, 0.0
  %v4068 = vsel %vm668, %v4036, 0.0
  %v4069 = vsel %vm669, %v4037, 0.0
  %v4070 = vsel %vm670, %v4038, 0.0
  %v4071 = vsel %vm671, %v4039, 0.0
  %v4072 = vsel %vm672, %v4040, 0.0
  %v4073 = vsel %vm673, %v4041, 0.0
  %v4074 = vsel %vm674, %v4042, 0.0
  %v4075 = vsel %vm675, %v4043, 0.0
  %v4076 = vsel %vm676, %v4044, 0.0
  %v4077 = vsel %vm677, %v4045, 0.0
  %v4078 = vsel %vm678, %v4046, 0.0
  %v4079 = vsel %vm679, %v4047, 0.0
  %v4080 = vsel %vm680, %v4048, 0.0
  %v4081 = vsel %vm681, %v4049, 0.0
  %4114 = vrot.lane.b32.xlu0 %v4050, 96
  %v4115 = vpop.permute.xlu0 %4114
  %4116 = vrot.lane.b32.xlu0 %v4051, 96
  %v4117 = vpop.permute.xlu0 %4116
  %4118 = vrot.lane.b32.xlu0 %v4052, 96
  %v4119 = vpop.permute.xlu0 %4118
  %4120 = vrot.lane.b32.xlu0 %v4053, 96
  %v4121 = vpop.permute.xlu0 %4120
  %4122 = vrot.lane.b32.xlu0 %v4054, 96
  %v4123 = vpop.permute.xlu0 %4122
  %4124 = vrot.lane.b32.xlu0 %v4055, 96
  %v4125 = vpop.permute.xlu0 %4124
  %4126 = vrot.lane.b32.xlu0 %v4056, 96
  %v4127 = vpop.permute.xlu0 %4126
  %4128 = vrot.lane.b32.xlu0 %v4057, 96
  %v4129 = vpop.permute.xlu0 %4128
  %4130 = vrot.lane.b32.xlu0 %v4058, 96
  %v4131 = vpop.permute.xlu0 %4130
  %4132 = vrot.lane.b32.xlu0 %v4059, 96
  %v4133 = vpop.permute.xlu0 %4132
  %4134 = vrot.lane.b32.xlu0 %v4060, 96
  %v4135 = vpop.permute.xlu0 %4134
  %4136 = vrot.lane.b32.xlu0 %v4061, 96
  %v4137 = vpop.permute.xlu0 %4136
  %4138 = vrot.lane.b32.xlu0 %v4062, 96
  %v4139 = vpop.permute.xlu0 %4138
  %4140 = vrot.lane.b32.xlu0 %v4063, 96
  %v4141 = vpop.permute.xlu0 %4140
  %4142 = vrot.lane.b32.xlu0 %v4064, 96
  %v4143 = vpop.permute.xlu0 %4142
  %4144 = vrot.lane.b32.xlu0 %v4065, 96
  %v4145 = vpop.permute.xlu0 %4144
  %4146 = vrot.lane.b32.xlu0 %v4066, 96
  %v4147 = vpop.permute.xlu0 %4146
  %4148 = vrot.lane.b32.xlu0 %v4067, 96
  %v4149 = vpop.permute.xlu0 %4148
  %4150 = vrot.lane.b32.xlu0 %v4068, 96
  %v4151 = vpop.permute.xlu0 %4150
  %4152 = vrot.lane.b32.xlu0 %v4069, 96
  %v4153 = vpop.permute.xlu0 %4152
  %4154 = vrot.lane.b32.xlu0 %v4070, 96
  %v4155 = vpop.permute.xlu0 %4154
  %4156 = vrot.lane.b32.xlu0 %v4071, 96
  %v4157 = vpop.permute.xlu0 %4156
  %4158 = vrot.lane.b32.xlu0 %v4072, 96
  %v4159 = vpop.permute.xlu0 %4158
  %4160 = vrot.lane.b32.xlu0 %v4073, 96
  %v4161 = vpop.permute.xlu0 %4160
  %4162 = vrot.lane.b32.xlu0 %v4074, 96
  %v4163 = vpop.permute.xlu0 %4162
  %4164 = vrot.lane.b32.xlu0 %v4075, 96
  %v4165 = vpop.permute.xlu0 %4164
  %4166 = vrot.lane.b32.xlu0 %v4076, 96
  %v4167 = vpop.permute.xlu0 %4166
  %4168 = vrot.lane.b32.xlu0 %v4077, 96
  %v4169 = vpop.permute.xlu0 %4168
  %4170 = vrot.lane.b32.xlu0 %v4078, 96
  %v4171 = vpop.permute.xlu0 %4170
  %4172 = vrot.lane.b32.xlu0 %v4079, 96
  %v4173 = vpop.permute.xlu0 %4172
  %4174 = vrot.lane.b32.xlu0 %v4080, 96
  %v4175 = vpop.permute.xlu0 %4174
  %4176 = vrot.lane.b32.xlu0 %v4081, 96
  %v4177 = vpop.permute.xlu0 %4176
  %vm4210 = vcmask 917248
  %4211 = vst.msk [vmem:[#allocation5] sm:$0xff] %vm4210, %v4115
  %4212 = vst.msk [vmem:[#allocation5 + $0x10] sm:$0xff] %vm4210, %v4117
  %4213 = vst.msk [vmem:[#allocation5 + $0x20] sm:$0xff] %vm4210, %v4119
  %4214 = vst.msk [vmem:[#allocation5 + $0x30] sm:$0xff] %vm4210, %v4121
  %4215 = vst.msk [vmem:[#allocation5 + $0x40] sm:$0xff] %vm4210, %v4123
  %4216 = vst.msk [vmem:[#allocation5 + $0x50] sm:$0xff] %vm4210, %v4125
  %4217 = vst.msk [vmem:[#allocation5 + $0x60] sm:$0xff] %vm4210, %v4127
  %4218 = vst.msk [vmem:[#allocation5 + $0x70] sm:$0xff] %vm4210, %v4129
  %4219 = vst.msk [vmem:[#allocation5 + $0x80] sm:$0xff] %vm4210, %v4131
  %4220 = vst.msk [vmem:[#allocation5 + $0x90] sm:$0xff] %vm4210, %v4133
  %4221 = vst.msk [vmem:[#allocation5 + $0xa0] sm:$0xff] %vm4210, %v4135
  %4222 = vst.msk [vmem:[#allocation5 + $0xb0] sm:$0xff] %vm4210, %v4137
  %4223 = vst.msk [vmem:[#allocation5 + $0xc0] sm:$0xff] %vm4210, %v4139
  %4224 = vst.msk [vmem:[#allocation5 + $0xd0] sm:$0xff] %vm4210, %v4141
  %4225 = vst.msk [vmem:[#allocation5 + $0xe0] sm:$0xff] %vm4210, %v4143
  %4226 = vst.msk [vmem:[#allocation5 + $0xf0] sm:$0xff] %vm4210, %v4145
  %4227 = vst.msk [vmem:[#allocation5 + $0x100] sm:$0xff] %vm4210, %v4147
  %4228 = vst.msk [vmem:[#allocation5 + $0x110] sm:$0xff] %vm4210, %v4149
  %4229 = vst.msk [vmem:[#allocation5 + $0x120] sm:$0xff] %vm4210, %v4151
  %4230 = vst.msk [vmem:[#allocation5 + $0x130] sm:$0xff] %vm4210, %v4153
  %4231 = vst.msk [vmem:[#allocation5 + $0x140] sm:$0xff] %vm4210, %v4155
  %4232 = vst.msk [vmem:[#allocation5 + $0x150] sm:$0xff] %vm4210, %v4157
  %4233 = vst.msk [vmem:[#allocation5 + $0x160] sm:$0xff] %vm4210, %v4159
  %4234 = vst.msk [vmem:[#allocation5 + $0x170] sm:$0xff] %vm4210, %v4161
  %4235 = vst.msk [vmem:[#allocation5 + $0x180] sm:$0xff] %vm4210, %v4163
  %4236 = vst.msk [vmem:[#allocation5 + $0x190] sm:$0xff] %vm4210, %v4165
  %4237 = vst.msk [vmem:[#allocation5 + $0x1a0] sm:$0xff] %vm4210, %v4167
  %4238 = vst.msk [vmem:[#allocation5 + $0x1b0] sm:$0xff] %vm4210, %v4169
  %4239 = vst.msk [vmem:[#allocation5 + $0x1c0] sm:$0xff] %vm4210, %v4171
  %4240 = vst.msk [vmem:[#allocation5 + $0x1d0] sm:$0xff] %vm4210, %v4173
  %4241 = vst.msk [vmem:[#allocation5 + $0x1e0] sm:$0xff] %vm4210, %v4175
  %4242 = vst.msk [vmem:[#allocation5 + $0x1f0] sm:$0xff] %vm4210, %v4177
  %v4243 = vld [vmem:[#allocation3 + $0x28] sm:$0xff]
  %v4244 = vld [vmem:[#allocation3 + $0x30] sm:$0xff]
  %v4245 = vld [vmem:[#allocation3 + $0x38] sm:$0xff]
  %v4246 = vld [vmem:[#allocation3 + $0x40] sm:$0xff]
  %v4247 = vld [vmem:[#allocation3 + $0x48] sm:$0xff]
  %v4248 = vld [vmem:[#allocation3 + $0x50] sm:$0xff]
  %v4249 = vld [vmem:[#allocation3 + $0x58] sm:$0xff]
  %v4250 = vld [vmem:[#allocation3 + $0x60] sm:$0xff]
  %v4251 = vld [vmem:[#allocation3 + $0x68] sm:$0xff]
  %v4252 = vld [vmem:[#allocation3 + $0x70] sm:$0xff]
  %v4253 = vld [vmem:[#allocation3 + $0x78] sm:$0xff]
  %v4254 = vld [vmem:[#allocation3 + $0x80] sm:$0xff]
  %v4255 = vld [vmem:[#allocation3 + $0x88] sm:$0xff]
  %v4256 = vld [vmem:[#allocation3 + $0x90] sm:$0xff]
  %v4257 = vld [vmem:[#allocation3 + $0x98] sm:$0xff]
  %v4258 = vld [vmem:[#allocation3 + $0xa0] sm:$0xff]
  %v4259 = vld [vmem:[#allocation3 + $0xa8] sm:$0xff]
  %v4260 = vld [vmem:[#allocation3 + $0xb0] sm:$0xff]
  %v4261 = vld [vmem:[#allocation3 + $0xb8] sm:$0xff]
  %v4262 = vld [vmem:[#allocation3 + $0xc0] sm:$0xff]
  %v4263 = vld [vmem:[#allocation3 + $0xc8] sm:$0xff]
  %v4264 = vld [vmem:[#allocation3 + $0xd0] sm:$0xff]
  %v4265 = vld [vmem:[#allocation3 + $0xd8] sm:$0xff]
  %v4266 = vld [vmem:[#allocation3 + $0xe0] sm:$0xff]
  %v4267 = vld [vmem:[#allocation3 + $0xe8] sm:$0xff]
  %v4268 = vld [vmem:[#allocation3 + $0xf0] sm:$0xff]
  %v4269 = vld [vmem:[#allocation3 + $0xf8] sm:$0xff]
  %v4270 = vld [vmem:[#allocation3 + $0x100] sm:$0xff]
  %v4271 = vld [vmem:[#allocation3 + $0x108] sm:$0xff]
  %v4272 = vld [vmem:[#allocation3 + $0x110] sm:$0xff]
  %v4273 = vld [vmem:[#allocation3 + $0x118] sm:$0xff]
  %v4274 = vld [vmem:[#allocation3 + $0x120] sm:$0xff]
  %4307 = vrot.lane.b32.xlu0 %v4243, 112
  %v4308 = vpop.permute.xlu0 %4307
  %4309 = vrot.lane.b32.xlu0 %v4244, 112
  %v4310 = vpop.permute.xlu0 %4309
  %4311 = vrot.lane.b32.xlu0 %v4245, 112
  %v4312 = vpop.permute.xlu0 %4311
  %4313 = vrot.lane.b32.xlu0 %v4246, 112
  %v4314 = vpop.permute.xlu0 %4313
  %4315 = vrot.lane.b32.xlu0 %v4247, 112
  %v4316 = vpop.permute.xlu0 %4315
  %4317 = vrot.lane.b32.xlu0 %v4248, 112
  %v4318 = vpop.permute.xlu0 %4317
  %4319 = vrot.lane.b32.xlu0 %v4249, 112
  %v4320 = vpop.permute.xlu0 %4319
  %4321 = vrot.lane.b32.xlu0 %v4250, 112
  %v4322 = vpop.permute.xlu0 %4321
  %4323 = vrot.lane.b32.xlu0 %v4251, 112
  %v4324 = vpop.permute.xlu0 %4323
  %4325 = vrot.lane.b32.xlu0 %v4252, 112
  %v4326 = vpop.permute.xlu0 %4325
  %4327 = vrot.lane.b32.xlu0 %v4253, 112
  %v4328 = vpop.permute.xlu0 %4327
  %4329 = vrot.lane.b32.xlu0 %v4254, 112
  %v4330 = vpop.permute.xlu0 %4329
  %4331 = vrot.lane.b32.xlu0 %v4255, 112
  %v4332 = vpop.permute.xlu0 %4331
  %4333 = vrot.lane.b32.xlu0 %v4256, 112
  %v4334 = vpop.permute.xlu0 %4333
  %4335 = vrot.lane.b32.xlu0 %v4257, 112
  %v4336 = vpop.permute.xlu0 %4335
  %4337 = vrot.lane.b32.xlu0 %v4258, 112
  %v4338 = vpop.permute.xlu0 %4337
  %4339 = vrot.lane.b32.xlu0 %v4259, 112
  %v4340 = vpop.permute.xlu0 %4339
  %4341 = vrot.lane.b32.xlu0 %v4260, 112
  %v4342 = vpop.permute.xlu0 %4341
  %4343 = vrot.lane.b32.xlu0 %v4261, 112
  %v4344 = vpop.permute.xlu0 %4343
  %4345 = vrot.lane.b32.xlu0 %v4262, 112
  %v4346 = vpop.permute.xlu0 %4345
  %4347 = vrot.lane.b32.xlu0 %v4263, 112
  %v4348 = vpop.permute.xlu0 %4347
  %4349 = vrot.lane.b32.xlu0 %v4264, 112
  %v4350 = vpop.permute.xlu0 %4349
  %4351 = vrot.lane.b32.xlu0 %v4265, 112
  %v4352 = vpop.permute.xlu0 %4351
  %4353 = vrot.lane.b32.xlu0 %v4266, 112
  %v4354 = vpop.permute.xlu0 %4353
  %4355 = vrot.lane.b32.xlu0 %v4267, 112
  %v4356 = vpop.permute.xlu0 %4355
  %4357 = vrot.lane.b32.xlu0 %v4268, 112
  %v4358 = vpop.permute.xlu0 %4357
  %4359 = vrot.lane.b32.xlu0 %v4269, 112
  %v4360 = vpop.permute.xlu0 %4359
  %4361 = vrot.lane.b32.xlu0 %v4270, 112
  %v4362 = vpop.permute.xlu0 %4361
  %4363 = vrot.lane.b32.xlu0 %v4271, 112
  %v4364 = vpop.permute.xlu0 %4363
  %4365 = vrot.lane.b32.xlu0 %v4272, 112
  %v4366 = vpop.permute.xlu0 %4365
  %4367 = vrot.lane.b32.xlu0 %v4273, 112
  %v4368 = vpop.permute.xlu0 %4367
  %4369 = vrot.lane.b32.xlu0 %v4274, 112
  %v4370 = vpop.permute.xlu0 %4369
  %vm4403 = vcmask 1048448
  %4404 = vst.msk [vmem:[#allocation5] sm:$0xff] %vm4403, %v4308
  %4405 = vst.msk [vmem:[#allocation5 + $0x10] sm:$0xff] %vm4403, %v4310
  %4406 = vst.msk [vmem:[#allocation5 + $0x20] sm:$0xff] %vm4403, %v4312
  %4407 = vst.msk [vmem:[#allocation5 + $0x30] sm:$0xff] %vm4403, %v4314
  %4408 = vst.msk [vmem:[#allocation5 + $0x40] sm:$0xff] %vm4403, %v4316
  %4409 = vst.msk [vmem:[#allocation5 + $0x50] sm:$0xff] %vm4403, %v4318
  %4410 = vst.msk [vmem:[#allocation5 + $0x60] sm:$0xff] %vm4403, %v4320
  %4411 = vst.msk [vmem:[#allocation5 + $0x70] sm:$0xff] %vm4403, %v4322
  %4412 = vst.msk [vmem:[#allocation5 + $0x80] sm:$0xff] %vm4403, %v4324
  %4413 = vst.msk [vmem:[#allocation5 + $0x90] sm:$0xff] %vm4403, %v4326
  %4414 = vst.msk [vmem:[#allocation5 + $0xa0] sm:$0xff] %vm4403, %v4328
  %4415 = vst.msk [vmem:[#allocation5 + $0xb0] sm:$0xff] %vm4403, %v4330
  %4416 = vst.msk [vmem:[#allocation5 + $0xc0] sm:$0xff] %vm4403, %v4332
  %4417 = vst.msk [vmem:[#allocation5 + $0xd0] sm:$0xff] %vm4403, %v4334
  %4418 = vst.msk [vmem:[#allocation5 + $0xe0] sm:$0xff] %vm4403, %v4336
  %4419 = vst.msk [vmem:[#allocation5 + $0xf0] sm:$0xff] %vm4403, %v4338
  %4420 = vst.msk [vmem:[#allocation5 + $0x100] sm:$0xff] %vm4403, %v4340
  %4421 = vst.msk [vmem:[#allocation5 + $0x110] sm:$0xff] %vm4403, %v4342
  %4422 = vst.msk [vmem:[#allocation5 + $0x120] sm:$0xff] %vm4403, %v4344
  %4423 = vst.msk [vmem:[#allocation5 + $0x130] sm:$0xff] %vm4403, %v4346
  %4424 = vst.msk [vmem:[#allocation5 + $0x140] sm:$0xff] %vm4403, %v4348
  %4425 = vst.msk [vmem:[#allocation5 + $0x150] sm:$0xff] %vm4403, %v4350
  %4426 = vst.msk [vmem:[#allocation5 + $0x160] sm:$0xff] %vm4403, %v4352
  %4427 = vst.msk [vmem:[#allocation5 + $0x170] sm:$0xff] %vm4403, %v4354
  %4428 = vst.msk [vmem:[#allocation5 + $0x180] sm:$0xff] %vm4403, %v4356
  %4429 = vst.msk [vmem:[#allocation5 + $0x190] sm:$0xff] %vm4403, %v4358
  %4430 = vst.msk [vmem:[#allocation5 + $0x1a0] sm:$0xff] %vm4403, %v4360
  %4431 = vst.msk [vmem:[#allocation5 + $0x1b0] sm:$0xff] %vm4403, %v4362
  %4432 = vst.msk [vmem:[#allocation5 + $0x1c0] sm:$0xff] %vm4403, %v4364
  %4433 = vst.msk [vmem:[#allocation5 + $0x1d0] sm:$0xff] %vm4403, %v4366
  %4434 = vst.msk [vmem:[#allocation5 + $0x1e0] sm:$0xff] %vm4403, %v4368
  %4435 = vst.msk [vmem:[#allocation5 + $0x1f0] sm:$0xff] %vm4403, %v4370
  %v4436 = vld [vmem:[#allocation3 + $0x29] sm:$0xff]
  %v4437 = vld [vmem:[#allocation3 + $0x31] sm:$0xff]
  %v4438 = vld [vmem:[#allocation3 + $0x39] sm:$0xff]
  %v4439 = vld [vmem:[#allocation3 + $0x41] sm:$0xff]
  %v4440 = vld [vmem:[#allocation3 + $0x49] sm:$0xff]
  %v4441 = vld [vmem:[#allocation3 + $0x51] sm:$0xff]
  %v4442 = vld [vmem:[#allocation3 + $0x59] sm:$0xff]
  %v4443 = vld [vmem:[#allocation3 + $0x61] sm:$0xff]
  %v4444 = vld [vmem:[#allocation3 + $0x69] sm:$0xff]
  %v4445 = vld [vmem:[#allocation3 + $0x71] sm:$0xff]
  %v4446 = vld [vmem:[#allocation3 + $0x79] sm:$0xff]
  %v4447 = vld [vmem:[#allocation3 + $0x81] sm:$0xff]
  %v4448 = vld [vmem:[#allocation3 + $0x89] sm:$0xff]
  %v4449 = vld [vmem:[#allocation3 + $0x91] sm:$0xff]
  %v4450 = vld [vmem:[#allocation3 + $0x99] sm:$0xff]
  %v4451 = vld [vmem:[#allocation3 + $0xa1] sm:$0xff]
  %v4452 = vld [vmem:[#allocation3 + $0xa9] sm:$0xff]
  %v4453 = vld [vmem:[#allocation3 + $0xb1] sm:$0xff]
  %v4454 = vld [vmem:[#allocation3 + $0xb9] sm:$0xff]
  %v4455 = vld [vmem:[#allocation3 + $0xc1] sm:$0xff]
  %v4456 = vld [vmem:[#allocation3 + $0xc9] sm:$0xff]
  %v4457 = vld [vmem:[#allocation3 + $0xd1] sm:$0xff]
  %v4458 = vld [vmem:[#allocation3 + $0xd9] sm:$0xff]
  %v4459 = vld [vmem:[#allocation3 + $0xe1] sm:$0xff]
  %v4460 = vld [vmem:[#allocation3 + $0xe9] sm:$0xff]
  %v4461 = vld [vmem:[#allocation3 + $0xf1] sm:$0xff]
  %v4462 = vld [vmem:[#allocation3 + $0xf9] sm:$0xff]
  %v4463 = vld [vmem:[#allocation3 + $0x101] sm:$0xff]
  %v4464 = vld [vmem:[#allocation3 + $0x109] sm:$0xff]
  %v4465 = vld [vmem:[#allocation3 + $0x111] sm:$0xff]
  %v4466 = vld [vmem:[#allocation3 + $0x119] sm:$0xff]
  %v4467 = vld [vmem:[#allocation3 + $0x121] sm:$0xff]
  %v4468 = vsel %vm1003, %v4436, 0.0
  %v4469 = vsel %vm1004, %v4437, 0.0
  %v4470 = vsel %vm1005, %v4438, 0.0
  %v4471 = vsel %vm1006, %v4439, 0.0
  %v4472 = vsel %vm1007, %v4440, 0.0
  %v4473 = vsel %vm1008, %v4441, 0.0
  %v4474 = vsel %vm1009, %v4442, 0.0
  %v4475 = vsel %vm1010, %v4443, 0.0
  %v4476 = vsel %vm1011, %v4444, 0.0
  %v4477 = vsel %vm1012, %v4445, 0.0
  %v4478 = vsel %vm1013, %v4446, 0.0
  %v4479 = vsel %vm1014, %v4447, 0.0
  %v4480 = vsel %vm1015, %v4448, 0.0
  %v4481 = vsel %vm1016, %v4449, 0.0
  %v4482 = vsel %vm1017, %v4450, 0.0
  %v4483 = vsel %vm1018, %v4451, 0.0
  %v4484 = vsel %vm1019, %v4452, 0.0
  %v4485 = vsel %vm1020, %v4453, 0.0
  %v4486 = vsel %vm1021, %v4454, 0.0
  %v4487 = vsel %vm1022, %v4455, 0.0
  %v4488 = vsel %vm1023, %v4456, 0.0
  %v4489 = vsel %vm1024, %v4457, 0.0
  %v4490 = vsel %vm1025, %v4458, 0.0
  %v4491 = vsel %vm1026, %v4459, 0.0
  %v4492 = vsel %vm1027, %v4460, 0.0
  %v4493 = vsel %vm1028, %v4461, 0.0
  %v4494 = vsel %vm1029, %v4462, 0.0
  %v4495 = vsel %vm1030, %v4463, 0.0
  %v4496 = vsel %vm1031, %v4464, 0.0
  %v4497 = vsel %vm1032, %v4465, 0.0
  %v4498 = vsel %vm1033, %v4466, 0.0
  %v4499 = vsel %vm1034, %v4467, 0.0
  %4500 = vst.msk [vmem:[#allocation5 + $0x8] sm:$0xff] %vm515, %v4468
  %4501 = vst.msk [vmem:[#allocation5 + $0x18] sm:$0xff] %vm515, %v4469
  %4502 = vst.msk [vmem:[#allocation5 + $0x28] sm:$0xff] %vm515, %v4470
  %4503 = vst.msk [vmem:[#allocation5 + $0x38] sm:$0xff] %vm515, %v4471
  %4504 = vst.msk [vmem:[#allocation5 + $0x48] sm:$0xff] %vm515, %v4472
  %4505 = vst.msk [vmem:[#allocation5 + $0x58] sm:$0xff] %vm515, %v4473
  %4506 = vst.msk [vmem:[#allocation5 + $0x68] sm:$0xff] %vm515, %v4474
  %4507 = vst.msk [vmem:[#allocation5 + $0x78] sm:$0xff] %vm515, %v4475
  %4508 = vst.msk [vmem:[#allocation5 + $0x88] sm:$0xff] %vm515, %v4476
  %4509 = vst.msk [vmem:[#allocation5 + $0x98] sm:$0xff] %vm515, %v4477
  %4510 = vst.msk [vmem:[#allocation5 + $0xa8] sm:$0xff] %vm515, %v4478
  %4511 = vst.msk [vmem:[#allocation5 + $0xb8] sm:$0xff] %vm515, %v4479
  %4512 = vst.msk [vmem:[#allocation5 + $0xc8] sm:$0xff] %vm515, %v4480
  %4513 = vst.msk [vmem:[#allocation5 + $0xd8] sm:$0xff] %vm515, %v4481
  %4514 = vst.msk [vmem:[#allocation5 + $0xe8] sm:$0xff] %vm515, %v4482
  %4515 = vst.msk [vmem:[#allocation5 + $0xf8] sm:$0xff] %vm515, %v4483
  %4516 = vst.msk [vmem:[#allocation5 + $0x108] sm:$0xff] %vm515, %v4484
  %4517 = vst.msk [vmem:[#allocation5 + $0x118] sm:$0xff] %vm515, %v4485
  %4518 = vst.msk [vmem:[#allocation5 + $0x128] sm:$0xff] %vm515, %v4486
  %4519 = vst.msk [vmem:[#allocation5 + $0x138] sm:$0xff] %vm515, %v4487
  %4520 = vst.msk [vmem:[#allocation5 + $0x148] sm:$0xff] %vm515, %v4488
  %4521 = vst.msk [vmem:[#allocation5 + $0x158] sm:$0xff] %vm515, %v4489
  %4522 = vst.msk [vmem:[#allocation5 + $0x168] sm:$0xff] %vm515, %v4490
  %4523 = vst.msk [vmem:[#allocation5 + $0x178] sm:$0xff] %vm515, %v4491
  %4524 = vst.msk [vmem:[#allocation5 + $0x188] sm:$0xff] %vm515, %v4492
  %4525 = vst.msk [vmem:[#allocation5 + $0x198] sm:$0xff] %vm515, %v4493
  %4526 = vst.msk [vmem:[#allocation5 + $0x1a8] sm:$0xff] %vm515, %v4494
  %4527 = vst.msk [vmem:[#allocation5 + $0x1b8] sm:$0xff] %vm515, %v4495
  %4528 = vst.msk [vmem:[#allocation5 + $0x1c8] sm:$0xff] %vm515, %v4496
  %4529 = vst.msk [vmem:[#allocation5 + $0x1d8] sm:$0xff] %vm515, %v4497
  %4530 = vst.msk [vmem:[#allocation5 + $0x1e8] sm:$0xff] %vm515, %v4498
  %4531 = vst.msk [vmem:[#allocation5 + $0x1f8] sm:$0xff] %vm515, %v4499
  %v4532 = vld [vmem:[#allocation5] sm:$0xff]
  %v4533 = vld [vmem:[#allocation5 + $0x8] sm:$0xff]
  %v4534 = vld [vmem:[#allocation5 + $0x10] sm:$0xff]
  %v4535 = vld [vmem:[#allocation5 + $0x18] sm:$0xff]
  %v4536 = vld [vmem:[#allocation5 + $0x20] sm:$0xff]
  %v4537 = vld [vmem:[#allocation5 + $0x28] sm:$0xff]
  %v4538 = vld [vmem:[#allocation5 + $0x30] sm:$0xff]
  %v4539 = vld [vmem:[#allocation5 + $0x38] sm:$0xff]
  %v4540 = vld [vmem:[#allocation5 + $0x40] sm:$0xff]
  %v4541 = vld [vmem:[#allocation5 + $0x48] sm:$0xff]
  %v4542 = vld [vmem:[#allocation5 + $0x50] sm:$0xff]
  %v4543 = vld [vmem:[#allocation5 + $0x58] sm:$0xff]
  %v4544 = vld [vmem:[#allocation5 + $0x60] sm:$0xff]
  %v4545 = vld [vmem:[#allocation5 + $0x68] sm:$0xff]
  %v4546 = vld [vmem:[#allocation5 + $0x70] sm:$0xff]
  %v4547 = vld [vmem:[#allocation5 + $0x78] sm:$0xff]
  %v4548 = vld [vmem:[#allocation5 + $0x80] sm:$0xff]
  %v4549 = vld [vmem:[#allocation5 + $0x88] sm:$0xff]
  %v4550 = vld [vmem:[#allocation5 + $0x90] sm:$0xff]
  %v4551 = vld [vmem:[#allocation5 + $0x98] sm:$0xff]
  %v4552 = vld [vmem:[#allocation5 + $0xa0] sm:$0xff]
  %v4553 = vld [vmem:[#allocation5 + $0xa8] sm:$0xff]
  %v4554 = vld [vmem:[#allocation5 + $0xb0] sm:$0xff]
  %v4555 = vld [vmem:[#allocation5 + $0xb8] sm:$0xff]
  %v4556 = vld [vmem:[#allocation5 + $0xc0] sm:$0xff]
  %v4557 = vld [vmem:[#allocation5 + $0xc8] sm:$0xff]
  %v4558 = vld [vmem:[#allocation5 + $0xd0] sm:$0xff]
  %v4559 = vld [vmem:[#allocation5 + $0xd8] sm:$0xff]
  %v4560 = vld [vmem:[#allocation5 + $0xe0] sm:$0xff]
  %v4561 = vld [vmem:[#allocation5 + $0xe8] sm:$0xff]
  %v4562 = vld [vmem:[#allocation5 + $0xf0] sm:$0xff]
  %v4563 = vld [vmem:[#allocation5 + $0xf8] sm:$0xff]
  %v4564 = vld [vmem:[#allocation5 + $0x100] sm:$0xff]
  %v4565 = vld [vmem:[#allocation5 + $0x108] sm:$0xff]
  %v4566 = vld [vmem:[#allocation5 + $0x110] sm:$0xff]
  %v4567 = vld [vmem:[#allocation5 + $0x118] sm:$0xff]
  %v4568 = vld [vmem:[#allocation5 + $0x120] sm:$0xff]
  %v4569 = vld [vmem:[#allocation5 + $0x128] sm:$0xff]
  %v4570 = vld [vmem:[#allocation5 + $0x130] sm:$0xff]
  %v4571 = vld [vmem:[#allocation5 + $0x138] sm:$0xff]
  %v4572 = vld [vmem:[#allocation5 + $0x140] sm:$0xff]
  %v4573 = vld [vmem:[#allocation5 + $0x148] sm:$0xff]
  %v4574 = vld [vmem:[#allocation5 + $0x150] sm:$0xff]
  %v4575 = vld [vmem:[#allocation5 + $0x158] sm:$0xff]
  %v4576 = vld [vmem:[#allocation5 + $0x160] sm:$0xff]
  %v4577 = vld [vmem:[#allocation5 + $0x168] sm:$0xff]
  %v4578 = vld [vmem:[#allocation5 + $0x170] sm:$0xff]
  %v4579 = vld [vmem:[#allocation5 + $0x178] sm:$0xff]
  %v4580 = vld [vmem:[#allocation5 + $0x180] sm:$0xff]
  %v4581 = vld [vmem:[#allocation5 + $0x188] sm:$0xff]
  %v4582 = vld [vmem:[#allocation5 + $0x190] sm:$0xff]
  %v4583 = vld [vmem:[#allocation5 + $0x198] sm:$0xff]
  %v4584 = vld [vmem:[#allocation5 + $0x1a0] sm:$0xff]
  %v4585 = vld [vmem:[#allocation5 + $0x1a8] sm:$0xff]
  %v4586 = vld [vmem:[#allocation5 + $0x1b0] sm:$0xff]
  %v4587 = vld [vmem:[#allocation5 + $0x1b8] sm:$0xff]
  %v4588 = vld [vmem:[#allocation5 + $0x1c0] sm:$0xff]
  %v4589 = vld [vmem:[#allocation5 + $0x1c8] sm:$0xff]
  %v4590 = vld [vmem:[#allocation5 + $0x1d0] sm:$0xff]
  %v4591 = vld [vmem:[#allocation5 + $0x1d8] sm:$0xff]
  %v4592 = vld [vmem:[#allocation5 + $0x1e0] sm:$0xff]
  %v4593 = vld [vmem:[#allocation5 + $0x1e8] sm:$0xff]
  %v4594 = vld [vmem:[#allocation5 + $0x1f0] sm:$0xff]
  %v4595 = vld [vmem:[#allocation5 + $0x1f8] sm:$0xff]
  %v4596 = vpack.c.bf16 %v4534, %v4532
  %v4597 = vpack.c.bf16 %v4535, %v4533
  %v4598 = vpack.c.bf16 %v4538, %v4536
  %v4599 = vpack.c.bf16 %v4539, %v4537
  %v4600 = vpack.c.bf16 %v4542, %v4540
  %v4601 = vpack.c.bf16 %v4543, %v4541
  %v4602 = vpack.c.bf16 %v4546, %v4544
  %v4603 = vpack.c.bf16 %v4547, %v4545
  %v4604 = vpack.c.bf16 %v4550, %v4548
  %v4605 = vpack.c.bf16 %v4551, %v4549
  %v4606 = vpack.c.bf16 %v4554, %v4552
  %v4607 = vpack.c.bf16 %v4555, %v4553
  %v4608 = vpack.c.bf16 %v4558, %v4556
  %v4609 = vpack.c.bf16 %v4559, %v4557
  %v4610 = vpack.c.bf16 %v4562, %v4560
  %v4611 = vpack.c.bf16 %v4563, %v4561
  %v4612 = vpack.c.bf16 %v4566, %v4564
  %v4613 = vpack.c.bf16 %v4567, %v4565
  %v4614 = vpack.c.bf16 %v4570, %v4568
  %v4615 = vpack.c.bf16 %v4571, %v4569
  %v4616 = vpack.c.bf16 %v4574, %v4572
  %v4617 = vpack.c.bf16 %v4575, %v4573
  %v4618 = vpack.c.bf16 %v4578, %v4576
  %v4619 = vpack.c.bf16 %v4579, %v4577
  %v4620 = vpack.c.bf16 %v4582, %v4580
  %v4621 = vpack.c.bf16 %v4583, %v4581
  %v4622 = vpack.c.bf16 %v4586, %v4584
  %v4623 = vpack.c.bf16 %v4587, %v4585
  %v4624 = vpack.c.bf16 %v4590, %v4588
  %v4625 = vpack.c.bf16 %v4591, %v4589
  %v4626 = vpack.c.bf16 %v4594, %v4592
  %v4627 = vpack.c.bf16 %v4595, %v4593
  %v4628 = vld [vmem:[%s3] sm:$0xff]
  %v4629 = vld [vmem:[%s3 + $0x8] sm:$0xff]
  %v4630 = vld [vmem:[%s3 + $0x10] sm:$0xff]
  %v4631 = vld [vmem:[%s3 + $0x18] sm:$0xff]
  %v4632 = vld [vmem:[%s3 + $0x20] sm:$0xff]
  %v4633 = vld [vmem:[%s3 + $0x28] sm:$0xff]
  %v4634 = vld [vmem:[%s3 + $0x30] sm:$0xff]
  %v4635 = vld [vmem:[%s3 + $0x38] sm:$0xff]
  %v4636 = vld [vmem:[%s3 + $0x40] sm:$0xff]
  %v4637 = vld [vmem:[%s3 + $0x48] sm:$0xff]
  %v4638 = vld [vmem:[%s3 + $0x50] sm:$0xff]
  %v4639 = vld [vmem:[%s3 + $0x58] sm:$0xff]
  %v4640 = vld [vmem:[%s3 + $0x60] sm:$0xff]
  %v4641 = vld [vmem:[%s3 + $0x68] sm:$0xff]
  %v4642 = vld [vmem:[%s3 + $0x70] sm:$0xff]
  %v4643 = vld [vmem:[%s3 + $0x78] sm:$0xff]
  %v4644 = vld [vmem:[%s3 + $0x80] sm:$0xff]
  %v4645 = vld [vmem:[%s3 + $0x88] sm:$0xff]
  %v4646 = vpack.c.bf16 %v4629, %v4628
  %v4647 = vpack.c.bf16 %v4631, %v4630
  %v4648 = vpack.c.bf16 %v4633, %v4632
  %v4649 = vpack.c.bf16 %v4635, %v4634
  %v4650 = vpack.c.bf16 %v4637, %v4636
  %v4651 = vpack.c.bf16 %v4639, %v4638
  %v4652 = vpack.c.bf16 %v4641, %v4640
  %v4653 = vpack.c.bf16 %v4643, %v4642
  %v4654 = vpack.c.bf16 %v4645, %v4644
  %v4655 = vld [vmem:[%s4] sm:$0x1]
  %v4657 = vlaneseq
  %v4658 = vshrl.u32 %v4657, 7
  %v4659 = vsub.s32 0, %v4658
  %v4660 = vrot.slane %v4655, %v4659
  %v4663 = vsel %vm515, %v4597, 0
  %v4666 = vsel %vm515, %v4599, 0
  %v4669 = vsel %vm515, %v4601, 0
  %v4672 = vsel %vm515, %v4603, 0
  %v4675 = vsel %vm515, %v4605, 0
  %v4678 = vsel %vm515, %v4607, 0
  %v4681 = vsel %vm515, %v4609, 0
  %v4684 = vsel %vm515, %v4611, 0
  %v4687 = vsel %vm515, %v4613, 0
  %v4690 = vsel %vm515, %v4615, 0
  %v4693 = vsel %vm515, %v4617, 0
  %v4696 = vsel %vm515, %v4619, 0
  %v4699 = vsel %vm515, %v4621, 0
  %v4702 = vsel %vm515, %v4623, 0
  %v4705 = vsel %vm515, %v4625, 0
  %v4708 = vsel %vm515, %v4627, 0
  %4710 = vmatprep.subr.bf16.mxu0 0
  %4711 = vmatpush1.bf16.msra.mxu0 %v4646
  %4712 = vmatprep.subr.bf16.mxu0 0
  %4713 = vmatpush1.bf16.msra.mxu0 %v4647
  %4714 = vmatprep.subr.bf16.mxu0 0
  %4715 = vmatpush1.bf16.msra.mxu0 %v4648
  %4716 = vmatprep.subr.bf16.mxu0 0
  %4717 = vmatpush1.bf16.msra.mxu0 %v4649
  %4718 = vmatprep.subr.bf16.mxu0 0
  %4719 = vmatpush1.bf16.msra.mxu0 %v4650
  %4720 = vmatprep.subr.bf16.mxu0 0
  %4721 = vmatpush1.bf16.msra.mxu0 %v4651
  %4722 = vmatprep.subr.bf16.mxu0 0
  %4723 = vmatpush1.bf16.msra.mxu0 %v4652
  %4724 = vmatprep.subr.bf16.mxu0 0
  %4725 = vmatpush1.bf16.msra.mxu0 %v4653
  %4726 = vmatprep.subr.bf16.mxu0 0
  %4727 = vmatpush1.bf16.msra.mxu0 %v4654
  %4728 = vmatprep.subr.bf16.mxu0 0
  %4729 = vmatpush1.bf16.msra.mxu0 0
  %4730 = vmatprep.subr.bf16.mxu0 0
  %4731 = vmatpush1.bf16.msra.mxu0 0
  %4732 = vmatprep.subr.bf16.mxu0 0
  %4733 = vmatpush1.bf16.msra.mxu0 0
  %4734 = vmatprep.subr.bf16.mxu0 0
  %4735 = vmatpush1.bf16.msra.mxu0 0
  %4736 = vmatprep.subr.bf16.mxu0 0
  %4737 = vmatpush1.bf16.msra.mxu0 0
  %4738 = vmatprep.subr.bf16.mxu0 0
  %4739 = vmatpush1.bf16.msra.mxu0 0
  %4740 = vmatprep.subr.bf16.mxu0 0
  %4741 = vmatpush1.bf16.msra.mxu0 0
  %4742 = vmatprep.mubr.bf16.mxu0 %v4663
  %4743 = vmatmul.mubr.bf16.gmra.mrb[0].mxu0 %v4596
  %v4744 = vpop.f32.mrb[0].mxu0
  %v4745 = vadd.f32 %v4660, %v4744
  %v4746 = vpop.f32.mrb[0].mxu0
  %v4747 = vpop.f32.mrb[0].mxu0
  %v4748 = vadd.f32 %v4660, %v4747
  %v4749 = vpop.f32.mrb[0].mxu0
  %4750 = vmatprep.mubr.bf16.mxu0 %v4666
  %4751 = vmatmul.mubr.bf16.gmra.mrb[0].mxu0 %v4598
  %v4752 = vpop.f32.mrb[0].mxu0
  %v4753 = vadd.f32 %v4660, %v4752
  %v4754 = vpop.f32.mrb[0].mxu0
  %v4755 = vpop.f32.mrb[0].mxu0
  %v4756 = vadd.f32 %v4660, %v4755
  %v4757 = vpop.f32.mrb[0].mxu0
  %4758 = vmatprep.mubr.bf16.mxu0 %v4669
  %4759 = vmatmul.mubr.bf16.gmra.mrb[0].mxu0 %v4600
  %v4760 = vpop.f32.mrb[0].mxu0
  %v4761 = vadd.f32 %v4660, %v4760
  %v4762 = vpop.f32.mrb[0].mxu0
  %v4763 = vpop.f32.mrb[0].mxu0
  %v4764 = vadd.f32 %v4660, %v4763
  %v4765 = vpop.f32.mrb[0].mxu0
  %4766 = vmatprep.mubr.bf16.mxu0 %v4672
  %4767 = vmatmul.mubr.bf16.gmra.mrb[0].mxu0 %v4602
  %v4768 = vpop.f32.mrb[0].mxu0
  %v4769 = vadd.f32 %v4660, %v4768
  %v4770 = vpop.f32.mrb[0].mxu0
  %v4771 = vpop.f32.mrb[0].mxu0
  %v4772 = vadd.f32 %v4660, %v4771
  %v4773 = vpop.f32.mrb[0].mxu0
  %4774 = vmatprep.mubr.bf16.mxu0 %v4675
  %4775 = vmatmul.mubr.bf16.gmra.mrb[0].mxu0 %v4604
  %v4776 = vpop.f32.mrb[0].mxu0
  %v4777 = vadd.f32 %v4660, %v4776
  %v4778 = vpop.f32.mrb[0].mxu0
  %v4779 = vpop.f32.mrb[0].mxu0
  %v4780 = vadd.f32 %v4660, %v4779
  %v4781 = vpop.f32.mrb[0].mxu0
  %4782 = vmatprep.mubr.bf16.mxu0 %v4678
  %4783 = vmatmul.mubr.bf16.gmra.mrb[0].mxu0 %v4606
  %v4784 = vpop.f32.mrb[0].mxu0
  %v4785 = vadd.f32 %v4660, %v4784
  %v4786 = vpop.f32.mrb[0].mxu0
  %v4787 = vpop.f32.mrb[0].mxu0
  %v4788 = vadd.f32 %v4660, %v4787
  %v4789 = vpop.f32.mrb[0].mxu0
  %4790 = vmatprep.mubr.bf16.mxu0 %v4681
  %4791 = vmatmul.mubr.bf16.gmra.mrb[0].mxu0 %v4608
  %v4792 = vpop.f32.mrb[0].mxu0
  %v4793 = vadd.f32 %v4660, %v4792
  %v4794 = vpop.f32.mrb[0].mxu0
  %v4795 = vpop.f32.mrb[0].mxu0
  %v4796 = vadd.f32 %v4660, %v4795
  %v4797 = vpop.f32.mrb[0].mxu0
  %4798 = vmatprep.mubr.bf16.mxu0 %v4684
  %4799 = vmatmul.mubr.bf16.gmra.mrb[0].mxu0 %v4610
  %v4800 = vpop.f32.mrb[0].mxu0
  %v4801 = vadd.f32 %v4660, %v4800
  %v4802 = vpop.f32.mrb[0].mxu0
  %v4803 = vpop.f32.mrb[0].mxu0
  %v4804 = vadd.f32 %v4660, %v4803
  %v4805 = vpop.f32.mrb[0].mxu0
  %4806 = vmatprep.mubr.bf16.mxu0 %v4687
  %4807 = vmatmul.mubr.bf16.gmra.mrb[0].mxu0 %v4612
  %v4808 = vpop.f32.mrb[0].mxu0
  %v4809 = vadd.f32 %v4660, %v4808
  %v4810 = vpop.f32.mrb[0].mxu0
  %v4811 = vpop.f32.mrb[0].mxu0
  %v4812 = vadd.f32 %v4660, %v4811
  %v4813 = vpop.f32.mrb[0].mxu0
  %4814 = vmatprep.mubr.bf16.mxu0 %v4690
  %4815 = vmatmul.mubr.bf16.gmra.mrb[0].mxu0 %v4614
  %v4816 = vpop.f32.mrb[0].mxu0
  %v4817 = vadd.f32 %v4660, %v4816
  %v4818 = vpop.f32.mrb[0].mxu0
  %v4819 = vpop.f32.mrb[0].mxu0
  %v4820 = vadd.f32 %v4660, %v4819
  %v4821 = vpop.f32.mrb[0].mxu0
  %4822 = vmatprep.mubr.bf16.mxu0 %v4693
  %4823 = vmatmul.mubr.bf16.gmra.mrb[0].mxu0 %v4616
  %v4824 = vpop.f32.mrb[0].mxu0
  %v4825 = vadd.f32 %v4660, %v4824
  %v4826 = vpop.f32.mrb[0].mxu0
  %v4827 = vpop.f32.mrb[0].mxu0
  %v4828 = vadd.f32 %v4660, %v4827
  %v4829 = vpop.f32.mrb[0].mxu0
  %4830 = vmatprep.mubr.bf16.mxu0 %v4696
  %4831 = vmatmul.mubr.bf16.gmra.mrb[0].mxu0 %v4618
  %v4832 = vpop.f32.mrb[0].mxu0
  %v4833 = vadd.f32 %v4660, %v4832
  %v4834 = vpop.f32.mrb[0].mxu0
  %v4835 = vpop.f32.mrb[0].mxu0
  %v4836 = vadd.f32 %v4660, %v4835
  %v4837 = vpop.f32.mrb[0].mxu0
  %4838 = vmatprep.mubr.bf16.mxu0 %v4699
  %4839 = vmatmul.mubr.bf16.gmra.mrb[0].mxu0 %v4620
  %v4840 = vpop.f32.mrb[0].mxu0
  %v4841 = vadd.f32 %v4660, %v4840
  %v4842 = vpop.f32.mrb[0].mxu0
  %v4843 = vpop.f32.mrb[0].mxu0
  %v4844 = vadd.f32 %v4660, %v4843
  %v4845 = vpop.f32.mrb[0].mxu0
  %4846 = vmatprep.mubr.bf16.mxu0 %v4702
  %4847 = vmatmul.mubr.bf16.gmra.mrb[0].mxu0 %v4622
  %v4848 = vpop.f32.mrb[0].mxu0
  %v4849 = vadd.f32 %v4660, %v4848
  %v4850 = vpop.f32.mrb[0].mxu0
  %v4851 = vpop.f32.mrb[0].mxu0
  %v4852 = vadd.f32 %v4660, %v4851
  %v4853 = vpop.f32.mrb[0].mxu0
  %4854 = vmatprep.mubr.bf16.mxu0 %v4705
  %4855 = vmatmul.mubr.bf16.gmra.mrb[0].mxu0 %v4624
  %v4856 = vpop.f32.mrb[0].mxu0
  %v4857 = vadd.f32 %v4660, %v4856
  %v4858 = vpop.f32.mrb[0].mxu0
  %v4859 = vpop.f32.mrb[0].mxu0
  %v4860 = vadd.f32 %v4660, %v4859
  %v4861 = vpop.f32.mrb[0].mxu0
  %4862 = vmatprep.mubr.bf16.mxu0 %v4708
  %4863 = vmatmul.mubr.bf16.gmra.mrb[0].mxu0 %v4626
  %v4864 = vpop.f32.mrb[0].mxu0
  %v4865 = vadd.f32 %v4660, %v4864
  %v4866 = vpop.f32.mrb[0].mxu0
  %v4867 = vpop.f32.mrb[0].mxu0
  %v4868 = vadd.f32 %v4660, %v4867
  %v4869 = vpop.f32.mrb[0].mxu0
  %4870 = vdwg.mxu0
  %v4871 = vmax.f32 %v4745, 0.0
  %v4872 = vmax.f32 %v4748, 0.0
  %v4873 = vmax.f32 %v4753, 0.0
  %v4874 = vmax.f32 %v4756, 0.0
  %v4875 = vmax.f32 %v4761, 0.0
  %v4876 = vmax.f32 %v4764, 0.0
  %v4877 = vmax.f32 %v4769, 0.0
  %v4878 = vmax.f32 %v4772, 0.0
  %v4879 = vmax.f32 %v4777, 0.0
  %v4880 = vmax.f32 %v4780, 0.0
  %v4881 = vmax.f32 %v4785, 0.0
  %v4882 = vmax.f32 %v4788, 0.0
  %v4883 = vmax.f32 %v4793, 0.0
  %v4884 = vmax.f32 %v4796, 0.0
  %v4885 = vmax.f32 %v4801, 0.0
  %v4886 = vmax.f32 %v4804, 0.0
  %v4887 = vmax.f32 %v4809, 0.0
  %v4888 = vmax.f32 %v4812, 0.0
  %v4889 = vmax.f32 %v4817, 0.0
  %v4890 = vmax.f32 %v4820, 0.0
  %v4891 = vmax.f32 %v4825, 0.0
  %v4892 = vmax.f32 %v4828, 0.0
  %v4893 = vmax.f32 %v4833, 0.0
  %v4894 = vmax.f32 %v4836, 0.0
  %v4895 = vmax.f32 %v4841, 0.0
  %v4896 = vmax.f32 %v4844, 0.0
  %v4897 = vmax.f32 %v4849, 0.0
  %v4898 = vmax.f32 %v4852, 0.0
  %v4899 = vmax.f32 %v4857, 0.0
  %v4900 = vmax.f32 %v4860, 0.0
  %v4901 = vmax.f32 %v4865, 0.0
  %v4902 = vmax.f32 %v4868, 0.0
  %v4903 = vpack.c.bf16 %v4872, %v4871
  %v4904 = vpack.c.bf16 %v4874, %v4873
  %v4905 = vpack.c.bf16 %v4876, %v4875
  %v4906 = vpack.c.bf16 %v4878, %v4877
  %v4907 = vpack.c.bf16 %v4880, %v4879
  %v4908 = vpack.c.bf16 %v4882, %v4881
  %v4909 = vpack.c.bf16 %v4884, %v4883
  %v4910 = vpack.c.bf16 %v4886, %v4885
  %v4911 = vpack.c.bf16 %v4888, %v4887
  %v4912 = vpack.c.bf16 %v4890, %v4889
  %v4913 = vpack.c.bf16 %v4892, %v4891
  %v4914 = vpack.c.bf16 %v4894, %v4893
  %v4915 = vpack.c.bf16 %v4896, %v4895
  %v4916 = vpack.c.bf16 %v4898, %v4897
  %v4917 = vpack.c.bf16 %v4900, %v4899
  %v4918 = vpack.c.bf16 %v4902, %v4901
  %v4919 = vld [vmem:[%s5] sm:$0xff]
  %v4920 = vld [vmem:[%s5 + $0x8] sm:$0xff]
  %v4921 = vpack.c.bf16 %v4920, %v4919
  %v4922 = vld [vmem:[%s6] sm:$0x1]
  %v4924 = vlaneseq
  %v4925 = vshrl.u32 %v4924, 7
  %v4926 = vsub.s32 0, %v4925
  %v4927 = vrot.slane %v4922, %v4926
  %v4930 = vsel %vm515, %v4903, 0
  %v4933 = vsel %vm515, %v4904, 0
  %v4936 = vsel %vm515, %v4905, 0
  %v4939 = vsel %vm515, %v4906, 0
  %v4942 = vsel %vm515, %v4907, 0
  %v4945 = vsel %vm515, %v4908, 0
  %v4948 = vsel %vm515, %v4909, 0
  %v4951 = vsel %vm515, %v4910, 0
  %v4954 = vsel %vm515, %v4911, 0
  %v4957 = vsel %vm515, %v4912, 0
  %v4960 = vsel %vm515, %v4913, 0
  %v4963 = vsel %vm515, %v4914, 0
  %v4966 = vsel %vm515, %v4915, 0
  %v4969 = vsel %vm515, %v4916, 0
  %v4972 = vsel %vm515, %v4917, 0
  %v4975 = vsel %vm515, %v4918, 0
  %4977 = vmatprep.subr.bf16.mxu0 0
  %4978 = vmatpush1.bf16.msra.mxu0 %v4921
  %4979 = vmatprep.subr.bf16.mxu0 0
  %4980 = vmatpush1.bf16.msra.mxu0 0
  %4981 = vmatprep.subr.bf16.mxu0 0
  %4982 = vmatpush1.bf16.msra.mxu0 0
  %4983 = vmatprep.subr.bf16.mxu0 0
  %4984 = vmatpush1.bf16.msra.mxu0 0
  %4985 = vmatprep.subr.bf16.mxu0 0
  %4986 = vmatpush1.bf16.msra.mxu0 0
  %4987 = vmatprep.subr.bf16.mxu0 0
  %4988 = vmatpush1.bf16.msra.mxu0 0
  %4989 = vmatprep.subr.bf16.mxu0 0
  %4990 = vmatpush1.bf16.msra.mxu0 0
  %4991 = vmatprep.subr.bf16.mxu0 0
  %4992 = vmatpush1.bf16.msra.mxu0 0
  %4993 = vmatprep.subr.bf16.mxu0 0
  %4994 = vmatpush1.bf16.msra.mxu0 0
  %4995 = vmatprep.subr.bf16.mxu0 0
  %4996 = vmatpush1.bf16.msra.mxu0 0
  %4997 = vmatprep.subr.bf16.mxu0 0
  %4998 = vmatpush1.bf16.msra.mxu0 0
  %4999 = vmatprep.subr.bf16.mxu0 0
  %5000 = vmatpush1.bf16.msra.mxu0 0
  %5001 = vmatprep.subr.bf16.mxu0 0
  %5002 = vmatpush1.bf16.msra.mxu0 0
  %5003 = vmatprep.subr.bf16.mxu0 0
  %5004 = vmatpush1.bf16.msra.mxu0 0
  %5005 = vmatprep.subr.bf16.mxu0 0
  %5006 = vmatpush1.bf16.msra.mxu0 0
  %5007 = vmatprep.subr.bf16.mxu0 0
  %5008 = vmatpush1.bf16.msra.mxu0 0
  %5009 = vmatprep.mubr.bf16.mxu0 0
  %5010 = vmatmul.mubr.bf16.gmra.mrb[0].mxu0 %v4930
  %v5011 = vpop.f32.mrb[0].mxu0
  %v5012 = vadd.f32 %v4927, %v5011
  %v5013 = vpop.f32.mrb[0].mxu0
  %v5014 = vpop.f32.mrb[0].mxu0
  %v5015 = vadd.f32 %v4927, %v5014
  %v5016 = vpop.f32.mrb[0].mxu0
  %5017 = vmatprep.mubr.bf16.mxu0 0
  %5018 = vmatmul.mubr.bf16.gmra.mrb[0].mxu0 %v4933
  %v5019 = vpop.f32.mrb[0].mxu0
  %v5020 = vadd.f32 %v4927, %v5019
  %v5021 = vpop.f32.mrb[0].mxu0
  %v5022 = vpop.f32.mrb[0].mxu0
  %v5023 = vadd.f32 %v4927, %v5022
  %v5024 = vpop.f32.mrb[0].mxu0
  %5025 = vmatprep.mubr.bf16.mxu0 0
  %5026 = vmatmul.mubr.bf16.gmra.mrb[0].mxu0 %v4936
  %v5027 = vpop.f32.mrb[0].mxu0
  %v5028 = vadd.f32 %v4927, %v5027
  %v5029 = vpop.f32.mrb[0].mxu0
  %v5030 = vpop.f32.mrb[0].mxu0
  %v5031 = vadd.f32 %v4927, %v5030
  %v5032 = vpop.f32.mrb[0].mxu0
  %5033 = vmatprep.mubr.bf16.mxu0 0
  %5034 = vmatmul.mubr.bf16.gmra.mrb[0].mxu0 %v4939
  %v5035 = vpop.f32.mrb[0].mxu0
  %v5036 = vadd.f32 %v4927, %v5035
  %v5037 = vpop.f32.mrb[0].mxu0
  %v5038 = vpop.f32.mrb[0].mxu0
  %v5039 = vadd.f32 %v4927, %v5038
  %v5040 = vpop.f32.mrb[0].mxu0
  %5041 = vmatprep.mubr.bf16.mxu0 0
  %5042 = vmatmul.mubr.bf16.gmra.mrb[0].mxu0 %v4942
  %v5043 = vpop.f32.mrb[0].mxu0
  %v5044 = vadd.f32 %v4927, %v5043
  %v5045 = vpop.f32.mrb[0].mxu0
  %v5046 = vpop.f32.mrb[0].mxu0
  %v5047 = vadd.f32 %v4927, %v5046
  %v5048 = vpop.f32.mrb[0].mxu0
  %5049 = vmatprep.mubr.bf16.mxu0 0
  %5050 = vmatmul.mubr.bf16.gmra.mrb[0].mxu0 %v4945
  %v5051 = vpop.f32.mrb[0].mxu0
  %v5052 = vadd.f32 %v4927, %v5051
  %v5053 = vpop.f32.mrb[0].mxu0
  %v5054 = vpop.f32.mrb[0].mxu0
  %v5055 = vadd.f32 %v4927, %v5054
  %v5056 = vpop.f32.mrb[0].mxu0
  %5057 = vmatprep.mubr.bf16.mxu0 0
  %5058 = vmatmul.mubr.bf16.gmra.mrb[0].mxu0 %v4948
  %v5059 = vpop.f32.mrb[0].mxu0
  %v5060 = vadd.f32 %v4927, %v5059
  %v5061 = vpop.f32.mrb[0].mxu0
  %v5062 = vpop.f32.mrb[0].mxu0
  %v5063 = vadd.f32 %v4927, %v5062
  %v5064 = vpop.f32.mrb[0].mxu0
  %5065 = vmatprep.mubr.bf16.mxu0 0
  %5066 = vmatmul.mubr.bf16.gmra.mrb[0].mxu0 %v4951
  %v5067 = vpop.f32.mrb[0].mxu0
  %v5068 = vadd.f32 %v4927, %v5067
  %v5069 = vpop.f32.mrb[0].mxu0
  %v5070 = vpop.f32.mrb[0].mxu0
  %v5071 = vadd.f32 %v4927, %v5070
  %v5072 = vpop.f32.mrb[0].mxu0
  %5073 = vmatprep.mubr.bf16.mxu0 0
  %5074 = vmatmul.mubr.bf16.gmra.mrb[0].mxu0 %v4954
  %v5075 = vpop.f32.mrb[0].mxu0
  %v5076 = vadd.f32 %v4927, %v5075
  %v5077 = vpop.f32.mrb[0].mxu0
  %v5078 = vpop.f32.mrb[0].mxu0
  %v5079 = vadd.f32 %v4927, %v5078
  %v5080 = vpop.f32.mrb[0].mxu0
  %5081 = vmatprep.mubr.bf16.mxu0 0
  %5082 = vmatmul.mubr.bf16.gmra.mrb[0].mxu0 %v4957
  %v5083 = vpop.f32.mrb[0].mxu0
  %v5084 = vadd.f32 %v4927, %v5083
  %v5085 = vpop.f32.mrb[0].mxu0
  %v5086 = vpop.f32.mrb[0].mxu0
  %v5087 = vadd.f32 %v4927, %v5086
  %v5088 = vpop.f32.mrb[0].mxu0
  %5089 = vmatprep.mubr.bf16.mxu0 0
  %5090 = vmatmul.mubr.bf16.gmra.mrb[0].mxu0 %v4960
  %v5091 = vpop.f32.mrb[0].mxu0
  %v5092 = vadd.f32 %v4927, %v5091
  %v5093 = vpop.f32.mrb[0].mxu0
  %v5094 = vpop.f32.mrb[0].mxu0
  %v5095 = vadd.f32 %v4927, %v5094
  %v5096 = vpop.f32.mrb[0].mxu0
  %5097 = vmatprep.mubr.bf16.mxu0 0
  %5098 = vmatmul.mubr.bf16.gmra.mrb[0].mxu0 %v4963
  %v5099 = vpop.f32.mrb[0].mxu0
  %v5100 = vadd.f32 %v4927, %v5099
  %v5101 = vpop.f32.mrb[0].mxu0
  %v5102 = vpop.f32.mrb[0].mxu0
  %v5103 = vadd.f32 %v4927, %v5102
  %v5104 = vpop.f32.mrb[0].mxu0
  %5105 = vmatprep.mubr.bf16.mxu0 0
  %5106 = vmatmul.mubr.bf16.gmra.mrb[0].mxu0 %v4966
  %v5107 = vpop.f32.mrb[0].mxu0
  %v5108 = vadd.f32 %v4927, %v5107
  %v5109 = vpop.f32.mrb[0].mxu0
  %v5110 = vpop.f32.mrb[0].mxu0
  %v5111 = vadd.f32 %v4927, %v5110
  %v5112 = vpop.f32.mrb[0].mxu0
  %5113 = vmatprep.mubr.bf16.mxu0 0
  %5114 = vmatmul.mubr.bf16.gmra.mrb[0].mxu0 %v4969
  %v5115 = vpop.f32.mrb[0].mxu0
  %v5116 = vadd.f32 %v4927, %v5115
  %v5117 = vpop.f32.mrb[0].mxu0
  %v5118 = vpop.f32.mrb[0].mxu0
  %v5119 = vadd.f32 %v4927, %v5118
  %v5120 = vpop.f32.mrb[0].mxu0
  %5121 = vmatprep.mubr.bf16.mxu0 0
  %5122 = vmatmul.mubr.bf16.gmra.mrb[0].mxu0 %v4972
  %v5123 = vpop.f32.mrb[0].mxu0
  %v5124 = vadd.f32 %v4927, %v5123
  %v5125 = vpop.f32.mrb[0].mxu0
  %v5126 = vpop.f32.mrb[0].mxu0
  %v5127 = vadd.f32 %v4927, %v5126
  %v5128 = vpop.f32.mrb[0].mxu0
  %5129 = vmatprep.mubr.bf16.mxu0 0
  %5130 = vmatmul.mubr.bf16.gmra.mrb[0].mxu0 %v4975
  %v5131 = vpop.f32.mrb[0].mxu0
  %v5132 = vadd.f32 %v4927, %v5131
  %v5133 = vpop.f32.mrb[0].mxu0
  %v5134 = vpop.f32.mrb[0].mxu0
  %v5135 = vadd.f32 %v4927, %v5134
  %v5136 = vpop.f32.mrb[0].mxu0
  %5137 = vdwg.mxu0
  %5138 = vst [vmem:[%s7] sm:$0xff] %v5012
  %5139 = vst [vmem:[%s7 + $0x8] sm:$0xff] %v5015
  %5140 = vst [vmem:[%s7 + $0x10] sm:$0xff] %v5020
  %5141 = vst [vmem:[%s7 + $0x18] sm:$0xff] %v5023
  %5142 = vst [vmem:[%s7 + $0x20] sm:$0xff] %v5028
  %5143 = vst [vmem:[%s7 + $0x28] sm:$0xff] %v5031
  %5144 = vst [vmem:[%s7 + $0x30] sm:$0xff] %v5036
  %5145 = vst [vmem:[%s7 + $0x38] sm:$0xff] %v5039
  %5146 = vst [vmem:[%s7 + $0x40] sm:$0xff] %v5044
  %5147 = vst [vmem:[%s7 + $0x48] sm:$0xff] %v5047
  %5148 = vst [vmem:[%s7 + $0x50] sm:$0xff] %v5052
  %5149 = vst [vmem:[%s7 + $0x58] sm:$0xff] %v5055
  %5150 = vst [vmem:[%s7 + $0x60] sm:$0xff] %v5060
  %5151 = vst [vmem:[%s7 + $0x68] sm:$0xff] %v5063
  %5152 = vst [vmem:[%s7 + $0x70] sm:$0xff] %v5068
  %5153 = vst [vmem:[%s7 + $0x78] sm:$0xff] %v5071
  %5154 = vst [vmem:[%s7 + $0x80] sm:$0xff] %v5076
  %5155 = vst [vmem:[%s7 + $0x88] sm:$0xff] %v5079
  %5156 = vst [vmem:[%s7 + $0x90] sm:$0xff] %v5084
  %5157 = vst [vmem:[%s7 + $0x98] sm:$0xff] %v5087
  %5158 = vst [vmem:[%s7 + $0xa0] sm:$0xff] %v5092
  %5159 = vst [vmem:[%s7 + $0xa8] sm:$0xff] %v5095
  %5160 = vst [vmem:[%s7 + $0xb0] sm:$0xff] %v5100
  %5161 = vst [vmem:[%s7 + $0xb8] sm:$0xff] %v5103
  %5162 = vst [vmem:[%s7 + $0xc0] sm:$0xff] %v5108
  %5163 = vst [vmem:[%s7 + $0xc8] sm:$0xff] %v5111
  %5164 = vst [vmem:[%s7 + $0xd0] sm:$0xff] %v5116
  %5165 = vst [vmem:[%s7 + $0xd8] sm:$0xff] %v5119
  %5166 = vst [vmem:[%s7 + $0xe0] sm:$0xff] %v5124
  %5167 = vst [vmem:[%s7 + $0xe8] sm:$0xff] %v5127
  %5168 = vst [vmem:[%s7 + $0xf0] sm:$0xff] %v5132
  %5169 = vst [vmem:[%s7 + $0xf8] sm:$0xff] %v5135
  %s5170 = scalar_lea.vmem %s0, 256
  %v5171 = vld [vmem:[%s5170] sm:$0xff]
  %v5172 = vld [vmem:[%s5170 + $0x8] sm:$0xff]
  %v5173 = vld [vmem:[%s5170 + $0x10] sm:$0xff]
  %v5174 = vld [vmem:[%s5170 + $0x18] sm:$0xff]
  %v5175 = vld [vmem:[%s5170 + $0x20] sm:$0xff]
  %v5176 = vld [vmem:[%s5170 + $0x28] sm:$0xff]
  %v5177 = vld [vmem:[%s5170 + $0x30] sm:$0xff]
  %v5178 = vld [vmem:[%s5170 + $0x38] sm:$0xff]
  %v5179 = vld [vmem:[%s5170 + $0x40] sm:$0xff]
  %v5180 = vld [vmem:[%s5170 + $0x48] sm:$0xff]
  %v5181 = vld [vmem:[%s5170 + $0x50] sm:$0xff]
  %v5182 = vld [vmem:[%s5170 + $0x58] sm:$0xff]
  %v5183 = vld [vmem:[%s5170 + $0x60] sm:$0xff]
  %v5184 = vld [vmem:[%s5170 + $0x68] sm:$0xff]
  %v5185 = vld [vmem:[%s5170 + $0x70] sm:$0xff]
  %v5186 = vld [vmem:[%s5170 + $0x78] sm:$0xff]
  %v5187 = vld [vmem:[%s5170 + $0x80] sm:$0xff]
  %v5188 = vld [vmem:[%s5170 + $0x88] sm:$0xff]
  %v5189 = vld [vmem:[%s5170 + $0x90] sm:$0xff]
  %v5190 = vld [vmem:[%s5170 + $0x98] sm:$0xff]
  %v5191 = vld [vmem:[%s5170 + $0xa0] sm:$0xff]
  %v5192 = vld [vmem:[%s5170 + $0xa8] sm:$0xff]
  %v5193 = vld [vmem:[%s5170 + $0xb0] sm:$0xff]
  %v5194 = vld [vmem:[%s5170 + $0xb8] sm:$0xff]
  %v5195 = vld [vmem:[%s5170 + $0xc0] sm:$0xff]
  %v5196 = vld [vmem:[%s5170 + $0xc8] sm:$0xff]
  %v5197 = vld [vmem:[%s5170 + $0xd0] sm:$0xff]
  %v5198 = vld [vmem:[%s5170 + $0xd8] sm:$0xff]
  %v5199 = vld [vmem:[%s5170 + $0xe0] sm:$0xff]
  %v5200 = vld [vmem:[%s5170 + $0xe8] sm:$0xff]
  %v5201 = vld [vmem:[%s5170 + $0xf0] sm:$0xff]
  %v5202 = vld [vmem:[%s5170 + $0xf8] sm:$0xff]
  %5203 = vst.msk [vmem:[#allocation2 + $0x18] sm:$0xff] %vm508, %v5171
  %5204 = vst.msk [vmem:[#allocation2 + $0x20] sm:$0xff] %vm508, %v5172
  %5205 = vst.msk [vmem:[#allocation2 + $0x28] sm:$0xff] %vm508, %v5173
  %5206 = vst.msk [vmem:[#allocation2 + $0x30] sm:$0xff] %vm508, %v5174
  %5207 = vst.msk [vmem:[#allocation2 + $0x38] sm:$0xff] %vm508, %v5175
  %5208 = vst.msk [vmem:[#allocation2 + $0x40] sm:$0xff] %vm508, %v5176
  %5209 = vst.msk [vmem:[#allocation2 + $0x48] sm:$0xff] %vm508, %v5177
  %5210 = vst.msk [vmem:[#allocation2 + $0x50] sm:$0xff] %vm508, %v5178
  %5211 = vst.msk [vmem:[#allocation2 + $0x58] sm:$0xff] %vm508, %v5179
  %5212 = vst.msk [vmem:[#allocation2 + $0x60] sm:$0xff] %vm508, %v5180
  %5213 = vst.msk [vmem:[#allocation2 + $0x68] sm:$0xff] %vm508, %v5181
  %5214 = vst.msk [vmem:[#allocation2 + $0x70] sm:$0xff] %vm508, %v5182
  %5215 = vst.msk [vmem:[#allocation2 + $0x78] sm:$0xff] %vm508, %v5183
  %5216 = vst.msk [vmem:[#allocation2 + $0x80] sm:$0xff] %vm508, %v5184
  %5217 = vst.msk [vmem:[#allocation2 + $0x88] sm:$0xff] %vm508, %v5185
  %5218 = vst.msk [vmem:[#allocation2 + $0x90] sm:$0xff] %vm508, %v5186
  %5219 = vst.msk [vmem:[#allocation2 + $0x98] sm:$0xff] %vm508, %v5187
  %5220 = vst.msk [vmem:[#allocation2 + $0xa0] sm:$0xff] %vm508, %v5188
  %5221 = vst.msk [vmem:[#allocation2 + $0xa8] sm:$0xff] %vm508, %v5189
  %5222 = vst.msk [vmem:[#allocation2 + $0xb0] sm:$0xff] %vm508, %v5190
  %5223 = vst.msk [vmem:[#allocation2 + $0xb8] sm:$0xff] %vm508, %v5191
  %5224 = vst.msk [vmem:[#allocation2 + $0xc0] sm:$0xff] %vm508, %v5192
  %5225 = vst.msk [vmem:[#allocation2 + $0xc8] sm:$0xff] %vm508, %v5193
  %5226 = vst.msk [vmem:[#allocation2 + $0xd0] sm:$0xff] %vm508, %v5194
  %5227 = vst.msk [vmem:[#allocation2 + $0xd8] sm:$0xff] %vm508, %v5195
  %5228 = vst.msk [vmem:[#allocation2 + $0xe0] sm:$0xff] %vm508, %v5196
  %5229 = vst.msk [vmem:[#allocation2 + $0xe8] sm:$0xff] %vm508, %v5197
  %5230 = vst.msk [vmem:[#allocation2 + $0xf0] sm:$0xff] %vm508, %v5198
  %5231 = vst.msk [vmem:[#allocation2 + $0xf8] sm:$0xff] %vm508, %v5199
  %5232 = vst.msk [vmem:[#allocation2 + $0x100] sm:$0xff] %vm508, %v5200
  %5233 = vst.msk [vmem:[#allocation2 + $0x108] sm:$0xff] %vm508, %v5201
  %5234 = vst.msk [vmem:[#allocation2 + $0x110] sm:$0xff] %vm508, %v5202
  %v5235 = vld [vmem:[#allocation2 + $0x7] sm:$0xff]
  %v5236 = vld [vmem:[#allocation2 + $0xf] sm:$0xff]
  %v5237 = vld [vmem:[#allocation2 + $0x17] sm:$0xff]
  %v5238 = vld [vmem:[#allocation2 + $0x1f] sm:$0xff]
  %v5239 = vld [vmem:[#allocation2 + $0x27] sm:$0xff]
  %v5240 = vld [vmem:[#allocation2 + $0x2f] sm:$0xff]
  %v5241 = vld [vmem:[#allocation2 + $0x37] sm:$0xff]
  %v5242 = vld [vmem:[#allocation2 + $0x3f] sm:$0xff]
  %v5243 = vld [vmem:[#allocation2 + $0x47] sm:$0xff]
  %v5244 = vld [vmem:[#allocation2 + $0x4f] sm:$0xff]
  %v5245 = vld [vmem:[#allocation2 + $0x57] sm:$0xff]
  %v5246 = vld [vmem:[#allocation2 + $0x5f] sm:$0xff]
  %v5247 = vld [vmem:[#allocation2 + $0x67] sm:$0xff]
  %v5248 = vld [vmem:[#allocation2 + $0x6f] sm:$0xff]
  %v5249 = vld [vmem:[#allocation2 + $0x77] sm:$0xff]
  %v5250 = vld [vmem:[#allocation2 + $0x7f] sm:$0xff]
  %v5251 = vld [vmem:[#allocation2 + $0x87] sm:$0xff]
  %v5252 = vld [vmem:[#allocation2 + $0x8f] sm:$0xff]
  %v5253 = vld [vmem:[#allocation2 + $0x97] sm:$0xff]
  %v5254 = vld [vmem:[#allocation2 + $0x9f] sm:$0xff]
  %v5255 = vld [vmem:[#allocation2 + $0xa7] sm:$0xff]
  %v5256 = vld [vmem:[#allocation2 + $0xaf] sm:$0xff]
  %v5257 = vld [vmem:[#allocation2 + $0xb7] sm:$0xff]
  %v5258 = vld [vmem:[#allocation2 + $0xbf] sm:$0xff]
  %v5259 = vld [vmem:[#allocation2 + $0xc7] sm:$0xff]
  %v5260 = vld [vmem:[#allocation2 + $0xcf] sm:$0xff]
  %v5261 = vld [vmem:[#allocation2 + $0xd7] sm:$0xff]
  %v5262 = vld [vmem:[#allocation2 + $0xdf] sm:$0xff]
  %v5263 = vld [vmem:[#allocation2 + $0xe7] sm:$0xff]
  %v5264 = vld [vmem:[#allocation2 + $0xef] sm:$0xff]
  %v5265 = vld [vmem:[#allocation2 + $0xf7] sm:$0xff]
  %v5266 = vld [vmem:[#allocation2 + $0xff] sm:$0xff]
  %v5267 = vsel %vm650, %v5235, 0.0
  %v5268 = vsel %vm651, %v5236, 0.0
  %v5269 = vsel %vm652, %v5237, 0.0
  %v5270 = vsel %vm653, %v5238, 0.0
  %v5271 = vsel %vm654, %v5239, 0.0
  %v5272 = vsel %vm655, %v5240, 0.0
  %v5273 = vsel %vm656, %v5241, 0.0
  %v5274 = vsel %vm657, %v5242, 0.0
  %v5275 = vsel %vm658, %v5243, 0.0
  %v5276 = vsel %vm659, %v5244, 0.0
  %v5277 = vsel %vm660, %v5245, 0.0
  %v5278 = vsel %vm661, %v5246, 0.0
  %v5279 = vsel %vm662, %v5247, 0.0
  %v5280 = vsel %vm663, %v5248, 0.0
  %v5281 = vsel %vm664, %v5249, 0.0
  %v5282 = vsel %vm665, %v5250, 0.0
  %v5283 = vsel %vm666, %v5251, 0.0
  %v5284 = vsel %vm667, %v5252, 0.0
  %v5285 = vsel %vm668, %v5253, 0.0
  %v5286 = vsel %vm669, %v5254, 0.0
  %v5287 = vsel %vm670, %v5255, 0.0
  %v5288 = vsel %vm671, %v5256, 0.0
  %v5289 = vsel %vm672, %v5257, 0.0
  %v5290 = vsel %vm673, %v5258, 0.0
  %v5291 = vsel %vm674, %v5259, 0.0
  %v5292 = vsel %vm675, %v5260, 0.0
  %v5293 = vsel %vm676, %v5261, 0.0
  %v5294 = vsel %vm677, %v5262, 0.0
  %v5295 = vsel %vm678, %v5263, 0.0
  %v5296 = vsel %vm679, %v5264, 0.0
  %v5297 = vsel %vm680, %v5265, 0.0
  %v5298 = vsel %vm681, %v5266, 0.0
  %5299 = vst.msk [vmem:[#allocation4] sm:$0xff] %vm508, %v5267
  %5300 = vst.msk [vmem:[#allocation4 + $0x8] sm:$0xff] %vm508, %v5268
  %5301 = vst.msk [vmem:[#allocation4 + $0x10] sm:$0xff] %vm508, %v5269
  %5302 = vst.msk [vmem:[#allocation4 + $0x18] sm:$0xff] %vm508, %v5270
  %5303 = vst.msk [vmem:[#allocation4 + $0x20] sm:$0xff] %vm508, %v5271
  %5304 = vst.msk [vmem:[#allocation4 + $0x28] sm:$0xff] %vm508, %v5272
  %5305 = vst.msk [vmem:[#allocation4 + $0x30] sm:$0xff] %vm508, %v5273
  %5306 = vst.msk [vmem:[#allocation4 + $0x38] sm:$0xff] %vm508, %v5274
  %5307 = vst.msk [vmem:[#allocation4 + $0x40] sm:$0xff] %vm508, %v5275
  %5308 = vst.msk [vmem:[#allocation4 + $0x48] sm:$0xff] %vm508, %v5276
  %5309 = vst.msk [vmem:[#allocation4 + $0x50] sm:$0xff] %vm508, %v5277
  %5310 = vst.msk [vmem:[#allocation4 + $0x58] sm:$0xff] %vm508, %v5278
  %5311 = vst.msk [vmem:[#allocation4 + $0x60] sm:$0xff] %vm508, %v5279
  %5312 = vst.msk [vmem:[#allocation4 + $0x68] sm:$0xff] %vm508, %v5280
  %5313 = vst.msk [vmem:[#allocation4 + $0x70] sm:$0xff] %vm508, %v5281
  %5314 = vst.msk [vmem:[#allocation4 + $0x78] sm:$0xff] %vm508, %v5282
  %5315 = vst.msk [vmem:[#allocation4 + $0x80] sm:$0xff] %vm508, %v5283
  %5316 = vst.msk [vmem:[#allocation4 + $0x88] sm:$0xff] %vm508, %v5284
  %5317 = vst.msk [vmem:[#allocation4 + $0x90] sm:$0xff] %vm508, %v5285
  %5318 = vst.msk [vmem:[#allocation4 + $0x98] sm:$0xff] %vm508, %v5286
  %5319 = vst.msk [vmem:[#allocation4 + $0xa0] sm:$0xff] %vm508, %v5287
  %5320 = vst.msk [vmem:[#allocation4 + $0xa8] sm:$0xff] %vm508, %v5288
  %5321 = vst.msk [vmem:[#allocation4 + $0xb0] sm:$0xff] %vm508, %v5289
  %5322 = vst.msk [vmem:[#allocation4 + $0xb8] sm:$0xff] %vm508, %v5290
  %5323 = vst.msk [vmem:[#allocation4 + $0xc0] sm:$0xff] %vm508, %v5291
  %5324 = vst.msk [vmem:[#allocation4 + $0xc8] sm:$0xff] %vm508, %v5292
  %5325 = vst.msk [vmem:[#allocation4 + $0xd0] sm:$0xff] %vm508, %v5293
  %5326 = vst.msk [vmem:[#allocation4 + $0xd8] sm:$0xff] %vm508, %v5294
  %5327 = vst.msk [vmem:[#allocation4 + $0xe0] sm:$0xff] %vm508, %v5295
  %5328 = vst.msk [vmem:[#allocation4 + $0xe8] sm:$0xff] %vm508, %v5296
  %5329 = vst.msk [vmem:[#allocation4 + $0xf0] sm:$0xff] %vm508, %v5297
  %5330 = vst.msk [vmem:[#allocation4 + $0xf8] sm:$0xff] %vm508, %v5298
  %v5331 = vld [vmem:[#allocation2 + $0x8] sm:$0xff]
  %v5332 = vld [vmem:[#allocation2 + $0x10] sm:$0xff]
  %v5333 = vld [vmem:[#allocation2 + $0x18] sm:$0xff]
  %v5334 = vld [vmem:[#allocation2 + $0x20] sm:$0xff]
  %v5335 = vld [vmem:[#allocation2 + $0x28] sm:$0xff]
  %v5336 = vld [vmem:[#allocation2 + $0x30] sm:$0xff]
  %v5337 = vld [vmem:[#allocation2 + $0x38] sm:$0xff]
  %v5338 = vld [vmem:[#allocation2 + $0x40] sm:$0xff]
  %v5339 = vld [vmem:[#allocation2 + $0x48] sm:$0xff]
  %v5340 = vld [vmem:[#allocation2 + $0x50] sm:$0xff]
  %v5341 = vld [vmem:[#allocation2 + $0x58] sm:$0xff]
  %v5342 = vld [vmem:[#allocation2 + $0x60] sm:$0xff]
  %v5343 = vld [vmem:[#allocation2 + $0x68] sm:$0xff]
  %v5344 = vld [vmem:[#allocation2 + $0x70] sm:$0xff]
  %v5345 = vld [vmem:[#allocation2 + $0x78] sm:$0xff]
  %v5346 = vld [vmem:[#allocation2 + $0x80] sm:$0xff]
  %v5347 = vld [vmem:[#allocation2 + $0x88] sm:$0xff]
  %v5348 = vld [vmem:[#allocation2 + $0x90] sm:$0xff]
  %v5349 = vld [vmem:[#allocation2 + $0x98] sm:$0xff]
  %v5350 = vld [vmem:[#allocation2 + $0xa0] sm:$0xff]
  %v5351 = vld [vmem:[#allocation2 + $0xa8] sm:$0xff]
  %v5352 = vld [vmem:[#allocation2 + $0xb0] sm:$0xff]
  %v5353 = vld [vmem:[#allocation2 + $0xb8] sm:$0xff]
  %v5354 = vld [vmem:[#allocation2 + $0xc0] sm:$0xff]
  %v5355 = vld [vmem:[#allocation2 + $0xc8] sm:$0xff]
  %v5356 = vld [vmem:[#allocation2 + $0xd0] sm:$0xff]
  %v5357 = vld [vmem:[#allocation2 + $0xd8] sm:$0xff]
  %v5358 = vld [vmem:[#allocation2 + $0xe0] sm:$0xff]
  %v5359 = vld [vmem:[#allocation2 + $0xe8] sm:$0xff]
  %v5360 = vld [vmem:[#allocation2 + $0xf0] sm:$0xff]
  %v5361 = vld [vmem:[#allocation2 + $0xf8] sm:$0xff]
  %v5362 = vld [vmem:[#allocation2 + $0x100] sm:$0xff]
  %5395 = vrot.lane.b32.xlu0 %v5331, 8
  %v5396 = vpop.permute.xlu0 %5395
  %5397 = vrot.lane.b32.xlu0 %v5332, 8
  %v5398 = vpop.permute.xlu0 %5397
  %5399 = vrot.lane.b32.xlu0 %v5333, 8
  %v5400 = vpop.permute.xlu0 %5399
  %5401 = vrot.lane.b32.xlu0 %v5334, 8
  %v5402 = vpop.permute.xlu0 %5401
  %5403 = vrot.lane.b32.xlu0 %v5335, 8
  %v5404 = vpop.permute.xlu0 %5403
  %5405 = vrot.lane.b32.xlu0 %v5336, 8
  %v5406 = vpop.permute.xlu0 %5405
  %5407 = vrot.lane.b32.xlu0 %v5337, 8
  %v5408 = vpop.permute.xlu0 %5407
  %5409 = vrot.lane.b32.xlu0 %v5338, 8
  %v5410 = vpop.permute.xlu0 %5409
  %5411 = vrot.lane.b32.xlu0 %v5339, 8
  %v5412 = vpop.permute.xlu0 %5411
  %5413 = vrot.lane.b32.xlu0 %v5340, 8
  %v5414 = vpop.permute.xlu0 %5413
  %5415 = vrot.lane.b32.xlu0 %v5341, 8
  %v5416 = vpop.permute.xlu0 %5415
  %5417 = vrot.lane.b32.xlu0 %v5342, 8
  %v5418 = vpop.permute.xlu0 %5417
  %5419 = vrot.lane.b32.xlu0 %v5343, 8
  %v5420 = vpop.permute.xlu0 %5419
  %5421 = vrot.lane.b32.xlu0 %v5344, 8
  %v5422 = vpop.permute.xlu0 %5421
  %5423 = vrot.lane.b32.xlu0 %v5345, 8
  %v5424 = vpop.permute.xlu0 %5423
  %5425 = vrot.lane.b32.xlu0 %v5346, 8
  %v5426 = vpop.permute.xlu0 %5425
  %5427 = vrot.lane.b32.xlu0 %v5347, 8
  %v5428 = vpop.permute.xlu0 %5427
  %5429 = vrot.lane.b32.xlu0 %v5348, 8
  %v5430 = vpop.permute.xlu0 %5429
  %5431 = vrot.lane.b32.xlu0 %v5349, 8
  %v5432 = vpop.permute.xlu0 %5431
  %5433 = vrot.lane.b32.xlu0 %v5350, 8
  %v5434 = vpop.permute.xlu0 %5433
  %5435 = vrot.lane.b32.xlu0 %v5351, 8
  %v5436 = vpop.permute.xlu0 %5435
  %5437 = vrot.lane.b32.xlu0 %v5352, 8
  %v5438 = vpop.permute.xlu0 %5437
  %5439 = vrot.lane.b32.xlu0 %v5353, 8
  %v5440 = vpop.permute.xlu0 %5439
  %5441 = vrot.lane.b32.xlu0 %v5354, 8
  %v5442 = vpop.permute.xlu0 %5441
  %5443 = vrot.lane.b32.xlu0 %v5355, 8
  %v5444 = vpop.permute.xlu0 %5443
  %5445 = vrot.lane.b32.xlu0 %v5356, 8
  %v5446 = vpop.permute.xlu0 %5445
  %5447 = vrot.lane.b32.xlu0 %v5357, 8
  %v5448 = vpop.permute.xlu0 %5447
  %5449 = vrot.lane.b32.xlu0 %v5358, 8
  %v5450 = vpop.permute.xlu0 %5449
  %5451 = vrot.lane.b32.xlu0 %v5359, 8
  %v5452 = vpop.permute.xlu0 %5451
  %5453 = vrot.lane.b32.xlu0 %v5360, 8
  %v5454 = vpop.permute.xlu0 %5453
  %5455 = vrot.lane.b32.xlu0 %v5361, 8
  %v5456 = vpop.permute.xlu0 %5455
  %5457 = vrot.lane.b32.xlu0 %v5362, 8
  %v5458 = vpop.permute.xlu0 %5457
  %5491 = vst.msk [vmem:[#allocation4] sm:$0xff] %vm906, %v5396
  %5492 = vst.msk [vmem:[#allocation4 + $0x8] sm:$0xff] %vm906, %v5398
  %5493 = vst.msk [vmem:[#allocation4 + $0x10] sm:$0xff] %vm906, %v5400
  %5494 = vst.msk [vmem:[#allocation4 + $0x18] sm:$0xff] %vm906, %v5402
  %5495 = vst.msk [vmem:[#allocation4 + $0x20] sm:$0xff] %vm906, %v5404
  %5496 = vst.msk [vmem:[#allocation4 + $0x28] sm:$0xff] %vm906, %v5406
  %5497 = vst.msk [vmem:[#allocation4 + $0x30] sm:$0xff] %vm906, %v5408
  %5498 = vst.msk [vmem:[#allocation4 + $0x38] sm:$0xff] %vm906, %v5410
  %5499 = vst.msk [vmem:[#allocation4 + $0x40] sm:$0xff] %vm906, %v5412
  %5500 = vst.msk [vmem:[#allocation4 + $0x48] sm:$0xff] %vm906, %v5414
  %5501 = vst.msk [vmem:[#allocation4 + $0x50] sm:$0xff] %vm906, %v5416
  %5502 = vst.msk [vmem:[#allocation4 + $0x58] sm:$0xff] %vm906, %v5418
  %5503 = vst.msk [vmem:[#allocation4 + $0x60] sm:$0xff] %vm906, %v5420
  %5504 = vst.msk [vmem:[#allocation4 + $0x68] sm:$0xff] %vm906, %v5422
  %5505 = vst.msk [vmem:[#allocation4 + $0x70] sm:$0xff] %vm906, %v5424
  %5506 = vst.msk [vmem:[#allocation4 + $0x78] sm:$0xff] %vm906, %v5426
  %5507 = vst.msk [vmem:[#allocation4 + $0x80] sm:$0xff] %vm906, %v5428
  %5508 = vst.msk [vmem:[#allocation4 + $0x88] sm:$0xff] %vm906, %v5430
  %5509 = vst.msk [vmem:[#allocation4 + $0x90] sm:$0xff] %vm906, %v5432
  %5510 = vst.msk [vmem:[#allocation4 + $0x98] sm:$0xff] %vm906, %v5434
  %5511 = vst.msk [vmem:[#allocation4 + $0xa0] sm:$0xff] %vm906, %v5436
  %5512 = vst.msk [vmem:[#allocation4 + $0xa8] sm:$0xff] %vm906, %v5438
  %5513 = vst.msk [vmem:[#allocation4 + $0xb0] sm:$0xff] %vm906, %v5440
  %5514 = vst.msk [vmem:[#allocation4 + $0xb8] sm:$0xff] %vm906, %v5442
  %5515 = vst.msk [vmem:[#allocation4 + $0xc0] sm:$0xff] %vm906, %v5444
  %5516 = vst.msk [vmem:[#allocation4 + $0xc8] sm:$0xff] %vm906, %v5446
  %5517 = vst.msk [vmem:[#allocation4 + $0xd0] sm:$0xff] %vm906, %v5448
  %5518 = vst.msk [vmem:[#allocation4 + $0xd8] sm:$0xff] %vm906, %v5450
  %5519 = vst.msk [vmem:[#allocation4 + $0xe0] sm:$0xff] %vm906, %v5452
  %5520 = vst.msk [vmem:[#allocation4 + $0xe8] sm:$0xff] %vm906, %v5454
  %5521 = vst.msk [vmem:[#allocation4 + $0xf0] sm:$0xff] %vm906, %v5456
  %5522 = vst.msk [vmem:[#allocation4 + $0xf8] sm:$0xff] %vm906, %v5458
  %v5523 = vld [vmem:[#allocation2 + $0x9] sm:$0xff]
  %v5524 = vld [vmem:[#allocation2 + $0x11] sm:$0xff]
  %v5525 = vld [vmem:[#allocation2 + $0x19] sm:$0xff]
  %v5526 = vld [vmem:[#allocation2 + $0x21] sm:$0xff]
  %v5527 = vld [vmem:[#allocation2 + $0x29] sm:$0xff]
  %v5528 = vld [vmem:[#allocation2 + $0x31] sm:$0xff]
  %v5529 = vld [vmem:[#allocation2 + $0x39] sm:$0xff]
  %v5530 = vld [vmem:[#allocation2 + $0x41] sm:$0xff]
  %v5531 = vld [vmem:[#allocation2 + $0x49] sm:$0xff]
  %v5532 = vld [vmem:[#allocation2 + $0x51] sm:$0xff]
  %v5533 = vld [vmem:[#allocation2 + $0x59] sm:$0xff]
  %v5534 = vld [vmem:[#allocation2 + $0x61] sm:$0xff]
  %v5535 = vld [vmem:[#allocation2 + $0x69] sm:$0xff]
  %v5536 = vld [vmem:[#allocation2 + $0x71] sm:$0xff]
  %v5537 = vld [vmem:[#allocation2 + $0x79] sm:$0xff]
  %v5538 = vld [vmem:[#allocation2 + $0x81] sm:$0xff]
  %v5539 = vld [vmem:[#allocation2 + $0x89] sm:$0xff]
  %v5540 = vld [vmem:[#allocation2 + $0x91] sm:$0xff]
  %v5541 = vld [vmem:[#allocation2 + $0x99] sm:$0xff]
  %v5542 = vld [vmem:[#allocation2 + $0xa1] sm:$0xff]
  %v5543 = vld [vmem:[#allocation2 + $0xa9] sm:$0xff]
  %v5544 = vld [vmem:[#allocation2 + $0xb1] sm:$0xff]
  %v5545 = vld [vmem:[#allocation2 + $0xb9] sm:$0xff]
  %v5546 = vld [vmem:[#allocation2 + $0xc1] sm:$0xff]
  %v5547 = vld [vmem:[#allocation2 + $0xc9] sm:$0xff]
  %v5548 = vld [vmem:[#allocation2 + $0xd1] sm:$0xff]
  %v5549 = vld [vmem:[#allocation2 + $0xd9] sm:$0xff]
  %v5550 = vld [vmem:[#allocation2 + $0xe1] sm:$0xff]
  %v5551 = vld [vmem:[#allocation2 + $0xe9] sm:$0xff]
  %v5552 = vld [vmem:[#allocation2 + $0xf1] sm:$0xff]
  %v5553 = vld [vmem:[#allocation2 + $0xf9] sm:$0xff]
  %v5554 = vld [vmem:[#allocation2 + $0x101] sm:$0xff]
  %v5555 = vsel %vm1003, %v5523, 0.0
  %v5556 = vsel %vm1004, %v5524, 0.0
  %v5557 = vsel %vm1005, %v5525, 0.0
  %v5558 = vsel %vm1006, %v5526, 0.0
  %v5559 = vsel %vm1007, %v5527, 0.0
  %v5560 = vsel %vm1008, %v5528, 0.0
  %v5561 = vsel %vm1009, %v5529, 0.0
  %v5562 = vsel %vm1010, %v5530, 0.0
  %v5563 = vsel %vm1011, %v5531, 0.0
  %v5564 = vsel %vm1012, %v5532, 0.0
  %v5565 = vsel %vm1013, %v5533, 0.0
  %v5566 = vsel %vm1014, %v5534, 0.0
  %v5567 = vsel %vm1015, %v5535, 0.0
  %v5568 = vsel %vm1016, %v5536, 0.0
  %v5569 = vsel %vm1017, %v5537, 0.0
  %v5570 = vsel %vm1018, %v5538, 0.0
  %v5571 = vsel %vm1019, %v5539, 0.0
  %v5572 = vsel %vm1020, %v5540, 0.0
  %v5573 = vsel %vm1021, %v5541, 0.0
  %v5574 = vsel %vm1022, %v5542, 0.0
  %v5575 = vsel %vm1023, %v5543, 0.0
  %v5576 = vsel %vm1024, %v5544, 0.0
  %v5577 = vsel %vm1025, %v5545, 0.0
  %v5578 = vsel %vm1026, %v5546, 0.0
  %v5579 = vsel %vm1027, %v5547, 0.0
  %v5580 = vsel %vm1028, %v5548, 0.0
  %v5581 = vsel %vm1029, %v5549, 0.0
  %v5582 = vsel %vm1030, %v5550, 0.0
  %v5583 = vsel %vm1031, %v5551, 0.0
  %v5584 = vsel %vm1032, %v5552, 0.0
  %v5585 = vsel %vm1033, %v5553, 0.0
  %v5586 = vsel %vm1034, %v5554, 0.0
  %5619 = vrot.lane.b32.xlu0 %v5555, 16
  %v5620 = vpop.permute.xlu0 %5619
  %5621 = vrot.lane.b32.xlu0 %v5556, 16
  %v5622 = vpop.permute.xlu0 %5621
  %5623 = vrot.lane.b32.xlu0 %v5557, 16
  %v5624 = vpop.permute.xlu0 %5623
  %5625 = vrot.lane.b32.xlu0 %v5558, 16
  %v5626 = vpop.permute.xlu0 %5625
  %5627 = vrot.lane.b32.xlu0 %v5559, 16
  %v5628 = vpop.permute.xlu0 %5627
  %5629 = vrot.lane.b32.xlu0 %v5560, 16
  %v5630 = vpop.permute.xlu0 %5629
  %5631 = vrot.lane.b32.xlu0 %v5561, 16
  %v5632 = vpop.permute.xlu0 %5631
  %5633 = vrot.lane.b32.xlu0 %v5562, 16
  %v5634 = vpop.permute.xlu0 %5633
  %5635 = vrot.lane.b32.xlu0 %v5563, 16
  %v5636 = vpop.permute.xlu0 %5635
  %5637 = vrot.lane.b32.xlu0 %v5564, 16
  %v5638 = vpop.permute.xlu0 %5637
  %5639 = vrot.lane.b32.xlu0 %v5565, 16
  %v5640 = vpop.permute.xlu0 %5639
  %5641 = vrot.lane.b32.xlu0 %v5566, 16
  %v5642 = vpop.permute.xlu0 %5641
  %5643 = vrot.lane.b32.xlu0 %v5567, 16
  %v5644 = vpop.permute.xlu0 %5643
  %5645 = vrot.lane.b32.xlu0 %v5568, 16
  %v5646 = vpop.permute.xlu0 %5645
  %5647 = vrot.lane.b32.xlu0 %v5569, 16
  %v5648 = vpop.permute.xlu0 %5647
  %5649 = vrot.lane.b32.xlu0 %v5570, 16
  %v5650 = vpop.permute.xlu0 %5649
  %5651 = vrot.lane.b32.xlu0 %v5571, 16
  %v5652 = vpop.permute.xlu0 %5651
  %5653 = vrot.lane.b32.xlu0 %v5572, 16
  %v5654 = vpop.permute.xlu0 %5653
  %5655 = vrot.lane.b32.xlu0 %v5573, 16
  %v5656 = vpop.permute.xlu0 %5655
  %5657 = vrot.lane.b32.xlu0 %v5574, 16
  %v5658 = vpop.permute.xlu0 %5657
  %5659 = vrot.lane.b32.xlu0 %v5575, 16
  %v5660 = vpop.permute.xlu0 %5659
  %5661 = vrot.lane.b32.xlu0 %v5576, 16
  %v5662 = vpop.permute.xlu0 %5661
  %5663 = vrot.lane.b32.xlu0 %v5577, 16
  %v5664 = vpop.permute.xlu0 %5663
  %5665 = vrot.lane.b32.xlu0 %v5578, 16
  %v5666 = vpop.permute.xlu0 %5665
  %5667 = vrot.lane.b32.xlu0 %v5579, 16
  %v5668 = vpop.permute.xlu0 %5667
  %5669 = vrot.lane.b32.xlu0 %v5580, 16
  %v5670 = vpop.permute.xlu0 %5669
  %5671 = vrot.lane.b32.xlu0 %v5581, 16
  %v5672 = vpop.permute.xlu0 %5671
  %5673 = vrot.lane.b32.xlu0 %v5582, 16
  %v5674 = vpop.permute.xlu0 %5673
  %5675 = vrot.lane.b32.xlu0 %v5583, 16
  %v5676 = vpop.permute.xlu0 %5675
  %5677 = vrot.lane.b32.xlu0 %v5584, 16
  %v5678 = vpop.permute.xlu0 %5677
  %5679 = vrot.lane.b32.xlu0 %v5585, 16
  %v5680 = vpop.permute.xlu0 %5679
  %5681 = vrot.lane.b32.xlu0 %v5586, 16
  %v5682 = vpop.permute.xlu0 %5681
  %5715 = vst.msk [vmem:[#allocation4] sm:$0xff] %vm1195, %v5620
  %5716 = vst.msk [vmem:[#allocation4 + $0x8] sm:$0xff] %vm1195, %v5622
  %5717 = vst.msk [vmem:[#allocation4 + $0x10] sm:$0xff] %vm1195, %v5624
  %5718 = vst.msk [vmem:[#allocation4 + $0x18] sm:$0xff] %vm1195, %v5626
  %5719 = vst.msk [vmem:[#allocation4 + $0x20] sm:$0xff] %vm1195, %v5628
  %5720 = vst.msk [vmem:[#allocation4 + $0x28] sm:$0xff] %vm1195, %v5630
  %5721 = vst.msk [vmem:[#allocation4 + $0x30] sm:$0xff] %vm1195, %v5632
  %5722 = vst.msk [vmem:[#allocation4 + $0x38] sm:$0xff] %vm1195, %v5634
  %5723 = vst.msk [vmem:[#allocation4 + $0x40] sm:$0xff] %vm1195, %v5636
  %5724 = vst.msk [vmem:[#allocation4 + $0x48] sm:$0xff] %vm1195, %v5638
  %5725 = vst.msk [vmem:[#allocation4 + $0x50] sm:$0xff] %vm1195, %v5640
  %5726 = vst.msk [vmem:[#allocation4 + $0x58] sm:$0xff] %vm1195, %v5642
  %5727 = vst.msk [vmem:[#allocation4 + $0x60] sm:$0xff] %vm1195, %v5644
  %5728 = vst.msk [vmem:[#allocation4 + $0x68] sm:$0xff] %vm1195, %v5646
  %5729 = vst.msk [vmem:[#allocation4 + $0x70] sm:$0xff] %vm1195, %v5648
  %5730 = vst.msk [vmem:[#allocation4 + $0x78] sm:$0xff] %vm1195, %v5650
  %5731 = vst.msk [vmem:[#allocation4 + $0x80] sm:$0xff] %vm1195, %v5652
  %5732 = vst.msk [vmem:[#allocation4 + $0x88] sm:$0xff] %vm1195, %v5654
  %5733 = vst.msk [vmem:[#allocation4 + $0x90] sm:$0xff] %vm1195, %v5656
  %5734 = vst.msk [vmem:[#allocation4 + $0x98] sm:$0xff] %vm1195, %v5658
  %5735 = vst.msk [vmem:[#allocation4 + $0xa0] sm:$0xff] %vm1195, %v5660
  %5736 = vst.msk [vmem:[#allocation4 + $0xa8] sm:$0xff] %vm1195, %v5662
  %5737 = vst.msk [vmem:[#allocation4 + $0xb0] sm:$0xff] %vm1195, %v5664
  %5738 = vst.msk [vmem:[#allocation4 + $0xb8] sm:$0xff] %vm1195, %v5666
  %5739 = vst.msk [vmem:[#allocation4 + $0xc0] sm:$0xff] %vm1195, %v5668
  %5740 = vst.msk [vmem:[#allocation4 + $0xc8] sm:$0xff] %vm1195, %v5670
  %5741 = vst.msk [vmem:[#allocation4 + $0xd0] sm:$0xff] %vm1195, %v5672
  %5742 = vst.msk [vmem:[#allocation4 + $0xd8] sm:$0xff] %vm1195, %v5674
  %5743 = vst.msk [vmem:[#allocation4 + $0xe0] sm:$0xff] %vm1195, %v5676
  %5744 = vst.msk [vmem:[#allocation4 + $0xe8] sm:$0xff] %vm1195, %v5678
  %5745 = vst.msk [vmem:[#allocation4 + $0xf0] sm:$0xff] %vm1195, %v5680
  %5746 = vst.msk [vmem:[#allocation4 + $0xf8] sm:$0xff] %vm1195, %v5682
  %v5747 = vld [vmem:[#allocation2 + $0x17] sm:$0xff]
  %v5748 = vld [vmem:[#allocation2 + $0x1f] sm:$0xff]
  %v5749 = vld [vmem:[#allocation2 + $0x27] sm:$0xff]
  %v5750 = vld [vmem:[#allocation2 + $0x2f] sm:$0xff]
  %v5751 = vld [vmem:[#allocation2 + $0x37] sm:$0xff]
  %v5752 = vld [vmem:[#allocation2 + $0x3f] sm:$0xff]
  %v5753 = vld [vmem:[#allocation2 + $0x47] sm:$0xff]
  %v5754 = vld [vmem:[#allocation2 + $0x4f] sm:$0xff]
  %v5755 = vld [vmem:[#allocation2 + $0x57] sm:$0xff]
  %v5756 = vld [vmem:[#allocation2 + $0x5f] sm:$0xff]
  %v5757 = vld [vmem:[#allocation2 + $0x67] sm:$0xff]
  %v5758 = vld [vmem:[#allocation2 + $0x6f] sm:$0xff]
  %v5759 = vld [vmem:[#allocation2 + $0x77] sm:$0xff]
  %v5760 = vld [vmem:[#allocation2 + $0x7f] sm:$0xff]
  %v5761 = vld [vmem:[#allocation2 + $0x87] sm:$0xff]
  %v5762 = vld [vmem:[#allocation2 + $0x8f] sm:$0xff]
  %v5763 = vld [vmem:[#allocation2 + $0x97] sm:$0xff]
  %v5764 = vld [vmem:[#allocation2 + $0x9f] sm:$0xff]
  %v5765 = vld [vmem:[#allocation2 + $0xa7] sm:$0xff]
  %v5766 = vld [vmem:[#allocation2 + $0xaf] sm:$0xff]
  %v5767 = vld [vmem:[#allocation2 + $0xb7] sm:$0xff]
  %v5768 = vld [vmem:[#allocation2 + $0xbf] sm:$0xff]
  %v5769 = vld [vmem:[#allocation2 + $0xc7] sm:$0xff]
  %v5770 = vld [vmem:[#allocation2 + $0xcf] sm:$0xff]
  %v5771 = vld [vmem:[#allocation2 + $0xd7] sm:$0xff]
  %v5772 = vld [vmem:[#allocation2 + $0xdf] sm:$0xff]
  %v5773 = vld [vmem:[#allocation2 + $0xe7] sm:$0xff]
  %v5774 = vld [vmem:[#allocation2 + $0xef] sm:$0xff]
  %v5775 = vld [vmem:[#allocation2 + $0xf7] sm:$0xff]
  %v5776 = vld [vmem:[#allocation2 + $0xff] sm:$0xff]
  %v5777 = vld [vmem:[#allocation2 + $0x107] sm:$0xff]
  %v5778 = vld [vmem:[#allocation2 + $0x10f] sm:$0xff]
  %v5779 = vsel %vm650, %v5747, 0.0
  %v5780 = vsel %vm651, %v5748, 0.0
  %v5781 = vsel %vm652, %v5749, 0.0
  %v5782 = vsel %vm653, %v5750, 0.0
  %v5783 = vsel %vm654, %v5751, 0.0
  %v5784 = vsel %vm655, %v5752, 0.0
  %v5785 = vsel %vm656, %v5753, 0.0
  %v5786 = vsel %vm657, %v5754, 0.0
  %v5787 = vsel %vm658, %v5755, 0.0
  %v5788 = vsel %vm659, %v5756, 0.0
  %v5789 = vsel %vm660, %v5757, 0.0
  %v5790 = vsel %vm661, %v5758, 0.0
  %v5791 = vsel %vm662, %v5759, 0.0
  %v5792 = vsel %vm663, %v5760, 0.0
  %v5793 = vsel %vm664, %v5761, 0.0
  %v5794 = vsel %vm665, %v5762, 0.0
  %v5795 = vsel %vm666, %v5763, 0.0
  %v5796 = vsel %vm667, %v5764, 0.0
  %v5797 = vsel %vm668, %v5765, 0.0
  %v5798 = vsel %vm669, %v5766, 0.0
  %v5799 = vsel %vm670, %v5767, 0.0
  %v5800 = vsel %vm671, %v5768, 0.0
  %v5801 = vsel %vm672, %v5769, 0.0
  %v5802 = vsel %vm673, %v5770, 0.0
  %v5803 = vsel %vm674, %v5771, 0.0
  %v5804 = vsel %vm675, %v5772, 0.0
  %v5805 = vsel %vm676, %v5773, 0.0
  %v5806 = vsel %vm677, %v5774, 0.0
  %v5807 = vsel %vm678, %v5775, 0.0
  %v5808 = vsel %vm679, %v5776, 0.0
  %v5809 = vsel %vm680, %v5777, 0.0
  %v5810 = vsel %vm681, %v5778, 0.0
  %5843 = vrot.lane.b32.xlu0 %v5779, 24
  %v5844 = vpop.permute.xlu0 %5843
  %5845 = vrot.lane.b32.xlu0 %v5780, 24
  %v5846 = vpop.permute.xlu0 %5845
  %5847 = vrot.lane.b32.xlu0 %v5781, 24
  %v5848 = vpop.permute.xlu0 %5847
  %5849 = vrot.lane.b32.xlu0 %v5782, 24
  %v5850 = vpop.permute.xlu0 %5849
  %5851 = vrot.lane.b32.xlu0 %v5783, 24
  %v5852 = vpop.permute.xlu0 %5851
  %5853 = vrot.lane.b32.xlu0 %v5784, 24
  %v5854 = vpop.permute.xlu0 %5853
  %5855 = vrot.lane.b32.xlu0 %v5785, 24
  %v5856 = vpop.permute.xlu0 %5855
  %5857 = vrot.lane.b32.xlu0 %v5786, 24
  %v5858 = vpop.permute.xlu0 %5857
  %5859 = vrot.lane.b32.xlu0 %v5787, 24
  %v5860 = vpop.permute.xlu0 %5859
  %5861 = vrot.lane.b32.xlu0 %v5788, 24
  %v5862 = vpop.permute.xlu0 %5861
  %5863 = vrot.lane.b32.xlu0 %v5789, 24
  %v5864 = vpop.permute.xlu0 %5863
  %5865 = vrot.lane.b32.xlu0 %v5790, 24
  %v5866 = vpop.permute.xlu0 %5865
  %5867 = vrot.lane.b32.xlu0 %v5791, 24
  %v5868 = vpop.permute.xlu0 %5867
  %5869 = vrot.lane.b32.xlu0 %v5792, 24
  %v5870 = vpop.permute.xlu0 %5869
  %5871 = vrot.lane.b32.xlu0 %v5793, 24
  %v5872 = vpop.permute.xlu0 %5871
  %5873 = vrot.lane.b32.xlu0 %v5794, 24
  %v5874 = vpop.permute.xlu0 %5873
  %5875 = vrot.lane.b32.xlu0 %v5795, 24
  %v5876 = vpop.permute.xlu0 %5875
  %5877 = vrot.lane.b32.xlu0 %v5796, 24
  %v5878 = vpop.permute.xlu0 %5877
  %5879 = vrot.lane.b32.xlu0 %v5797, 24
  %v5880 = vpop.permute.xlu0 %5879
  %5881 = vrot.lane.b32.xlu0 %v5798, 24
  %v5882 = vpop.permute.xlu0 %5881
  %5883 = vrot.lane.b32.xlu0 %v5799, 24
  %v5884 = vpop.permute.xlu0 %5883
  %5885 = vrot.lane.b32.xlu0 %v5800, 24
  %v5886 = vpop.permute.xlu0 %5885
  %5887 = vrot.lane.b32.xlu0 %v5801, 24
  %v5888 = vpop.permute.xlu0 %5887
  %5889 = vrot.lane.b32.xlu0 %v5802, 24
  %v5890 = vpop.permute.xlu0 %5889
  %5891 = vrot.lane.b32.xlu0 %v5803, 24
  %v5892 = vpop.permute.xlu0 %5891
  %5893 = vrot.lane.b32.xlu0 %v5804, 24
  %v5894 = vpop.permute.xlu0 %5893
  %5895 = vrot.lane.b32.xlu0 %v5805, 24
  %v5896 = vpop.permute.xlu0 %5895
  %5897 = vrot.lane.b32.xlu0 %v5806, 24
  %v5898 = vpop.permute.xlu0 %5897
  %5899 = vrot.lane.b32.xlu0 %v5807, 24
  %v5900 = vpop.permute.xlu0 %5899
  %5901 = vrot.lane.b32.xlu0 %v5808, 24
  %v5902 = vpop.permute.xlu0 %5901
  %5903 = vrot.lane.b32.xlu0 %v5809, 24
  %v5904 = vpop.permute.xlu0 %5903
  %5905 = vrot.lane.b32.xlu0 %v5810, 24
  %v5906 = vpop.permute.xlu0 %5905
  %5939 = vst.msk [vmem:[#allocation4] sm:$0xff] %vm1420, %v5844
  %5940 = vst.msk [vmem:[#allocation4 + $0x8] sm:$0xff] %vm1420, %v5846
  %5941 = vst.msk [vmem:[#allocation4 + $0x10] sm:$0xff] %vm1420, %v5848
  %5942 = vst.msk [vmem:[#allocation4 + $0x18] sm:$0xff] %vm1420, %v5850
  %5943 = vst.msk [vmem:[#allocation4 + $0x20] sm:$0xff] %vm1420, %v5852
  %5944 = vst.msk [vmem:[#allocation4 + $0x28] sm:$0xff] %vm1420, %v5854
  %5945 = vst.msk [vmem:[#allocation4 + $0x30] sm:$0xff] %vm1420, %v5856
  %5946 = vst.msk [vmem:[#allocation4 + $0x38] sm:$0xff] %vm1420, %v5858
  %5947 = vst.msk [vmem:[#allocation4 + $0x40] sm:$0xff] %vm1420, %v5860
  %5948 = vst.msk [vmem:[#allocation4 + $0x48] sm:$0xff] %vm1420, %v5862
  %5949 = vst.msk [vmem:[#allocation4 + $0x50] sm:$0xff] %vm1420, %v5864
  %5950 = vst.msk [vmem:[#allocation4 + $0x58] sm:$0xff] %vm1420, %v5866
  %5951 = vst.msk [vmem:[#allocation4 + $0x60] sm:$0xff] %vm1420, %v5868
  %5952 = vst.msk [vmem:[#allocation4 + $0x68] sm:$0xff] %vm1420, %v5870
  %5953 = vst.msk [vmem:[#allocation4 + $0x70] sm:$0xff] %vm1420, %v5872
  %5954 = vst.msk [vmem:[#allocation4 + $0x78] sm:$0xff] %vm1420, %v5874
  %5955 = vst.msk [vmem:[#allocation4 + $0x80] sm:$0xff] %vm1420, %v5876
  %5956 = vst.msk [vmem:[#allocation4 + $0x88] sm:$0xff] %vm1420, %v5878
  %5957 = vst.msk [vmem:[#allocation4 + $0x90] sm:$0xff] %vm1420, %v5880
  %5958 = vst.msk [vmem:[#allocation4 + $0x98] sm:$0xff] %vm1420, %v5882
  %5959 = vst.msk [vmem:[#allocation4 + $0xa0] sm:$0xff] %vm1420, %v5884
  %5960 = vst.msk [vmem:[#allocation4 + $0xa8] sm:$0xff] %vm1420, %v5886
  %5961 = vst.msk [vmem:[#allocation4 + $0xb0] sm:$0xff] %vm1420, %v5888
  %5962 = vst.msk [vmem:[#allocation4 + $0xb8] sm:$0xff] %vm1420, %v5890
  %5963 = vst.msk [vmem:[#allocation4 + $0xc0] sm:$0xff] %vm1420, %v5892
  %5964 = vst.msk [vmem:[#allocation4 + $0xc8] sm:$0xff] %vm1420, %v5894
  %5965 = vst.msk [vmem:[#allocation4 + $0xd0] sm:$0xff] %vm1420, %v5896
  %5966 = vst.msk [vmem:[#allocation4 + $0xd8] sm:$0xff] %vm1420, %v5898
  %5967 = vst.msk [vmem:[#allocation4 + $0xe0] sm:$0xff] %vm1420, %v5900
  %5968 = vst.msk [vmem:[#allocation4 + $0xe8] sm:$0xff] %vm1420, %v5902
  %5969 = vst.msk [vmem:[#allocation4 + $0xf0] sm:$0xff] %vm1420, %v5904
  %5970 = vst.msk [vmem:[#allocation4 + $0xf8] sm:$0xff] %vm1420, %v5906
  %v5971 = vld [vmem:[#allocation2 + $0x18] sm:$0xff]
  %v5972 = vld [vmem:[#allocation2 + $0x20] sm:$0xff]
  %v5973 = vld [vmem:[#allocation2 + $0x28] sm:$0xff]
  %v5974 = vld [vmem:[#allocation2 + $0x30] sm:$0xff]
  %v5975 = vld [vmem:[#allocation2 + $0x38] sm:$0xff]
  %v5976 = vld [vmem:[#allocation2 + $0x40] sm:$0xff]
  %v5977 = vld [vmem:[#allocation2 + $0x48] sm:$0xff]
  %v5978 = vld [vmem:[#allocation2 + $0x50] sm:$0xff]
  %v5979 = vld [vmem:[#allocation2 + $0x58] sm:$0xff]
  %v5980 = vld [vmem:[#allocation2 + $0x60] sm:$0xff]
  %v5981 = vld [vmem:[#allocation2 + $0x68] sm:$0xff]
  %v5982 = vld [vmem:[#allocation2 + $0x70] sm:$0xff]
  %v5983 = vld [vmem:[#allocation2 + $0x78] sm:$0xff]
  %v5984 = vld [vmem:[#allocation2 + $0x80] sm:$0xff]
  %v5985 = vld [vmem:[#allocation2 + $0x88] sm:$0xff]
  %v5986 = vld [vmem:[#allocation2 + $0x90] sm:$0xff]
  %v5987 = vld [vmem:[#allocation2 + $0x98] sm:$0xff]
  %v5988 = vld [vmem:[#allocation2 + $0xa0] sm:$0xff]
  %v5989 = vld [vmem:[#allocation2 + $0xa8] sm:$0xff]
  %v5990 = vld [vmem:[#allocation2 + $0xb0] sm:$0xff]
  %v5991 = vld [vmem:[#allocation2 + $0xb8] sm:$0xff]
  %v5992 = vld [vmem:[#allocation2 + $0xc0] sm:$0xff]
  %v5993 = vld [vmem:[#allocation2 + $0xc8] sm:$0xff]
  %v5994 = vld [vmem:[#allocation2 + $0xd0] sm:$0xff]
  %v5995 = vld [vmem:[#allocation2 + $0xd8] sm:$0xff]
  %v5996 = vld [vmem:[#allocation2 + $0xe0] sm:$0xff]
  %v5997 = vld [vmem:[#allocation2 + $0xe8] sm:$0xff]
  %v5998 = vld [vmem:[#allocation2 + $0xf0] sm:$0xff]
  %v5999 = vld [vmem:[#allocation2 + $0xf8] sm:$0xff]
  %v6000 = vld [vmem:[#allocation2 + $0x100] sm:$0xff]
  %v6001 = vld [vmem:[#allocation2 + $0x108] sm:$0xff]
  %v6002 = vld [vmem:[#allocation2 + $0x110] sm:$0xff]
  %6035 = vrot.lane.b32.xlu0 %v5971, 32
  %v6036 = vpop.permute.xlu0 %6035
  %6037 = vrot.lane.b32.xlu0 %v5972, 32
  %v6038 = vpop.permute.xlu0 %6037
  %6039 = vrot.lane.b32.xlu0 %v5973, 32
  %v6040 = vpop.permute.xlu0 %6039
  %6041 = vrot.lane.b32.xlu0 %v5974, 32
  %v6042 = vpop.permute.xlu0 %6041
  %6043 = vrot.lane.b32.xlu0 %v5975, 32
  %v6044 = vpop.permute.xlu0 %6043
  %6045 = vrot.lane.b32.xlu0 %v5976, 32
  %v6046 = vpop.permute.xlu0 %6045
  %6047 = vrot.lane.b32.xlu0 %v5977, 32
  %v6048 = vpop.permute.xlu0 %6047
  %6049 = vrot.lane.b32.xlu0 %v5978, 32
  %v6050 = vpop.permute.xlu0 %6049
  %6051 = vrot.lane.b32.xlu0 %v5979, 32
  %v6052 = vpop.permute.xlu0 %6051
  %6053 = vrot.lane.b32.xlu0 %v5980, 32
  %v6054 = vpop.permute.xlu0 %6053
  %6055 = vrot.lane.b32.xlu0 %v5981, 32
  %v6056 = vpop.permute.xlu0 %6055
  %6057 = vrot.lane.b32.xlu0 %v5982, 32
  %v6058 = vpop.permute.xlu0 %6057
  %6059 = vrot.lane.b32.xlu0 %v5983, 32
  %v6060 = vpop.permute.xlu0 %6059
  %6061 = vrot.lane.b32.xlu0 %v5984, 32
  %v6062 = vpop.permute.xlu0 %6061
  %6063 = vrot.lane.b32.xlu0 %v5985, 32
  %v6064 = vpop.permute.xlu0 %6063
  %6065 = vrot.lane.b32.xlu0 %v5986, 32
  %v6066 = vpop.permute.xlu0 %6065
  %6067 = vrot.lane.b32.xlu0 %v5987, 32
  %v6068 = vpop.permute.xlu0 %6067
  %6069 = vrot.lane.b32.xlu0 %v5988, 32
  %v6070 = vpop.permute.xlu0 %6069
  %6071 = vrot.lane.b32.xlu0 %v5989, 32
  %v6072 = vpop.permute.xlu0 %6071
  %6073 = vrot.lane.b32.xlu0 %v5990, 32
  %v6074 = vpop.permute.xlu0 %6073
  %6075 = vrot.lane.b32.xlu0 %v5991, 32
  %v6076 = vpop.permute.xlu0 %6075
  %6077 = vrot.lane.b32.xlu0 %v5992, 32
  %v6078 = vpop.permute.xlu0 %6077
  %6079 = vrot.lane.b32.xlu0 %v5993, 32
  %v6080 = vpop.permute.xlu0 %6079
  %6081 = vrot.lane.b32.xlu0 %v5994, 32
  %v6082 = vpop.permute.xlu0 %6081
  %6083 = vrot.lane.b32.xlu0 %v5995, 32
  %v6084 = vpop.permute.xlu0 %6083
  %6085 = vrot.lane.b32.xlu0 %v5996, 32
  %v6086 = vpop.permute.xlu0 %6085
  %6087 = vrot.lane.b32.xlu0 %v5997, 32
  %v6088 = vpop.permute.xlu0 %6087
  %6089 = vrot.lane.b32.xlu0 %v5998, 32
  %v6090 = vpop.permute.xlu0 %6089
  %6091 = vrot.lane.b32.xlu0 %v5999, 32
  %v6092 = vpop.permute.xlu0 %6091
  %6093 = vrot.lane.b32.xlu0 %v6000, 32
  %v6094 = vpop.permute.xlu0 %6093
  %6095 = vrot.lane.b32.xlu0 %v6001, 32
  %v6096 = vpop.permute.xlu0 %6095
  %6097 = vrot.lane.b32.xlu0 %v6002, 32
  %v6098 = vpop.permute.xlu0 %6097
  %6131 = vst.msk [vmem:[#allocation4] sm:$0xff] %vm1613, %v6036
  %6132 = vst.msk [vmem:[#allocation4 + $0x8] sm:$0xff] %vm1613, %v6038
  %6133 = vst.msk [vmem:[#allocation4 + $0x10] sm:$0xff] %vm1613, %v6040
  %6134 = vst.msk [vmem:[#allocation4 + $0x18] sm:$0xff] %vm1613, %v6042
  %6135 = vst.msk [vmem:[#allocation4 + $0x20] sm:$0xff] %vm1613, %v6044
  %6136 = vst.msk [vmem:[#allocation4 + $0x28] sm:$0xff] %vm1613, %v6046
  %6137 = vst.msk [vmem:[#allocation4 + $0x30] sm:$0xff] %vm1613, %v6048
  %6138 = vst.msk [vmem:[#allocation4 + $0x38] sm:$0xff] %vm1613, %v6050
  %6139 = vst.msk [vmem:[#allocation4 + $0x40] sm:$0xff] %vm1613, %v6052
  %6140 = vst.msk [vmem:[#allocation4 + $0x48] sm:$0xff] %vm1613, %v6054
  %6141 = vst.msk [vmem:[#allocation4 + $0x50] sm:$0xff] %vm1613, %v6056
  %6142 = vst.msk [vmem:[#allocation4 + $0x58] sm:$0xff] %vm1613, %v6058
  %6143 = vst.msk [vmem:[#allocation4 + $0x60] sm:$0xff] %vm1613, %v6060
  %6144 = vst.msk [vmem:[#allocation4 + $0x68] sm:$0xff] %vm1613, %v6062
  %6145 = vst.msk [vmem:[#allocation4 + $0x70] sm:$0xff] %vm1613, %v6064
  %6146 = vst.msk [vmem:[#allocation4 + $0x78] sm:$0xff] %vm1613, %v6066
  %6147 = vst.msk [vmem:[#allocation4 + $0x80] sm:$0xff] %vm1613, %v6068
  %6148 = vst.msk [vmem:[#allocation4 + $0x88] sm:$0xff] %vm1613, %v6070
  %6149 = vst.msk [vmem:[#allocation4 + $0x90] sm:$0xff] %vm1613, %v6072
  %6150 = vst.msk [vmem:[#allocation4 + $0x98] sm:$0xff] %vm1613, %v6074
  %6151 = vst.msk [vmem:[#allocation4 + $0xa0] sm:$0xff] %vm1613, %v6076
  %6152 = vst.msk [vmem:[#allocation4 + $0xa8] sm:$0xff] %vm1613, %v6078
  %6153 = vst.msk [vmem:[#allocation4 + $0xb0] sm:$0xff] %vm1613, %v6080
  %6154 = vst.msk [vmem:[#allocation4 + $0xb8] sm:$0xff] %vm1613, %v6082
  %6155 = vst.msk [vmem:[#allocation4 + $0xc0] sm:$0xff] %vm1613, %v6084
  %6156 = vst.msk [vmem:[#allocation4 + $0xc8] sm:$0xff] %vm1613, %v6086
  %6157 = vst.msk [vmem:[#allocation4 + $0xd0] sm:$0xff] %vm1613, %v6088
  %6158 = vst.msk [vmem:[#allocation4 + $0xd8] sm:$0xff] %vm1613, %v6090
  %6159 = vst.msk [vmem:[#allocation4 + $0xe0] sm:$0xff] %vm1613, %v6092
  %6160 = vst.msk [vmem:[#allocation4 + $0xe8] sm:$0xff] %vm1613, %v6094
  %6161 = vst.msk [vmem:[#allocation4 + $0xf0] sm:$0xff] %vm1613, %v6096
  %6162 = vst.msk [vmem:[#allocation4 + $0xf8] sm:$0xff] %vm1613, %v6098
  %v6163 = vld [vmem:[#allocation2 + $0x19] sm:$0xff]
  %v6164 = vld [vmem:[#allocation2 + $0x21] sm:$0xff]
  %v6165 = vld [vmem:[#allocation2 + $0x29] sm:$0xff]
  %v6166 = vld [vmem:[#allocation2 + $0x31] sm:$0xff]
  %v6167 = vld [vmem:[#allocation2 + $0x39] sm:$0xff]
  %v6168 = vld [vmem:[#allocation2 + $0x41] sm:$0xff]
  %v6169 = vld [vmem:[#allocation2 + $0x49] sm:$0xff]
  %v6170 = vld [vmem:[#allocation2 + $0x51] sm:$0xff]
  %v6171 = vld [vmem:[#allocation2 + $0x59] sm:$0xff]
  %v6172 = vld [vmem:[#allocation2 + $0x61] sm:$0xff]
  %v6173 = vld [vmem:[#allocation2 + $0x69] sm:$0xff]
  %v6174 = vld [vmem:[#allocation2 + $0x71] sm:$0xff]
  %v6175 = vld [vmem:[#allocation2 + $0x79] sm:$0xff]
  %v6176 = vld [vmem:[#allocation2 + $0x81] sm:$0xff]
  %v6177 = vld [vmem:[#allocation2 + $0x89] sm:$0xff]
  %v6178 = vld [vmem:[#allocation2 + $0x91] sm:$0xff]
  %v6179 = vld [vmem:[#allocation2 + $0x99] sm:$0xff]
  %v6180 = vld [vmem:[#allocation2 + $0xa1] sm:$0xff]
  %v6181 = vld [vmem:[#allocation2 + $0xa9] sm:$0xff]
  %v6182 = vld [vmem:[#allocation2 + $0xb1] sm:$0xff]
  %v6183 = vld [vmem:[#allocation2 + $0xb9] sm:$0xff]
  %v6184 = vld [vmem:[#allocation2 + $0xc1] sm:$0xff]
  %v6185 = vld [vmem:[#allocation2 + $0xc9] sm:$0xff]
  %v6186 = vld [vmem:[#allocation2 + $0xd1] sm:$0xff]
  %v6187 = vld [vmem:[#allocation2 + $0xd9] sm:$0xff]
  %v6188 = vld [vmem:[#allocation2 + $0xe1] sm:$0xff]
  %v6189 = vld [vmem:[#allocation2 + $0xe9] sm:$0xff]
  %v6190 = vld [vmem:[#allocation2 + $0xf1] sm:$0xff]
  %v6191 = vld [vmem:[#allocation2 + $0xf9] sm:$0xff]
  %v6192 = vld [vmem:[#allocation2 + $0x101] sm:$0xff]
  %v6193 = vld [vmem:[#allocation2 + $0x109] sm:$0xff]
  %v6194 = vld [vmem:[#allocation2 + $0x111] sm:$0xff]
  %v6195 = vsel %vm1003, %v6163, 0.0
  %v6196 = vsel %vm1004, %v6164, 0.0
  %v6197 = vsel %vm1005, %v6165, 0.0
  %v6198 = vsel %vm1006, %v6166, 0.0
  %v6199 = vsel %vm1007, %v6167, 0.0
  %v6200 = vsel %vm1008, %v6168, 0.0
  %v6201 = vsel %vm1009, %v6169, 0.0
  %v6202 = vsel %vm1010, %v6170, 0.0
  %v6203 = vsel %vm1011, %v6171, 0.0
  %v6204 = vsel %vm1012, %v6172, 0.0
  %v6205 = vsel %vm1013, %v6173, 0.0
  %v6206 = vsel %vm1014, %v6174, 0.0
  %v6207 = vsel %vm1015, %v6175, 0.0
  %v6208 = vsel %vm1016, %v6176, 0.0
  %v6209 = vsel %vm1017, %v6177, 0.0
  %v6210 = vsel %vm1018, %v6178, 0.0
  %v6211 = vsel %vm1019, %v6179, 0.0
  %v6212 = vsel %vm1020, %v6180, 0.0
  %v6213 = vsel %vm1021, %v6181, 0.0
  %v6214 = vsel %vm1022, %v6182, 0.0
  %v6215 = vsel %vm1023, %v6183, 0.0
  %v6216 = vsel %vm1024, %v6184, 0.0
  %v6217 = vsel %vm1025, %v6185, 0.0
  %v6218 = vsel %vm1026, %v6186, 0.0
  %v6219 = vsel %vm1027, %v6187, 0.0
  %v6220 = vsel %vm1028, %v6188, 0.0
  %v6221 = vsel %vm1029, %v6189, 0.0
  %v6222 = vsel %vm1030, %v6190, 0.0
  %v6223 = vsel %vm1031, %v6191, 0.0
  %v6224 = vsel %vm1032, %v6192, 0.0
  %v6225 = vsel %vm1033, %v6193, 0.0
  %v6226 = vsel %vm1034, %v6194, 0.0
  %6259 = vrot.lane.b32.xlu0 %v6195, 40
  %v6260 = vpop.permute.xlu0 %6259
  %6261 = vrot.lane.b32.xlu0 %v6196, 40
  %v6262 = vpop.permute.xlu0 %6261
  %6263 = vrot.lane.b32.xlu0 %v6197, 40
  %v6264 = vpop.permute.xlu0 %6263
  %6265 = vrot.lane.b32.xlu0 %v6198, 40
  %v6266 = vpop.permute.xlu0 %6265
  %6267 = vrot.lane.b32.xlu0 %v6199, 40
  %v6268 = vpop.permute.xlu0 %6267
  %6269 = vrot.lane.b32.xlu0 %v6200, 40
  %v6270 = vpop.permute.xlu0 %6269
  %6271 = vrot.lane.b32.xlu0 %v6201, 40
  %v6272 = vpop.permute.xlu0 %6271
  %6273 = vrot.lane.b32.xlu0 %v6202, 40
  %v6274 = vpop.permute.xlu0 %6273
  %6275 = vrot.lane.b32.xlu0 %v6203, 40
  %v6276 = vpop.permute.xlu0 %6275
  %6277 = vrot.lane.b32.xlu0 %v6204, 40
  %v6278 = vpop.permute.xlu0 %6277
  %6279 = vrot.lane.b32.xlu0 %v6205, 40
  %v6280 = vpop.permute.xlu0 %6279
  %6281 = vrot.lane.b32.xlu0 %v6206, 40
  %v6282 = vpop.permute.xlu0 %6281
  %6283 = vrot.lane.b32.xlu0 %v6207, 40
  %v6284 = vpop.permute.xlu0 %6283
  %6285 = vrot.lane.b32.xlu0 %v6208, 40
  %v6286 = vpop.permute.xlu0 %6285
  %6287 = vrot.lane.b32.xlu0 %v6209, 40
  %v6288 = vpop.permute.xlu0 %6287
  %6289 = vrot.lane.b32.xlu0 %v6210, 40
  %v6290 = vpop.permute.xlu0 %6289
  %6291 = vrot.lane.b32.xlu0 %v6211, 40
  %v6292 = vpop.permute.xlu0 %6291
  %6293 = vrot.lane.b32.xlu0 %v6212, 40
  %v6294 = vpop.permute.xlu0 %6293
  %6295 = vrot.lane.b32.xlu0 %v6213, 40
  %v6296 = vpop.permute.xlu0 %6295
  %6297 = vrot.lane.b32.xlu0 %v6214, 40
  %v6298 = vpop.permute.xlu0 %6297
  %6299 = vrot.lane.b32.xlu0 %v6215, 40
  %v6300 = vpop.permute.xlu0 %6299
  %6301 = vrot.lane.b32.xlu0 %v6216, 40
  %v6302 = vpop.permute.xlu0 %6301
  %6303 = vrot.lane.b32.xlu0 %v6217, 40
  %v6304 = vpop.permute.xlu0 %6303
  %6305 = vrot.lane.b32.xlu0 %v6218, 40
  %v6306 = vpop.permute.xlu0 %6305
  %6307 = vrot.lane.b32.xlu0 %v6219, 40
  %v6308 = vpop.permute.xlu0 %6307
  %6309 = vrot.lane.b32.xlu0 %v6220, 40
  %v6310 = vpop.permute.xlu0 %6309
  %6311 = vrot.lane.b32.xlu0 %v6221, 40
  %v6312 = vpop.permute.xlu0 %6311
  %6313 = vrot.lane.b32.xlu0 %v6222, 40
  %v6314 = vpop.permute.xlu0 %6313
  %6315 = vrot.lane.b32.xlu0 %v6223, 40
  %v6316 = vpop.permute.xlu0 %6315
  %6317 = vrot.lane.b32.xlu0 %v6224, 40
  %v6318 = vpop.permute.xlu0 %6317
  %6319 = vrot.lane.b32.xlu0 %v6225, 40
  %v6320 = vpop.permute.xlu0 %6319
  %6321 = vrot.lane.b32.xlu0 %v6226, 40
  %v6322 = vpop.permute.xlu0 %6321
  %6355 = vst.msk [vmem:[#allocation4] sm:$0xff] %vm1838, %v6260
  %6356 = vst.msk [vmem:[#allocation4 + $0x8] sm:$0xff] %vm1838, %v6262
  %6357 = vst.msk [vmem:[#allocation4 + $0x10] sm:$0xff] %vm1838, %v6264
  %6358 = vst.msk [vmem:[#allocation4 + $0x18] sm:$0xff] %vm1838, %v6266
  %6359 = vst.msk [vmem:[#allocation4 + $0x20] sm:$0xff] %vm1838, %v6268
  %6360 = vst.msk [vmem:[#allocation4 + $0x28] sm:$0xff] %vm1838, %v6270
  %6361 = vst.msk [vmem:[#allocation4 + $0x30] sm:$0xff] %vm1838, %v6272
  %6362 = vst.msk [vmem:[#allocation4 + $0x38] sm:$0xff] %vm1838, %v6274
  %6363 = vst.msk [vmem:[#allocation4 + $0x40] sm:$0xff] %vm1838, %v6276
  %6364 = vst.msk [vmem:[#allocation4 + $0x48] sm:$0xff] %vm1838, %v6278
  %6365 = vst.msk [vmem:[#allocation4 + $0x50] sm:$0xff] %vm1838, %v6280
  %6366 = vst.msk [vmem:[#allocation4 + $0x58] sm:$0xff] %vm1838, %v6282
  %6367 = vst.msk [vmem:[#allocation4 + $0x60] sm:$0xff] %vm1838, %v6284
  %6368 = vst.msk [vmem:[#allocation4 + $0x68] sm:$0xff] %vm1838, %v6286
  %6369 = vst.msk [vmem:[#allocation4 + $0x70] sm:$0xff] %vm1838, %v6288
  %6370 = vst.msk [vmem:[#allocation4 + $0x78] sm:$0xff] %vm1838, %v6290
  %6371 = vst.msk [vmem:[#allocation4 + $0x80] sm:$0xff] %vm1838, %v6292
  %6372 = vst.msk [vmem:[#allocation4 + $0x88] sm:$0xff] %vm1838, %v6294
  %6373 = vst.msk [vmem:[#allocation4 + $0x90] sm:$0xff] %vm1838, %v6296
  %6374 = vst.msk [vmem:[#allocation4 + $0x98] sm:$0xff] %vm1838, %v6298
  %6375 = vst.msk [vmem:[#allocation4 + $0xa0] sm:$0xff] %vm1838, %v6300
  %6376 = vst.msk [vmem:[#allocation4 + $0xa8] sm:$0xff] %vm1838, %v6302
  %6377 = vst.msk [vmem:[#allocation4 + $0xb0] sm:$0xff] %vm1838, %v6304
  %6378 = vst.msk [vmem:[#allocation4 + $0xb8] sm:$0xff] %vm1838, %v6306
  %6379 = vst.msk [vmem:[#allocation4 + $0xc0] sm:$0xff] %vm1838, %v6308
  %6380 = vst.msk [vmem:[#allocation4 + $0xc8] sm:$0xff] %vm1838, %v6310
  %6381 = vst.msk [vmem:[#allocation4 + $0xd0] sm:$0xff] %vm1838, %v6312
  %6382 = vst.msk [vmem:[#allocation4 + $0xd8] sm:$0xff] %vm1838, %v6314
  %6383 = vst.msk [vmem:[#allocation4 + $0xe0] sm:$0xff] %vm1838, %v6316
  %6384 = vst.msk [vmem:[#allocation4 + $0xe8] sm:$0xff] %vm1838, %v6318
  %6385 = vst.msk [vmem:[#allocation4 + $0xf0] sm:$0xff] %vm1838, %v6320
  %6386 = vst.msk [vmem:[#allocation4 + $0xf8] sm:$0xff] %vm1838, %v6322
  %v6387 = vld [vmem:[#allocation2 + $0x27] sm:$0xff]
  %v6388 = vld [vmem:[#allocation2 + $0x2f] sm:$0xff]
  %v6389 = vld [vmem:[#allocation2 + $0x37] sm:$0xff]
  %v6390 = vld [vmem:[#allocation2 + $0x3f] sm:$0xff]
  %v6391 = vld [vmem:[#allocation2 + $0x47] sm:$0xff]
  %v6392 = vld [vmem:[#allocation2 + $0x4f] sm:$0xff]
  %v6393 = vld [vmem:[#allocation2 + $0x57] sm:$0xff]
  %v6394 = vld [vmem:[#allocation2 + $0x5f] sm:$0xff]
  %v6395 = vld [vmem:[#allocation2 + $0x67] sm:$0xff]
  %v6396 = vld [vmem:[#allocation2 + $0x6f] sm:$0xff]
  %v6397 = vld [vmem:[#allocation2 + $0x77] sm:$0xff]
  %v6398 = vld [vmem:[#allocation2 + $0x7f] sm:$0xff]
  %v6399 = vld [vmem:[#allocation2 + $0x87] sm:$0xff]
  %v6400 = vld [vmem:[#allocation2 + $0x8f] sm:$0xff]
  %v6401 = vld [vmem:[#allocation2 + $0x97] sm:$0xff]
  %v6402 = vld [vmem:[#allocation2 + $0x9f] sm:$0xff]
  %v6403 = vld [vmem:[#allocation2 + $0xa7] sm:$0xff]
  %v6404 = vld [vmem:[#allocation2 + $0xaf] sm:$0xff]
  %v6405 = vld [vmem:[#allocation2 + $0xb7] sm:$0xff]
  %v6406 = vld [vmem:[#allocation2 + $0xbf] sm:$0xff]
  %v6407 = vld [vmem:[#allocation2 + $0xc7] sm:$0xff]
  %v6408 = vld [vmem:[#allocation2 + $0xcf] sm:$0xff]
  %v6409 = vld [vmem:[#allocation2 + $0xd7] sm:$0xff]
  %v6410 = vld [vmem:[#allocation2 + $0xdf] sm:$0xff]
  %v6411 = vld [vmem:[#allocation2 + $0xe7] sm:$0xff]
  %v6412 = vld [vmem:[#allocation2 + $0xef] sm:$0xff]
  %v6413 = vld [vmem:[#allocation2 + $0xf7] sm:$0xff]
  %v6414 = vld [vmem:[#allocation2 + $0xff] sm:$0xff]
  %v6415 = vld [vmem:[#allocation2 + $0x107] sm:$0xff]
  %v6416 = vld [vmem:[#allocation2 + $0x10f] sm:$0xff]
  %v6417 = vld [vmem:[#allocation2 + $0x117] sm:$0xff]
  %v6418 = vld [vmem:[#allocation2 + $0x11f] sm:$0xff]
  %v6419 = vsel %vm650, %v6387, 0.0
  %v6420 = vsel %vm651, %v6388, 0.0
  %v6421 = vsel %vm652, %v6389, 0.0
  %v6422 = vsel %vm653, %v6390, 0.0
  %v6423 = vsel %vm654, %v6391, 0.0
  %v6424 = vsel %vm655, %v6392, 0.0
  %v6425 = vsel %vm656, %v6393, 0.0
  %v6426 = vsel %vm657, %v6394, 0.0
  %v6427 = vsel %vm658, %v6395, 0.0
  %v6428 = vsel %vm659, %v6396, 0.0
  %v6429 = vsel %vm660, %v6397, 0.0
  %v6430 = vsel %vm661, %v6398, 0.0
  %v6431 = vsel %vm662, %v6399, 0.0
  %v6432 = vsel %vm663, %v6400, 0.0
  %v6433 = vsel %vm664, %v6401, 0.0
  %v6434 = vsel %vm665, %v6402, 0.0
  %v6435 = vsel %vm666, %v6403, 0.0
  %v6436 = vsel %vm667, %v6404, 0.0
  %v6437 = vsel %vm668, %v6405, 0.0
  %v6438 = vsel %vm669, %v6406, 0.0
  %v6439 = vsel %vm670, %v6407, 0.0
  %v6440 = vsel %vm671, %v6408, 0.0
  %v6441 = vsel %vm672, %v6409, 0.0
  %v6442 = vsel %vm673, %v6410, 0.0
  %v6443 = vsel %vm674, %v6411, 0.0
  %v6444 = vsel %vm675, %v6412, 0.0
  %v6445 = vsel %vm676, %v6413, 0.0
  %v6446 = vsel %vm677, %v6414, 0.0
  %v6447 = vsel %vm678, %v6415, 0.0
  %v6448 = vsel %vm679, %v6416, 0.0
  %v6449 = vsel %vm680, %v6417, 0.0
  %v6450 = vsel %vm681, %v6418, 0.0
  %6483 = vrot.lane.b32.xlu0 %v6419, 48
  %v6484 = vpop.permute.xlu0 %6483
  %6485 = vrot.lane.b32.xlu0 %v6420, 48
  %v6486 = vpop.permute.xlu0 %6485
  %6487 = vrot.lane.b32.xlu0 %v6421, 48
  %v6488 = vpop.permute.xlu0 %6487
  %6489 = vrot.lane.b32.xlu0 %v6422, 48
  %v6490 = vpop.permute.xlu0 %6489
  %6491 = vrot.lane.b32.xlu0 %v6423, 48
  %v6492 = vpop.permute.xlu0 %6491
  %6493 = vrot.lane.b32.xlu0 %v6424, 48
  %v6494 = vpop.permute.xlu0 %6493
  %6495 = vrot.lane.b32.xlu0 %v6425, 48
  %v6496 = vpop.permute.xlu0 %6495
  %6497 = vrot.lane.b32.xlu0 %v6426, 48
  %v6498 = vpop.permute.xlu0 %6497
  %6499 = vrot.lane.b32.xlu0 %v6427, 48
  %v6500 = vpop.permute.xlu0 %6499
  %6501 = vrot.lane.b32.xlu0 %v6428, 48
  %v6502 = vpop.permute.xlu0 %6501
  %6503 = vrot.lane.b32.xlu0 %v6429, 48
  %v6504 = vpop.permute.xlu0 %6503
  %6505 = vrot.lane.b32.xlu0 %v6430, 48
  %v6506 = vpop.permute.xlu0 %6505
  %6507 = vrot.lane.b32.xlu0 %v6431, 48
  %v6508 = vpop.permute.xlu0 %6507
  %6509 = vrot.lane.b32.xlu0 %v6432, 48
  %v6510 = vpop.permute.xlu0 %6509
  %6511 = vrot.lane.b32.xlu0 %v6433, 48
  %v6512 = vpop.permute.xlu0 %6511
  %6513 = vrot.lane.b32.xlu0 %v6434, 48
  %v6514 = vpop.permute.xlu0 %6513
  %6515 = vrot.lane.b32.xlu0 %v6435, 48
  %v6516 = vpop.permute.xlu0 %6515
  %6517 = vrot.lane.b32.xlu0 %v6436, 48
  %v6518 = vpop.permute.xlu0 %6517
  %6519 = vrot.lane.b32.xlu0 %v6437, 48
  %v6520 = vpop.permute.xlu0 %6519
  %6521 = vrot.lane.b32.xlu0 %v6438, 48
  %v6522 = vpop.permute.xlu0 %6521
  %6523 = vrot.lane.b32.xlu0 %v6439, 48
  %v6524 = vpop.permute.xlu0 %6523
  %6525 = vrot.lane.b32.xlu0 %v6440, 48
  %v6526 = vpop.permute.xlu0 %6525
  %6527 = vrot.lane.b32.xlu0 %v6441, 48
  %v6528 = vpop.permute.xlu0 %6527
  %6529 = vrot.lane.b32.xlu0 %v6442, 48
  %v6530 = vpop.permute.xlu0 %6529
  %6531 = vrot.lane.b32.xlu0 %v6443, 48
  %v6532 = vpop.permute.xlu0 %6531
  %6533 = vrot.lane.b32.xlu0 %v6444, 48
  %v6534 = vpop.permute.xlu0 %6533
  %6535 = vrot.lane.b32.xlu0 %v6445, 48
  %v6536 = vpop.permute.xlu0 %6535
  %6537 = vrot.lane.b32.xlu0 %v6446, 48
  %v6538 = vpop.permute.xlu0 %6537
  %6539 = vrot.lane.b32.xlu0 %v6447, 48
  %v6540 = vpop.permute.xlu0 %6539
  %6541 = vrot.lane.b32.xlu0 %v6448, 48
  %v6542 = vpop.permute.xlu0 %6541
  %6543 = vrot.lane.b32.xlu0 %v6449, 48
  %v6544 = vpop.permute.xlu0 %6543
  %6545 = vrot.lane.b32.xlu0 %v6450, 48
  %v6546 = vpop.permute.xlu0 %6545
  %6579 = vst.msk [vmem:[#allocation4] sm:$0xff] %vm2063, %v6484
  %6580 = vst.msk [vmem:[#allocation4 + $0x8] sm:$0xff] %vm2063, %v6486
  %6581 = vst.msk [vmem:[#allocation4 + $0x10] sm:$0xff] %vm2063, %v6488
  %6582 = vst.msk [vmem:[#allocation4 + $0x18] sm:$0xff] %vm2063, %v6490
  %6583 = vst.msk [vmem:[#allocation4 + $0x20] sm:$0xff] %vm2063, %v6492
  %6584 = vst.msk [vmem:[#allocation4 + $0x28] sm:$0xff] %vm2063, %v6494
  %6585 = vst.msk [vmem:[#allocation4 + $0x30] sm:$0xff] %vm2063, %v6496
  %6586 = vst.msk [vmem:[#allocation4 + $0x38] sm:$0xff] %vm2063, %v6498
  %6587 = vst.msk [vmem:[#allocation4 + $0x40] sm:$0xff] %vm2063, %v6500
  %6588 = vst.msk [vmem:[#allocation4 + $0x48] sm:$0xff] %vm2063, %v6502
  %6589 = vst.msk [vmem:[#allocation4 + $0x50] sm:$0xff] %vm2063, %v6504
  %6590 = vst.msk [vmem:[#allocation4 + $0x58] sm:$0xff] %vm2063, %v6506
  %6591 = vst.msk [vmem:[#allocation4 + $0x60] sm:$0xff] %vm2063, %v6508
  %6592 = vst.msk [vmem:[#allocation4 + $0x68] sm:$0xff] %vm2063, %v6510
  %6593 = vst.msk [vmem:[#allocation4 + $0x70] sm:$0xff] %vm2063, %v6512
  %6594 = vst.msk [vmem:[#allocation4 + $0x78] sm:$0xff] %vm2063, %v6514
  %6595 = vst.msk [vmem:[#allocation4 + $0x80] sm:$0xff] %vm2063, %v6516
  %6596 = vst.msk [vmem:[#allocation4 + $0x88] sm:$0xff] %vm2063, %v6518
  %6597 = vst.msk [vmem:[#allocation4 + $0x90] sm:$0xff] %vm2063, %v6520
  %6598 = vst.msk [vmem:[#allocation4 + $0x98] sm:$0xff] %vm2063, %v6522
  %6599 = vst.msk [vmem:[#allocation4 + $0xa0] sm:$0xff] %vm2063, %v6524
  %6600 = vst.msk [vmem:[#allocation4 + $0xa8] sm:$0xff] %vm2063, %v6526
  %6601 = vst.msk [vmem:[#allocation4 + $0xb0] sm:$0xff] %vm2063, %v6528
  %6602 = vst.msk [vmem:[#allocation4 + $0xb8] sm:$0xff] %vm2063, %v6530
  %6603 = vst.msk [vmem:[#allocation4 + $0xc0] sm:$0xff] %vm2063, %v6532
  %6604 = vst.msk [vmem:[#allocation4 + $0xc8] sm:$0xff] %vm2063, %v6534
  %6605 = vst.msk [vmem:[#allocation4 + $0xd0] sm:$0xff] %vm2063, %v6536
  %6606 = vst.msk [vmem:[#allocation4 + $0xd8] sm:$0xff] %vm2063, %v6538
  %6607 = vst.msk [vmem:[#allocation4 + $0xe0] sm:$0xff] %vm2063, %v6540
  %6608 = vst.msk [vmem:[#allocation4 + $0xe8] sm:$0xff] %vm2063, %v6542
  %6609 = vst.msk [vmem:[#allocation4 + $0xf0] sm:$0xff] %vm2063, %v6544
  %6610 = vst.msk [vmem:[#allocation4 + $0xf8] sm:$0xff] %vm2063, %v6546
  %v6611 = vld [vmem:[#allocation2 + $0x28] sm:$0xff]
  %v6612 = vld [vmem:[#allocation2 + $0x30] sm:$0xff]
  %v6613 = vld [vmem:[#allocation2 + $0x38] sm:$0xff]
  %v6614 = vld [vmem:[#allocation2 + $0x40] sm:$0xff]
  %v6615 = vld [vmem:[#allocation2 + $0x48] sm:$0xff]
  %v6616 = vld [vmem:[#allocation2 + $0x50] sm:$0xff]
  %v6617 = vld [vmem:[#allocation2 + $0x58] sm:$0xff]
  %v6618 = vld [vmem:[#allocation2 + $0x60] sm:$0xff]
  %v6619 = vld [vmem:[#allocation2 + $0x68] sm:$0xff]
  %v6620 = vld [vmem:[#allocation2 + $0x70] sm:$0xff]
  %v6621 = vld [vmem:[#allocation2 + $0x78] sm:$0xff]
  %v6622 = vld [vmem:[#allocation2 + $0x80] sm:$0xff]
  %v6623 = vld [vmem:[#allocation2 + $0x88] sm:$0xff]
  %v6624 = vld [vmem:[#allocation2 + $0x90] sm:$0xff]
  %v6625 = vld [vmem:[#allocation2 + $0x98] sm:$0xff]
  %v6626 = vld [vmem:[#allocation2 + $0xa0] sm:$0xff]
  %v6627 = vld [vmem:[#allocation2 + $0xa8] sm:$0xff]
  %v6628 = vld [vmem:[#allocation2 + $0xb0] sm:$0xff]
  %v6629 = vld [vmem:[#allocation2 + $0xb8] sm:$0xff]
  %v6630 = vld [vmem:[#allocation2 + $0xc0] sm:$0xff]
  %v6631 = vld [vmem:[#allocation2 + $0xc8] sm:$0xff]
  %v6632 = vld [vmem:[#allocation2 + $0xd0] sm:$0xff]
  %v6633 = vld [vmem:[#allocation2 + $0xd8] sm:$0xff]
  %v6634 = vld [vmem:[#allocation2 + $0xe0] sm:$0xff]
  %v6635 = vld [vmem:[#allocation2 + $0xe8] sm:$0xff]
  %v6636 = vld [vmem:[#allocation2 + $0xf0] sm:$0xff]
  %v6637 = vld [vmem:[#allocation2 + $0xf8] sm:$0xff]
  %v6638 = vld [vmem:[#allocation2 + $0x100] sm:$0xff]
  %v6639 = vld [vmem:[#allocation2 + $0x108] sm:$0xff]
  %v6640 = vld [vmem:[#allocation2 + $0x110] sm:$0xff]
  %v6641 = vld [vmem:[#allocation2 + $0x118] sm:$0xff]
  %v6642 = vld [vmem:[#allocation2 + $0x120] sm:$0xff]
  %6675 = vrot.lane.b32.xlu0 %v6611, 56
  %v6676 = vpop.permute.xlu0 %6675
  %6677 = vrot.lane.b32.xlu0 %v6612, 56
  %v6678 = vpop.permute.xlu0 %6677
  %6679 = vrot.lane.b32.xlu0 %v6613, 56
  %v6680 = vpop.permute.xlu0 %6679
  %6681 = vrot.lane.b32.xlu0 %v6614, 56
  %v6682 = vpop.permute.xlu0 %6681
  %6683 = vrot.lane.b32.xlu0 %v6615, 56
  %v6684 = vpop.permute.xlu0 %6683
  %6685 = vrot.lane.b32.xlu0 %v6616, 56
  %v6686 = vpop.permute.xlu0 %6685
  %6687 = vrot.lane.b32.xlu0 %v6617, 56
  %v6688 = vpop.permute.xlu0 %6687
  %6689 = vrot.lane.b32.xlu0 %v6618, 56
  %v6690 = vpop.permute.xlu0 %6689
  %6691 = vrot.lane.b32.xlu0 %v6619, 56
  %v6692 = vpop.permute.xlu0 %6691
  %6693 = vrot.lane.b32.xlu0 %v6620, 56
  %v6694 = vpop.permute.xlu0 %6693
  %6695 = vrot.lane.b32.xlu0 %v6621, 56
  %v6696 = vpop.permute.xlu0 %6695
  %6697 = vrot.lane.b32.xlu0 %v6622, 56
  %v6698 = vpop.permute.xlu0 %6697
  %6699 = vrot.lane.b32.xlu0 %v6623, 56
  %v6700 = vpop.permute.xlu0 %6699
  %6701 = vrot.lane.b32.xlu0 %v6624, 56
  %v6702 = vpop.permute.xlu0 %6701
  %6703 = vrot.lane.b32.xlu0 %v6625, 56
  %v6704 = vpop.permute.xlu0 %6703
  %6705 = vrot.lane.b32.xlu0 %v6626, 56
  %v6706 = vpop.permute.xlu0 %6705
  %6707 = vrot.lane.b32.xlu0 %v6627, 56
  %v6708 = vpop.permute.xlu0 %6707
  %6709 = vrot.lane.b32.xlu0 %v6628, 56
  %v6710 = vpop.permute.xlu0 %6709
  %6711 = vrot.lane.b32.xlu0 %v6629, 56
  %v6712 = vpop.permute.xlu0 %6711
  %6713 = vrot.lane.b32.xlu0 %v6630, 56
  %v6714 = vpop.permute.xlu0 %6713
  %6715 = vrot.lane.b32.xlu0 %v6631, 56
  %v6716 = vpop.permute.xlu0 %6715
  %6717 = vrot.lane.b32.xlu0 %v6632, 56
  %v6718 = vpop.permute.xlu0 %6717
  %6719 = vrot.lane.b32.xlu0 %v6633, 56
  %v6720 = vpop.permute.xlu0 %6719
  %6721 = vrot.lane.b32.xlu0 %v6634, 56
  %v6722 = vpop.permute.xlu0 %6721
  %6723 = vrot.lane.b32.xlu0 %v6635, 56
  %v6724 = vpop.permute.xlu0 %6723
  %6725 = vrot.lane.b32.xlu0 %v6636, 56
  %v6726 = vpop.permute.xlu0 %6725
  %6727 = vrot.lane.b32.xlu0 %v6637, 56
  %v6728 = vpop.permute.xlu0 %6727
  %6729 = vrot.lane.b32.xlu0 %v6638, 56
  %v6730 = vpop.permute.xlu0 %6729
  %6731 = vrot.lane.b32.xlu0 %v6639, 56
  %v6732 = vpop.permute.xlu0 %6731
  %6733 = vrot.lane.b32.xlu0 %v6640, 56
  %v6734 = vpop.permute.xlu0 %6733
  %6735 = vrot.lane.b32.xlu0 %v6641, 56
  %v6736 = vpop.permute.xlu0 %6735
  %6737 = vrot.lane.b32.xlu0 %v6642, 56
  %v6738 = vpop.permute.xlu0 %6737
  %6771 = vst.msk [vmem:[#allocation4] sm:$0xff] %vm2256, %v6676
  %6772 = vst.msk [vmem:[#allocation4 + $0x8] sm:$0xff] %vm2256, %v6678
  %6773 = vst.msk [vmem:[#allocation4 + $0x10] sm:$0xff] %vm2256, %v6680
  %6774 = vst.msk [vmem:[#allocation4 + $0x18] sm:$0xff] %vm2256, %v6682
  %6775 = vst.msk [vmem:[#allocation4 + $0x20] sm:$0xff] %vm2256, %v6684
  %6776 = vst.msk [vmem:[#allocation4 + $0x28] sm:$0xff] %vm2256, %v6686
  %6777 = vst.msk [vmem:[#allocation4 + $0x30] sm:$0xff] %vm2256, %v6688
  %6778 = vst.msk [vmem:[#allocation4 + $0x38] sm:$0xff] %vm2256, %v6690
  %6779 = vst.msk [vmem:[#allocation4 + $0x40] sm:$0xff] %vm2256, %v6692
  %6780 = vst.msk [vmem:[#allocation4 + $0x48] sm:$0xff] %vm2256, %v6694
  %6781 = vst.msk [vmem:[#allocation4 + $0x50] sm:$0xff] %vm2256, %v6696
  %6782 = vst.msk [vmem:[#allocation4 + $0x58] sm:$0xff] %vm2256, %v6698
  %6783 = vst.msk [vmem:[#allocation4 + $0x60] sm:$0xff] %vm2256, %v6700
  %6784 = vst.msk [vmem:[#allocation4 + $0x68] sm:$0xff] %vm2256, %v6702
  %6785 = vst.msk [vmem:[#allocation4 + $0x70] sm:$0xff] %vm2256, %v6704
  %6786 = vst.msk [vmem:[#allocation4 + $0x78] sm:$0xff] %vm2256, %v6706
  %6787 = vst.msk [vmem:[#allocation4 + $0x80] sm:$0xff] %vm2256, %v6708
  %6788 = vst.msk [vmem:[#allocation4 + $0x88] sm:$0xff] %vm2256, %v6710
  %6789 = vst.msk [vmem:[#allocation4 + $0x90] sm:$0xff] %vm2256, %v6712
  %6790 = vst.msk [vmem:[#allocation4 + $0x98] sm:$0xff] %vm2256, %v6714
  %6791 = vst.msk [vmem:[#allocation4 + $0xa0] sm:$0xff] %vm2256, %v6716
  %6792 = vst.msk [vmem:[#allocation4 + $0xa8] sm:$0xff] %vm2256, %v6718
  %6793 = vst.msk [vmem:[#allocation4 + $0xb0] sm:$0xff] %vm2256, %v6720
  %6794 = vst.msk [vmem:[#allocation4 + $0xb8] sm:$0xff] %vm2256, %v6722
  %6795 = vst.msk [vmem:[#allocation4 + $0xc0] sm:$0xff] %vm2256, %v6724
  %6796 = vst.msk [vmem:[#allocation4 + $0xc8] sm:$0xff] %vm2256, %v6726
  %6797 = vst.msk [vmem:[#allocation4 + $0xd0] sm:$0xff] %vm2256, %v6728
  %6798 = vst.msk [vmem:[#allocation4 + $0xd8] sm:$0xff] %vm2256, %v6730
  %6799 = vst.msk [vmem:[#allocation4 + $0xe0] sm:$0xff] %vm2256, %v6732
  %6800 = vst.msk [vmem:[#allocation4 + $0xe8] sm:$0xff] %vm2256, %v6734
  %6801 = vst.msk [vmem:[#allocation4 + $0xf0] sm:$0xff] %vm2256, %v6736
  %6802 = vst.msk [vmem:[#allocation4 + $0xf8] sm:$0xff] %vm2256, %v6738
  %v6803 = vld [vmem:[#allocation2 + $0x29] sm:$0xff]
  %v6804 = vld [vmem:[#allocation2 + $0x31] sm:$0xff]
  %v6805 = vld [vmem:[#allocation2 + $0x39] sm:$0xff]
  %v6806 = vld [vmem:[#allocation2 + $0x41] sm:$0xff]
  %v6807 = vld [vmem:[#allocation2 + $0x49] sm:$0xff]
  %v6808 = vld [vmem:[#allocation2 + $0x51] sm:$0xff]
  %v6809 = vld [vmem:[#allocation2 + $0x59] sm:$0xff]
  %v6810 = vld [vmem:[#allocation2 + $0x61] sm:$0xff]
  %v6811 = vld [vmem:[#allocation2 + $0x69] sm:$0xff]
  %v6812 = vld [vmem:[#allocation2 + $0x71] sm:$0xff]
  %v6813 = vld [vmem:[#allocation2 + $0x79] sm:$0xff]
  %v6814 = vld [vmem:[#allocation2 + $0x81] sm:$0xff]
  %v6815 = vld [vmem:[#allocation2 + $0x89] sm:$0xff]
  %v6816 = vld [vmem:[#allocation2 + $0x91] sm:$0xff]
  %v6817 = vld [vmem:[#allocation2 + $0x99] sm:$0xff]
  %v6818 = vld [vmem:[#allocation2 + $0xa1] sm:$0xff]
  %v6819 = vld [vmem:[#allocation2 + $0xa9] sm:$0xff]
  %v6820 = vld [vmem:[#allocation2 + $0xb1] sm:$0xff]
  %v6821 = vld [vmem:[#allocation2 + $0xb9] sm:$0xff]
  %v6822 = vld [vmem:[#allocation2 + $0xc1] sm:$0xff]
  %v6823 = vld [vmem:[#allocation2 + $0xc9] sm:$0xff]
  %v6824 = vld [vmem:[#allocation2 + $0xd1] sm:$0xff]
  %v6825 = vld [vmem:[#allocation2 + $0xd9] sm:$0xff]
  %v6826 = vld [vmem:[#allocation2 + $0xe1] sm:$0xff]
  %v6827 = vld [vmem:[#allocation2 + $0xe9] sm:$0xff]
  %v6828 = vld [vmem:[#allocation2 + $0xf1] sm:$0xff]
  %v6829 = vld [vmem:[#allocation2 + $0xf9] sm:$0xff]
  %v6830 = vld [vmem:[#allocation2 + $0x101] sm:$0xff]
  %v6831 = vld [vmem:[#allocation2 + $0x109] sm:$0xff]
  %v6832 = vld [vmem:[#allocation2 + $0x111] sm:$0xff]
  %v6833 = vld [vmem:[#allocation2 + $0x119] sm:$0xff]
  %v6834 = vld [vmem:[#allocation2 + $0x121] sm:$0xff]
  %v6835 = vsel %vm1003, %v6803, 0.0
  %v6836 = vsel %vm1004, %v6804, 0.0
  %v6837 = vsel %vm1005, %v6805, 0.0
  %v6838 = vsel %vm1006, %v6806, 0.0
  %v6839 = vsel %vm1007, %v6807, 0.0
  %v6840 = vsel %vm1008, %v6808, 0.0
  %v6841 = vsel %vm1009, %v6809, 0.0
  %v6842 = vsel %vm1010, %v6810, 0.0
  %v6843 = vsel %vm1011, %v6811, 0.0
  %v6844 = vsel %vm1012, %v6812, 0.0
  %v6845 = vsel %vm1013, %v6813, 0.0
  %v6846 = vsel %vm1014, %v6814, 0.0
  %v6847 = vsel %vm1015, %v6815, 0.0
  %v6848 = vsel %vm1016, %v6816, 0.0
  %v6849 = vsel %vm1017, %v6817, 0.0
  %v6850 = vsel %vm1018, %v6818, 0.0
  %v6851 = vsel %vm1019, %v6819, 0.0
  %v6852 = vsel %vm1020, %v6820, 0.0
  %v6853 = vsel %vm1021, %v6821, 0.0
  %v6854 = vsel %vm1022, %v6822, 0.0
  %v6855 = vsel %vm1023, %v6823, 0.0
  %v6856 = vsel %vm1024, %v6824, 0.0
  %v6857 = vsel %vm1025, %v6825, 0.0
  %v6858 = vsel %vm1026, %v6826, 0.0
  %v6859 = vsel %vm1027, %v6827, 0.0
  %v6860 = vsel %vm1028, %v6828, 0.0
  %v6861 = vsel %vm1029, %v6829, 0.0
  %v6862 = vsel %vm1030, %v6830, 0.0
  %v6863 = vsel %vm1031, %v6831, 0.0
  %v6864 = vsel %vm1032, %v6832, 0.0
  %v6865 = vsel %vm1033, %v6833, 0.0
  %v6866 = vsel %vm1034, %v6834, 0.0
  %6899 = vrot.lane.b32.xlu0 %v6835, 64
  %v6900 = vpop.permute.xlu0 %6899
  %6901 = vrot.lane.b32.xlu0 %v6836, 64
  %v6902 = vpop.permute.xlu0 %6901
  %6903 = vrot.lane.b32.xlu0 %v6837, 64
  %v6904 = vpop.permute.xlu0 %6903
  %6905 = vrot.lane.b32.xlu0 %v6838, 64
  %v6906 = vpop.permute.xlu0 %6905
  %6907 = vrot.lane.b32.xlu0 %v6839, 64
  %v6908 = vpop.permute.xlu0 %6907
  %6909 = vrot.lane.b32.xlu0 %v6840, 64
  %v6910 = vpop.permute.xlu0 %6909
  %6911 = vrot.lane.b32.xlu0 %v6841, 64
  %v6912 = vpop.permute.xlu0 %6911
  %6913 = vrot.lane.b32.xlu0 %v6842, 64
  %v6914 = vpop.permute.xlu0 %6913
  %6915 = vrot.lane.b32.xlu0 %v6843, 64
  %v6916 = vpop.permute.xlu0 %6915
  %6917 = vrot.lane.b32.xlu0 %v6844, 64
  %v6918 = vpop.permute.xlu0 %6917
  %6919 = vrot.lane.b32.xlu0 %v6845, 64
  %v6920 = vpop.permute.xlu0 %6919
  %6921 = vrot.lane.b32.xlu0 %v6846, 64
  %v6922 = vpop.permute.xlu0 %6921
  %6923 = vrot.lane.b32.xlu0 %v6847, 64
  %v6924 = vpop.permute.xlu0 %6923
  %6925 = vrot.lane.b32.xlu0 %v6848, 64
  %v6926 = vpop.permute.xlu0 %6925
  %6927 = vrot.lane.b32.xlu0 %v6849, 64
  %v6928 = vpop.permute.xlu0 %6927
  %6929 = vrot.lane.b32.xlu0 %v6850, 64
  %v6930 = vpop.permute.xlu0 %6929
  %6931 = vrot.lane.b32.xlu0 %v6851, 64
  %v6932 = vpop.permute.xlu0 %6931
  %6933 = vrot.lane.b32.xlu0 %v6852, 64
  %v6934 = vpop.permute.xlu0 %6933
  %6935 = vrot.lane.b32.xlu0 %v6853, 64
  %v6936 = vpop.permute.xlu0 %6935
  %6937 = vrot.lane.b32.xlu0 %v6854, 64
  %v6938 = vpop.permute.xlu0 %6937
  %6939 = vrot.lane.b32.xlu0 %v6855, 64
  %v6940 = vpop.permute.xlu0 %6939
  %6941 = vrot.lane.b32.xlu0 %v6856, 64
  %v6942 = vpop.permute.xlu0 %6941
  %6943 = vrot.lane.b32.xlu0 %v6857, 64
  %v6944 = vpop.permute.xlu0 %6943
  %6945 = vrot.lane.b32.xlu0 %v6858, 64
  %v6946 = vpop.permute.xlu0 %6945
  %6947 = vrot.lane.b32.xlu0 %v6859, 64
  %v6948 = vpop.permute.xlu0 %6947
  %6949 = vrot.lane.b32.xlu0 %v6860, 64
  %v6950 = vpop.permute.xlu0 %6949
  %6951 = vrot.lane.b32.xlu0 %v6861, 64
  %v6952 = vpop.permute.xlu0 %6951
  %6953 = vrot.lane.b32.xlu0 %v6862, 64
  %v6954 = vpop.permute.xlu0 %6953
  %6955 = vrot.lane.b32.xlu0 %v6863, 64
  %v6956 = vpop.permute.xlu0 %6955
  %6957 = vrot.lane.b32.xlu0 %v6864, 64
  %v6958 = vpop.permute.xlu0 %6957
  %6959 = vrot.lane.b32.xlu0 %v6865, 64
  %v6960 = vpop.permute.xlu0 %6959
  %6961 = vrot.lane.b32.xlu0 %v6866, 64
  %v6962 = vpop.permute.xlu0 %6961
  %6995 = vst.msk [vmem:[#allocation4] sm:$0xff] %vm2481, %v6900
  %6996 = vst.msk [vmem:[#allocation4 + $0x8] sm:$0xff] %vm2481, %v6902
  %6997 = vst.msk [vmem:[#allocation4 + $0x10] sm:$0xff] %vm2481, %v6904
  %6998 = vst.msk [vmem:[#allocation4 + $0x18] sm:$0xff] %vm2481, %v6906
  %6999 = vst.msk [vmem:[#allocation4 + $0x20] sm:$0xff] %vm2481, %v6908
  %7000 = vst.msk [vmem:[#allocation4 + $0x28] sm:$0xff] %vm2481, %v6910
  %7001 = vst.msk [vmem:[#allocation4 + $0x30] sm:$0xff] %vm2481, %v6912
  %7002 = vst.msk [vmem:[#allocation4 + $0x38] sm:$0xff] %vm2481, %v6914
  %7003 = vst.msk [vmem:[#allocation4 + $0x40] sm:$0xff] %vm2481, %v6916
  %7004 = vst.msk [vmem:[#allocation4 + $0x48] sm:$0xff] %vm2481, %v6918
  %7005 = vst.msk [vmem:[#allocation4 + $0x50] sm:$0xff] %vm2481, %v6920
  %7006 = vst.msk [vmem:[#allocation4 + $0x58] sm:$0xff] %vm2481, %v6922
  %7007 = vst.msk [vmem:[#allocation4 + $0x60] sm:$0xff] %vm2481, %v6924
  %7008 = vst.msk [vmem:[#allocation4 + $0x68] sm:$0xff] %vm2481, %v6926
  %7009 = vst.msk [vmem:[#allocation4 + $0x70] sm:$0xff] %vm2481, %v6928
  %7010 = vst.msk [vmem:[#allocation4 + $0x78] sm:$0xff] %vm2481, %v6930
  %7011 = vst.msk [vmem:[#allocation4 + $0x80] sm:$0xff] %vm2481, %v6932
  %7012 = vst.msk [vmem:[#allocation4 + $0x88] sm:$0xff] %vm2481, %v6934
  %7013 = vst.msk [vmem:[#allocation4 + $0x90] sm:$0xff] %vm2481, %v6936
  %7014 = vst.msk [vmem:[#allocation4 + $0x98] sm:$0xff] %vm2481, %v6938
  %7015 = vst.msk [vmem:[#allocation4 + $0xa0] sm:$0xff] %vm2481, %v6940
  %7016 = vst.msk [vmem:[#allocation4 + $0xa8] sm:$0xff] %vm2481, %v6942
  %7017 = vst.msk [vmem:[#allocation4 + $0xb0] sm:$0xff] %vm2481, %v6944
  %7018 = vst.msk [vmem:[#allocation4 + $0xb8] sm:$0xff] %vm2481, %v6946
  %7019 = vst.msk [vmem:[#allocation4 + $0xc0] sm:$0xff] %vm2481, %v6948
  %7020 = vst.msk [vmem:[#allocation4 + $0xc8] sm:$0xff] %vm2481, %v6950
  %7021 = vst.msk [vmem:[#allocation4 + $0xd0] sm:$0xff] %vm2481, %v6952
  %7022 = vst.msk [vmem:[#allocation4 + $0xd8] sm:$0xff] %vm2481, %v6954
  %7023 = vst.msk [vmem:[#allocation4 + $0xe0] sm:$0xff] %vm2481, %v6956
  %7024 = vst.msk [vmem:[#allocation4 + $0xe8] sm:$0xff] %vm2481, %v6958
  %7025 = vst.msk [vmem:[#allocation4 + $0xf0] sm:$0xff] %vm2481, %v6960
  %7026 = vst.msk [vmem:[#allocation4 + $0xf8] sm:$0xff] %vm2481, %v6962
  %v7027 = vld [vmem:[#allocation4] sm:$0xff]
  %v7028 = vld [vmem:[#allocation4 + $0x8] sm:$0xff]
  %v7029 = vld [vmem:[#allocation4 + $0x10] sm:$0xff]
  %v7030 = vld [vmem:[#allocation4 + $0x18] sm:$0xff]
  %v7031 = vld [vmem:[#allocation4 + $0x20] sm:$0xff]
  %v7032 = vld [vmem:[#allocation4 + $0x28] sm:$0xff]
  %v7033 = vld [vmem:[#allocation4 + $0x30] sm:$0xff]
  %v7034 = vld [vmem:[#allocation4 + $0x38] sm:$0xff]
  %v7035 = vld [vmem:[#allocation4 + $0x40] sm:$0xff]
  %v7036 = vld [vmem:[#allocation4 + $0x48] sm:$0xff]
  %v7037 = vld [vmem:[#allocation4 + $0x50] sm:$0xff]
  %v7038 = vld [vmem:[#allocation4 + $0x58] sm:$0xff]
  %v7039 = vld [vmem:[#allocation4 + $0x60] sm:$0xff]
  %v7040 = vld [vmem:[#allocation4 + $0x68] sm:$0xff]
  %v7041 = vld [vmem:[#allocation4 + $0x70] sm:$0xff]
  %v7042 = vld [vmem:[#allocation4 + $0x78] sm:$0xff]
  %v7043 = vld [vmem:[#allocation4 + $0x80] sm:$0xff]
  %v7044 = vld [vmem:[#allocation4 + $0x88] sm:$0xff]
  %v7045 = vld [vmem:[#allocation4 + $0x90] sm:$0xff]
  %v7046 = vld [vmem:[#allocation4 + $0x98] sm:$0xff]
  %v7047 = vld [vmem:[#allocation4 + $0xa0] sm:$0xff]
  %v7048 = vld [vmem:[#allocation4 + $0xa8] sm:$0xff]
  %v7049 = vld [vmem:[#allocation4 + $0xb0] sm:$0xff]
  %v7050 = vld [vmem:[#allocation4 + $0xb8] sm:$0xff]
  %v7051 = vld [vmem:[#allocation4 + $0xc0] sm:$0xff]
  %v7052 = vld [vmem:[#allocation4 + $0xc8] sm:$0xff]
  %v7053 = vld [vmem:[#allocation4 + $0xd0] sm:$0xff]
  %v7054 = vld [vmem:[#allocation4 + $0xd8] sm:$0xff]
  %v7055 = vld [vmem:[#allocation4 + $0xe0] sm:$0xff]
  %v7056 = vld [vmem:[#allocation4 + $0xe8] sm:$0xff]
  %v7057 = vld [vmem:[#allocation4 + $0xf0] sm:$0xff]
  %v7058 = vld [vmem:[#allocation4 + $0xf8] sm:$0xff]
  %v7059 = vpack.c.bf16 %v7028, %v7027
  %v7060 = vpack.c.bf16 %v7030, %v7029
  %v7061 = vpack.c.bf16 %v7032, %v7031
  %v7062 = vpack.c.bf16 %v7034, %v7033
  %v7063 = vpack.c.bf16 %v7036, %v7035
  %v7064 = vpack.c.bf16 %v7038, %v7037
  %v7065 = vpack.c.bf16 %v7040, %v7039
  %v7066 = vpack.c.bf16 %v7042, %v7041
  %v7067 = vpack.c.bf16 %v7044, %v7043
  %v7068 = vpack.c.bf16 %v7046, %v7045
  %v7069 = vpack.c.bf16 %v7048, %v7047
  %v7070 = vpack.c.bf16 %v7050, %v7049
  %v7071 = vpack.c.bf16 %v7052, %v7051
  %v7072 = vpack.c.bf16 %v7054, %v7053
  %v7073 = vpack.c.bf16 %v7056, %v7055
  %v7074 = vpack.c.bf16 %v7058, %v7057
  %v7075 = vld [vmem:[%s1] sm:$0xff]
  %v7076 = vld [vmem:[%s1 + $0x8] sm:$0xff]
  %v7077 = vld [vmem:[%s1 + $0x10] sm:$0xff]
  %v7078 = vld [vmem:[%s1 + $0x18] sm:$0xff]
  %v7079 = vld [vmem:[%s1 + $0x20] sm:$0xff]
  %v7080 = vld [vmem:[%s1 + $0x28] sm:$0xff]
  %v7081 = vld [vmem:[%s1 + $0x30] sm:$0xff]
  %v7082 = vld [vmem:[%s1 + $0x38] sm:$0xff]
  %v7083 = vld [vmem:[%s1 + $0x40] sm:$0xff]
  %v7084 = vpack.c.bf16 %v7076, %v7075
  %v7085 = vpack.c.bf16 %v7078, %v7077
  %v7086 = vpack.c.bf16 %v7080, %v7079
  %v7087 = vpack.c.bf16 %v7082, %v7081
  %v7088 = vpack.c.bf16 %v7083, %v7083
  %v7089 = vld [vmem:[%s2] sm:$0x1]
  %v7091 = vlaneseq
  %v7092 = vshrl.u32 %v7091, 7
  %v7093 = vsub.s32 0, %v7092
  %v7094 = vrot.slane %v7089, %v7093
  %v7097 = vsel %vm2583, %v7059, 0
  %v7100 = vsel %vm2583, %v7060, 0
  %v7103 = vsel %vm2583, %v7061, 0
  %v7106 = vsel %vm2583, %v7062, 0
  %v7109 = vsel %vm2583, %v7063, 0
  %v7112 = vsel %vm2583, %v7064, 0
  %v7115 = vsel %vm2583, %v7065, 0
  %v7118 = vsel %vm2583, %v7066, 0
  %v7121 = vsel %vm2583, %v7067, 0
  %v7124 = vsel %vm2583, %v7068, 0
  %v7127 = vsel %vm2583, %v7069, 0
  %v7130 = vsel %vm2583, %v7070, 0
  %v7133 = vsel %vm2583, %v7071, 0
  %v7136 = vsel %vm2583, %v7072, 0
  %v7139 = vsel %vm2583, %v7073, 0
  %v7142 = vsel %vm2583, %v7074, 0
  %v7145 = vsel %vm2632, %v7088, 0
  %7147 = vmatprep.subr.bf16.mxu0 0
  %7148 = vmatpush1.bf16.msra.mxu0 %v7084
  %7149 = vmatprep.subr.bf16.mxu0 0
  %7150 = vmatpush1.bf16.msra.mxu0 %v7085
  %7151 = vmatprep.subr.bf16.mxu0 0
  %7152 = vmatpush1.bf16.msra.mxu0 %v7086
  %7153 = vmatprep.subr.bf16.mxu0 0
  %7154 = vmatpush1.bf16.msra.mxu0 %v7087
  %7155 = vmatprep.subr.bf16.mxu0 0
  %7156 = vmatpush1.bf16.msra.mxu0 %v7145
  %7157 = vmatprep.subr.bf16.mxu0 0
  %7158 = vmatpush1.bf16.msra.mxu0 0
  %7159 = vmatprep.subr.bf16.mxu0 0
  %7160 = vmatpush1.bf16.msra.mxu0 0
  %7161 = vmatprep.subr.bf16.mxu0 0
  %7162 = vmatpush1.bf16.msra.mxu0 0
  %7163 = vmatprep.subr.bf16.mxu0 0
  %7164 = vmatpush1.bf16.msra.mxu0 0
  %7165 = vmatprep.subr.bf16.mxu0 0
  %7166 = vmatpush1.bf16.msra.mxu0 0
  %7167 = vmatprep.subr.bf16.mxu0 0
  %7168 = vmatpush1.bf16.msra.mxu0 0
  %7169 = vmatprep.subr.bf16.mxu0 0
  %7170 = vmatpush1.bf16.msra.mxu0 0
  %7171 = vmatprep.subr.bf16.mxu0 0
  %7172 = vmatpush1.bf16.msra.mxu0 0
  %7173 = vmatprep.subr.bf16.mxu0 0
  %7174 = vmatpush1.bf16.msra.mxu0 0
  %7175 = vmatprep.subr.bf16.mxu0 0
  %7176 = vmatpush1.bf16.msra.mxu0 0
  %7177 = vmatprep.subr.bf16.mxu0 0
  %7178 = vmatpush1.bf16.msra.mxu0 0
  %7179 = vmatprep.mubr.bf16.mxu0 0
  %7180 = vmatmul.mubr.bf16.gmra.mrb[0].mxu0 %v7097
  %v7181 = vpop.f32.mrb[0].mxu0
  %v7182 = vadd.f32 %v7094, %v7181
  %v7183 = vpop.f32.mrb[0].mxu0
  %v7184 = vpop.f32.mrb[0].mxu0
  %v7185 = vadd.f32 %v7094, %v7184
  %v7186 = vpop.f32.mrb[0].mxu0
  %7187 = vmatprep.mubr.bf16.mxu0 0
  %7188 = vmatmul.mubr.bf16.gmra.mrb[0].mxu0 %v7100
  %v7189 = vpop.f32.mrb[0].mxu0
  %v7190 = vadd.f32 %v7094, %v7189
  %v7191 = vpop.f32.mrb[0].mxu0
  %v7192 = vpop.f32.mrb[0].mxu0
  %v7193 = vadd.f32 %v7094, %v7192
  %v7194 = vpop.f32.mrb[0].mxu0
  %7195 = vmatprep.mubr.bf16.mxu0 0
  %7196 = vmatmul.mubr.bf16.gmra.mrb[0].mxu0 %v7103
  %v7197 = vpop.f32.mrb[0].mxu0
  %v7198 = vadd.f32 %v7094, %v7197
  %v7199 = vpop.f32.mrb[0].mxu0
  %v7200 = vpop.f32.mrb[0].mxu0
  %v7201 = vadd.f32 %v7094, %v7200
  %v7202 = vpop.f32.mrb[0].mxu0
  %7203 = vmatprep.mubr.bf16.mxu0 0
  %7204 = vmatmul.mubr.bf16.gmra.mrb[0].mxu0 %v7106
  %v7205 = vpop.f32.mrb[0].mxu0
  %v7206 = vadd.f32 %v7094, %v7205
  %v7207 = vpop.f32.mrb[0].mxu0
  %v7208 = vpop.f32.mrb[0].mxu0
  %v7209 = vadd.f32 %v7094, %v7208
  %v7210 = vpop.f32.mrb[0].mxu0
  %7211 = vmatprep.mubr.bf16.mxu0 0
  %7212 = vmatmul.mubr.bf16.gmra.mrb[0].mxu0 %v7109
  %v7213 = vpop.f32.mrb[0].mxu0
  %v7214 = vadd.f32 %v7094, %v7213
  %v7215 = vpop.f32.mrb[0].mxu0
  %v7216 = vpop.f32.mrb[0].mxu0
  %v7217 = vadd.f32 %v7094, %v7216
  %v7218 = vpop.f32.mrb[0].mxu0
  %7219 = vmatprep.mubr.bf16.mxu0 0
  %7220 = vmatmul.mubr.bf16.gmra.mrb[0].mxu0 %v7112
  %v7221 = vpop.f32.mrb[0].mxu0
  %v7222 = vadd.f32 %v7094, %v7221
  %v7223 = vpop.f32.mrb[0].mxu0
  %v7224 = vpop.f32.mrb[0].mxu0
  %v7225 = vadd.f32 %v7094, %v7224
  %v7226 = vpop.f32.mrb[0].mxu0
  %7227 = vmatprep.mubr.bf16.mxu0 0
  %7228 = vmatmul.mubr.bf16.gmra.mrb[0].mxu0 %v7115
  %v7229 = vpop.f32.mrb[0].mxu0
  %v7230 = vadd.f32 %v7094, %v7229
  %v7231 = vpop.f32.mrb[0].mxu0
  %v7232 = vpop.f32.mrb[0].mxu0
  %v7233 = vadd.f32 %v7094, %v7232
  %v7234 = vpop.f32.mrb[0].mxu0
  %7235 = vmatprep.mubr.bf16.mxu0 0
  %7236 = vmatmul.mubr.bf16.gmra.mrb[0].mxu0 %v7118
  %v7237 = vpop.f32.mrb[0].mxu0
  %v7238 = vadd.f32 %v7094, %v7237
  %v7239 = vpop.f32.mrb[0].mxu0
  %v7240 = vpop.f32.mrb[0].mxu0
  %v7241 = vadd.f32 %v7094, %v7240
  %v7242 = vpop.f32.mrb[0].mxu0
  %7243 = vmatprep.mubr.bf16.mxu0 0
  %7244 = vmatmul.mubr.bf16.gmra.mrb[0].mxu0 %v7121
  %v7245 = vpop.f32.mrb[0].mxu0
  %v7246 = vadd.f32 %v7094, %v7245
  %v7247 = vpop.f32.mrb[0].mxu0
  %v7248 = vpop.f32.mrb[0].mxu0
  %v7249 = vadd.f32 %v7094, %v7248
  %v7250 = vpop.f32.mrb[0].mxu0
  %7251 = vmatprep.mubr.bf16.mxu0 0
  %7252 = vmatmul.mubr.bf16.gmra.mrb[0].mxu0 %v7124
  %v7253 = vpop.f32.mrb[0].mxu0
  %v7254 = vadd.f32 %v7094, %v7253
  %v7255 = vpop.f32.mrb[0].mxu0
  %v7256 = vpop.f32.mrb[0].mxu0
  %v7257 = vadd.f32 %v7094, %v7256
  %v7258 = vpop.f32.mrb[0].mxu0
  %7259 = vmatprep.mubr.bf16.mxu0 0
  %7260 = vmatmul.mubr.bf16.gmra.mrb[0].mxu0 %v7127
  %v7261 = vpop.f32.mrb[0].mxu0
  %v7262 = vadd.f32 %v7094, %v7261
  %v7263 = vpop.f32.mrb[0].mxu0
  %v7264 = vpop.f32.mrb[0].mxu0
  %v7265 = vadd.f32 %v7094, %v7264
  %v7266 = vpop.f32.mrb[0].mxu0
  %7267 = vmatprep.mubr.bf16.mxu0 0
  %7268 = vmatmul.mubr.bf16.gmra.mrb[0].mxu0 %v7130
  %v7269 = vpop.f32.mrb[0].mxu0
  %v7270 = vadd.f32 %v7094, %v7269
  %v7271 = vpop.f32.mrb[0].mxu0
  %v7272 = vpop.f32.mrb[0].mxu0
  %v7273 = vadd.f32 %v7094, %v7272
  %v7274 = vpop.f32.mrb[0].mxu0
  %7275 = vmatprep.mubr.bf16.mxu0 0
  %7276 = vmatmul.mubr.bf16.gmra.mrb[0].mxu0 %v7133
  %v7277 = vpop.f32.mrb[0].mxu0
  %v7278 = vadd.f32 %v7094, %v7277
  %v7279 = vpop.f32.mrb[0].mxu0
  %v7280 = vpop.f32.mrb[0].mxu0
  %v7281 = vadd.f32 %v7094, %v7280
  %v7282 = vpop.f32.mrb[0].mxu0
  %7283 = vmatprep.mubr.bf16.mxu0 0
  %7284 = vmatmul.mubr.bf16.gmra.mrb[0].mxu0 %v7136
  %v7285 = vpop.f32.mrb[0].mxu0
  %v7286 = vadd.f32 %v7094, %v7285
  %v7287 = vpop.f32.mrb[0].mxu0
  %v7288 = vpop.f32.mrb[0].mxu0
  %v7289 = vadd.f32 %v7094, %v7288
  %v7290 = vpop.f32.mrb[0].mxu0
  %7291 = vmatprep.mubr.bf16.mxu0 0
  %7292 = vmatmul.mubr.bf16.gmra.mrb[0].mxu0 %v7139
  %v7293 = vpop.f32.mrb[0].mxu0
  %v7294 = vadd.f32 %v7094, %v7293
  %v7295 = vpop.f32.mrb[0].mxu0
  %v7296 = vpop.f32.mrb[0].mxu0
  %v7297 = vadd.f32 %v7094, %v7296
  %v7298 = vpop.f32.mrb[0].mxu0
  %7299 = vmatprep.mubr.bf16.mxu0 0
  %7300 = vmatmul.mubr.bf16.gmra.mrb[0].mxu0 %v7142
  %v7301 = vpop.f32.mrb[0].mxu0
  %v7302 = vadd.f32 %v7094, %v7301
  %v7303 = vpop.f32.mrb[0].mxu0
  %v7304 = vpop.f32.mrb[0].mxu0
  %v7305 = vadd.f32 %v7094, %v7304
  %v7306 = vpop.f32.mrb[0].mxu0
  %7307 = vdwg.mxu0
  %v7308 = vmax.f32 %v7182, 0.0
  %v7309 = vmax.f32 %v7185, 0.0
  %v7310 = vmax.f32 %v7190, 0.0
  %v7311 = vmax.f32 %v7193, 0.0
  %v7312 = vmax.f32 %v7198, 0.0
  %v7313 = vmax.f32 %v7201, 0.0
  %v7314 = vmax.f32 %v7206, 0.0
  %v7315 = vmax.f32 %v7209, 0.0
  %v7316 = vmax.f32 %v7214, 0.0
  %v7317 = vmax.f32 %v7217, 0.0
  %v7318 = vmax.f32 %v7222, 0.0
  %v7319 = vmax.f32 %v7225, 0.0
  %v7320 = vmax.f32 %v7230, 0.0
  %v7321 = vmax.f32 %v7233, 0.0
  %v7322 = vmax.f32 %v7238, 0.0
  %v7323 = vmax.f32 %v7241, 0.0
  %v7324 = vmax.f32 %v7246, 0.0
  %v7325 = vmax.f32 %v7249, 0.0
  %v7326 = vmax.f32 %v7254, 0.0
  %v7327 = vmax.f32 %v7257, 0.0
  %v7328 = vmax.f32 %v7262, 0.0
  %v7329 = vmax.f32 %v7265, 0.0
  %v7330 = vmax.f32 %v7270, 0.0
  %v7331 = vmax.f32 %v7273, 0.0
  %v7332 = vmax.f32 %v7278, 0.0
  %v7333 = vmax.f32 %v7281, 0.0
  %v7334 = vmax.f32 %v7286, 0.0
  %v7335 = vmax.f32 %v7289, 0.0
  %v7336 = vmax.f32 %v7294, 0.0
  %v7337 = vmax.f32 %v7297, 0.0
  %v7338 = vmax.f32 %v7302, 0.0
  %v7339 = vmax.f32 %v7305, 0.0
  %7340 = vst.msk [vmem:[#allocation3 + $0x18] sm:$0xff] %vm515, %v7308
  %7341 = vst.msk [vmem:[#allocation3 + $0x20] sm:$0xff] %vm515, %v7309
  %7342 = vst.msk [vmem:[#allocation3 + $0x28] sm:$0xff] %vm515, %v7310
  %7343 = vst.msk [vmem:[#allocation3 + $0x30] sm:$0xff] %vm515, %v7311
  %7344 = vst.msk [vmem:[#allocation3 + $0x38] sm:$0xff] %vm515, %v7312
  %7345 = vst.msk [vmem:[#allocation3 + $0x40] sm:$0xff] %vm515, %v7313
  %7346 = vst.msk [vmem:[#allocation3 + $0x48] sm:$0xff] %vm515, %v7314
  %7347 = vst.msk [vmem:[#allocation3 + $0x50] sm:$0xff] %vm515, %v7315
  %7348 = vst.msk [vmem:[#allocation3 + $0x58] sm:$0xff] %vm515, %v7316
  %7349 = vst.msk [vmem:[#allocation3 + $0x60] sm:$0xff] %vm515, %v7317
  %7350 = vst.msk [vmem:[#allocation3 + $0x68] sm:$0xff] %vm515, %v7318
  %7351 = vst.msk [vmem:[#allocation3 + $0x70] sm:$0xff] %vm515, %v7319
  %7352 = vst.msk [vmem:[#allocation3 + $0x78] sm:$0xff] %vm515, %v7320
  %7353 = vst.msk [vmem:[#allocation3 + $0x80] sm:$0xff] %vm515, %v7321
  %7354 = vst.msk [vmem:[#allocation3 + $0x88] sm:$0xff] %vm515, %v7322
  %7355 = vst.msk [vmem:[#allocation3 + $0x90] sm:$0xff] %vm515, %v7323
  %7356 = vst.msk [vmem:[#allocation3 + $0x98] sm:$0xff] %vm515, %v7324
  %7357 = vst.msk [vmem:[#allocation3 + $0xa0] sm:$0xff] %vm515, %v7325
  %7358 = vst.msk [vmem:[#allocation3 + $0xa8] sm:$0xff] %vm515, %v7326
  %7359 = vst.msk [vmem:[#allocation3 + $0xb0] sm:$0xff] %vm515, %v7327
  %7360 = vst.msk [vmem:[#allocation3 + $0xb8] sm:$0xff] %vm515, %v7328
  %7361 = vst.msk [vmem:[#allocation3 + $0xc0] sm:$0xff] %vm515, %v7329
  %7362 = vst.msk [vmem:[#allocation3 + $0xc8] sm:$0xff] %vm515, %v7330
  %7363 = vst.msk [vmem:[#allocation3 + $0xd0] sm:$0xff] %vm515, %v7331
  %7364 = vst.msk [vmem:[#allocation3 + $0xd8] sm:$0xff] %vm515, %v7332
  %7365 = vst.msk [vmem:[#allocation3 + $0xe0] sm:$0xff] %vm515, %v7333
  %7366 = vst.msk [vmem:[#allocation3 + $0xe8] sm:$0xff] %vm515, %v7334
  %7367 = vst.msk [vmem:[#allocation3 + $0xf0] sm:$0xff] %vm515, %v7335
  %7368 = vst.msk [vmem:[#allocation3 + $0xf8] sm:$0xff] %vm515, %v7336
  %7369 = vst.msk [vmem:[#allocation3 + $0x100] sm:$0xff] %vm515, %v7337
  %7370 = vst.msk [vmem:[#allocation3 + $0x108] sm:$0xff] %vm515, %v7338
  %7371 = vst.msk [vmem:[#allocation3 + $0x110] sm:$0xff] %vm515, %v7339
  %v7372 = vld [vmem:[#allocation3 + $0x7] sm:$0xff]
  %v7373 = vld [vmem:[#allocation3 + $0xf] sm:$0xff]
  %v7374 = vld [vmem:[#allocation3 + $0x17] sm:$0xff]
  %v7375 = vld [vmem:[#allocation3 + $0x1f] sm:$0xff]
  %v7376 = vld [vmem:[#allocation3 + $0x27] sm:$0xff]
  %v7377 = vld [vmem:[#allocation3 + $0x2f] sm:$0xff]
  %v7378 = vld [vmem:[#allocation3 + $0x37] sm:$0xff]
  %v7379 = vld [vmem:[#allocation3 + $0x3f] sm:$0xff]
  %v7380 = vld [vmem:[#allocation3 + $0x47] sm:$0xff]
  %v7381 = vld [vmem:[#allocation3 + $0x4f] sm:$0xff]
  %v7382 = vld [vmem:[#allocation3 + $0x57] sm:$0xff]
  %v7383 = vld [vmem:[#allocation3 + $0x5f] sm:$0xff]
  %v7384 = vld [vmem:[#allocation3 + $0x67] sm:$0xff]
  %v7385 = vld [vmem:[#allocation3 + $0x6f] sm:$0xff]
  %v7386 = vld [vmem:[#allocation3 + $0x77] sm:$0xff]
  %v7387 = vld [vmem:[#allocation3 + $0x7f] sm:$0xff]
  %v7388 = vld [vmem:[#allocation3 + $0x87] sm:$0xff]
  %v7389 = vld [vmem:[#allocation3 + $0x8f] sm:$0xff]
  %v7390 = vld [vmem:[#allocation3 + $0x97] sm:$0xff]
  %v7391 = vld [vmem:[#allocation3 + $0x9f] sm:$0xff]
  %v7392 = vld [vmem:[#allocation3 + $0xa7] sm:$0xff]
  %v7393 = vld [vmem:[#allocation3 + $0xaf] sm:$0xff]
  %v7394 = vld [vmem:[#allocation3 + $0xb7] sm:$0xff]
  %v7395 = vld [vmem:[#allocation3 + $0xbf] sm:$0xff]
  %v7396 = vld [vmem:[#allocation3 + $0xc7] sm:$0xff]
  %v7397 = vld [vmem:[#allocation3 + $0xcf] sm:$0xff]
  %v7398 = vld [vmem:[#allocation3 + $0xd7] sm:$0xff]
  %v7399 = vld [vmem:[#allocation3 + $0xdf] sm:$0xff]
  %v7400 = vld [vmem:[#allocation3 + $0xe7] sm:$0xff]
  %v7401 = vld [vmem:[#allocation3 + $0xef] sm:$0xff]
  %v7402 = vld [vmem:[#allocation3 + $0xf7] sm:$0xff]
  %v7403 = vld [vmem:[#allocation3 + $0xff] sm:$0xff]
  %v7404 = vsel %vm650, %v7372, 0.0
  %v7405 = vsel %vm651, %v7373, 0.0
  %v7406 = vsel %vm652, %v7374, 0.0
  %v7407 = vsel %vm653, %v7375, 0.0
  %v7408 = vsel %vm654, %v7376, 0.0
  %v7409 = vsel %vm655, %v7377, 0.0
  %v7410 = vsel %vm656, %v7378, 0.0
  %v7411 = vsel %vm657, %v7379, 0.0
  %v7412 = vsel %vm658, %v7380, 0.0
  %v7413 = vsel %vm659, %v7381, 0.0
  %v7414 = vsel %vm660, %v7382, 0.0
  %v7415 = vsel %vm661, %v7383, 0.0
  %v7416 = vsel %vm662, %v7384, 0.0
  %v7417 = vsel %vm663, %v7385, 0.0
  %v7418 = vsel %vm664, %v7386, 0.0
  %v7419 = vsel %vm665, %v7387, 0.0
  %v7420 = vsel %vm666, %v7388, 0.0
  %v7421 = vsel %vm667, %v7389, 0.0
  %v7422 = vsel %vm668, %v7390, 0.0
  %v7423 = vsel %vm669, %v7391, 0.0
  %v7424 = vsel %vm670, %v7392, 0.0
  %v7425 = vsel %vm671, %v7393, 0.0
  %v7426 = vsel %vm672, %v7394, 0.0
  %v7427 = vsel %vm673, %v7395, 0.0
  %v7428 = vsel %vm674, %v7396, 0.0
  %v7429 = vsel %vm675, %v7397, 0.0
  %v7430 = vsel %vm676, %v7398, 0.0
  %v7431 = vsel %vm677, %v7399, 0.0
  %v7432 = vsel %vm678, %v7400, 0.0
  %v7433 = vsel %vm679, %v7401, 0.0
  %v7434 = vsel %vm680, %v7402, 0.0
  %v7435 = vsel %vm681, %v7403, 0.0
  %7436 = vst.msk [vmem:[#allocation5] sm:$0xff] %vm515, %v7404
  %7437 = vst.msk [vmem:[#allocation5 + $0x10] sm:$0xff] %vm515, %v7405
  %7438 = vst.msk [vmem:[#allocation5 + $0x20] sm:$0xff] %vm515, %v7406
  %7439 = vst.msk [vmem:[#allocation5 + $0x30] sm:$0xff] %vm515, %v7407
  %7440 = vst.msk [vmem:[#allocation5 + $0x40] sm:$0xff] %vm515, %v7408
  %7441 = vst.msk [vmem:[#allocation5 + $0x50] sm:$0xff] %vm515, %v7409
  %7442 = vst.msk [vmem:[#allocation5 + $0x60] sm:$0xff] %vm515, %v7410
  %7443 = vst.msk [vmem:[#allocation5 + $0x70] sm:$0xff] %vm515, %v7411
  %7444 = vst.msk [vmem:[#allocation5 + $0x80] sm:$0xff] %vm515, %v7412
  %7445 = vst.msk [vmem:[#allocation5 + $0x90] sm:$0xff] %vm515, %v7413
  %7446 = vst.msk [vmem:[#allocation5 + $0xa0] sm:$0xff] %vm515, %v7414
  %7447 = vst.msk [vmem:[#allocation5 + $0xb0] sm:$0xff] %vm515, %v7415
  %7448 = vst.msk [vmem:[#allocation5 + $0xc0] sm:$0xff] %vm515, %v7416
  %7449 = vst.msk [vmem:[#allocation5 + $0xd0] sm:$0xff] %vm515, %v7417
  %7450 = vst.msk [vmem:[#allocation5 + $0xe0] sm:$0xff] %vm515, %v7418
  %7451 = vst.msk [vmem:[#allocation5 + $0xf0] sm:$0xff] %vm515, %v7419
  %7452 = vst.msk [vmem:[#allocation5 + $0x100] sm:$0xff] %vm515, %v7420
  %7453 = vst.msk [vmem:[#allocation5 + $0x110] sm:$0xff] %vm515, %v7421
  %7454 = vst.msk [vmem:[#allocation5 + $0x120] sm:$0xff] %vm515, %v7422
  %7455 = vst.msk [vmem:[#allocation5 + $0x130] sm:$0xff] %vm515, %v7423
  %7456 = vst.msk [vmem:[#allocation5 + $0x140] sm:$0xff] %vm515, %v7424
  %7457 = vst.msk [vmem:[#allocation5 + $0x150] sm:$0xff] %vm515, %v7425
  %7458 = vst.msk [vmem:[#allocation5 + $0x160] sm:$0xff] %vm515, %v7426
  %7459 = vst.msk [vmem:[#allocation5 + $0x170] sm:$0xff] %vm515, %v7427
  %7460 = vst.msk [vmem:[#allocation5 + $0x180] sm:$0xff] %vm515, %v7428
  %7461 = vst.msk [vmem:[#allocation5 + $0x190] sm:$0xff] %vm515, %v7429
  %7462 = vst.msk [vmem:[#allocation5 + $0x1a0] sm:$0xff] %vm515, %v7430
  %7463 = vst.msk [vmem:[#allocation5 + $0x1b0] sm:$0xff] %vm515, %v7431
  %7464 = vst.msk [vmem:[#allocation5 + $0x1c0] sm:$0xff] %vm515, %v7432
  %7465 = vst.msk [vmem:[#allocation5 + $0x1d0] sm:$0xff] %vm515, %v7433
  %7466 = vst.msk [vmem:[#allocation5 + $0x1e0] sm:$0xff] %vm515, %v7434
  %7467 = vst.msk [vmem:[#allocation5 + $0x1f0] sm:$0xff] %vm515, %v7435
  %v7468 = vld [vmem:[#allocation3 + $0x8] sm:$0xff]
  %v7469 = vld [vmem:[#allocation3 + $0x10] sm:$0xff]
  %v7470 = vld [vmem:[#allocation3 + $0x18] sm:$0xff]
  %v7471 = vld [vmem:[#allocation3 + $0x20] sm:$0xff]
  %v7472 = vld [vmem:[#allocation3 + $0x28] sm:$0xff]
  %v7473 = vld [vmem:[#allocation3 + $0x30] sm:$0xff]
  %v7474 = vld [vmem:[#allocation3 + $0x38] sm:$0xff]
  %v7475 = vld [vmem:[#allocation3 + $0x40] sm:$0xff]
  %v7476 = vld [vmem:[#allocation3 + $0x48] sm:$0xff]
  %v7477 = vld [vmem:[#allocation3 + $0x50] sm:$0xff]
  %v7478 = vld [vmem:[#allocation3 + $0x58] sm:$0xff]
  %v7479 = vld [vmem:[#allocation3 + $0x60] sm:$0xff]
  %v7480 = vld [vmem:[#allocation3 + $0x68] sm:$0xff]
  %v7481 = vld [vmem:[#allocation3 + $0x70] sm:$0xff]
  %v7482 = vld [vmem:[#allocation3 + $0x78] sm:$0xff]
  %v7483 = vld [vmem:[#allocation3 + $0x80] sm:$0xff]
  %v7484 = vld [vmem:[#allocation3 + $0x88] sm:$0xff]
  %v7485 = vld [vmem:[#allocation3 + $0x90] sm:$0xff]
  %v7486 = vld [vmem:[#allocation3 + $0x98] sm:$0xff]
  %v7487 = vld [vmem:[#allocation3 + $0xa0] sm:$0xff]
  %v7488 = vld [vmem:[#allocation3 + $0xa8] sm:$0xff]
  %v7489 = vld [vmem:[#allocation3 + $0xb0] sm:$0xff]
  %v7490 = vld [vmem:[#allocation3 + $0xb8] sm:$0xff]
  %v7491 = vld [vmem:[#allocation3 + $0xc0] sm:$0xff]
  %v7492 = vld [vmem:[#allocation3 + $0xc8] sm:$0xff]
  %v7493 = vld [vmem:[#allocation3 + $0xd0] sm:$0xff]
  %v7494 = vld [vmem:[#allocation3 + $0xd8] sm:$0xff]
  %v7495 = vld [vmem:[#allocation3 + $0xe0] sm:$0xff]
  %v7496 = vld [vmem:[#allocation3 + $0xe8] sm:$0xff]
  %v7497 = vld [vmem:[#allocation3 + $0xf0] sm:$0xff]
  %v7498 = vld [vmem:[#allocation3 + $0xf8] sm:$0xff]
  %v7499 = vld [vmem:[#allocation3 + $0x100] sm:$0xff]
  %7532 = vrot.lane.b32.xlu0 %v7468, 16
  %v7533 = vpop.permute.xlu0 %7532
  %7534 = vrot.lane.b32.xlu0 %v7469, 16
  %v7535 = vpop.permute.xlu0 %7534
  %7536 = vrot.lane.b32.xlu0 %v7470, 16
  %v7537 = vpop.permute.xlu0 %7536
  %7538 = vrot.lane.b32.xlu0 %v7471, 16
  %v7539 = vpop.permute.xlu0 %7538
  %7540 = vrot.lane.b32.xlu0 %v7472, 16
  %v7541 = vpop.permute.xlu0 %7540
  %7542 = vrot.lane.b32.xlu0 %v7473, 16
  %v7543 = vpop.permute.xlu0 %7542
  %7544 = vrot.lane.b32.xlu0 %v7474, 16
  %v7545 = vpop.permute.xlu0 %7544
  %7546 = vrot.lane.b32.xlu0 %v7475, 16
  %v7547 = vpop.permute.xlu0 %7546
  %7548 = vrot.lane.b32.xlu0 %v7476, 16
  %v7549 = vpop.permute.xlu0 %7548
  %7550 = vrot.lane.b32.xlu0 %v7477, 16
  %v7551 = vpop.permute.xlu0 %7550
  %7552 = vrot.lane.b32.xlu0 %v7478, 16
  %v7553 = vpop.permute.xlu0 %7552
  %7554 = vrot.lane.b32.xlu0 %v7479, 16
  %v7555 = vpop.permute.xlu0 %7554
  %7556 = vrot.lane.b32.xlu0 %v7480, 16
  %v7557 = vpop.permute.xlu0 %7556
  %7558 = vrot.lane.b32.xlu0 %v7481, 16
  %v7559 = vpop.permute.xlu0 %7558
  %7560 = vrot.lane.b32.xlu0 %v7482, 16
  %v7561 = vpop.permute.xlu0 %7560
  %7562 = vrot.lane.b32.xlu0 %v7483, 16
  %v7563 = vpop.permute.xlu0 %7562
  %7564 = vrot.lane.b32.xlu0 %v7484, 16
  %v7565 = vpop.permute.xlu0 %7564
  %7566 = vrot.lane.b32.xlu0 %v7485, 16
  %v7567 = vpop.permute.xlu0 %7566
  %7568 = vrot.lane.b32.xlu0 %v7486, 16
  %v7569 = vpop.permute.xlu0 %7568
  %7570 = vrot.lane.b32.xlu0 %v7487, 16
  %v7571 = vpop.permute.xlu0 %7570
  %7572 = vrot.lane.b32.xlu0 %v7488, 16
  %v7573 = vpop.permute.xlu0 %7572
  %7574 = vrot.lane.b32.xlu0 %v7489, 16
  %v7575 = vpop.permute.xlu0 %7574
  %7576 = vrot.lane.b32.xlu0 %v7490, 16
  %v7577 = vpop.permute.xlu0 %7576
  %7578 = vrot.lane.b32.xlu0 %v7491, 16
  %v7579 = vpop.permute.xlu0 %7578
  %7580 = vrot.lane.b32.xlu0 %v7492, 16
  %v7581 = vpop.permute.xlu0 %7580
  %7582 = vrot.lane.b32.xlu0 %v7493, 16
  %v7583 = vpop.permute.xlu0 %7582
  %7584 = vrot.lane.b32.xlu0 %v7494, 16
  %v7585 = vpop.permute.xlu0 %7584
  %7586 = vrot.lane.b32.xlu0 %v7495, 16
  %v7587 = vpop.permute.xlu0 %7586
  %7588 = vrot.lane.b32.xlu0 %v7496, 16
  %v7589 = vpop.permute.xlu0 %7588
  %7590 = vrot.lane.b32.xlu0 %v7497, 16
  %v7591 = vpop.permute.xlu0 %7590
  %7592 = vrot.lane.b32.xlu0 %v7498, 16
  %v7593 = vpop.permute.xlu0 %7592
  %7594 = vrot.lane.b32.xlu0 %v7499, 16
  %v7595 = vpop.permute.xlu0 %7594
  %7628 = vst.msk [vmem:[#allocation5] sm:$0xff] %vm3117, %v7533
  %7629 = vst.msk [vmem:[#allocation5 + $0x10] sm:$0xff] %vm3117, %v7535
  %7630 = vst.msk [vmem:[#allocation5 + $0x20] sm:$0xff] %vm3117, %v7537
  %7631 = vst.msk [vmem:[#allocation5 + $0x30] sm:$0xff] %vm3117, %v7539
  %7632 = vst.msk [vmem:[#allocation5 + $0x40] sm:$0xff] %vm3117, %v7541
  %7633 = vst.msk [vmem:[#allocation5 + $0x50] sm:$0xff] %vm3117, %v7543
  %7634 = vst.msk [vmem:[#allocation5 + $0x60] sm:$0xff] %vm3117, %v7545
  %7635 = vst.msk [vmem:[#allocation5 + $0x70] sm:$0xff] %vm3117, %v7547
  %7636 = vst.msk [vmem:[#allocation5 + $0x80] sm:$0xff] %vm3117, %v7549
  %7637 = vst.msk [vmem:[#allocation5 + $0x90] sm:$0xff] %vm3117, %v7551
  %7638 = vst.msk [vmem:[#allocation5 + $0xa0] sm:$0xff] %vm3117, %v7553
  %7639 = vst.msk [vmem:[#allocation5 + $0xb0] sm:$0xff] %vm3117, %v7555
  %7640 = vst.msk [vmem:[#allocation5 + $0xc0] sm:$0xff] %vm3117, %v7557
  %7641 = vst.msk [vmem:[#allocation5 + $0xd0] sm:$0xff] %vm3117, %v7559
  %7642 = vst.msk [vmem:[#allocation5 + $0xe0] sm:$0xff] %vm3117, %v7561
  %7643 = vst.msk [vmem:[#allocation5 + $0xf0] sm:$0xff] %vm3117, %v7563
  %7644 = vst.msk [vmem:[#allocation5 + $0x100] sm:$0xff] %vm3117, %v7565
  %7645 = vst.msk [vmem:[#allocation5 + $0x110] sm:$0xff] %vm3117, %v7567
  %7646 = vst.msk [vmem:[#allocation5 + $0x120] sm:$0xff] %vm3117, %v7569
  %7647 = vst.msk [vmem:[#allocation5 + $0x130] sm:$0xff] %vm3117, %v7571
  %7648 = vst.msk [vmem:[#allocation5 + $0x140] sm:$0xff] %vm3117, %v7573
  %7649 = vst.msk [vmem:[#allocation5 + $0x150] sm:$0xff] %vm3117, %v7575
  %7650 = vst.msk [vmem:[#allocation5 + $0x160] sm:$0xff] %vm3117, %v7577
  %7651 = vst.msk [vmem:[#allocation5 + $0x170] sm:$0xff] %vm3117, %v7579
  %7652 = vst.msk [vmem:[#allocation5 + $0x180] sm:$0xff] %vm3117, %v7581
  %7653 = vst.msk [vmem:[#allocation5 + $0x190] sm:$0xff] %vm3117, %v7583
  %7654 = vst.msk [vmem:[#allocation5 + $0x1a0] sm:$0xff] %vm3117, %v7585
  %7655 = vst.msk [vmem:[#allocation5 + $0x1b0] sm:$0xff] %vm3117, %v7587
  %7656 = vst.msk [vmem:[#allocation5 + $0x1c0] sm:$0xff] %vm3117, %v7589
  %7657 = vst.msk [vmem:[#allocation5 + $0x1d0] sm:$0xff] %vm3117, %v7591
  %7658 = vst.msk [vmem:[#allocation5 + $0x1e0] sm:$0xff] %vm3117, %v7593
  %7659 = vst.msk [vmem:[#allocation5 + $0x1f0] sm:$0xff] %vm3117, %v7595
  %v7660 = vld [vmem:[#allocation3 + $0x9] sm:$0xff]
  %v7661 = vld [vmem:[#allocation3 + $0x11] sm:$0xff]
  %v7662 = vld [vmem:[#allocation3 + $0x19] sm:$0xff]
  %v7663 = vld [vmem:[#allocation3 + $0x21] sm:$0xff]
  %v7664 = vld [vmem:[#allocation3 + $0x29] sm:$0xff]
  %v7665 = vld [vmem:[#allocation3 + $0x31] sm:$0xff]
  %v7666 = vld [vmem:[#allocation3 + $0x39] sm:$0xff]
  %v7667 = vld [vmem:[#allocation3 + $0x41] sm:$0xff]
  %v7668 = vld [vmem:[#allocation3 + $0x49] sm:$0xff]
  %v7669 = vld [vmem:[#allocation3 + $0x51] sm:$0xff]
  %v7670 = vld [vmem:[#allocation3 + $0x59] sm:$0xff]
  %v7671 = vld [vmem:[#allocation3 + $0x61] sm:$0xff]
  %v7672 = vld [vmem:[#allocation3 + $0x69] sm:$0xff]
  %v7673 = vld [vmem:[#allocation3 + $0x71] sm:$0xff]
  %v7674 = vld [vmem:[#allocation3 + $0x79] sm:$0xff]
  %v7675 = vld [vmem:[#allocation3 + $0x81] sm:$0xff]
  %v7676 = vld [vmem:[#allocation3 + $0x89] sm:$0xff]
  %v7677 = vld [vmem:[#allocation3 + $0x91] sm:$0xff]
  %v7678 = vld [vmem:[#allocation3 + $0x99] sm:$0xff]
  %v7679 = vld [vmem:[#allocation3 + $0xa1] sm:$0xff]
  %v7680 = vld [vmem:[#allocation3 + $0xa9] sm:$0xff]
  %v7681 = vld [vmem:[#allocation3 + $0xb1] sm:$0xff]
  %v7682 = vld [vmem:[#allocation3 + $0xb9] sm:$0xff]
  %v7683 = vld [vmem:[#allocation3 + $0xc1] sm:$0xff]
  %v7684 = vld [vmem:[#allocation3 + $0xc9] sm:$0xff]
  %v7685 = vld [vmem:[#allocation3 + $0xd1] sm:$0xff]
  %v7686 = vld [vmem:[#allocation3 + $0xd9] sm:$0xff]
  %v7687 = vld [vmem:[#allocation3 + $0xe1] sm:$0xff]
  %v7688 = vld [vmem:[#allocation3 + $0xe9] sm:$0xff]
  %v7689 = vld [vmem:[#allocation3 + $0xf1] sm:$0xff]
  %v7690 = vld [vmem:[#allocation3 + $0xf9] sm:$0xff]
  %v7691 = vld [vmem:[#allocation3 + $0x101] sm:$0xff]
  %v7692 = vsel %vm1003, %v7660, 0.0
  %v7693 = vsel %vm1004, %v7661, 0.0
  %v7694 = vsel %vm1005, %v7662, 0.0
  %v7695 = vsel %vm1006, %v7663, 0.0
  %v7696 = vsel %vm1007, %v7664, 0.0
  %v7697 = vsel %vm1008, %v7665, 0.0
  %v7698 = vsel %vm1009, %v7666, 0.0
  %v7699 = vsel %vm1010, %v7667, 0.0
  %v7700 = vsel %vm1011, %v7668, 0.0
  %v7701 = vsel %vm1012, %v7669, 0.0
  %v7702 = vsel %vm1013, %v7670, 0.0
  %v7703 = vsel %vm1014, %v7671, 0.0
  %v7704 = vsel %vm1015, %v7672, 0.0
  %v7705 = vsel %vm1016, %v7673, 0.0
  %v7706 = vsel %vm1017, %v7674, 0.0
  %v7707 = vsel %vm1018, %v7675, 0.0
  %v7708 = vsel %vm1019, %v7676, 0.0
  %v7709 = vsel %vm1020, %v7677, 0.0
  %v7710 = vsel %vm1021, %v7678, 0.0
  %v7711 = vsel %vm1022, %v7679, 0.0
  %v7712 = vsel %vm1023, %v7680, 0.0
  %v7713 = vsel %vm1024, %v7681, 0.0
  %v7714 = vsel %vm1025, %v7682, 0.0
  %v7715 = vsel %vm1026, %v7683, 0.0
  %v7716 = vsel %vm1027, %v7684, 0.0
  %v7717 = vsel %vm1028, %v7685, 0.0
  %v7718 = vsel %vm1029, %v7686, 0.0
  %v7719 = vsel %vm1030, %v7687, 0.0
  %v7720 = vsel %vm1031, %v7688, 0.0
  %v7721 = vsel %vm1032, %v7689, 0.0
  %v7722 = vsel %vm1033, %v7690, 0.0
  %v7723 = vsel %vm1034, %v7691, 0.0
  %7756 = vrot.lane.b32.xlu0 %v7692, 32
  %v7757 = vpop.permute.xlu0 %7756
  %7758 = vrot.lane.b32.xlu0 %v7693, 32
  %v7759 = vpop.permute.xlu0 %7758
  %7760 = vrot.lane.b32.xlu0 %v7694, 32
  %v7761 = vpop.permute.xlu0 %7760
  %7762 = vrot.lane.b32.xlu0 %v7695, 32
  %v7763 = vpop.permute.xlu0 %7762
  %7764 = vrot.lane.b32.xlu0 %v7696, 32
  %v7765 = vpop.permute.xlu0 %7764
  %7766 = vrot.lane.b32.xlu0 %v7697, 32
  %v7767 = vpop.permute.xlu0 %7766
  %7768 = vrot.lane.b32.xlu0 %v7698, 32
  %v7769 = vpop.permute.xlu0 %7768
  %7770 = vrot.lane.b32.xlu0 %v7699, 32
  %v7771 = vpop.permute.xlu0 %7770
  %7772 = vrot.lane.b32.xlu0 %v7700, 32
  %v7773 = vpop.permute.xlu0 %7772
  %7774 = vrot.lane.b32.xlu0 %v7701, 32
  %v7775 = vpop.permute.xlu0 %7774
  %7776 = vrot.lane.b32.xlu0 %v7702, 32
  %v7777 = vpop.permute.xlu0 %7776
  %7778 = vrot.lane.b32.xlu0 %v7703, 32
  %v7779 = vpop.permute.xlu0 %7778
  %7780 = vrot.lane.b32.xlu0 %v7704, 32
  %v7781 = vpop.permute.xlu0 %7780
  %7782 = vrot.lane.b32.xlu0 %v7705, 32
  %v7783 = vpop.permute.xlu0 %7782
  %7784 = vrot.lane.b32.xlu0 %v7706, 32
  %v7785 = vpop.permute.xlu0 %7784
  %7786 = vrot.lane.b32.xlu0 %v7707, 32
  %v7787 = vpop.permute.xlu0 %7786
  %7788 = vrot.lane.b32.xlu0 %v7708, 32
  %v7789 = vpop.permute.xlu0 %7788
  %7790 = vrot.lane.b32.xlu0 %v7709, 32
  %v7791 = vpop.permute.xlu0 %7790
  %7792 = vrot.lane.b32.xlu0 %v7710, 32
  %v7793 = vpop.permute.xlu0 %7792
  %7794 = vrot.lane.b32.xlu0 %v7711, 32
  %v7795 = vpop.permute.xlu0 %7794
  %7796 = vrot.lane.b32.xlu0 %v7712, 32
  %v7797 = vpop.permute.xlu0 %7796
  %7798 = vrot.lane.b32.xlu0 %v7713, 32
  %v7799 = vpop.permute.xlu0 %7798
  %7800 = vrot.lane.b32.xlu0 %v7714, 32
  %v7801 = vpop.permute.xlu0 %7800
  %7802 = vrot.lane.b32.xlu0 %v7715, 32
  %v7803 = vpop.permute.xlu0 %7802
  %7804 = vrot.lane.b32.xlu0 %v7716, 32
  %v7805 = vpop.permute.xlu0 %7804
  %7806 = vrot.lane.b32.xlu0 %v7717, 32
  %v7807 = vpop.permute.xlu0 %7806
  %7808 = vrot.lane.b32.xlu0 %v7718, 32
  %v7809 = vpop.permute.xlu0 %7808
  %7810 = vrot.lane.b32.xlu0 %v7719, 32
  %v7811 = vpop.permute.xlu0 %7810
  %7812 = vrot.lane.b32.xlu0 %v7720, 32
  %v7813 = vpop.permute.xlu0 %7812
  %7814 = vrot.lane.b32.xlu0 %v7721, 32
  %v7815 = vpop.permute.xlu0 %7814
  %7816 = vrot.lane.b32.xlu0 %v7722, 32
  %v7817 = vpop.permute.xlu0 %7816
  %7818 = vrot.lane.b32.xlu0 %v7723, 32
  %v7819 = vpop.permute.xlu0 %7818
  %7852 = vst.msk [vmem:[#allocation5] sm:$0xff] %vm3342, %v7757
  %7853 = vst.msk [vmem:[#allocation5 + $0x10] sm:$0xff] %vm3342, %v7759
  %7854 = vst.msk [vmem:[#allocation5 + $0x20] sm:$0xff] %vm3342, %v7761
  %7855 = vst.msk [vmem:[#allocation5 + $0x30] sm:$0xff] %vm3342, %v7763
  %7856 = vst.msk [vmem:[#allocation5 + $0x40] sm:$0xff] %vm3342, %v7765
  %7857 = vst.msk [vmem:[#allocation5 + $0x50] sm:$0xff] %vm3342, %v7767
  %7858 = vst.msk [vmem:[#allocation5 + $0x60] sm:$0xff] %vm3342, %v7769
  %7859 = vst.msk [vmem:[#allocation5 + $0x70] sm:$0xff] %vm3342, %v7771
  %7860 = vst.msk [vmem:[#allocation5 + $0x80] sm:$0xff] %vm3342, %v7773
  %7861 = vst.msk [vmem:[#allocation5 + $0x90] sm:$0xff] %vm3342, %v7775
  %7862 = vst.msk [vmem:[#allocation5 + $0xa0] sm:$0xff] %vm3342, %v7777
  %7863 = vst.msk [vmem:[#allocation5 + $0xb0] sm:$0xff] %vm3342, %v7779
  %7864 = vst.msk [vmem:[#allocation5 + $0xc0] sm:$0xff] %vm3342, %v7781
  %7865 = vst.msk [vmem:[#allocation5 + $0xd0] sm:$0xff] %vm3342, %v7783
  %7866 = vst.msk [vmem:[#allocation5 + $0xe0] sm:$0xff] %vm3342, %v7785
  %7867 = vst.msk [vmem:[#allocation5 + $0xf0] sm:$0xff] %vm3342, %v7787
  %7868 = vst.msk [vmem:[#allocation5 + $0x100] sm:$0xff] %vm3342, %v7789
  %7869 = vst.msk [vmem:[#allocation5 + $0x110] sm:$0xff] %vm3342, %v7791
  %7870 = vst.msk [vmem:[#allocation5 + $0x120] sm:$0xff] %vm3342, %v7793
  %7871 = vst.msk [vmem:[#allocation5 + $0x130] sm:$0xff] %vm3342, %v7795
  %7872 = vst.msk [vmem:[#allocation5 + $0x140] sm:$0xff] %vm3342, %v7797
  %7873 = vst.msk [vmem:[#allocation5 + $0x150] sm:$0xff] %vm3342, %v7799
  %7874 = vst.msk [vmem:[#allocation5 + $0x160] sm:$0xff] %vm3342, %v7801
  %7875 = vst.msk [vmem:[#allocation5 + $0x170] sm:$0xff] %vm3342, %v7803
  %7876 = vst.msk [vmem:[#allocation5 + $0x180] sm:$0xff] %vm3342, %v7805
  %7877 = vst.msk [vmem:[#allocation5 + $0x190] sm:$0xff] %vm3342, %v7807
  %7878 = vst.msk [vmem:[#allocation5 + $0x1a0] sm:$0xff] %vm3342, %v7809
  %7879 = vst.msk [vmem:[#allocation5 + $0x1b0] sm:$0xff] %vm3342, %v7811
  %7880 = vst.msk [vmem:[#allocation5 + $0x1c0] sm:$0xff] %vm3342, %v7813
  %7881 = vst.msk [vmem:[#allocation5 + $0x1d0] sm:$0xff] %vm3342, %v7815
  %7882 = vst.msk [vmem:[#allocation5 + $0x1e0] sm:$0xff] %vm3342, %v7817
  %7883 = vst.msk [vmem:[#allocation5 + $0x1f0] sm:$0xff] %vm3342, %v7819
  %v7884 = vld [vmem:[#allocation3 + $0x17] sm:$0xff]
  %v7885 = vld [vmem:[#allocation3 + $0x1f] sm:$0xff]
  %v7886 = vld [vmem:[#allocation3 + $0x27] sm:$0xff]
  %v7887 = vld [vmem:[#allocation3 + $0x2f] sm:$0xff]
  %v7888 = vld [vmem:[#allocation3 + $0x37] sm:$0xff]
  %v7889 = vld [vmem:[#allocation3 + $0x3f] sm:$0xff]
  %v7890 = vld [vmem:[#allocation3 + $0x47] sm:$0xff]
  %v7891 = vld [vmem:[#allocation3 + $0x4f] sm:$0xff]
  %v7892 = vld [vmem:[#allocation3 + $0x57] sm:$0xff]
  %v7893 = vld [vmem:[#allocation3 + $0x5f] sm:$0xff]
  %v7894 = vld [vmem:[#allocation3 + $0x67] sm:$0xff]
  %v7895 = vld [vmem:[#allocation3 + $0x6f] sm:$0xff]
  %v7896 = vld [vmem:[#allocation3 + $0x77] sm:$0xff]
  %v7897 = vld [vmem:[#allocation3 + $0x7f] sm:$0xff]
  %v7898 = vld [vmem:[#allocation3 + $0x87] sm:$0xff]
  %v7899 = vld [vmem:[#allocation3 + $0x8f] sm:$0xff]
  %v7900 = vld [vmem:[#allocation3 + $0x97] sm:$0xff]
  %v7901 = vld [vmem:[#allocation3 + $0x9f] sm:$0xff]
  %v7902 = vld [vmem:[#allocation3 + $0xa7] sm:$0xff]
  %v7903 = vld [vmem:[#allocation3 + $0xaf] sm:$0xff]
  %v7904 = vld [vmem:[#allocation3 + $0xb7] sm:$0xff]
  %v7905 = vld [vmem:[#allocation3 + $0xbf] sm:$0xff]
  %v7906 = vld [vmem:[#allocation3 + $0xc7] sm:$0xff]
  %v7907 = vld [vmem:[#allocation3 + $0xcf] sm:$0xff]
  %v7908 = vld [vmem:[#allocation3 + $0xd7] sm:$0xff]
  %v7909 = vld [vmem:[#allocation3 + $0xdf] sm:$0xff]
  %v7910 = vld [vmem:[#allocation3 + $0xe7] sm:$0xff]
  %v7911 = vld [vmem:[#allocation3 + $0xef] sm:$0xff]
  %v7912 = vld [vmem:[#allocation3 + $0xf7] sm:$0xff]
  %v7913 = vld [vmem:[#allocation3 + $0xff] sm:$0xff]
  %v7914 = vld [vmem:[#allocation3 + $0x107] sm:$0xff]
  %v7915 = vld [vmem:[#allocation3 + $0x10f] sm:$0xff]
  %v7916 = vsel %vm650, %v7884, 0.0
  %v7917 = vsel %vm651, %v7885, 0.0
  %v7918 = vsel %vm652, %v7886, 0.0
  %v7919 = vsel %vm653, %v7887, 0.0
  %v7920 = vsel %vm654, %v7888, 0.0
  %v7921 = vsel %vm655, %v7889, 0.0
  %v7922 = vsel %vm656, %v7890, 0.0
  %v7923 = vsel %vm657, %v7891, 0.0
  %v7924 = vsel %vm658, %v7892, 0.0
  %v7925 = vsel %vm659, %v7893, 0.0
  %v7926 = vsel %vm660, %v7894, 0.0
  %v7927 = vsel %vm661, %v7895, 0.0
  %v7928 = vsel %vm662, %v7896, 0.0
  %v7929 = vsel %vm663, %v7897, 0.0
  %v7930 = vsel %vm664, %v7898, 0.0
  %v7931 = vsel %vm665, %v7899, 0.0
  %v7932 = vsel %vm666, %v7900, 0.0
  %v7933 = vsel %vm667, %v7901, 0.0
  %v7934 = vsel %vm668, %v7902, 0.0
  %v7935 = vsel %vm669, %v7903, 0.0
  %v7936 = vsel %vm670, %v7904, 0.0
  %v7937 = vsel %vm671, %v7905, 0.0
  %v7938 = vsel %vm672, %v7906, 0.0
  %v7939 = vsel %vm673, %v7907, 0.0
  %v7940 = vsel %vm674, %v7908, 0.0
  %v7941 = vsel %vm675, %v7909, 0.0
  %v7942 = vsel %vm676, %v7910, 0.0
  %v7943 = vsel %vm677, %v7911, 0.0
  %v7944 = vsel %vm678, %v7912, 0.0
  %v7945 = vsel %vm679, %v7913, 0.0
  %v7946 = vsel %vm680, %v7914, 0.0
  %v7947 = vsel %vm681, %v7915, 0.0
  %7980 = vrot.lane.b32.xlu0 %v7916, 48
  %v7981 = vpop.permute.xlu0 %7980
  %7982 = vrot.lane.b32.xlu0 %v7917, 48
  %v7983 = vpop.permute.xlu0 %7982
  %7984 = vrot.lane.b32.xlu0 %v7918, 48
  %v7985 = vpop.permute.xlu0 %7984
  %7986 = vrot.lane.b32.xlu0 %v7919, 48
  %v7987 = vpop.permute.xlu0 %7986
  %7988 = vrot.lane.b32.xlu0 %v7920, 48
  %v7989 = vpop.permute.xlu0 %7988
  %7990 = vrot.lane.b32.xlu0 %v7921, 48
  %v7991 = vpop.permute.xlu0 %7990
  %7992 = vrot.lane.b32.xlu0 %v7922, 48
  %v7993 = vpop.permute.xlu0 %7992
  %7994 = vrot.lane.b32.xlu0 %v7923, 48
  %v7995 = vpop.permute.xlu0 %7994
  %7996 = vrot.lane.b32.xlu0 %v7924, 48
  %v7997 = vpop.permute.xlu0 %7996
  %7998 = vrot.lane.b32.xlu0 %v7925, 48
  %v7999 = vpop.permute.xlu0 %7998
  %8000 = vrot.lane.b32.xlu0 %v7926, 48
  %v8001 = vpop.permute.xlu0 %8000
  %8002 = vrot.lane.b32.xlu0 %v7927, 48
  %v8003 = vpop.permute.xlu0 %8002
  %8004 = vrot.lane.b32.xlu0 %v7928, 48
  %v8005 = vpop.permute.xlu0 %8004
  %8006 = vrot.lane.b32.xlu0 %v7929, 48
  %v8007 = vpop.permute.xlu0 %8006
  %8008 = vrot.lane.b32.xlu0 %v7930, 48
  %v8009 = vpop.permute.xlu0 %8008
  %8010 = vrot.lane.b32.xlu0 %v7931, 48
  %v8011 = vpop.permute.xlu0 %8010
  %8012 = vrot.lane.b32.xlu0 %v7932, 48
  %v8013 = vpop.permute.xlu0 %8012
  %8014 = vrot.lane.b32.xlu0 %v7933, 48
  %v8015 = vpop.permute.xlu0 %8014
  %8016 = vrot.lane.b32.xlu0 %v7934, 48
  %v8017 = vpop.permute.xlu0 %8016
  %8018 = vrot.lane.b32.xlu0 %v7935, 48
  %v8019 = vpop.permute.xlu0 %8018
  %8020 = vrot.lane.b32.xlu0 %v7936, 48
  %v8021 = vpop.permute.xlu0 %8020
  %8022 = vrot.lane.b32.xlu0 %v7937, 48
  %v8023 = vpop.permute.xlu0 %8022
  %8024 = vrot.lane.b32.xlu0 %v7938, 48
  %v8025 = vpop.permute.xlu0 %8024
  %8026 = vrot.lane.b32.xlu0 %v7939, 48
  %v8027 = vpop.permute.xlu0 %8026
  %8028 = vrot.lane.b32.xlu0 %v7940, 48
  %v8029 = vpop.permute.xlu0 %8028
  %8030 = vrot.lane.b32.xlu0 %v7941, 48
  %v8031 = vpop.permute.xlu0 %8030
  %8032 = vrot.lane.b32.xlu0 %v7942, 48
  %v8033 = vpop.permute.xlu0 %8032
  %8034 = vrot.lane.b32.xlu0 %v7943, 48
  %v8035 = vpop.permute.xlu0 %8034
  %8036 = vrot.lane.b32.xlu0 %v7944, 48
  %v8037 = vpop.permute.xlu0 %8036
  %8038 = vrot.lane.b32.xlu0 %v7945, 48
  %v8039 = vpop.permute.xlu0 %8038
  %8040 = vrot.lane.b32.xlu0 %v7946, 48
  %v8041 = vpop.permute.xlu0 %8040
  %8042 = vrot.lane.b32.xlu0 %v7947, 48
  %v8043 = vpop.permute.xlu0 %8042
  %8076 = vst.msk [vmem:[#allocation5] sm:$0xff] %vm3567, %v7981
  %8077 = vst.msk [vmem:[#allocation5 + $0x10] sm:$0xff] %vm3567, %v7983
  %8078 = vst.msk [vmem:[#allocation5 + $0x20] sm:$0xff] %vm3567, %v7985
  %8079 = vst.msk [vmem:[#allocation5 + $0x30] sm:$0xff] %vm3567, %v7987
  %8080 = vst.msk [vmem:[#allocation5 + $0x40] sm:$0xff] %vm3567, %v7989
  %8081 = vst.msk [vmem:[#allocation5 + $0x50] sm:$0xff] %vm3567, %v7991
  %8082 = vst.msk [vmem:[#allocation5 + $0x60] sm:$0xff] %vm3567, %v7993
  %8083 = vst.msk [vmem:[#allocation5 + $0x70] sm:$0xff] %vm3567, %v7995
  %8084 = vst.msk [vmem:[#allocation5 + $0x80] sm:$0xff] %vm3567, %v7997
  %8085 = vst.msk [vmem:[#allocation5 + $0x90] sm:$0xff] %vm3567, %v7999
  %8086 = vst.msk [vmem:[#allocation5 + $0xa0] sm:$0xff] %vm3567, %v8001
  %8087 = vst.msk [vmem:[#allocation5 + $0xb0] sm:$0xff] %vm3567, %v8003
  %8088 = vst.msk [vmem:[#allocation5 + $0xc0] sm:$0xff] %vm3567, %v8005
  %8089 = vst.msk [vmem:[#allocation5 + $0xd0] sm:$0xff] %vm3567, %v8007
  %8090 = vst.msk [vmem:[#allocation5 + $0xe0] sm:$0xff] %vm3567, %v8009
  %8091 = vst.msk [vmem:[#allocation5 + $0xf0] sm:$0xff] %vm3567, %v8011
  %8092 = vst.msk [vmem:[#allocation5 + $0x100] sm:$0xff] %vm3567, %v8013
  %8093 = vst.msk [vmem:[#allocation5 + $0x110] sm:$0xff] %vm3567, %v8015
  %8094 = vst.msk [vmem:[#allocation5 + $0x120] sm:$0xff] %vm3567, %v8017
  %8095 = vst.msk [vmem:[#allocation5 + $0x130] sm:$0xff] %vm3567, %v8019
  %8096 = vst.msk [vmem:[#allocation5 + $0x140] sm:$0xff] %vm3567, %v8021
  %8097 = vst.msk [vmem:[#allocation5 + $0x150] sm:$0xff] %vm3567, %v8023
  %8098 = vst.msk [vmem:[#allocation5 + $0x160] sm:$0xff] %vm3567, %v8025
  %8099 = vst.msk [vmem:[#allocation5 + $0x170] sm:$0xff] %vm3567, %v8027
  %8100 = vst.msk [vmem:[#allocation5 + $0x180] sm:$0xff] %vm3567, %v8029
  %8101 = vst.msk [vmem:[#allocation5 + $0x190] sm:$0xff] %vm3567, %v8031
  %8102 = vst.msk [vmem:[#allocation5 + $0x1a0] sm:$0xff] %vm3567, %v8033
  %8103 = vst.msk [vmem:[#allocation5 + $0x1b0] sm:$0xff] %vm3567, %v8035
  %8104 = vst.msk [vmem:[#allocation5 + $0x1c0] sm:$0xff] %vm3567, %v8037
  %8105 = vst.msk [vmem:[#allocation5 + $0x1d0] sm:$0xff] %vm3567, %v8039
  %8106 = vst.msk [vmem:[#allocation5 + $0x1e0] sm:$0xff] %vm3567, %v8041
  %8107 = vst.msk [vmem:[#allocation5 + $0x1f0] sm:$0xff] %vm3567, %v8043
  %v8108 = vld [vmem:[#allocation3 + $0x18] sm:$0xff]
  %v8109 = vld [vmem:[#allocation3 + $0x20] sm:$0xff]
  %v8110 = vld [vmem:[#allocation3 + $0x28] sm:$0xff]
  %v8111 = vld [vmem:[#allocation3 + $0x30] sm:$0xff]
  %v8112 = vld [vmem:[#allocation3 + $0x38] sm:$0xff]
  %v8113 = vld [vmem:[#allocation3 + $0x40] sm:$0xff]
  %v8114 = vld [vmem:[#allocation3 + $0x48] sm:$0xff]
  %v8115 = vld [vmem:[#allocation3 + $0x50] sm:$0xff]
  %v8116 = vld [vmem:[#allocation3 + $0x58] sm:$0xff]
  %v8117 = vld [vmem:[#allocation3 + $0x60] sm:$0xff]
  %v8118 = vld [vmem:[#allocation3 + $0x68] sm:$0xff]
  %v8119 = vld [vmem:[#allocation3 + $0x70] sm:$0xff]
  %v8120 = vld [vmem:[#allocation3 + $0x78] sm:$0xff]
  %v8121 = vld [vmem:[#allocation3 + $0x80] sm:$0xff]
  %v8122 = vld [vmem:[#allocation3 + $0x88] sm:$0xff]
  %v8123 = vld [vmem:[#allocation3 + $0x90] sm:$0xff]
  %v8124 = vld [vmem:[#allocation3 + $0x98] sm:$0xff]
  %v8125 = vld [vmem:[#allocation3 + $0xa0] sm:$0xff]
  %v8126 = vld [vmem:[#allocation3 + $0xa8] sm:$0xff]
  %v8127 = vld [vmem:[#allocation3 + $0xb0] sm:$0xff]
  %v8128 = vld [vmem:[#allocation3 + $0xb8] sm:$0xff]
  %v8129 = vld [vmem:[#allocation3 + $0xc0] sm:$0xff]
  %v8130 = vld [vmem:[#allocation3 + $0xc8] sm:$0xff]
  %v8131 = vld [vmem:[#allocation3 + $0xd0] sm:$0xff]
  %v8132 = vld [vmem:[#allocation3 + $0xd8] sm:$0xff]
  %v8133 = vld [vmem:[#allocation3 + $0xe0] sm:$0xff]
  %v8134 = vld [vmem:[#allocation3 + $0xe8] sm:$0xff]
  %v8135 = vld [vmem:[#allocation3 + $0xf0] sm:$0xff]
  %v8136 = vld [vmem:[#allocation3 + $0xf8] sm:$0xff]
  %v8137 = vld [vmem:[#allocation3 + $0x100] sm:$0xff]
  %v8138 = vld [vmem:[#allocation3 + $0x108] sm:$0xff]
  %v8139 = vld [vmem:[#allocation3 + $0x110] sm:$0xff]
  %8172 = vrot.lane.b32.xlu0 %v8108, 64
  %v8173 = vpop.permute.xlu0 %8172
  %8174 = vrot.lane.b32.xlu0 %v8109, 64
  %v8175 = vpop.permute.xlu0 %8174
  %8176 = vrot.lane.b32.xlu0 %v8110, 64
  %v8177 = vpop.permute.xlu0 %8176
  %8178 = vrot.lane.b32.xlu0 %v8111, 64
  %v8179 = vpop.permute.xlu0 %8178
  %8180 = vrot.lane.b32.xlu0 %v8112, 64
  %v8181 = vpop.permute.xlu0 %8180
  %8182 = vrot.lane.b32.xlu0 %v8113, 64
  %v8183 = vpop.permute.xlu0 %8182
  %8184 = vrot.lane.b32.xlu0 %v8114, 64
  %v8185 = vpop.permute.xlu0 %8184
  %8186 = vrot.lane.b32.xlu0 %v8115, 64
  %v8187 = vpop.permute.xlu0 %8186
  %8188 = vrot.lane.b32.xlu0 %v8116, 64
  %v8189 = vpop.permute.xlu0 %8188
  %8190 = vrot.lane.b32.xlu0 %v8117, 64
  %v8191 = vpop.permute.xlu0 %8190
  %8192 = vrot.lane.b32.xlu0 %v8118, 64
  %v8193 = vpop.permute.xlu0 %8192
  %8194 = vrot.lane.b32.xlu0 %v8119, 64
  %v8195 = vpop.permute.xlu0 %8194
  %8196 = vrot.lane.b32.xlu0 %v8120, 64
  %v8197 = vpop.permute.xlu0 %8196
  %8198 = vrot.lane.b32.xlu0 %v8121, 64
  %v8199 = vpop.permute.xlu0 %8198
  %8200 = vrot.lane.b32.xlu0 %v8122, 64
  %v8201 = vpop.permute.xlu0 %8200
  %8202 = vrot.lane.b32.xlu0 %v8123, 64
  %v8203 = vpop.permute.xlu0 %8202
  %8204 = vrot.lane.b32.xlu0 %v8124, 64
  %v8205 = vpop.permute.xlu0 %8204
  %8206 = vrot.lane.b32.xlu0 %v8125, 64
  %v8207 = vpop.permute.xlu0 %8206
  %8208 = vrot.lane.b32.xlu0 %v8126, 64
  %v8209 = vpop.permute.xlu0 %8208
  %8210 = vrot.lane.b32.xlu0 %v8127, 64
  %v8211 = vpop.permute.xlu0 %8210
  %8212 = vrot.lane.b32.xlu0 %v8128, 64
  %v8213 = vpop.permute.xlu0 %8212
  %8214 = vrot.lane.b32.xlu0 %v8129, 64
  %v8215 = vpop.permute.xlu0 %8214
  %8216 = vrot.lane.b32.xlu0 %v8130, 64
  %v8217 = vpop.permute.xlu0 %8216
  %8218 = vrot.lane.b32.xlu0 %v8131, 64
  %v8219 = vpop.permute.xlu0 %8218
  %8220 = vrot.lane.b32.xlu0 %v8132, 64
  %v8221 = vpop.permute.xlu0 %8220
  %8222 = vrot.lane.b32.xlu0 %v8133, 64
  %v8223 = vpop.permute.xlu0 %8222
  %8224 = vrot.lane.b32.xlu0 %v8134, 64
  %v8225 = vpop.permute.xlu0 %8224
  %8226 = vrot.lane.b32.xlu0 %v8135, 64
  %v8227 = vpop.permute.xlu0 %8226
  %8228 = vrot.lane.b32.xlu0 %v8136, 64
  %v8229 = vpop.permute.xlu0 %8228
  %8230 = vrot.lane.b32.xlu0 %v8137, 64
  %v8231 = vpop.permute.xlu0 %8230
  %8232 = vrot.lane.b32.xlu0 %v8138, 64
  %v8233 = vpop.permute.xlu0 %8232
  %8234 = vrot.lane.b32.xlu0 %v8139, 64
  %v8235 = vpop.permute.xlu0 %8234
  %8268 = vst.msk [vmem:[#allocation5] sm:$0xff] %vm3760, %v8173
  %8269 = vst.msk [vmem:[#allocation5 + $0x10] sm:$0xff] %vm3760, %v8175
  %8270 = vst.msk [vmem:[#allocation5 + $0x20] sm:$0xff] %vm3760, %v8177
  %8271 = vst.msk [vmem:[#allocation5 + $0x30] sm:$0xff] %vm3760, %v8179
  %8272 = vst.msk [vmem:[#allocation5 + $0x40] sm:$0xff] %vm3760, %v8181
  %8273 = vst.msk [vmem:[#allocation5 + $0x50] sm:$0xff] %vm3760, %v8183
  %8274 = vst.msk [vmem:[#allocation5 + $0x60] sm:$0xff] %vm3760, %v8185
  %8275 = vst.msk [vmem:[#allocation5 + $0x70] sm:$0xff] %vm3760, %v8187
  %8276 = vst.msk [vmem:[#allocation5 + $0x80] sm:$0xff] %vm3760, %v8189
  %8277 = vst.msk [vmem:[#allocation5 + $0x90] sm:$0xff] %vm3760, %v8191
  %8278 = vst.msk [vmem:[#allocation5 + $0xa0] sm:$0xff] %vm3760, %v8193
  %8279 = vst.msk [vmem:[#allocation5 + $0xb0] sm:$0xff] %vm3760, %v8195
  %8280 = vst.msk [vmem:[#allocation5 + $0xc0] sm:$0xff] %vm3760, %v8197
  %8281 = vst.msk [vmem:[#allocation5 + $0xd0] sm:$0xff] %vm3760, %v8199
  %8282 = vst.msk [vmem:[#allocation5 + $0xe0] sm:$0xff] %vm3760, %v8201
  %8283 = vst.msk [vmem:[#allocation5 + $0xf0] sm:$0xff] %vm3760, %v8203
  %8284 = vst.msk [vmem:[#allocation5 + $0x100] sm:$0xff] %vm3760, %v8205
  %8285 = vst.msk [vmem:[#allocation5 + $0x110] sm:$0xff] %vm3760, %v8207
  %8286 = vst.msk [vmem:[#allocation5 + $0x120] sm:$0xff] %vm3760, %v8209
  %8287 = vst.msk [vmem:[#allocation5 + $0x130] sm:$0xff] %vm3760, %v8211
  %8288 = vst.msk [vmem:[#allocation5 + $0x140] sm:$0xff] %vm3760, %v8213
  %8289 = vst.msk [vmem:[#allocation5 + $0x150] sm:$0xff] %vm3760, %v8215
  %8290 = vst.msk [vmem:[#allocation5 + $0x160] sm:$0xff] %vm3760, %v8217
  %8291 = vst.msk [vmem:[#allocation5 + $0x170] sm:$0xff] %vm3760, %v8219
  %8292 = vst.msk [vmem:[#allocation5 + $0x180] sm:$0xff] %vm3760, %v8221
  %8293 = vst.msk [vmem:[#allocation5 + $0x190] sm:$0xff] %vm3760, %v8223
  %8294 = vst.msk [vmem:[#allocation5 + $0x1a0] sm:$0xff] %vm3760, %v8225
  %8295 = vst.msk [vmem:[#allocation5 + $0x1b0] sm:$0xff] %vm3760, %v8227
  %8296 = vst.msk [vmem:[#allocation5 + $0x1c0] sm:$0xff] %vm3760, %v8229
  %8297 = vst.msk [vmem:[#allocation5 + $0x1d0] sm:$0xff] %vm3760, %v8231
  %8298 = vst.msk [vmem:[#allocation5 + $0x1e0] sm:$0xff] %vm3760, %v8233
  %8299 = vst.msk [vmem:[#allocation5 + $0x1f0] sm:$0xff] %vm3760, %v8235
  %v8300 = vld [vmem:[#allocation3 + $0x19] sm:$0xff]
  %v8301 = vld [vmem:[#allocation3 + $0x21] sm:$0xff]
  %v8302 = vld [vmem:[#allocation3 + $0x29] sm:$0xff]
  %v8303 = vld [vmem:[#allocation3 + $0x31] sm:$0xff]
  %v8304 = vld [vmem:[#allocation3 + $0x39] sm:$0xff]
  %v8305 = vld [vmem:[#allocation3 + $0x41] sm:$0xff]
  %v8306 = vld [vmem:[#allocation3 + $0x49] sm:$0xff]
  %v8307 = vld [vmem:[#allocation3 + $0x51] sm:$0xff]
  %v8308 = vld [vmem:[#allocation3 + $0x59] sm:$0xff]
  %v8309 = vld [vmem:[#allocation3 + $0x61] sm:$0xff]
  %v8310 = vld [vmem:[#allocation3 + $0x69] sm:$0xff]
  %v8311 = vld [vmem:[#allocation3 + $0x71] sm:$0xff]
  %v8312 = vld [vmem:[#allocation3 + $0x79] sm:$0xff]
  %v8313 = vld [vmem:[#allocation3 + $0x81] sm:$0xff]
  %v8314 = vld [vmem:[#allocation3 + $0x89] sm:$0xff]
  %v8315 = vld [vmem:[#allocation3 + $0x91] sm:$0xff]
  %v8316 = vld [vmem:[#allocation3 + $0x99] sm:$0xff]
  %v8317 = vld [vmem:[#allocation3 + $0xa1] sm:$0xff]
  %v8318 = vld [vmem:[#allocation3 + $0xa9] sm:$0xff]
  %v8319 = vld [vmem:[#allocation3 + $0xb1] sm:$0xff]
  %v8320 = vld [vmem:[#allocation3 + $0xb9] sm:$0xff]
  %v8321 = vld [vmem:[#allocation3 + $0xc1] sm:$0xff]
  %v8322 = vld [vmem:[#allocation3 + $0xc9] sm:$0xff]
  %v8323 = vld [vmem:[#allocation3 + $0xd1] sm:$0xff]
  %v8324 = vld [vmem:[#allocation3 + $0xd9] sm:$0xff]
  %v8325 = vld [vmem:[#allocation3 + $0xe1] sm:$0xff]
  %v8326 = vld [vmem:[#allocation3 + $0xe9] sm:$0xff]
  %v8327 = vld [vmem:[#allocation3 + $0xf1] sm:$0xff]
  %v8328 = vld [vmem:[#allocation3 + $0xf9] sm:$0xff]
  %v8329 = vld [vmem:[#allocation3 + $0x101] sm:$0xff]
  %v8330 = vld [vmem:[#allocation3 + $0x109] sm:$0xff]
  %v8331 = vld [vmem:[#allocation3 + $0x111] sm:$0xff]
  %v8332 = vsel %vm1003, %v8300, 0.0
  %v8333 = vsel %vm1004, %v8301, 0.0
  %v8334 = vsel %vm1005, %v8302, 0.0
  %v8335 = vsel %vm1006, %v8303, 0.0
  %v8336 = vsel %vm1007, %v8304, 0.0
  %v8337 = vsel %vm1008, %v8305, 0.0
  %v8338 = vsel %vm1009, %v8306, 0.0
  %v8339 = vsel %vm1010, %v8307, 0.0
  %v8340 = vsel %vm1011, %v8308, 0.0
  %v8341 = vsel %vm1012, %v8309, 0.0
  %v8342 = vsel %vm1013, %v8310, 0.0
  %v8343 = vsel %vm1014, %v8311, 0.0
  %v8344 = vsel %vm1015, %v8312, 0.0
  %v8345 = vsel %vm1016, %v8313, 0.0
  %v8346 = vsel %vm1017, %v8314, 0.0
  %v8347 = vsel %vm1018, %v8315, 0.0
  %v8348 = vsel %vm1019, %v8316, 0.0
  %v8349 = vsel %vm1020, %v8317, 0.0
  %v8350 = vsel %vm1021, %v8318, 0.0
  %v8351 = vsel %vm1022, %v8319, 0.0
  %v8352 = vsel %vm1023, %v8320, 0.0
  %v8353 = vsel %vm1024, %v8321, 0.0
  %v8354 = vsel %vm1025, %v8322, 0.0
  %v8355 = vsel %vm1026, %v8323, 0.0
  %v8356 = vsel %vm1027, %v8324, 0.0
  %v8357 = vsel %vm1028, %v8325, 0.0
  %v8358 = vsel %vm1029, %v8326, 0.0
  %v8359 = vsel %vm1030, %v8327, 0.0
  %v8360 = vsel %vm1031, %v8328, 0.0
  %v8361 = vsel %vm1032, %v8329, 0.0
  %v8362 = vsel %vm1033, %v8330, 0.0
  %v8363 = vsel %vm1034, %v8331, 0.0
  %8396 = vrot.lane.b32.xlu0 %v8332, 80
  %v8397 = vpop.permute.xlu0 %8396
  %8398 = vrot.lane.b32.xlu0 %v8333, 80
  %v8399 = vpop.permute.xlu0 %8398
  %8400 = vrot.lane.b32.xlu0 %v8334, 80
  %v8401 = vpop.permute.xlu0 %8400
  %8402 = vrot.lane.b32.xlu0 %v8335, 80
  %v8403 = vpop.permute.xlu0 %8402
  %8404 = vrot.lane.b32.xlu0 %v8336, 80
  %v8405 = vpop.permute.xlu0 %8404
  %8406 = vrot.lane.b32.xlu0 %v8337, 80
  %v8407 = vpop.permute.xlu0 %8406
  %8408 = vrot.lane.b32.xlu0 %v8338, 80
  %v8409 = vpop.permute.xlu0 %8408
  %8410 = vrot.lane.b32.xlu0 %v8339, 80
  %v8411 = vpop.permute.xlu0 %8410
  %8412 = vrot.lane.b32.xlu0 %v8340, 80
  %v8413 = vpop.permute.xlu0 %8412
  %8414 = vrot.lane.b32.xlu0 %v8341, 80
  %v8415 = vpop.permute.xlu0 %8414
  %8416 = vrot.lane.b32.xlu0 %v8342, 80
  %v8417 = vpop.permute.xlu0 %8416
  %8418 = vrot.lane.b32.xlu0 %v8343, 80
  %v8419 = vpop.permute.xlu0 %8418
  %8420 = vrot.lane.b32.xlu0 %v8344, 80
  %v8421 = vpop.permute.xlu0 %8420
  %8422 = vrot.lane.b32.xlu0 %v8345, 80
  %v8423 = vpop.permute.xlu0 %8422
  %8424 = vrot.lane.b32.xlu0 %v8346, 80
  %v8425 = vpop.permute.xlu0 %8424
  %8426 = vrot.lane.b32.xlu0 %v8347, 80
  %v8427 = vpop.permute.xlu0 %8426
  %8428 = vrot.lane.b32.xlu0 %v8348, 80
  %v8429 = vpop.permute.xlu0 %8428
  %8430 = vrot.lane.b32.xlu0 %v8349, 80
  %v8431 = vpop.permute.xlu0 %8430
  %8432 = vrot.lane.b32.xlu0 %v8350, 80
  %v8433 = vpop.permute.xlu0 %8432
  %8434 = vrot.lane.b32.xlu0 %v8351, 80
  %v8435 = vpop.permute.xlu0 %8434
  %8436 = vrot.lane.b32.xlu0 %v8352, 80
  %v8437 = vpop.permute.xlu0 %8436
  %8438 = vrot.lane.b32.xlu0 %v8353, 80
  %v8439 = vpop.permute.xlu0 %8438
  %8440 = vrot.lane.b32.xlu0 %v8354, 80
  %v8441 = vpop.permute.xlu0 %8440
  %8442 = vrot.lane.b32.xlu0 %v8355, 80
  %v8443 = vpop.permute.xlu0 %8442
  %8444 = vrot.lane.b32.xlu0 %v8356, 80
  %v8445 = vpop.permute.xlu0 %8444
  %8446 = vrot.lane.b32.xlu0 %v8357, 80
  %v8447 = vpop.permute.xlu0 %8446
  %8448 = vrot.lane.b32.xlu0 %v8358, 80
  %v8449 = vpop.permute.xlu0 %8448
  %8450 = vrot.lane.b32.xlu0 %v8359, 80
  %v8451 = vpop.permute.xlu0 %8450
  %8452 = vrot.lane.b32.xlu0 %v8360, 80
  %v8453 = vpop.permute.xlu0 %8452
  %8454 = vrot.lane.b32.xlu0 %v8361, 80
  %v8455 = vpop.permute.xlu0 %8454
  %8456 = vrot.lane.b32.xlu0 %v8362, 80
  %v8457 = vpop.permute.xlu0 %8456
  %8458 = vrot.lane.b32.xlu0 %v8363, 80
  %v8459 = vpop.permute.xlu0 %8458
  %8492 = vst.msk [vmem:[#allocation5] sm:$0xff] %vm3985, %v8397
  %8493 = vst.msk [vmem:[#allocation5 + $0x10] sm:$0xff] %vm3985, %v8399
  %8494 = vst.msk [vmem:[#allocation5 + $0x20] sm:$0xff] %vm3985, %v8401
  %8495 = vst.msk [vmem:[#allocation5 + $0x30] sm:$0xff] %vm3985, %v8403
  %8496 = vst.msk [vmem:[#allocation5 + $0x40] sm:$0xff] %vm3985, %v8405
  %8497 = vst.msk [vmem:[#allocation5 + $0x50] sm:$0xff] %vm3985, %v8407
  %8498 = vst.msk [vmem:[#allocation5 + $0x60] sm:$0xff] %vm3985, %v8409
  %8499 = vst.msk [vmem:[#allocation5 + $0x70] sm:$0xff] %vm3985, %v8411
  %8500 = vst.msk [vmem:[#allocation5 + $0x80] sm:$0xff] %vm3985, %v8413
  %8501 = vst.msk [vmem:[#allocation5 + $0x90] sm:$0xff] %vm3985, %v8415
  %8502 = vst.msk [vmem:[#allocation5 + $0xa0] sm:$0xff] %vm3985, %v8417
  %8503 = vst.msk [vmem:[#allocation5 + $0xb0] sm:$0xff] %vm3985, %v8419
  %8504 = vst.msk [vmem:[#allocation5 + $0xc0] sm:$0xff] %vm3985, %v8421
  %8505 = vst.msk [vmem:[#allocation5 + $0xd0] sm:$0xff] %vm3985, %v8423
  %8506 = vst.msk [vmem:[#allocation5 + $0xe0] sm:$0xff] %vm3985, %v8425
  %8507 = vst.msk [vmem:[#allocation5 + $0xf0] sm:$0xff] %vm3985, %v8427
  %8508 = vst.msk [vmem:[#allocation5 + $0x100] sm:$0xff] %vm3985, %v8429
  %8509 = vst.msk [vmem:[#allocation5 + $0x110] sm:$0xff] %vm3985, %v8431
  %8510 = vst.msk [vmem:[#allocation5 + $0x120] sm:$0xff] %vm3985, %v8433
  %8511 = vst.msk [vmem:[#allocation5 + $0x130] sm:$0xff] %vm3985, %v8435
  %8512 = vst.msk [vmem:[#allocation5 + $0x140] sm:$0xff] %vm3985, %v8437
  %8513 = vst.msk [vmem:[#allocation5 + $0x150] sm:$0xff] %vm3985, %v8439
  %8514 = vst.msk [vmem:[#allocation5 + $0x160] sm:$0xff] %vm3985, %v8441
  %8515 = vst.msk [vmem:[#allocation5 + $0x170] sm:$0xff] %vm3985, %v8443
  %8516 = vst.msk [vmem:[#allocation5 + $0x180] sm:$0xff] %vm3985, %v8445
  %8517 = vst.msk [vmem:[#allocation5 + $0x190] sm:$0xff] %vm3985, %v8447
  %8518 = vst.msk [vmem:[#allocation5 + $0x1a0] sm:$0xff] %vm3985, %v8449
  %8519 = vst.msk [vmem:[#allocation5 + $0x1b0] sm:$0xff] %vm3985, %v8451
  %8520 = vst.msk [vmem:[#allocation5 + $0x1c0] sm:$0xff] %vm3985, %v8453
  %8521 = vst.msk [vmem:[#allocation5 + $0x1d0] sm:$0xff] %vm3985, %v8455
  %8522 = vst.msk [vmem:[#allocation5 + $0x1e0] sm:$0xff] %vm3985, %v8457
  %8523 = vst.msk [vmem:[#allocation5 + $0x1f0] sm:$0xff] %vm3985, %v8459
  %v8524 = vld [vmem:[#allocation3 + $0x27] sm:$0xff]
  %v8525 = vld [vmem:[#allocation3 + $0x2f] sm:$0xff]
  %v8526 = vld [vmem:[#allocation3 + $0x37] sm:$0xff]
  %v8527 = vld [vmem:[#allocation3 + $0x3f] sm:$0xff]
  %v8528 = vld [vmem:[#allocation3 + $0x47] sm:$0xff]
  %v8529 = vld [vmem:[#allocation3 + $0x4f] sm:$0xff]
  %v8530 = vld [vmem:[#allocation3 + $0x57] sm:$0xff]
  %v8531 = vld [vmem:[#allocation3 + $0x5f] sm:$0xff]
  %v8532 = vld [vmem:[#allocation3 + $0x67] sm:$0xff]
  %v8533 = vld [vmem:[#allocation3 + $0x6f] sm:$0xff]
  %v8534 = vld [vmem:[#allocation3 + $0x77] sm:$0xff]
  %v8535 = vld [vmem:[#allocation3 + $0x7f] sm:$0xff]
  %v8536 = vld [vmem:[#allocation3 + $0x87] sm:$0xff]
  %v8537 = vld [vmem:[#allocation3 + $0x8f] sm:$0xff]
  %v8538 = vld [vmem:[#allocation3 + $0x97] sm:$0xff]
  %v8539 = vld [vmem:[#allocation3 + $0x9f] sm:$0xff]
  %v8540 = vld [vmem:[#allocation3 + $0xa7] sm:$0xff]
  %v8541 = vld [vmem:[#allocation3 + $0xaf] sm:$0xff]
  %v8542 = vld [vmem:[#allocation3 + $0xb7] sm:$0xff]
  %v8543 = vld [vmem:[#allocation3 + $0xbf] sm:$0xff]
  %v8544 = vld [vmem:[#allocation3 + $0xc7] sm:$0xff]
  %v8545 = vld [vmem:[#allocation3 + $0xcf] sm:$0xff]
  %v8546 = vld [vmem:[#allocation3 + $0xd7] sm:$0xff]
  %v8547 = vld [vmem:[#allocation3 + $0xdf] sm:$0xff]
  %v8548 = vld [vmem:[#allocation3 + $0xe7] sm:$0xff]
  %v8549 = vld [vmem:[#allocation3 + $0xef] sm:$0xff]
  %v8550 = vld [vmem:[#allocation3 + $0xf7] sm:$0xff]
  %v8551 = vld [vmem:[#allocation3 + $0xff] sm:$0xff]
  %v8552 = vld [vmem:[#allocation3 + $0x107] sm:$0xff]
  %v8553 = vld [vmem:[#allocation3 + $0x10f] sm:$0xff]
  %v8554 = vld [vmem:[#allocation3 + $0x117] sm:$0xff]
  %v8555 = vld [vmem:[#allocation3 + $0x11f] sm:$0xff]
  %v8556 = vsel %vm650, %v8524, 0.0
  %v8557 = vsel %vm651, %v8525, 0.0
  %v8558 = vsel %vm652, %v8526, 0.0
  %v8559 = vsel %vm653, %v8527, 0.0
  %v8560 = vsel %vm654, %v8528, 0.0
  %v8561 = vsel %vm655, %v8529, 0.0
  %v8562 = vsel %vm656, %v8530, 0.0
  %v8563 = vsel %vm657, %v8531, 0.0
  %v8564 = vsel %vm658, %v8532, 0.0
  %v8565 = vsel %vm659, %v8533, 0.0
  %v8566 = vsel %vm660, %v8534, 0.0
  %v8567 = vsel %vm661, %v8535, 0.0
  %v8568 = vsel %vm662, %v8536, 0.0
  %v8569 = vsel %vm663, %v8537, 0.0
  %v8570 = vsel %vm664, %v8538, 0.0
  %v8571 = vsel %vm665, %v8539, 0.0
  %v8572 = vsel %vm666, %v8540, 0.0
  %v8573 = vsel %vm667, %v8541, 0.0
  %v8574 = vsel %vm668, %v8542, 0.0
  %v8575 = vsel %vm669, %v8543, 0.0
  %v8576 = vsel %vm670, %v8544, 0.0
  %v8577 = vsel %vm671, %v8545, 0.0
  %v8578 = vsel %vm672, %v8546, 0.0
  %v8579 = vsel %vm673, %v8547, 0.0
  %v8580 = vsel %vm674, %v8548, 0.0
  %v8581 = vsel %vm675, %v8549, 0.0
  %v8582 = vsel %vm676, %v8550, 0.0
  %v8583 = vsel %vm677, %v8551, 0.0
  %v8584 = vsel %vm678, %v8552, 0.0
  %v8585 = vsel %vm679, %v8553, 0.0
  %v8586 = vsel %vm680, %v8554, 0.0
  %v8587 = vsel %vm681, %v8555, 0.0
  %8620 = vrot.lane.b32.xlu0 %v8556, 96
  %v8621 = vpop.permute.xlu0 %8620
  %8622 = vrot.lane.b32.xlu0 %v8557, 96
  %v8623 = vpop.permute.xlu0 %8622
  %8624 = vrot.lane.b32.xlu0 %v8558, 96
  %v8625 = vpop.permute.xlu0 %8624
  %8626 = vrot.lane.b32.xlu0 %v8559, 96
  %v8627 = vpop.permute.xlu0 %8626
  %8628 = vrot.lane.b32.xlu0 %v8560, 96
  %v8629 = vpop.permute.xlu0 %8628
  %8630 = vrot.lane.b32.xlu0 %v8561, 96
  %v8631 = vpop.permute.xlu0 %8630
  %8632 = vrot.lane.b32.xlu0 %v8562, 96
  %v8633 = vpop.permute.xlu0 %8632
  %8634 = vrot.lane.b32.xlu0 %v8563, 96
  %v8635 = vpop.permute.xlu0 %8634
  %8636 = vrot.lane.b32.xlu0 %v8564, 96
  %v8637 = vpop.permute.xlu0 %8636
  %8638 = vrot.lane.b32.xlu0 %v8565, 96
  %v8639 = vpop.permute.xlu0 %8638
  %8640 = vrot.lane.b32.xlu0 %v8566, 96
  %v8641 = vpop.permute.xlu0 %8640
  %8642 = vrot.lane.b32.xlu0 %v8567, 96
  %v8643 = vpop.permute.xlu0 %8642
  %8644 = vrot.lane.b32.xlu0 %v8568, 96
  %v8645 = vpop.permute.xlu0 %8644
  %8646 = vrot.lane.b32.xlu0 %v8569, 96
  %v8647 = vpop.permute.xlu0 %8646
  %8648 = vrot.lane.b32.xlu0 %v8570, 96
  %v8649 = vpop.permute.xlu0 %8648
  %8650 = vrot.lane.b32.xlu0 %v8571, 96
  %v8651 = vpop.permute.xlu0 %8650
  %8652 = vrot.lane.b32.xlu0 %v8572, 96
  %v8653 = vpop.permute.xlu0 %8652
  %8654 = vrot.lane.b32.xlu0 %v8573, 96
  %v8655 = vpop.permute.xlu0 %8654
  %8656 = vrot.lane.b32.xlu0 %v8574, 96
  %v8657 = vpop.permute.xlu0 %8656
  %8658 = vrot.lane.b32.xlu0 %v8575, 96
  %v8659 = vpop.permute.xlu0 %8658
  %8660 = vrot.lane.b32.xlu0 %v8576, 96
  %v8661 = vpop.permute.xlu0 %8660
  %8662 = vrot.lane.b32.xlu0 %v8577, 96
  %v8663 = vpop.permute.xlu0 %8662
  %8664 = vrot.lane.b32.xlu0 %v8578, 96
  %v8665 = vpop.permute.xlu0 %8664
  %8666 = vrot.lane.b32.xlu0 %v8579, 96
  %v8667 = vpop.permute.xlu0 %8666
  %8668 = vrot.lane.b32.xlu0 %v8580, 96
  %v8669 = vpop.permute.xlu0 %8668
  %8670 = vrot.lane.b32.xlu0 %v8581, 96
  %v8671 = vpop.permute.xlu0 %8670
  %8672 = vrot.lane.b32.xlu0 %v8582, 96
  %v8673 = vpop.permute.xlu0 %8672
  %8674 = vrot.lane.b32.xlu0 %v8583, 96
  %v8675 = vpop.permute.xlu0 %8674
  %8676 = vrot.lane.b32.xlu0 %v8584, 96
  %v8677 = vpop.permute.xlu0 %8676
  %8678 = vrot.lane.b32.xlu0 %v8585, 96
  %v8679 = vpop.permute.xlu0 %8678
  %8680 = vrot.lane.b32.xlu0 %v8586, 96
  %v8681 = vpop.permute.xlu0 %8680
  %8682 = vrot.lane.b32.xlu0 %v8587, 96
  %v8683 = vpop.permute.xlu0 %8682
  %8716 = vst.msk [vmem:[#allocation5] sm:$0xff] %vm4210, %v8621
  %8717 = vst.msk [vmem:[#allocation5 + $0x10] sm:$0xff] %vm4210, %v8623
  %8718 = vst.msk [vmem:[#allocation5 + $0x20] sm:$0xff] %vm4210, %v8625
  %8719 = vst.msk [vmem:[#allocation5 + $0x30] sm:$0xff] %vm4210, %v8627
  %8720 = vst.msk [vmem:[#allocation5 + $0x40] sm:$0xff] %vm4210, %v8629
  %8721 = vst.msk [vmem:[#allocation5 + $0x50] sm:$0xff] %vm4210, %v8631
  %8722 = vst.msk [vmem:[#allocation5 + $0x60] sm:$0xff] %vm4210, %v8633
  %8723 = vst.msk [vmem:[#allocation5 + $0x70] sm:$0xff] %vm4210, %v8635
  %8724 = vst.msk [vmem:[#allocation5 + $0x80] sm:$0xff] %vm4210, %v8637
  %8725 = vst.msk [vmem:[#allocation5 + $0x90] sm:$0xff] %vm4210, %v8639
  %8726 = vst.msk [vmem:[#allocation5 + $0xa0] sm:$0xff] %vm4210, %v8641
  %8727 = vst.msk [vmem:[#allocation5 + $0xb0] sm:$0xff] %vm4210, %v8643
  %8728 = vst.msk [vmem:[#allocation5 + $0xc0] sm:$0xff] %vm4210, %v8645
  %8729 = vst.msk [vmem:[#allocation5 + $0xd0] sm:$0xff] %vm4210, %v8647
  %8730 = vst.msk [vmem:[#allocation5 + $0xe0] sm:$0xff] %vm4210, %v8649
  %8731 = vst.msk [vmem:[#allocation5 + $0xf0] sm:$0xff] %vm4210, %v8651
  %8732 = vst.msk [vmem:[#allocation5 + $0x100] sm:$0xff] %vm4210, %v8653
  %8733 = vst.msk [vmem:[#allocation5 + $0x110] sm:$0xff] %vm4210, %v8655
  %8734 = vst.msk [vmem:[#allocation5 + $0x120] sm:$0xff] %vm4210, %v8657
  %8735 = vst.msk [vmem:[#allocation5 + $0x130] sm:$0xff] %vm4210, %v8659
  %8736 = vst.msk [vmem:[#allocation5 + $0x140] sm:$0xff] %vm4210, %v8661
  %8737 = vst.msk [vmem:[#allocation5 + $0x150] sm:$0xff] %vm4210, %v8663
  %8738 = vst.msk [vmem:[#allocation5 + $0x160] sm:$0xff] %vm4210, %v8665
  %8739 = vst.msk [vmem:[#allocation5 + $0x170] sm:$0xff] %vm4210, %v8667
  %8740 = vst.msk [vmem:[#allocation5 + $0x180] sm:$0xff] %vm4210, %v8669
  %8741 = vst.msk [vmem:[#allocation5 + $0x190] sm:$0xff] %vm4210, %v8671
  %8742 = vst.msk [vmem:[#allocation5 + $0x1a0] sm:$0xff] %vm4210, %v8673
  %8743 = vst.msk [vmem:[#allocation5 + $0x1b0] sm:$0xff] %vm4210, %v8675
  %8744 = vst.msk [vmem:[#allocation5 + $0x1c0] sm:$0xff] %vm4210, %v8677
  %8745 = vst.msk [vmem:[#allocation5 + $0x1d0] sm:$0xff] %vm4210, %v8679
  %8746 = vst.msk [vmem:[#allocation5 + $0x1e0] sm:$0xff] %vm4210, %v8681
  %8747 = vst.msk [vmem:[#allocation5 + $0x1f0] sm:$0xff] %vm4210, %v8683
  %v8748 = vld [vmem:[#allocation3 + $0x28] sm:$0xff]
  %v8749 = vld [vmem:[#allocation3 + $0x30] sm:$0xff]
  %v8750 = vld [vmem:[#allocation3 + $0x38] sm:$0xff]
  %v8751 = vld [vmem:[#allocation3 + $0x40] sm:$0xff]
  %v8752 = vld [vmem:[#allocation3 + $0x48] sm:$0xff]
  %v8753 = vld [vmem:[#allocation3 + $0x50] sm:$0xff]
  %v8754 = vld [vmem:[#allocation3 + $0x58] sm:$0xff]
  %v8755 = vld [vmem:[#allocation3 + $0x60] sm:$0xff]
  %v8756 = vld [vmem:[#allocation3 + $0x68] sm:$0xff]
  %v8757 = vld [vmem:[#allocation3 + $0x70] sm:$0xff]
  %v8758 = vld [vmem:[#allocation3 + $0x78] sm:$0xff]
  %v8759 = vld [vmem:[#allocation3 + $0x80] sm:$0xff]
  %v8760 = vld [vmem:[#allocation3 + $0x88] sm:$0xff]
  %v8761 = vld [vmem:[#allocation3 + $0x90] sm:$0xff]
  %v8762 = vld [vmem:[#allocation3 + $0x98] sm:$0xff]
  %v8763 = vld [vmem:[#allocation3 + $0xa0] sm:$0xff]
  %v8764 = vld [vmem:[#allocation3 + $0xa8] sm:$0xff]
  %v8765 = vld [vmem:[#allocation3 + $0xb0] sm:$0xff]
  %v8766 = vld [vmem:[#allocation3 + $0xb8] sm:$0xff]
  %v8767 = vld [vmem:[#allocation3 + $0xc0] sm:$0xff]
  %v8768 = vld [vmem:[#allocation3 + $0xc8] sm:$0xff]
  %v8769 = vld [vmem:[#allocation3 + $0xd0] sm:$0xff]
  %v8770 = vld [vmem:[#allocation3 + $0xd8] sm:$0xff]
  %v8771 = vld [vmem:[#allocation3 + $0xe0] sm:$0xff]
  %v8772 = vld [vmem:[#allocation3 + $0xe8] sm:$0xff]
  %v8773 = vld [vmem:[#allocation3 + $0xf0] sm:$0xff]
  %v8774 = vld [vmem:[#allocation3 + $0xf8] sm:$0xff]
  %v8775 = vld [vmem:[#allocation3 + $0x100] sm:$0xff]
  %v8776 = vld [vmem:[#allocation3 + $0x108] sm:$0xff]
  %v8777 = vld [vmem:[#allocation3 + $0x110] sm:$0xff]
  %v8778 = vld [vmem:[#allocation3 + $0x118] sm:$0xff]
  %v8779 = vld [vmem:[#allocation3 + $0x120] sm:$0xff]
  %8812 = vrot.lane.b32.xlu0 %v8748, 112
  %v8813 = vpop.permute.xlu0 %8812
  %8814 = vrot.lane.b32.xlu0 %v8749, 112
  %v8815 = vpop.permute.xlu0 %8814
  %8816 = vrot.lane.b32.xlu0 %v8750, 112
  %v8817 = vpop.permute.xlu0 %8816
  %8818 = vrot.lane.b32.xlu0 %v8751, 112
  %v8819 = vpop.permute.xlu0 %8818
  %8820 = vrot.lane.b32.xlu0 %v8752, 112
  %v8821 = vpop.permute.xlu0 %8820
  %8822 = vrot.lane.b32.xlu0 %v8753, 112
  %v8823 = vpop.permute.xlu0 %8822
  %8824 = vrot.lane.b32.xlu0 %v8754, 112
  %v8825 = vpop.permute.xlu0 %8824
  %8826 = vrot.lane.b32.xlu0 %v8755, 112
  %v8827 = vpop.permute.xlu0 %8826
  %8828 = vrot.lane.b32.xlu0 %v8756, 112
  %v8829 = vpop.permute.xlu0 %8828
  %8830 = vrot.lane.b32.xlu0 %v8757, 112
  %v8831 = vpop.permute.xlu0 %8830
  %8832 = vrot.lane.b32.xlu0 %v8758, 112
  %v8833 = vpop.permute.xlu0 %8832
  %8834 = vrot.lane.b32.xlu0 %v8759, 112
  %v8835 = vpop.permute.xlu0 %8834
  %8836 = vrot.lane.b32.xlu0 %v8760, 112
  %v8837 = vpop.permute.xlu0 %8836
  %8838 = vrot.lane.b32.xlu0 %v8761, 112
  %v8839 = vpop.permute.xlu0 %8838
  %8840 = vrot.lane.b32.xlu0 %v8762, 112
  %v8841 = vpop.permute.xlu0 %8840
  %8842 = vrot.lane.b32.xlu0 %v8763, 112
  %v8843 = vpop.permute.xlu0 %8842
  %8844 = vrot.lane.b32.xlu0 %v8764, 112
  %v8845 = vpop.permute.xlu0 %8844
  %8846 = vrot.lane.b32.xlu0 %v8765, 112
  %v8847 = vpop.permute.xlu0 %8846
  %8848 = vrot.lane.b32.xlu0 %v8766, 112
  %v8849 = vpop.permute.xlu0 %8848
  %8850 = vrot.lane.b32.xlu0 %v8767, 112
  %v8851 = vpop.permute.xlu0 %8850
  %8852 = vrot.lane.b32.xlu0 %v8768, 112
  %v8853 = vpop.permute.xlu0 %8852
  %8854 = vrot.lane.b32.xlu0 %v8769, 112
  %v8855 = vpop.permute.xlu0 %8854
  %8856 = vrot.lane.b32.xlu0 %v8770, 112
  %v8857 = vpop.permute.xlu0 %8856
  %8858 = vrot.lane.b32.xlu0 %v8771, 112
  %v8859 = vpop.permute.xlu0 %8858
  %8860 = vrot.lane.b32.xlu0 %v8772, 112
  %v8861 = vpop.permute.xlu0 %8860
  %8862 = vrot.lane.b32.xlu0 %v8773, 112
  %v8863 = vpop.permute.xlu0 %8862
  %8864 = vrot.lane.b32.xlu0 %v8774, 112
  %v8865 = vpop.permute.xlu0 %8864
  %8866 = vrot.lane.b32.xlu0 %v8775, 112
  %v8867 = vpop.permute.xlu0 %8866
  %8868 = vrot.lane.b32.xlu0 %v8776, 112
  %v8869 = vpop.permute.xlu0 %8868
  %8870 = vrot.lane.b32.xlu0 %v8777, 112
  %v8871 = vpop.permute.xlu0 %8870
  %8872 = vrot.lane.b32.xlu0 %v8778, 112
  %v8873 = vpop.permute.xlu0 %8872
  %8874 = vrot.lane.b32.xlu0 %v8779, 112
  %v8875 = vpop.permute.xlu0 %8874
  %8908 = vst.msk [vmem:[#allocation5] sm:$0xff] %vm4403, %v8813
  %8909 = vst.msk [vmem:[#allocation5 + $0x10] sm:$0xff] %vm4403, %v8815
  %8910 = vst.msk [vmem:[#allocation5 + $0x20] sm:$0xff] %vm4403, %v8817
  %8911 = vst.msk [vmem:[#allocation5 + $0x30] sm:$0xff] %vm4403, %v8819
  %8912 = vst.msk [vmem:[#allocation5 + $0x40] sm:$0xff] %vm4403, %v8821
  %8913 = vst.msk [vmem:[#allocation5 + $0x50] sm:$0xff] %vm4403, %v8823
  %8914 = vst.msk [vmem:[#allocation5 + $0x60] sm:$0xff] %vm4403, %v8825
  %8915 = vst.msk [vmem:[#allocation5 + $0x70] sm:$0xff] %vm4403, %v8827
  %8916 = vst.msk [vmem:[#allocation5 + $0x80] sm:$0xff] %vm4403, %v8829
  %8917 = vst.msk [vmem:[#allocation5 + $0x90] sm:$0xff] %vm4403, %v8831
  %8918 = vst.msk [vmem:[#allocation5 + $0xa0] sm:$0xff] %vm4403, %v8833
  %8919 = vst.msk [vmem:[#allocation5 + $0xb0] sm:$0xff] %vm4403, %v8835
  %8920 = vst.msk [vmem:[#allocation5 + $0xc0] sm:$0xff] %vm4403, %v8837
  %8921 = vst.msk [vmem:[#allocation5 + $0xd0] sm:$0xff] %vm4403, %v8839
  %8922 = vst.msk [vmem:[#allocation5 + $0xe0] sm:$0xff] %vm4403, %v8841
  %8923 = vst.msk [vmem:[#allocation5 + $0xf0] sm:$0xff] %vm4403, %v8843
  %8924 = vst.msk [vmem:[#allocation5 + $0x100] sm:$0xff] %vm4403, %v8845
  %8925 = vst.msk [vmem:[#allocation5 + $0x110] sm:$0xff] %vm4403, %v8847
  %8926 = vst.msk [vmem:[#allocation5 + $0x120] sm:$0xff] %vm4403, %v8849
  %8927 = vst.msk [vmem:[#allocation5 + $0x130] sm:$0xff] %vm4403, %v8851
  %8928 = vst.msk [vmem:[#allocation5 + $0x140] sm:$0xff] %vm4403, %v8853
  %8929 = vst.msk [vmem:[#allocation5 + $0x150] sm:$0xff] %vm4403, %v8855
  %8930 = vst.msk [vmem:[#allocation5 + $0x160] sm:$0xff] %vm4403, %v8857
  %8931 = vst.msk [vmem:[#allocation5 + $0x170] sm:$0xff] %vm4403, %v8859
  %8932 = vst.msk [vmem:[#allocation5 + $0x180] sm:$0xff] %vm4403, %v8861
  %8933 = vst.msk [vmem:[#allocation5 + $0x190] sm:$0xff] %vm4403, %v8863
  %8934 = vst.msk [vmem:[#allocation5 + $0x1a0] sm:$0xff] %vm4403, %v8865
  %8935 = vst.msk [vmem:[#allocation5 + $0x1b0] sm:$0xff] %vm4403, %v8867
  %8936 = vst.msk [vmem:[#allocation5 + $0x1c0] sm:$0xff] %vm4403, %v8869
  %8937 = vst.msk [vmem:[#allocation5 + $0x1d0] sm:$0xff] %vm4403, %v8871
  %8938 = vst.msk [vmem:[#allocation5 + $0x1e0] sm:$0xff] %vm4403, %v8873
  %8939 = vst.msk [vmem:[#allocation5 + $0x1f0] sm:$0xff] %vm4403, %v8875
  %v8940 = vld [vmem:[#allocation3 + $0x29] sm:$0xff]
  %v8941 = vld [vmem:[#allocation3 + $0x31] sm:$0xff]
  %v8942 = vld [vmem:[#allocation3 + $0x39] sm:$0xff]
  %v8943 = vld [vmem:[#allocation3 + $0x41] sm:$0xff]
  %v8944 = vld [vmem:[#allocation3 + $0x49] sm:$0xff]
  %v8945 = vld [vmem:[#allocation3 + $0x51] sm:$0xff]
  %v8946 = vld [vmem:[#allocation3 + $0x59] sm:$0xff]
  %v8947 = vld [vmem:[#allocation3 + $0x61] sm:$0xff]
  %v8948 = vld [vmem:[#allocation3 + $0x69] sm:$0xff]
  %v8949 = vld [vmem:[#allocation3 + $0x71] sm:$0xff]
  %v8950 = vld [vmem:[#allocation3 + $0x79] sm:$0xff]
  %v8951 = vld [vmem:[#allocation3 + $0x81] sm:$0xff]
  %v8952 = vld [vmem:[#allocation3 + $0x89] sm:$0xff]
  %v8953 = vld [vmem:[#allocation3 + $0x91] sm:$0xff]
  %v8954 = vld [vmem:[#allocation3 + $0x99] sm:$0xff]
  %v8955 = vld [vmem:[#allocation3 + $0xa1] sm:$0xff]
  %v8956 = vld [vmem:[#allocation3 + $0xa9] sm:$0xff]
  %v8957 = vld [vmem:[#allocation3 + $0xb1] sm:$0xff]
  %v8958 = vld [vmem:[#allocation3 + $0xb9] sm:$0xff]
  %v8959 = vld [vmem:[#allocation3 + $0xc1] sm:$0xff]
  %v8960 = vld [vmem:[#allocation3 + $0xc9] sm:$0xff]
  %v8961 = vld [vmem:[#allocation3 + $0xd1] sm:$0xff]
  %v8962 = vld [vmem:[#allocation3 + $0xd9] sm:$0xff]
  %v8963 = vld [vmem:[#allocation3 + $0xe1] sm:$0xff]
  %v8964 = vld [vmem:[#allocation3 + $0xe9] sm:$0xff]
  %v8965 = vld [vmem:[#allocation3 + $0xf1] sm:$0xff]
  %v8966 = vld [vmem:[#allocation3 + $0xf9] sm:$0xff]
  %v8967 = vld [vmem:[#allocation3 + $0x101] sm:$0xff]
  %v8968 = vld [vmem:[#allocation3 + $0x109] sm:$0xff]
  %v8969 = vld [vmem:[#allocation3 + $0x111] sm:$0xff]
  %v8970 = vld [vmem:[#allocation3 + $0x119] sm:$0xff]
  %v8971 = vld [vmem:[#allocation3 + $0x121] sm:$0xff]
  %v8972 = vsel %vm1003, %v8940, 0.0
  %v8973 = vsel %vm1004, %v8941, 0.0
  %v8974 = vsel %vm1005, %v8942, 0.0
  %v8975 = vsel %vm1006, %v8943, 0.0
  %v8976 = vsel %vm1007, %v8944, 0.0
  %v8977 = vsel %vm1008, %v8945, 0.0
  %v8978 = vsel %vm1009, %v8946, 0.0
  %v8979 = vsel %vm1010, %v8947, 0.0
  %v8980 = vsel %vm1011, %v8948, 0.0
  %v8981 = vsel %vm1012, %v8949, 0.0
  %v8982 = vsel %vm1013, %v8950, 0.0
  %v8983 = vsel %vm1014, %v8951, 0.0
  %v8984 = vsel %vm1015, %v8952, 0.0
  %v8985 = vsel %vm1016, %v8953, 0.0
  %v8986 = vsel %vm1017, %v8954, 0.0
  %v8987 = vsel %vm1018, %v8955, 0.0
  %v8988 = vsel %vm1019, %v8956, 0.0
  %v8989 = vsel %vm1020, %v8957, 0.0
  %v8990 = vsel %vm1021, %v8958, 0.0
  %v8991 = vsel %vm1022, %v8959, 0.0
  %v8992 = vsel %vm1023, %v8960, 0.0
  %v8993 = vsel %vm1024, %v8961, 0.0
  %v8994 = vsel %vm1025, %v8962, 0.0
  %v8995 = vsel %vm1026, %v8963, 0.0
  %v8996 = vsel %vm1027, %v8964, 0.0
  %v8997 = vsel %vm1028, %v8965, 0.0
  %v8998 = vsel %vm1029, %v8966, 0.0
  %v8999 = vsel %vm1030, %v8967, 0.0
  %v9000 = vsel %vm1031, %v8968, 0.0
  %v9001 = vsel %vm1032, %v8969, 0.0
  %v9002 = vsel %vm1033, %v8970, 0.0
  %v9003 = vsel %vm1034, %v8971, 0.0
  %9004 = vst.msk [vmem:[#allocation5 + $0x8] sm:$0xff] %vm515, %v8972
  %9005 = vst.msk [vmem:[#allocation5 + $0x18] sm:$0xff] %vm515, %v8973
  %9006 = vst.msk [vmem:[#allocation5 + $0x28] sm:$0xff] %vm515, %v8974
  %9007 = vst.msk [vmem:[#allocation5 + $0x38] sm:$0xff] %vm515, %v8975
  %9008 = vst.msk [vmem:[#allocation5 + $0x48] sm:$0xff] %vm515, %v8976
  %9009 = vst.msk [vmem:[#allocation5 + $0x58] sm:$0xff] %vm515, %v8977
  %9010 = vst.msk [vmem:[#allocation5 + $0x68] sm:$0xff] %vm515, %v8978
  %9011 = vst.msk [vmem:[#allocation5 + $0x78] sm:$0xff] %vm515, %v8979
  %9012 = vst.msk [vmem:[#allocation5 + $0x88] sm:$0xff] %vm515, %v8980
  %9013 = vst.msk [vmem:[#allocation5 + $0x98] sm:$0xff] %vm515, %v8981
  %9014 = vst.msk [vmem:[#allocation5 + $0xa8] sm:$0xff] %vm515, %v8982
  %9015 = vst.msk [vmem:[#allocation5 + $0xb8] sm:$0xff] %vm515, %v8983
  %9016 = vst.msk [vmem:[#allocation5 + $0xc8] sm:$0xff] %vm515, %v8984
  %9017 = vst.msk [vmem:[#allocation5 + $0xd8] sm:$0xff] %vm515, %v8985
  %9018 = vst.msk [vmem:[#allocation5 + $0xe8] sm:$0xff] %vm515, %v8986
  %9019 = vst.msk [vmem:[#allocation5 + $0xf8] sm:$0xff] %vm515, %v8987
  %9020 = vst.msk [vmem:[#allocation5 + $0x108] sm:$0xff] %vm515, %v8988
  %9021 = vst.msk [vmem:[#allocation5 + $0x118] sm:$0xff] %vm515, %v8989
  %9022 = vst.msk [vmem:[#allocation5 + $0x128] sm:$0xff] %vm515, %v8990
  %9023 = vst.msk [vmem:[#allocation5 + $0x138] sm:$0xff] %vm515, %v8991
  %9024 = vst.msk [vmem:[#allocation5 + $0x148] sm:$0xff] %vm515, %v8992
  %9025 = vst.msk [vmem:[#allocation5 + $0x158] sm:$0xff] %vm515, %v8993
  %9026 = vst.msk [vmem:[#allocation5 + $0x168] sm:$0xff] %vm515, %v8994
  %9027 = vst.msk [vmem:[#allocation5 + $0x178] sm:$0xff] %vm515, %v8995
  %9028 = vst.msk [vmem:[#allocation5 + $0x188] sm:$0xff] %vm515, %v8996
  %9029 = vst.msk [vmem:[#allocation5 + $0x198] sm:$0xff] %vm515, %v8997
  %9030 = vst.msk [vmem:[#allocation5 + $0x1a8] sm:$0xff] %vm515, %v8998
  %9031 = vst.msk [vmem:[#allocation5 + $0x1b8] sm:$0xff] %vm515, %v8999
  %9032 = vst.msk [vmem:[#allocation5 + $0x1c8] sm:$0xff] %vm515, %v9000
  %9033 = vst.msk [vmem:[#allocation5 + $0x1d8] sm:$0xff] %vm515, %v9001
  %9034 = vst.msk [vmem:[#allocation5 + $0x1e8] sm:$0xff] %vm515, %v9002
  %9035 = vst.msk [vmem:[#allocation5 + $0x1f8] sm:$0xff] %vm515, %v9003
  %v9036 = vld [vmem:[#allocation5] sm:$0xff]
  %v9037 = vld [vmem:[#allocation5 + $0x8] sm:$0xff]
  %v9038 = vld [vmem:[#allocation5 + $0x10] sm:$0xff]
  %v9039 = vld [vmem:[#allocation5 + $0x18] sm:$0xff]
  %v9040 = vld [vmem:[#allocation5 + $0x20] sm:$0xff]
  %v9041 = vld [vmem:[#allocation5 + $0x28] sm:$0xff]
  %v9042 = vld [vmem:[#allocation5 + $0x30] sm:$0xff]
  %v9043 = vld [vmem:[#allocation5 + $0x38] sm:$0xff]
  %v9044 = vld [vmem:[#allocation5 + $0x40] sm:$0xff]
  %v9045 = vld [vmem:[#allocation5 + $0x48] sm:$0xff]
  %v9046 = vld [vmem:[#allocation5 + $0x50] sm:$0xff]
  %v9047 = vld [vmem:[#allocation5 + $0x58] sm:$0xff]
  %v9048 = vld [vmem:[#allocation5 + $0x60] sm:$0xff]
  %v9049 = vld [vmem:[#allocation5 + $0x68] sm:$0xff]
  %v9050 = vld [vmem:[#allocation5 + $0x70] sm:$0xff]
  %v9051 = vld [vmem:[#allocation5 + $0x78] sm:$0xff]
  %v9052 = vld [vmem:[#allocation5 + $0x80] sm:$0xff]
  %v9053 = vld [vmem:[#allocation5 + $0x88] sm:$0xff]
  %v9054 = vld [vmem:[#allocation5 + $0x90] sm:$0xff]
  %v9055 = vld [vmem:[#allocation5 + $0x98] sm:$0xff]
  %v9056 = vld [vmem:[#allocation5 + $0xa0] sm:$0xff]
  %v9057 = vld [vmem:[#allocation5 + $0xa8] sm:$0xff]
  %v9058 = vld [vmem:[#allocation5 + $0xb0] sm:$0xff]
  %v9059 = vld [vmem:[#allocation5 + $0xb8] sm:$0xff]
  %v9060 = vld [vmem:[#allocation5 + $0xc0] sm:$0xff]
  %v9061 = vld [vmem:[#allocation5 + $0xc8] sm:$0xff]
  %v9062 = vld [vmem:[#allocation5 + $0xd0] sm:$0xff]
  %v9063 = vld [vmem:[#allocation5 + $0xd8] sm:$0xff]
  %v9064 = vld [vmem:[#allocation5 + $0xe0] sm:$0xff]
  %v9065 = vld [vmem:[#allocation5 + $0xe8] sm:$0xff]
  %v9066 = vld [vmem:[#allocation5 + $0xf0] sm:$0xff]
  %v9067 = vld [vmem:[#allocation5 + $0xf8] sm:$0xff]
  %v9068 = vld [vmem:[#allocation5 + $0x100] sm:$0xff]
  %v9069 = vld [vmem:[#allocation5 + $0x108] sm:$0xff]
  %v9070 = vld [vmem:[#allocation5 + $0x110] sm:$0xff]
  %v9071 = vld [vmem:[#allocation5 + $0x118] sm:$0xff]
  %v9072 = vld [vmem:[#allocation5 + $0x120] sm:$0xff]
  %v9073 = vld [vmem:[#allocation5 + $0x128] sm:$0xff]
  %v9074 = vld [vmem:[#allocation5 + $0x130] sm:$0xff]
  %v9075 = vld [vmem:[#allocation5 + $0x138] sm:$0xff]
  %v9076 = vld [vmem:[#allocation5 + $0x140] sm:$0xff]
  %v9077 = vld [vmem:[#allocation5 + $0x148] sm:$0xff]
  %v9078 = vld [vmem:[#allocation5 + $0x150] sm:$0xff]
  %v9079 = vld [vmem:[#allocation5 + $0x158] sm:$0xff]
  %v9080 = vld [vmem:[#allocation5 + $0x160] sm:$0xff]
  %v9081 = vld [vmem:[#allocation5 + $0x168] sm:$0xff]
  %v9082 = vld [vmem:[#allocation5 + $0x170] sm:$0xff]
  %v9083 = vld [vmem:[#allocation5 + $0x178] sm:$0xff]
  %v9084 = vld [vmem:[#allocation5 + $0x180] sm:$0xff]
  %v9085 = vld [vmem:[#allocation5 + $0x188] sm:$0xff]
  %v9086 = vld [vmem:[#allocation5 + $0x190] sm:$0xff]
  %v9087 = vld [vmem:[#allocation5 + $0x198] sm:$0xff]
  %v9088 = vld [vmem:[#allocation5 + $0x1a0] sm:$0xff]
  %v9089 = vld [vmem:[#allocation5 + $0x1a8] sm:$0xff]
  %v9090 = vld [vmem:[#allocation5 + $0x1b0] sm:$0xff]
  %v9091 = vld [vmem:[#allocation5 + $0x1b8] sm:$0xff]
  %v9092 = vld [vmem:[#allocation5 + $0x1c0] sm:$0xff]
  %v9093 = vld [vmem:[#allocation5 + $0x1c8] sm:$0xff]
  %v9094 = vld [vmem:[#allocation5 + $0x1d0] sm:$0xff]
  %v9095 = vld [vmem:[#allocation5 + $0x1d8] sm:$0xff]
  %v9096 = vld [vmem:[#allocation5 + $0x1e0] sm:$0xff]
  %v9097 = vld [vmem:[#allocation5 + $0x1e8] sm:$0xff]
  %v9098 = vld [vmem:[#allocation5 + $0x1f0] sm:$0xff]
  %v9099 = vld [vmem:[#allocation5 + $0x1f8] sm:$0xff]
  %v9100 = vpack.c.bf16 %v9038, %v9036
  %v9101 = vpack.c.bf16 %v9039, %v9037
  %v9102 = vpack.c.bf16 %v9042, %v9040
  %v9103 = vpack.c.bf16 %v9043, %v9041
  %v9104 = vpack.c.bf16 %v9046, %v9044
  %v9105 = vpack.c.bf16 %v9047, %v9045
  %v9106 = vpack.c.bf16 %v9050, %v9048
  %v9107 = vpack.c.bf16 %v9051, %v9049
  %v9108 = vpack.c.bf16 %v9054, %v9052
  %v9109 = vpack.c.bf16 %v9055, %v9053
  %v9110 = vpack.c.bf16 %v9058, %v9056
  %v9111 = vpack.c.bf16 %v9059, %v9057
  %v9112 = vpack.c.bf16 %v9062, %v9060
  %v9113 = vpack.c.bf16 %v9063, %v9061
  %v9114 = vpack.c.bf16 %v9066, %v9064
  %v9115 = vpack.c.bf16 %v9067, %v9065
  %v9116 = vpack.c.bf16 %v9070, %v9068
  %v9117 = vpack.c.bf16 %v9071, %v9069
  %v9118 = vpack.c.bf16 %v9074, %v9072
  %v9119 = vpack.c.bf16 %v9075, %v9073
  %v9120 = vpack.c.bf16 %v9078, %v9076
  %v9121 = vpack.c.bf16 %v9079, %v9077
  %v9122 = vpack.c.bf16 %v9082, %v9080
  %v9123 = vpack.c.bf16 %v9083, %v9081
  %v9124 = vpack.c.bf16 %v9086, %v9084
  %v9125 = vpack.c.bf16 %v9087, %v9085
  %v9126 = vpack.c.bf16 %v9090, %v9088
  %v9127 = vpack.c.bf16 %v9091, %v9089
  %v9128 = vpack.c.bf16 %v9094, %v9092
  %v9129 = vpack.c.bf16 %v9095, %v9093
  %v9130 = vpack.c.bf16 %v9098, %v9096
  %v9131 = vpack.c.bf16 %v9099, %v9097
  %v9132 = vld [vmem:[%s3] sm:$0xff]
  %v9133 = vld [vmem:[%s3 + $0x8] sm:$0xff]
  %v9134 = vld [vmem:[%s3 + $0x10] sm:$0xff]
  %v9135 = vld [vmem:[%s3 + $0x18] sm:$0xff]
  %v9136 = vld [vmem:[%s3 + $0x20] sm:$0xff]
  %v9137 = vld [vmem:[%s3 + $0x28] sm:$0xff]
  %v9138 = vld [vmem:[%s3 + $0x30] sm:$0xff]
  %v9139 = vld [vmem:[%s3 + $0x38] sm:$0xff]
  %v9140 = vld [vmem:[%s3 + $0x40] sm:$0xff]
  %v9141 = vld [vmem:[%s3 + $0x48] sm:$0xff]
  %v9142 = vld [vmem:[%s3 + $0x50] sm:$0xff]
  %v9143 = vld [vmem:[%s3 + $0x58] sm:$0xff]
  %v9144 = vld [vmem:[%s3 + $0x60] sm:$0xff]
  %v9145 = vld [vmem:[%s3 + $0x68] sm:$0xff]
  %v9146 = vld [vmem:[%s3 + $0x70] sm:$0xff]
  %v9147 = vld [vmem:[%s3 + $0x78] sm:$0xff]
  %v9148 = vld [vmem:[%s3 + $0x80] sm:$0xff]
  %v9149 = vld [vmem:[%s3 + $0x88] sm:$0xff]
  %v9150 = vpack.c.bf16 %v9133, %v9132
  %v9151 = vpack.c.bf16 %v9135, %v9134
  %v9152 = vpack.c.bf16 %v9137, %v9136
  %v9153 = vpack.c.bf16 %v9139, %v9138
  %v9154 = vpack.c.bf16 %v9141, %v9140
  %v9155 = vpack.c.bf16 %v9143, %v9142
  %v9156 = vpack.c.bf16 %v9145, %v9144
  %v9157 = vpack.c.bf16 %v9147, %v9146
  %v9158 = vpack.c.bf16 %v9149, %v9148
  %v9159 = vld [vmem:[%s4] sm:$0x1]
  %v9161 = vlaneseq
  %v9162 = vshrl.u32 %v9161, 7
  %v9163 = vsub.s32 0, %v9162
  %v9164 = vrot.slane %v9159, %v9163
  %v9167 = vsel %vm515, %v9101, 0
  %v9170 = vsel %vm515, %v9103, 0
  %v9173 = vsel %vm515, %v9105, 0
  %v9176 = vsel %vm515, %v9107, 0
  %v9179 = vsel %vm515, %v9109, 0
  %v9182 = vsel %vm515, %v9111, 0
  %v9185 = vsel %vm515, %v9113, 0
  %v9188 = vsel %vm515, %v9115, 0
  %v9191 = vsel %vm515, %v9117, 0
  %v9194 = vsel %vm515, %v9119, 0
  %v9197 = vsel %vm515, %v9121, 0
  %v9200 = vsel %vm515, %v9123, 0
  %v9203 = vsel %vm515, %v9125, 0
  %v9206 = vsel %vm515, %v9127, 0
  %v9209 = vsel %vm515, %v9129, 0
  %v9212 = vsel %vm515, %v9131, 0
  %9214 = vmatprep.subr.bf16.mxu0 0
  %9215 = vmatpush1.bf16.msra.mxu0 %v9150
  %9216 = vmatprep.subr.bf16.mxu0 0
  %9217 = vmatpush1.bf16.msra.mxu0 %v9151
  %9218 = vmatprep.subr.bf16.mxu0 0
  %9219 = vmatpush1.bf16.msra.mxu0 %v9152
  %9220 = vmatprep.subr.bf16.mxu0 0
  %9221 = vmatpush1.bf16.msra.mxu0 %v9153
  %9222 = vmatprep.subr.bf16.mxu0 0
  %9223 = vmatpush1.bf16.msra.mxu0 %v9154
  %9224 = vmatprep.subr.bf16.mxu0 0
  %9225 = vmatpush1.bf16.msra.mxu0 %v9155
  %9226 = vmatprep.subr.bf16.mxu0 0
  %9227 = vmatpush1.bf16.msra.mxu0 %v9156
  %9228 = vmatprep.subr.bf16.mxu0 0
  %9229 = vmatpush1.bf16.msra.mxu0 %v9157
  %9230 = vmatprep.subr.bf16.mxu0 0
  %9231 = vmatpush1.bf16.msra.mxu0 %v9158
  %9232 = vmatprep.subr.bf16.mxu0 0
  %9233 = vmatpush1.bf16.msra.mxu0 0
  %9234 = vmatprep.subr.bf16.mxu0 0
  %9235 = vmatpush1.bf16.msra.mxu0 0
  %9236 = vmatprep.subr.bf16.mxu0 0
  %9237 = vmatpush1.bf16.msra.mxu0 0
  %9238 = vmatprep.subr.bf16.mxu0 0
  %9239 = vmatpush1.bf16.msra.mxu0 0
  %9240 = vmatprep.subr.bf16.mxu0 0
  %9241 = vmatpush1.bf16.msra.mxu0 0
  %9242 = vmatprep.subr.bf16.mxu0 0
  %9243 = vmatpush1.bf16.msra.mxu0 0
  %9244 = vmatprep.subr.bf16.mxu0 0
  %9245 = vmatpush1.bf16.msra.mxu0 0
  %9246 = vmatprep.mubr.bf16.mxu0 %v9167
  %9247 = vmatmul.mubr.bf16.gmra.mrb[0].mxu0 %v9100
  %v9248 = vpop.f32.mrb[0].mxu0
  %v9249 = vadd.f32 %v9164, %v9248
  %v9250 = vpop.f32.mrb[0].mxu0
  %v9251 = vpop.f32.mrb[0].mxu0
  %v9252 = vadd.f32 %v9164, %v9251
  %v9253 = vpop.f32.mrb[0].mxu0
  %9254 = vmatprep.mubr.bf16.mxu0 %v9170
  %9255 = vmatmul.mubr.bf16.gmra.mrb[0].mxu0 %v9102
  %v9256 = vpop.f32.mrb[0].mxu0
  %v9257 = vadd.f32 %v9164, %v9256
  %v9258 = vpop.f32.mrb[0].mxu0
  %v9259 = vpop.f32.mrb[0].mxu0
  %v9260 = vadd.f32 %v9164, %v9259
  %v9261 = vpop.f32.mrb[0].mxu0
  %9262 = vmatprep.mubr.bf16.mxu0 %v9173
  %9263 = vmatmul.mubr.bf16.gmra.mrb[0].mxu0 %v9104
  %v9264 = vpop.f32.mrb[0].mxu0
  %v9265 = vadd.f32 %v9164, %v9264
  %v9266 = vpop.f32.mrb[0].mxu0
  %v9267 = vpop.f32.mrb[0].mxu0
  %v9268 = vadd.f32 %v9164, %v9267
  %v9269 = vpop.f32.mrb[0].mxu0
  %9270 = vmatprep.mubr.bf16.mxu0 %v9176
  %9271 = vmatmul.mubr.bf16.gmra.mrb[0].mxu0 %v9106
  %v9272 = vpop.f32.mrb[0].mxu0
  %v9273 = vadd.f32 %v9164, %v9272
  %v9274 = vpop.f32.mrb[0].mxu0
  %v9275 = vpop.f32.mrb[0].mxu0
  %v9276 = vadd.f32 %v9164, %v9275
  %v9277 = vpop.f32.mrb[0].mxu0
  %9278 = vmatprep.mubr.bf16.mxu0 %v9179
  %9279 = vmatmul.mubr.bf16.gmra.mrb[0].mxu0 %v9108
  %v9280 = vpop.f32.mrb[0].mxu0
  %v9281 = vadd.f32 %v9164, %v9280
  %v9282 = vpop.f32.mrb[0].mxu0
  %v9283 = vpop.f32.mrb[0].mxu0
  %v9284 = vadd.f32 %v9164, %v9283
  %v9285 = vpop.f32.mrb[0].mxu0
  %9286 = vmatprep.mubr.bf16.mxu0 %v9182
  %9287 = vmatmul.mubr.bf16.gmra.mrb[0].mxu0 %v9110
  %v9288 = vpop.f32.mrb[0].mxu0
  %v9289 = vadd.f32 %v9164, %v9288
  %v9290 = vpop.f32.mrb[0].mxu0
  %v9291 = vpop.f32.mrb[0].mxu0
  %v9292 = vadd.f32 %v9164, %v9291
  %v9293 = vpop.f32.mrb[0].mxu0
  %9294 = vmatprep.mubr.bf16.mxu0 %v9185
  %9295 = vmatmul.mubr.bf16.gmra.mrb[0].mxu0 %v9112
  %v9296 = vpop.f32.mrb[0].mxu0
  %v9297 = vadd.f32 %v9164, %v9296
  %v9298 = vpop.f32.mrb[0].mxu0
  %v9299 = vpop.f32.mrb[0].mxu0
  %v9300 = vadd.f32 %v9164, %v9299
  %v9301 = vpop.f32.mrb[0].mxu0
  %9302 = vmatprep.mubr.bf16.mxu0 %v9188
  %9303 = vmatmul.mubr.bf16.gmra.mrb[0].mxu0 %v9114
  %v9304 = vpop.f32.mrb[0].mxu0
  %v9305 = vadd.f32 %v9164, %v9304
  %v9306 = vpop.f32.mrb[0].mxu0
  %v9307 = vpop.f32.mrb[0].mxu0
  %v9308 = vadd.f32 %v9164, %v9307
  %v9309 = vpop.f32.mrb[0].mxu0
  %9310 = vmatprep.mubr.bf16.mxu0 %v9191
  %9311 = vmatmul.mubr.bf16.gmra.mrb[0].mxu0 %v9116
  %v9312 = vpop.f32.mrb[0].mxu0
  %v9313 = vadd.f32 %v9164, %v9312
  %v9314 = vpop.f32.mrb[0].mxu0
  %v9315 = vpop.f32.mrb[0].mxu0
  %v9316 = vadd.f32 %v9164, %v9315
  %v9317 = vpop.f32.mrb[0].mxu0
  %9318 = vmatprep.mubr.bf16.mxu0 %v9194
  %9319 = vmatmul.mubr.bf16.gmra.mrb[0].mxu0 %v9118
  %v9320 = vpop.f32.mrb[0].mxu0
  %v9321 = vadd.f32 %v9164, %v9320
  %v9322 = vpop.f32.mrb[0].mxu0
  %v9323 = vpop.f32.mrb[0].mxu0
  %v9324 = vadd.f32 %v9164, %v9323
  %v9325 = vpop.f32.mrb[0].mxu0
  %9326 = vmatprep.mubr.bf16.mxu0 %v9197
  %9327 = vmatmul.mubr.bf16.gmra.mrb[0].mxu0 %v9120
  %v9328 = vpop.f32.mrb[0].mxu0
  %v9329 = vadd.f32 %v9164, %v9328
  %v9330 = vpop.f32.mrb[0].mxu0
  %v9331 = vpop.f32.mrb[0].mxu0
  %v9332 = vadd.f32 %v9164, %v9331
  %v9333 = vpop.f32.mrb[0].mxu0
  %9334 = vmatprep.mubr.bf16.mxu0 %v9200
  %9335 = vmatmul.mubr.bf16.gmra.mrb[0].mxu0 %v9122
  %v9336 = vpop.f32.mrb[0].mxu0
  %v9337 = vadd.f32 %v9164, %v9336
  %v9338 = vpop.f32.mrb[0].mxu0
  %v9339 = vpop.f32.mrb[0].mxu0
  %v9340 = vadd.f32 %v9164, %v9339
  %v9341 = vpop.f32.mrb[0].mxu0
  %9342 = vmatprep.mubr.bf16.mxu0 %v9203
  %9343 = vmatmul.mubr.bf16.gmra.mrb[0].mxu0 %v9124
  %v9344 = vpop.f32.mrb[0].mxu0
  %v9345 = vadd.f32 %v9164, %v9344
  %v9346 = vpop.f32.mrb[0].mxu0
  %v9347 = vpop.f32.mrb[0].mxu0
  %v9348 = vadd.f32 %v9164, %v9347
  %v9349 = vpop.f32.mrb[0].mxu0
  %9350 = vmatprep.mubr.bf16.mxu0 %v9206
  %9351 = vmatmul.mubr.bf16.gmra.mrb[0].mxu0 %v9126
  %v9352 = vpop.f32.mrb[0].mxu0
  %v9353 = vadd.f32 %v9164, %v9352
  %v9354 = vpop.f32.mrb[0].mxu0
  %v9355 = vpop.f32.mrb[0].mxu0
  %v9356 = vadd.f32 %v9164, %v9355
  %v9357 = vpop.f32.mrb[0].mxu0
  %9358 = vmatprep.mubr.bf16.mxu0 %v9209
  %9359 = vmatmul.mubr.bf16.gmra.mrb[0].mxu0 %v9128
  %v9360 = vpop.f32.mrb[0].mxu0
  %v9361 = vadd.f32 %v9164, %v9360
  %v9362 = vpop.f32.mrb[0].mxu0
  %v9363 = vpop.f32.mrb[0].mxu0
  %v9364 = vadd.f32 %v9164, %v9363
  %v9365 = vpop.f32.mrb[0].mxu0
  %9366 = vmatprep.mubr.bf16.mxu0 %v9212
  %9367 = vmatmul.mubr.bf16.gmra.mrb[0].mxu0 %v9130
  %v9368 = vpop.f32.mrb[0].mxu0
  %v9369 = vadd.f32 %v9164, %v9368
  %v9370 = vpop.f32.mrb[0].mxu0
  %v9371 = vpop.f32.mrb[0].mxu0
  %v9372 = vadd.f32 %v9164, %v9371
  %v9373 = vpop.f32.mrb[0].mxu0
  %9374 = vdwg.mxu0
  %v9375 = vmax.f32 %v9249, 0.0
  %v9376 = vmax.f32 %v9252, 0.0
  %v9377 = vmax.f32 %v9257, 0.0
  %v9378 = vmax.f32 %v9260, 0.0
  %v9379 = vmax.f32 %v9265, 0.0
  %v9380 = vmax.f32 %v9268, 0.0
  %v9381 = vmax.f32 %v9273, 0.0
  %v9382 = vmax.f32 %v9276, 0.0
  %v9383 = vmax.f32 %v9281, 0.0
  %v9384 = vmax.f32 %v9284, 0.0
  %v9385 = vmax.f32 %v9289, 0.0
  %v9386 = vmax.f32 %v9292, 0.0
  %v9387 = vmax.f32 %v9297, 0.0
  %v9388 = vmax.f32 %v9300, 0.0
  %v9389 = vmax.f32 %v9305, 0.0
  %v9390 = vmax.f32 %v9308, 0.0
  %v9391 = vmax.f32 %v9313, 0.0
  %v9392 = vmax.f32 %v9316, 0.0
  %v9393 = vmax.f32 %v9321, 0.0
  %v9394 = vmax.f32 %v9324, 0.0
  %v9395 = vmax.f32 %v9329, 0.0
  %v9396 = vmax.f32 %v9332, 0.0
  %v9397 = vmax.f32 %v9337, 0.0
  %v9398 = vmax.f32 %v9340, 0.0
  %v9399 = vmax.f32 %v9345, 0.0
  %v9400 = vmax.f32 %v9348, 0.0
  %v9401 = vmax.f32 %v9353, 0.0
  %v9402 = vmax.f32 %v9356, 0.0
  %v9403 = vmax.f32 %v9361, 0.0
  %v9404 = vmax.f32 %v9364, 0.0
  %v9405 = vmax.f32 %v9369, 0.0
  %v9406 = vmax.f32 %v9372, 0.0
  %v9407 = vpack.c.bf16 %v9376, %v9375
  %v9408 = vpack.c.bf16 %v9378, %v9377
  %v9409 = vpack.c.bf16 %v9380, %v9379
  %v9410 = vpack.c.bf16 %v9382, %v9381
  %v9411 = vpack.c.bf16 %v9384, %v9383
  %v9412 = vpack.c.bf16 %v9386, %v9385
  %v9413 = vpack.c.bf16 %v9388, %v9387
  %v9414 = vpack.c.bf16 %v9390, %v9389
  %v9415 = vpack.c.bf16 %v9392, %v9391
  %v9416 = vpack.c.bf16 %v9394, %v9393
  %v9417 = vpack.c.bf16 %v9396, %v9395
  %v9418 = vpack.c.bf16 %v9398, %v9397
  %v9419 = vpack.c.bf16 %v9400, %v9399
  %v9420 = vpack.c.bf16 %v9402, %v9401
  %v9421 = vpack.c.bf16 %v9404, %v9403
  %v9422 = vpack.c.bf16 %v9406, %v9405
  %v9423 = vld [vmem:[%s5] sm:$0xff]
  %v9424 = vld [vmem:[%s5 + $0x8] sm:$0xff]
  %v9425 = vpack.c.bf16 %v9424, %v9423
  %v9426 = vld [vmem:[%s6] sm:$0x1]
  %v9428 = vlaneseq
  %v9429 = vshrl.u32 %v9428, 7
  %v9430 = vsub.s32 0, %v9429
  %v9431 = vrot.slane %v9426, %v9430
  %v9434 = vsel %vm515, %v9407, 0
  %v9437 = vsel %vm515, %v9408, 0
  %v9440 = vsel %vm515, %v9409, 0
  %v9443 = vsel %vm515, %v9410, 0
  %v9446 = vsel %vm515, %v9411, 0
  %v9449 = vsel %vm515, %v9412, 0
  %v9452 = vsel %vm515, %v9413, 0
  %v9455 = vsel %vm515, %v9414, 0
  %v9458 = vsel %vm515, %v9415, 0
  %v9461 = vsel %vm515, %v9416, 0
  %v9464 = vsel %vm515, %v9417, 0
  %v9467 = vsel %vm515, %v9418, 0
  %v9470 = vsel %vm515, %v9419, 0
  %v9473 = vsel %vm515, %v9420, 0
  %v9476 = vsel %vm515, %v9421, 0
  %v9479 = vsel %vm515, %v9422, 0
  %9481 = vmatprep.subr.bf16.mxu0 0
  %9482 = vmatpush1.bf16.msra.mxu0 %v9425
  %9483 = vmatprep.subr.bf16.mxu0 0
  %9484 = vmatpush1.bf16.msra.mxu0 0
  %9485 = vmatprep.subr.bf16.mxu0 0
  %9486 = vmatpush1.bf16.msra.mxu0 0
  %9487 = vmatprep.subr.bf16.mxu0 0
  %9488 = vmatpush1.bf16.msra.mxu0 0
  %9489 = vmatprep.subr.bf16.mxu0 0
  %9490 = vmatpush1.bf16.msra.mxu0 0
  %9491 = vmatprep.subr.bf16.mxu0 0
  %9492 = vmatpush1.bf16.msra.mxu0 0
  %9493 = vmatprep.subr.bf16.mxu0 0
  %9494 = vmatpush1.bf16.msra.mxu0 0
  %9495 = vmatprep.subr.bf16.mxu0 0
  %9496 = vmatpush1.bf16.msra.mxu0 0
  %9497 = vmatprep.subr.bf16.mxu0 0
  %9498 = vmatpush1.bf16.msra.mxu0 0
  %9499 = vmatprep.subr.bf16.mxu0 0
  %9500 = vmatpush1.bf16.msra.mxu0 0
  %9501 = vmatprep.subr.bf16.mxu0 0
  %9502 = vmatpush1.bf16.msra.mxu0 0
  %9503 = vmatprep.subr.bf16.mxu0 0
  %9504 = vmatpush1.bf16.msra.mxu0 0
  %9505 = vmatprep.subr.bf16.mxu0 0
  %9506 = vmatpush1.bf16.msra.mxu0 0
  %9507 = vmatprep.subr.bf16.mxu0 0
  %9508 = vmatpush1.bf16.msra.mxu0 0
  %9509 = vmatprep.subr.bf16.mxu0 0
  %9510 = vmatpush1.bf16.msra.mxu0 0
  %9511 = vmatprep.subr.bf16.mxu0 0
  %9512 = vmatpush1.bf16.msra.mxu0 0
  %9513 = vmatprep.mubr.bf16.mxu0 0
  %9514 = vmatmul.mubr.bf16.gmra.mrb[0].mxu0 %v9434
  %v9515 = vpop.f32.mrb[0].mxu0
  %v9516 = vadd.f32 %v9431, %v9515
  %v9517 = vpop.f32.mrb[0].mxu0
  %v9518 = vpop.f32.mrb[0].mxu0
  %v9519 = vadd.f32 %v9431, %v9518
  %v9520 = vpop.f32.mrb[0].mxu0
  %9521 = vmatprep.mubr.bf16.mxu0 0
  %9522 = vmatmul.mubr.bf16.gmra.mrb[0].mxu0 %v9437
  %v9523 = vpop.f32.mrb[0].mxu0
  %v9524 = vadd.f32 %v9431, %v9523
  %v9525 = vpop.f32.mrb[0].mxu0
  %v9526 = vpop.f32.mrb[0].mxu0
  %v9527 = vadd.f32 %v9431, %v9526
  %v9528 = vpop.f32.mrb[0].mxu0
  %9529 = vmatprep.mubr.bf16.mxu0 0
  %9530 = vmatmul.mubr.bf16.gmra.mrb[0].mxu0 %v9440
  %v9531 = vpop.f32.mrb[0].mxu0
  %v9532 = vadd.f32 %v9431, %v9531
  %v9533 = vpop.f32.mrb[0].mxu0
  %v9534 = vpop.f32.mrb[0].mxu0
  %v9535 = vadd.f32 %v9431, %v9534
  %v9536 = vpop.f32.mrb[0].mxu0
  %9537 = vmatprep.mubr.bf16.mxu0 0
  %9538 = vmatmul.mubr.bf16.gmra.mrb[0].mxu0 %v9443
  %v9539 = vpop.f32.mrb[0].mxu0
  %v9540 = vadd.f32 %v9431, %v9539
  %v9541 = vpop.f32.mrb[0].mxu0
  %v9542 = vpop.f32.mrb[0].mxu0
  %v9543 = vadd.f32 %v9431, %v9542
  %v9544 = vpop.f32.mrb[0].mxu0
  %9545 = vmatprep.mubr.bf16.mxu0 0
  %9546 = vmatmul.mubr.bf16.gmra.mrb[0].mxu0 %v9446
  %v9547 = vpop.f32.mrb[0].mxu0
  %v9548 = vadd.f32 %v9431, %v9547
  %v9549 = vpop.f32.mrb[0].mxu0
  %v9550 = vpop.f32.mrb[0].mxu0
  %v9551 = vadd.f32 %v9431, %v9550
  %v9552 = vpop.f32.mrb[0].mxu0
  %9553 = vmatprep.mubr.bf16.mxu0 0
  %9554 = vmatmul.mubr.bf16.gmra.mrb[0].mxu0 %v9449
  %v9555 = vpop.f32.mrb[0].mxu0
  %v9556 = vadd.f32 %v9431, %v9555
  %v9557 = vpop.f32.mrb[0].mxu0
  %v9558 = vpop.f32.mrb[0].mxu0
  %v9559 = vadd.f32 %v9431, %v9558
  %v9560 = vpop.f32.mrb[0].mxu0
  %9561 = vmatprep.mubr.bf16.mxu0 0
  %9562 = vmatmul.mubr.bf16.gmra.mrb[0].mxu0 %v9452
  %v9563 = vpop.f32.mrb[0].mxu0
  %v9564 = vadd.f32 %v9431, %v9563
  %v9565 = vpop.f32.mrb[0].mxu0
  %v9566 = vpop.f32.mrb[0].mxu0
  %v9567 = vadd.f32 %v9431, %v9566
  %v9568 = vpop.f32.mrb[0].mxu0
  %9569 = vmatprep.mubr.bf16.mxu0 0
  %9570 = vmatmul.mubr.bf16.gmra.mrb[0].mxu0 %v9455
  %v9571 = vpop.f32.mrb[0].mxu0
  %v9572 = vadd.f32 %v9431, %v9571
  %v9573 = vpop.f32.mrb[0].mxu0
  %v9574 = vpop.f32.mrb[0].mxu0
  %v9575 = vadd.f32 %v9431, %v9574
  %v9576 = vpop.f32.mrb[0].mxu0
  %9577 = vmatprep.mubr.bf16.mxu0 0
  %9578 = vmatmul.mubr.bf16.gmra.mrb[0].mxu0 %v9458
  %v9579 = vpop.f32.mrb[0].mxu0
  %v9580 = vadd.f32 %v9431, %v9579
  %v9581 = vpop.f32.mrb[0].mxu0
  %v9582 = vpop.f32.mrb[0].mxu0
  %v9583 = vadd.f32 %v9431, %v9582
  %v9584 = vpop.f32.mrb[0].mxu0
  %9585 = vmatprep.mubr.bf16.mxu0 0
  %9586 = vmatmul.mubr.bf16.gmra.mrb[0].mxu0 %v9461
  %v9587 = vpop.f32.mrb[0].mxu0
  %v9588 = vadd.f32 %v9431, %v9587
  %v9589 = vpop.f32.mrb[0].mxu0
  %v9590 = vpop.f32.mrb[0].mxu0
  %v9591 = vadd.f32 %v9431, %v9590
  %v9592 = vpop.f32.mrb[0].mxu0
  %9593 = vmatprep.mubr.bf16.mxu0 0
  %9594 = vmatmul.mubr.bf16.gmra.mrb[0].mxu0 %v9464
  %v9595 = vpop.f32.mrb[0].mxu0
  %v9596 = vadd.f32 %v9431, %v9595
  %v9597 = vpop.f32.mrb[0].mxu0
  %v9598 = vpop.f32.mrb[0].mxu0
  %v9599 = vadd.f32 %v9431, %v9598
  %v9600 = vpop.f32.mrb[0].mxu0
  %9601 = vmatprep.mubr.bf16.mxu0 0
  %9602 = vmatmul.mubr.bf16.gmra.mrb[0].mxu0 %v9467
  %v9603 = vpop.f32.mrb[0].mxu0
  %v9604 = vadd.f32 %v9431, %v9603
  %v9605 = vpop.f32.mrb[0].mxu0
  %v9606 = vpop.f32.mrb[0].mxu0
  %v9607 = vadd.f32 %v9431, %v9606
  %v9608 = vpop.f32.mrb[0].mxu0
  %9609 = vmatprep.mubr.bf16.mxu0 0
  %9610 = vmatmul.mubr.bf16.gmra.mrb[0].mxu0 %v9470
  %v9611 = vpop.f32.mrb[0].mxu0
  %v9612 = vadd.f32 %v9431, %v9611
  %v9613 = vpop.f32.mrb[0].mxu0
  %v9614 = vpop.f32.mrb[0].mxu0
  %v9615 = vadd.f32 %v9431, %v9614
  %v9616 = vpop.f32.mrb[0].mxu0
  %9617 = vmatprep.mubr.bf16.mxu0 0
  %9618 = vmatmul.mubr.bf16.gmra.mrb[0].mxu0 %v9473
  %v9619 = vpop.f32.mrb[0].mxu0
  %v9620 = vadd.f32 %v9431, %v9619
  %v9621 = vpop.f32.mrb[0].mxu0
  %v9622 = vpop.f32.mrb[0].mxu0
  %v9623 = vadd.f32 %v9431, %v9622
  %v9624 = vpop.f32.mrb[0].mxu0
  %9625 = vmatprep.mubr.bf16.mxu0 0
  %9626 = vmatmul.mubr.bf16.gmra.mrb[0].mxu0 %v9476
  %v9627 = vpop.f32.mrb[0].mxu0
  %v9628 = vadd.f32 %v9431, %v9627
  %v9629 = vpop.f32.mrb[0].mxu0
  %v9630 = vpop.f32.mrb[0].mxu0
  %v9631 = vadd.f32 %v9431, %v9630
  %v9632 = vpop.f32.mrb[0].mxu0
  %9633 = vmatprep.mubr.bf16.mxu0 0
  %9634 = vmatmul.mubr.bf16.gmra.mrb[0].mxu0 %v9479
  %v9635 = vpop.f32.mrb[0].mxu0
  %v9636 = vadd.f32 %v9431, %v9635
  %v9637 = vpop.f32.mrb[0].mxu0
  %v9638 = vpop.f32.mrb[0].mxu0
  %v9639 = vadd.f32 %v9431, %v9638
  %v9640 = vpop.f32.mrb[0].mxu0
  %9641 = vdwg.mxu0
  %s9642 = scalar_lea.vmem %s7, 256
  %9643 = vst [vmem:[%s9642] sm:$0xff] %v9516
  %9644 = vst [vmem:[%s9642 + $0x8] sm:$0xff] %v9519
  %9645 = vst [vmem:[%s9642 + $0x10] sm:$0xff] %v9524
  %9646 = vst [vmem:[%s9642 + $0x18] sm:$0xff] %v9527
  %9647 = vst [vmem:[%s9642 + $0x20] sm:$0xff] %v9532
  %9648 = vst [vmem:[%s9642 + $0x28] sm:$0xff] %v9535
  %9649 = vst [vmem:[%s9642 + $0x30] sm:$0xff] %v9540
  %9650 = vst [vmem:[%s9642 + $0x38] sm:$0xff] %v9543
  %9651 = vst [vmem:[%s9642 + $0x40] sm:$0xff] %v9548
  %9652 = vst [vmem:[%s9642 + $0x48] sm:$0xff] %v9551
  %9653 = vst [vmem:[%s9642 + $0x50] sm:$0xff] %v9556
  %9654 = vst [vmem:[%s9642 + $0x58] sm:$0xff] %v9559
  %9655 = vst [vmem:[%s9642 + $0x60] sm:$0xff] %v9564
  %9656 = vst [vmem:[%s9642 + $0x68] sm:$0xff] %v9567
  %9657 = vst [vmem:[%s9642 + $0x70] sm:$0xff] %v9572
  %9658 = vst [vmem:[%s9642 + $0x78] sm:$0xff] %v9575
  %9659 = vst [vmem:[%s9642 + $0x80] sm:$0xff] %v9580
  %9660 = vst [vmem:[%s9642 + $0x88] sm:$0xff] %v9583
  %9661 = vst [vmem:[%s9642 + $0x90] sm:$0xff] %v9588
  %9662 = vst [vmem:[%s9642 + $0x98] sm:$0xff] %v9591
  %9663 = vst [vmem:[%s9642 + $0xa0] sm:$0xff] %v9596
  %9664 = vst [vmem:[%s9642 + $0xa8] sm:$0xff] %v9599
  %9665 = vst [vmem:[%s9642 + $0xb0] sm:$0xff] %v9604
  %9666 = vst [vmem:[%s9642 + $0xb8] sm:$0xff] %v9607
  %9667 = vst [vmem:[%s9642 + $0xc0] sm:$0xff] %v9612
  %9668 = vst [vmem:[%s9642 + $0xc8] sm:$0xff] %v9615
  %9669 = vst [vmem:[%s9642 + $0xd0] sm:$0xff] %v9620
  %9670 = vst [vmem:[%s9642 + $0xd8] sm:$0xff] %v9623
  %9671 = vst [vmem:[%s9642 + $0xe0] sm:$0xff] %v9628
  %9672 = vst [vmem:[%s9642 + $0xe8] sm:$0xff] %v9631
  %9673 = vst [vmem:[%s9642 + $0xf0] sm:$0xff] %v9636
  %9674 = vst [vmem:[%s9642 + $0xf8] sm:$0xff] %v9639
  // Predicated region
  $region30: #{range_branch.1} parent=0 // pred_check
    _
  $region31: #{range_branch.1} parent=0 // pred_check_branch
    %9676 = sbr.rel (0) target = $region33
  $region32: #{range_branch.1} parent=0 // pred_region
    _
  $region33: #{range_branch.1} parent=0 // pred_fallthru
    _
  // Predicated region
  $region34: #{range_branch.1} parent=0 // pred_check
    _
  $region35: #{range_branch.1} parent=0 // pred_check_branch
    %9678 = sbr.rel (0) target = $region37
  $region36: #{range_branch.1} parent=0 // pred_region
    _
  $region37: #{range_branch.1} parent=0 // pred_fallthru
    _

</llo_original>
